<compile_context>
chip_gen: v7x
topology: tpu7x:2x2x1
jax: 0.10.0
libtpu: 0.0.40
codegen_flags: <defaults>
</compile_context>

<pallas_src>
import math

import jax
import jax.numpy as jnp
from jax.experimental import pallas as pl
from jax.experimental.pallas import tpu as pltpu


# ----------------------------------------------------------------------------
# helpers
# ----------------------------------------------------------------------------
def _pick_tile_rows(H, WP, n_lanes):
    """Image rows per block.

    Returns a divisor TH of H such that the canvas tile (TH * WP rows) keeps the
    per-step working set (~f32 accumulator + double-buffered bf16 output) within
    ~2 MiB and keeps the sublane extent 8-aligned unless it is the full extent.
    Conservative enough for v7x's 64 MiB VMEM as well as v5e/v6e.
    """
    budget_rows = max(WP, (2 * 1024 * 1024) // (max(1, n_lanes) * 8))
    if H * WP <= budget_rows:
        return H                       # whole image per block (small shapes)
    for th in range(H - 1, 0, -1):
        if H % th == 0 and th * WP <= budget_rows and (th * WP) % 8 == 0:
            return th
    return H                           # fallback: full extent (always legal)


# ----------------------------------------------------------------------------
# Conv2d(3x3, stride=1, padding=1, bias) + per-channel sum/sumsq partials.
# Input:  canvas (N, H, W+2, Cin) bf16 (zero columns at 0 and W+1).
# Output: y      (N, H*(W+2), Cout) bf16 canvas rows (junk columns masked to 0),
#         psum / psumsq (N, 1, Cout) f32 partial statistics (sum over H*W pixels).
# ----------------------------------------------------------------------------
def _conv3x3_bias_stats_pallas(xc, w9, bias):
    N, H, WP, Cin = xc.shape
    W = WP - 2
    Cout = w9.shape[-1]
    M = H * WP                      # output canvas rows per image
    MP = (H + 4) * WP               # padded input rows per image (2 guard rows/side)

    # Only H is padded here (the W padding already lives in the canvas format).
    xp = jnp.pad(xc, ((0, 0), (2, 2), (0, 0), (0, 0))).reshape(N, MP, Cin)
    xp = xp.astype(jnp.bfloat16)

    # Cout (lane) tiling: 128-wide tiles for large channel counts.
    if Cout > 128 and Cout % 128 == 0:
        TCO = 128
    else:
        TCO = Cout
    CO = Cout // TCO

    # Row tiling of the output canvas (VMEM-budgeted, v7x-safe).
    TH = _pick_tile_rows(H, WP, TCO)
    MT = H // TH
    TM = TH * WP

    def kernel(x_ref, w_ref, b_ref, y_ref, ps_ref, psq_ref):
        m = pl.program_id(2)
        m0 = 0 if MT == 1 else m * TM        # static offset when untiled
        acc = jnp.zeros((TM, TCO), jnp.float32)
        # 9 taps formed in-kernel via row offsets on the flattened padded view:
        #   output canvas row q  <->  padded input row q + (dy+1)*WP + (dx-1)
        for dy in range(3):
            for dx in range(3):
                off = (dy + 1) * WP + (dx - 1)
                a = x_ref[0, pl.ds(m0 + off, TM), :]          # (TM, Cin) bf16
                acc = acc + jnp.dot(a, w_ref[dy * 3 + dx],    # (Cin, TCO) bf16
                                    preferred_element_type=jnp.float32)
        acc = acc + b_ref[...]                                # fused bias
        # Mask the 2 junk canvas columns (col 0 and col W+1) back to zero so the
        # canvas stays valid padding for the next layer and stats stay exact.
        col = jax.lax.broadcasted_iota(jnp.int32, (TM, 1), 0) % WP
        acc = jnp.where((col >= 1) & (col <= W), acc, 0.0)
        y_ref[0] = acc.astype(y_ref.dtype)

        # Per-(n, cout-tile) channel sum / sumsq partials, accumulated over row
        # tiles in the resident output block (train-mode BatchNorm statistics).
        @pl.when(m == 0)
        def _init():
            ps_ref[...] = jnp.zeros_like(ps_ref)
            psq_ref[...] = jnp.zeros_like(psq_ref)

        ps_ref[0] += jnp.sum(acc, axis=0, keepdims=True)
        psq_ref[0] += jnp.sum(acc * acc, axis=0, keepdims=True)

    y, ps, psq = pl.pallas_call(
        kernel,
        out_shape=(
            jax.ShapeDtypeStruct((N, M, Cout), jnp.bfloat16),
            jax.ShapeDtypeStruct((N, 1, Cout), jnp.float32),
            jax.ShapeDtypeStruct((N, 1, Cout), jnp.float32),
        ),
        grid=(CO, N, MT),
        in_specs=[
            # whole padded image stays resident across cout/row steps
            pl.BlockSpec((1, MP, Cin), lambda co, n, m: (n, 0, 0)),
            # weights / bias resident across n and row tiles
            pl.BlockSpec((9, Cin, TCO), lambda co, n, m: (0, 0, co)),
            pl.BlockSpec((1, TCO), lambda co, n, m: (0, co)),
        ],
        out_specs=(
            pl.BlockSpec((1, TM, TCO), lambda co, n, m: (n, m, co)),
            pl.BlockSpec((1, 1, TCO), lambda co, n, m: (n, 0, co)),
            pl.BlockSpec((1, 1, TCO), lambda co, n, m: (n, 0, co)),
        ),
        compiler_params=pltpu.CompilerParams(
            dimension_semantics=("parallel", "parallel", "arbitrary")),
    )(xp, w9.astype(jnp.bfloat16), bias.reshape(1, Cout).astype(jnp.float32))
    return y, ps, psq


# ----------------------------------------------------------------------------
# BatchNorm-apply (scale/shift precomputed from batch stats) + ReLU, row-tiled.
# Keeps the canvas format (re-masks the padding columns to zero).
# ----------------------------------------------------------------------------
def _bn_relu_apply_pallas(y_flat, scale, shift, WP, W):
    N, M, C = y_flat.shape           # M = H * WP
    H = M // WP
    TH = _pick_tile_rows(H, WP, C)
    RT = H // TH
    TR = TH * WP                     # multiple of WP -> column mask is tile-invariant

    def kernel(y_ref, s_ref, t_ref, o_ref):
        y = y_ref[0].astype(jnp.float32)                       # (TR, C)
        z = jnp.maximum(y * s_ref[...] + t_ref[...], 0.0)      # BN affine + ReLU
        col = jax.lax.broadcasted_iota(jnp.int32, (TR, 1), 0) % WP
        o_ref[0] = jnp.where((col >= 1) & (col <= W), z, 0.0).astype(o_ref.dtype)

    return pl.pallas_call(
        kernel,
        out_shape=jax.ShapeDtypeStruct((N, M, C), jnp.bfloat16),
        grid=(N, RT),
        in_specs=[
            pl.BlockSpec((1, TR, C), lambda n, r: (n, r, 0)),
            pl.BlockSpec((1, C), lambda n, r: (0, 0)),
            pl.BlockSpec((1, C), lambda n, r: (0, 0)),
        ],
        out_specs=pl.BlockSpec((1, TR, C), lambda n, r: (n, r, 0)),
        compiler_params=pltpu.CompilerParams(
            dimension_semantics=("parallel", "parallel")),
    )(y_flat, scale.reshape(1, C).astype(jnp.float32),
      shift.reshape(1, C).astype(jnp.float32))


# ----------------------------------------------------------------------------
# Fused conv + bias + (train-mode) BatchNorm + ReLU on the canvas format.
# ----------------------------------------------------------------------------
def conv_bn_relu_canvas(xc, w9, bias, gamma, beta, eps=1e-5):
    N, H, WP, Cin = xc.shape
    W = WP - 2
    Cout = w9.shape[-1]

    y_flat, ps, psq = _conv3x3_bias_stats_pallas(xc, w9, bias)

    # Batch statistics (biased variance, like nn.BatchNorm2d in training mode)
    # from the per-image partials -- (C,)-sized math, negligible.
    cnt = float(N * H * W)
    s = jnp.sum(ps, axis=(0, 1))
    sq = jnp.sum(psq, axis=(0, 1))
    mean = s / cnt
    var = jnp.maximum(sq / cnt - mean * mean, 0.0)
    scale = gamma * jax.lax.rsqrt(var + eps)
    shift = beta - mean * scale

    z = _bn_relu_apply_pallas(y_flat, scale, shift, WP, W)
    return z.reshape(N, H, WP, Cout)


# ----------------------------------------------------------------------------
# MaxPool2d(2,2) on the canvas format.
# TODO(synk): left to XLA fusion (strided-view max, single read+write); fusing it
# into the BN/ReLU kernel epilogue would need in-kernel stride-2 sublane slices.
# ----------------------------------------------------------------------------
def maxpool2x2_canvas(xc):
    N, H, WP, C = xc.shape
    W = WP - 2
    assert H % 2 == 0 and W % 2 == 0, "MaxPool2d(2,2) needs even spatial dims"
    x = xc[:, :, 1:W + 1, :]
    m = jnp.maximum(
        jnp.maximum(x[:, 0::2, 0::2, :], x[:, 0::2, 1::2, :]),
        jnp.maximum(x[:, 1::2, 0::2, :], x[:, 1::2, 1::2, :]))
    return jnp.pad(m, ((0, 0), (0, 0), (1, 1), (0, 0)))   # re-add zero pad columns


# ----------------------------------------------------------------------------
# Fused MLP head: y = (x @ w1 + b1) @ w2 + b2  (fc1 -> fc2, no activation),
# single Pallas kernel, everything resident in VMEM (shapes are tiny).
# ----------------------------------------------------------------------------
def mlp_head_pallas(x, w1, b1, w2, b2):
    N, K = x.shape
    Hd = w1.shape[1]
    Mo = w2.shape[1]

    def kernel(x_ref, w1_ref, b1_ref, w2_ref, b2_ref, o_ref):
        h = jnp.dot(x_ref[...], w1_ref[...],
                    preferred_element_type=jnp.float32) + b1_ref[...]
        o = jnp.dot(h, w2_ref[...],
                    preferred_element_type=jnp.float32) + b2_ref[...]
        o_ref[...] = o.astype(o_ref.dtype)

    return pl.pallas_call(
        kernel,
        out_shape=jax.ShapeDtypeStruct((N, Mo), jnp.float32),
    )(x.astype(jnp.float32),
      w1.astype(jnp.float32), b1.reshape(1, Hd).astype(jnp.float32),
      w2.astype(jnp.float32), b2.reshape(1, Mo).astype(jnp.float32))


# ----------------------------------------------------------------------------
# Parameters + forward pass (matches the PyTorch module's forward semantics).
# ----------------------------------------------------------------------------
def init_conv_params(cfg, key, in_ch=3):
    params = []
    for layer_cfg in cfg:
        if layer_cfg == 'A':
            params.append(None)
        else:
            key, k1, k2 = jax.random.split(key, 3)
            fan_in = in_ch * 9
            # weight layout (9, Cin, Cout); tap k = dy*3 + dx
            w = jax.random.normal(k1, (9, in_ch, layer_cfg),
                                  jnp.float32) / math.sqrt(fan_in)
            b = 0.1 * jax.random.normal(k2, (layer_cfg,), jnp.float32)
            gamma = jnp.ones((layer_cfg,), jnp.float32)     # BatchNorm2d defaults
            beta = jnp.zeros((layer_cfg,), jnp.float32)
            params.append((w, b, gamma, beta))
            in_ch = layer_cfg
    return params, in_ch


def init_fc_params(key, in_dim, hidden_dim, out_dim):
    k1, k2, k3, k4 = jax.random.split(key, 4)
    w1 = jax.random.normal(k1, (in_dim, hidden_dim), jnp.float32) / math.sqrt(in_dim)
    b1 = 0.01 * jax.random.normal(k2, (hidden_dim,), jnp.float32)
    w2 = jax.random.normal(k3, (hidden_dim, out_dim), jnp.float32) / math.sqrt(hidden_dim)
    b2 = 0.01 * jax.random.normal(k4, (out_dim,), jnp.float32)
    return ((w1, b1), (w2, b2))


def conv_layers_forward(x_nchw, cfg, params):
    # NCHW (PyTorch) -> channels-last canvas (bf16, zero pad columns)
    x = jnp.transpose(x_nchw, (0, 2, 3, 1)).astype(jnp.bfloat16)
    xc = jnp.pad(x, ((0, 0), (0, 0), (1, 1), (0, 0)))
    for layer_cfg, p in zip(cfg, params):
        if layer_cfg == 'A':
            xc = maxpool2x2_canvas(xc)
        else:
            w, b, gamma, beta = p
            xc = conv_bn_relu_canvas(xc, w, b, gamma, beta)
    W = xc.shape[2] - 2
    out = xc[:, :, 1:W + 1, :]                       # crop canvas -> NHWC
    return jnp.transpose(out, (0, 3, 1, 2)).astype(jnp.float32)   # NCHW
    # TODO(synk): BatchNorm running_mean/running_var momentum buffers are not
    # materialized (they do not affect the training-mode forward output).


def vgg_forward(x_nchw, cfg, conv_params, fc_params):
    feat = conv_layers_forward(x_nchw, cfg, conv_params)   # (N, C, Hf, Wf)
    n = feat.shape[0]
    yflat = feat.reshape(n, -1)                            # NCHW flatten (like .view)
    (w1, b1), (w2, b2) = fc_params
    return mlp_head_pallas(yflat, w1, b1, w2, b2)          # fused fc1 -> fc2


if __name__ == "__main__":
    # Small config: conv(3->8)+BN+ReLU, pool, conv(8->16)+BN+ReLU, pool.
    cfg = [8, 'A', 16, 'A']
    H = W = 16
    key = jax.random.PRNGKey(0)
    key, pkey, fkey, xkey = jax.random.split(key, 4)

    conv_params, out_ch = init_conv_params(cfg, pkey)
    n_pool = cfg.count('A')
    flatten_features = out_ch * (H // 2 ** n_pool) * (W // 2 ** n_pool)  # 16*4*4=256
    # (The reference hard-codes 512 for its canonical cfg; derived here instead.)
    fc_params = init_fc_params(fkey, flatten_features, 100, 10)

    x = jax.random.normal(xkey, (2, 3, H, W), jnp.float32)   # NCHW like PyTorch

    fwd = jax.jit(lambda inp: vgg_forward(inp, cfg, conv_params, fc_params))
    y = fwd(x)
    jax.block_until_ready(y)

    assert y.shape == (2, 10), y.shape
    assert bool(jnp.all(jnp.isfinite(y))), "non-finite output"
    print("KERNEL_OK")
</pallas_src>

<mosaic_0001>
module attributes {stable_mosaic.version = 11 : i64} {
  func.func @kernel(%arg0: i32, %arg1: i32, %arg2: memref<1x288x8xbf16, #tpu.memory_space<vmem>>, %arg3: memref<1x8xf32, #tpu.memory_space<vmem>>, %arg4: memref<1x8xf32, #tpu.memory_space<vmem>>, %arg5: memref<1x288x8xbf16, #tpu.memory_space<vmem>>) attributes {dimension_semantics = [#tpu.dimension_semantics<parallel>, #tpu.dimension_semantics<parallel>], iteration_bounds = array<i64: 2, 1>, scalar_prefetch = 0 : i64, scratch_operands = 0 : i64, tpu.core_type = #tpu.core_type<tc>, window_params = [{transform_indices = @transform_0, window_bounds = array<i64: 1, 288, 8>}, {pipeline_mode = #tpu.pipeline_mode<synchronous>, transform_indices = @transform_1, window_bounds = array<i64: 1, 8>}, {pipeline_mode = #tpu.pipeline_mode<synchronous>, transform_indices = @transform_2, window_bounds = array<i64: 1, 8>}, {transform_indices = @transform_3, window_bounds = array<i64: 1, 288, 8>}]} {
    %c0 = arith.constant 0 : index
    %c0_0 = arith.constant 0 : index
    %c0_1 = arith.constant 0 : index
    %0 = vector.load %arg2[%c0, %c0_0, %c0_1] : memref<1x288x8xbf16, #tpu.memory_space<vmem>>, vector<1x288x8xbf16>
    %1 = vector.shape_cast %0 : vector<1x288x8xbf16> to vector<288x8xbf16>
    %2 = arith.extf %1 : vector<288x8xbf16> to vector<288x8xf32>
    %c0_2 = arith.constant 0 : index
    %c0_3 = arith.constant 0 : index
    %3 = vector.load %arg3[%c0_2, %c0_3] : memref<1x8xf32, #tpu.memory_space<vmem>>, vector<1x8xf32>
    %4 = vector.broadcast %3 : vector<1x8xf32> to vector<288x8xf32>
    %5 = arith.mulf %2, %4 : vector<288x8xf32>
    %c0_4 = arith.constant 0 : index
    %c0_5 = arith.constant 0 : index
    %6 = vector.load %arg4[%c0_4, %c0_5] : memref<1x8xf32, #tpu.memory_space<vmem>>, vector<1x8xf32>
    %7 = vector.broadcast %6 : vector<1x8xf32> to vector<288x8xf32>
    %8 = arith.addf %5, %7 : vector<288x8xf32>
    %cst = arith.constant 0.000000e+00 : f32
    %9 = vector.broadcast %cst : f32 to vector<288x8xf32>
    %10 = arith.maximumf %8, %9 : vector<288x8xf32>
    %11 = tpu.iota {dimensions = array<i32: 0>} : vector<288x1xi32>
    %c18_i32 = arith.constant 18 : i32
    %c0_i32 = arith.constant 0 : i32
    %12 = arith.cmpi eq, %c18_i32, %c0_i32 : i32
    %c1_i32 = arith.constant 1 : i32
    %13 = arith.select %12, %c1_i32, %c18_i32 : i32
    %14 = vector.broadcast %13 : i32 to vector<288x1xi32>
    %15 = arith.remsi %11, %14 : vector<288x1xi32>
    %c0_i32_6 = arith.constant 0 : i32
    %16 = vector.broadcast %c0_i32_6 : i32 to vector<288x1xi32>
    %17 = arith.cmpi ne, %15, %16 : vector<288x1xi32>
    %c0_i32_7 = arith.constant 0 : i32
    %18 = vector.broadcast %c0_i32_7 : i32 to vector<288x1xi32>
    %19 = arith.cmpi slt, %15, %18 : vector<288x1xi32>
    %c0_i32_8 = arith.constant 0 : i32
    %20 = arith.cmpi slt, %13, %c0_i32_8 : i32
    %21 = vector.broadcast %20 : i1 to vector<288x1xi1>
    %22 = vector.broadcast %21 : vector<288x1xi1> to vector<288x1xi1>
    %23 = arith.xori %19, %22 : vector<288x1xi1>
    %24 = arith.andi %23, %17 : vector<288x1xi1>
    %25 = vector.broadcast %13 : i32 to vector<288x1xi32>
    %26 = arith.addi %15, %25 : vector<288x1xi32>
    %27 = arith.select %24, %26, %15 : vector<288x1xi1>, vector<288x1xi32>
    %c1_i32_9 = arith.constant 1 : i32
    %28 = vector.broadcast %c1_i32_9 : i32 to vector<288x1xi32>
    %29 = arith.cmpi sge, %27, %28 : vector<288x1xi32>
    %c16_i32 = arith.constant 16 : i32
    %30 = vector.broadcast %c16_i32 : i32 to vector<288x1xi32>
    %31 = arith.cmpi sle, %27, %30 : vector<288x1xi32>
    %32 = arith.andi %29, %31 : vector<288x1xi1>
    %cst_10 = arith.constant 0.000000e+00 : f32
    %33 = vector.shape_cast %32 : vector<288x1xi1> to vector<288x1xi1>
    %34 = vector.broadcast %33 : vector<288x1xi1> to vector<288x8xi1>
    %35 = vector.broadcast %cst_10 : f32 to vector<288x8xf32>
    %36 = arith.select %34, %10, %35 : vector<288x8xi1>, vector<288x8xf32>
    %37 = arith.truncf %36 : vector<288x8xf32> to vector<288x8xbf16>
    %c0_11 = arith.constant 0 : index
    %c0_12 = arith.constant 0 : index
    %c0_13 = arith.constant 0 : index
    %38 = vector.load %arg5[%c0_11, %c0_12, %c0_13] : memref<1x288x8xbf16, #tpu.memory_space<vmem>>, vector<1x288x8xbf16>
    %39 = vector.shape_cast %38 : vector<1x288x8xbf16> to vector<288x8xbf16>
    %40 = vector.shape_cast %37 : vector<288x8xbf16> to vector<1x288x8xbf16>
    tpu.vector_store %arg5[%c0_11, %c0_12, %c0_13], %40 {strides = array<i32>} : memref<1x288x8xbf16, #tpu.memory_space<vmem>>, vector<1x288x8xbf16>,
    return
  }
  func.func @transform_0(%arg0: i32, %arg1: i32) -> (i32, i32, i32) {
    %c0_i32 = arith.constant 0 : i32
    %c0_i32_0 = arith.constant 0 : i32
    return %arg0, %arg1, %c0_i32 : i32, i32, i32
  }
  func.func @transform_1(%arg0: i32, %arg1: i32) -> (i32, i32) {
    %c0_i32 = arith.constant 0 : i32
    %c0_i32_0 = arith.constant 0 : i32
    %c0_i32_1 = arith.constant 0 : i32
    return %c0_i32, %c0_i32_0 : i32, i32
  }
  func.func @transform_2(%arg0: i32, %arg1: i32) -> (i32, i32) {
    %c0_i32 = arith.constant 0 : i32
    %c0_i32_0 = arith.constant 0 : i32
    %c0_i32_1 = arith.constant 0 : i32
    return %c0_i32, %c0_i32_0 : i32, i32
  }
  func.func @transform_3(%arg0: i32, %arg1: i32) -> (i32, i32, i32) {
    %c0_i32 = arith.constant 0 : i32
    %c0_i32_0 = arith.constant 0 : i32
    return %arg0, %arg1, %c0_i32 : i32, i32, i32
  }
}

module attributes {stable_mosaic.version = 11 : i64} {
  func.func @kernel(%arg0: i32, %arg1: i32, %arg2: i32, %arg3: memref<1x360x3xbf16, #tpu.memory_space<vmem>>, %arg4: memref<9x3x8xbf16, #tpu.memory_space<vmem>>, %arg5: memref<1x8xf32, #tpu.memory_space<vmem>>, %arg6: memref<1x288x8xbf16, #tpu.memory_space<vmem>>, %arg7: memref<1x1x8xf32, #tpu.memory_space<vmem>>, %arg8: memref<1x1x8xf32, #tpu.memory_space<vmem>>) attributes {dimension_semantics = [#tpu.dimension_semantics<parallel>, #tpu.dimension_semantics<parallel>, #tpu.dimension_semantics<arbitrary>], iteration_bounds = array<i64: 1, 2, 1>, scalar_prefetch = 0 : i64, scratch_operands = 0 : i64, tpu.core_type = #tpu.core_type<tc>, window_params = [{transform_indices = @transform_0, window_bounds = array<i64: 1, 360, 3>}, {transform_indices = @transform_1, window_bounds = array<i64: 9, 3, 8>}, {transform_indices = @transform_2, window_bounds = array<i64: 1, 8>}, {transform_indices = @transform_3, window_bounds = array<i64: 1, 288, 8>}, {transform_indices = @transform_4, window_bounds = array<i64: 1, 1, 8>}, {transform_indices = @transform_5, window_bounds = array<i64: 1, 1, 8>}]} {
    %cst = arith.constant 0.000000e+00 : f32
    %0 = vector.broadcast %cst : f32 to vector<288x8xf32>
    %c0 = arith.constant 0 : index
    %c17 = arith.constant 17 : index
    %c0_0 = arith.constant 0 : index
    %1 = vector.load %arg3[%c0, %c17, %c0_0] : memref<1x360x3xbf16, #tpu.memory_space<vmem>>, vector<1x288x3xbf16>
    %2 = vector.shape_cast %1 : vector<1x288x3xbf16> to vector<288x3xbf16>
    %c0_1 = arith.constant 0 : index
    %c0_2 = arith.constant 0 : index
    %c0_3 = arith.constant 0 : index
    %3 = vector.load %arg4[%c0_1, %c0_2, %c0_3] : memref<9x3x8xbf16, #tpu.memory_space<vmem>>, vector<1x3x8xbf16>
    %4 = vector.shape_cast %3 : vector<1x3x8xbf16> to vector<3x8xbf16>
    %cst_4 = arith.constant dense<0.000000e+00> : vector<288x8xf32>
    %5 = tpu.matmul %2, %4, %cst_4 {dimension_numbers = #tpu.dot_dimension_numbers<[1], [0], [0], [1], [0, 0, 1, 1], [], []>} : vector<288x3xbf16>, vector<3x8xbf16>, vector<288x8xf32> -> vector<288x8xf32>
    %6 = arith.addf %0, %5 : vector<288x8xf32>
    %c0_5 = arith.constant 0 : index
    %c18 = arith.constant 18 : index
    %c0_6 = arith.constant 0 : index
    %7 = vector.load %arg3[%c0_5, %c18, %c0_6] : memref<1x360x3xbf16, #tpu.memory_space<vmem>>, vector<1x288x3xbf16>
    %8 = vector.shape_cast %7 : vector<1x288x3xbf16> to vector<288x3xbf16>
    %c1 = arith.constant 1 : index
    %c0_7 = arith.constant 0 : index
    %c0_8 = arith.constant 0 : index
    %9 = vector.load %arg4[%c1, %c0_7, %c0_8] : memref<9x3x8xbf16, #tpu.memory_space<vmem>>, vector<1x3x8xbf16>
    %10 = vector.shape_cast %9 : vector<1x3x8xbf16> to vector<3x8xbf16>
    %cst_9 = arith.constant dense<0.000000e+00> : vector<288x8xf32>
    %11 = tpu.matmul %8, %10, %cst_9 {dimension_numbers = #tpu.dot_dimension_numbers<[1], [0], [0], [1], [0, 0, 1, 1], [], []>} : vector<288x3xbf16>, vector<3x8xbf16>, vector<288x8xf32> -> vector<288x8xf32>
    %12 = arith.addf %6, %11 : vector<288x8xf32>
    %c0_10 = arith.constant 0 : index
    %c19 = arith.constant 19 : index
    %c0_11 = arith.constant 0 : index
    %13 = vector.load %arg3[%c0_10, %c19, %c0_11] : memref<1x360x3xbf16, #tpu.memory_space<vmem>>, vector<1x288x3xbf16>
    %14 = vector.shape_cast %13 : vector<1x288x3xbf16> to vector<288x3xbf16>
    %c2 = arith.constant 2 : index
    %c0_12 = arith.constant 0 : index
    %c0_13 = arith.constant 0 : index
    %15 = vector.load %arg4[%c2, %c0_12, %c0_13] : memref<9x3x8xbf16, #tpu.memory_space<vmem>>, vector<1x3x8xbf16>
    %16 = vector.shape_cast %15 : vector<1x3x8xbf16> to vector<3x8xbf16>
    %cst_14 = arith.constant dense<0.000000e+00> : vector<288x8xf32>
    %17 = tpu.matmul %14, %16, %cst_14 {dimension_numbers = #tpu.dot_dimension_numbers<[1], [0], [0], [1], [0, 0, 1, 1], [], []>} : vector<288x3xbf16>, vector<3x8xbf16>, vector<288x8xf32> -> vector<288x8xf32>
    %18 = arith.addf %12, %17 : vector<288x8xf32>
    %c0_15 = arith.constant 0 : index
    %c35 = arith.constant 35 : index
    %c0_16 = arith.constant 0 : index
    %19 = vector.load %arg3[%c0_15, %c35, %c0_16] : memref<1x360x3xbf16, #tpu.memory_space<vmem>>, vector<1x288x3xbf16>
    %20 = vector.shape_cast %19 : vector<1x288x3xbf16> to vector<288x3xbf16>
    %c3 = arith.constant 3 : index
    %c0_17 = arith.constant 0 : index
    %c0_18 = arith.constant 0 : index
    %21 = vector.load %arg4[%c3, %c0_17, %c0_18] : memref<9x3x8xbf16, #tpu.memory_space<vmem>>, vector<1x3x8xbf16>
    %22 = vector.shape_cast %21 : vector<1x3x8xbf16> to vector<3x8xbf16>
    %cst_19 = arith.constant dense<0.000000e+00> : vector<288x8xf32>
    %23 = tpu.matmul %20, %22, %cst_19 {dimension_numbers = #tpu.dot_dimension_numbers<[1], [0], [0], [1], [0, 0, 1, 1], [], []>} : vector<288x3xbf16>, vector<3x8xbf16>, vector<288x8xf32> -> vector<288x8xf32>
    %24 = arith.addf %18, %23 : vector<288x8xf32>
    %c0_20 = arith.constant 0 : index
    %c36 = arith.constant 36 : index
    %c0_21 = arith.constant 0 : index
    %25 = vector.load %arg3[%c0_20, %c36, %c0_21] : memref<1x360x3xbf16, #tpu.memory_space<vmem>>, vector<1x288x3xbf16>
    %26 = vector.shape_cast %25 : vector<1x288x3xbf16> to vector<288x3xbf16>
    %c4 = arith.constant 4 : index
    %c0_22 = arith.constant 0 : index
    %c0_23 = arith.constant 0 : index
    %27 = vector.load %arg4[%c4, %c0_22, %c0_23] : memref<9x3x8xbf16, #tpu.memory_space<vmem>>, vector<1x3x8xbf16>
    %28 = vector.shape_cast %27 : vector<1x3x8xbf16> to vector<3x8xbf16>
    %cst_24 = arith.constant dense<0.000000e+00> : vector<288x8xf32>
    %29 = tpu.matmul %26, %28, %cst_24 {dimension_numbers = #tpu.dot_dimension_numbers<[1], [0], [0], [1], [0, 0, 1, 1], [], []>} : vector<288x3xbf16>, vector<3x8xbf16>, vector<288x8xf32> -> vector<288x8xf32>
    %30 = arith.addf %24, %29 : vector<288x8xf32>
    %c0_25 = arith.constant 0 : index
    %c37 = arith.constant 37 : index
    %c0_26 = arith.constant 0 : index
    %31 = vector.load %arg3[%c0_25, %c37, %c0_26] : memref<1x360x3xbf16, #tpu.memory_space<vmem>>, vector<1x288x3xbf16>
    %32 = vector.shape_cast %31 : vector<1x288x3xbf16> to vector<288x3xbf16>
    %c5 = arith.constant 5 : index
    %c0_27 = arith.constant 0 : index
    %c0_28 = arith.constant 0 : index
    %33 = vector.load %arg4[%c5, %c0_27, %c0_28] : memref<9x3x8xbf16, #tpu.memory_space<vmem>>, vector<1x3x8xbf16>
    %34 = vector.shape_cast %33 : vector<1x3x8xbf16> to vector<3x8xbf16>
    %cst_29 = arith.constant dense<0.000000e+00> : vector<288x8xf32>
    %35 = tpu.matmul %32, %34, %cst_29 {dimension_numbers = #tpu.dot_dimension_numbers<[1], [0], [0], [1], [0, 0, 1, 1], [], []>} : vector<288x3xbf16>, vector<3x8xbf16>, vector<288x8xf32> -> vector<288x8xf32>
    %36 = arith.addf %30, %35 : vector<288x8xf32>
    %c0_30 = arith.constant 0 : index
    %c53 = arith.constant 53 : index
    %c0_31 = arith.constant 0 : index
    %37 = vector.load %arg3[%c0_30, %c53, %c0_31] : memref<1x360x3xbf16, #tpu.memory_space<vmem>>, vector<1x288x3xbf16>
    %38 = vector.shape_cast %37 : vector<1x288x3xbf16> to vector<288x3xbf16>
    %c6 = arith.constant 6 : index
    %c0_32 = arith.constant 0 : index
    %c0_33 = arith.constant 0 : index
    %39 = vector.load %arg4[%c6, %c0_32, %c0_33] : memref<9x3x8xbf16, #tpu.memory_space<vmem>>, vector<1x3x8xbf16>
    %40 = vector.shape_cast %39 : vector<1x3x8xbf16> to vector<3x8xbf16>
    %cst_34 = arith.constant dense<0.000000e+00> : vector<288x8xf32>
    %41 = tpu.matmul %38, %40, %cst_34 {dimension_numbers = #tpu.dot_dimension_numbers<[1], [0], [0], [1], [0, 0, 1, 1], [], []>} : vector<288x3xbf16>, vector<3x8xbf16>, vector<288x8xf32> -> vector<288x8xf32>
    %42 = arith.addf %36, %41 : vector<288x8xf32>
    %c0_35 = arith.constant 0 : index
    %c54 = arith.constant 54 : index
    %c0_36 = arith.constant 0 : index
    %43 = vector.load %arg3[%c0_35, %c54, %c0_36] : memref<1x360x3xbf16, #tpu.memory_space<vmem>>, vector<1x288x3xbf16>
    %44 = vector.shape_cast %43 : vector<1x288x3xbf16> to vector<288x3xbf16>
    %c7 = arith.constant 7 : index
    %c0_37 = arith.constant 0 : index
    %c0_38 = arith.constant 0 : index
    %45 = vector.load %arg4[%c7, %c0_37, %c0_38] : memref<9x3x8xbf16, #tpu.memory_space<vmem>>, vector<1x3x8xbf16>
    %46 = vector.shape_cast %45 : vector<1x3x8xbf16> to vector<3x8xbf16>
    %cst_39 = arith.constant dense<0.000000e+00> : vector<288x8xf32>
    %47 = tpu.matmul %44, %46, %cst_39 {dimension_numbers = #tpu.dot_dimension_numbers<[1], [0], [0], [1], [0, 0, 1, 1], [], []>} : vector<288x3xbf16>, vector<3x8xbf16>, vector<288x8xf32> -> vector<288x8xf32>
    %48 = arith.addf %42, %47 : vector<288x8xf32>
    %c0_40 = arith.constant 0 : index
    %c55 = arith.constant 55 : index
    %c0_41 = arith.constant 0 : index
    %49 = vector.load %arg3[%c0_40, %c55, %c0_41] : memref<1x360x3xbf16, #tpu.memory_space<vmem>>, vector<1x288x3xbf16>
    %50 = vector.shape_cast %49 : vector<1x288x3xbf16> to vector<288x3xbf16>
    %c8 = arith.constant 8 : index
    %c0_42 = arith.constant 0 : index
    %c0_43 = arith.constant 0 : index
    %51 = vector.load %arg4[%c8, %c0_42, %c0_43] : memref<9x3x8xbf16, #tpu.memory_space<vmem>>, vector<1x3x8xbf16>
    %52 = vector.shape_cast %51 : vector<1x3x8xbf16> to vector<3x8xbf16>
    %cst_44 = arith.constant dense<0.000000e+00> : vector<288x8xf32>
    %53 = tpu.matmul %50, %52, %cst_44 {dimension_numbers = #tpu.dot_dimension_numbers<[1], [0], [0], [1], [0, 0, 1, 1], [], []>} : vector<288x3xbf16>, vector<3x8xbf16>, vector<288x8xf32> -> vector<288x8xf32>
    %54 = arith.addf %48, %53 : vector<288x8xf32>
    %c0_45 = arith.constant 0 : index
    %c0_46 = arith.constant 0 : index
    %55 = vector.load %arg5[%c0_45, %c0_46] : memref<1x8xf32, #tpu.memory_space<vmem>>, vector<1x8xf32>
    %56 = vector.broadcast %55 : vector<1x8xf32> to vector<288x8xf32>
    %57 = arith.addf %54, %56 : vector<288x8xf32>
    %58 = tpu.iota {dimensions = array<i32: 0>} : vector<288x1xi32>
    %c18_i32 = arith.constant 18 : i32
    %c0_i32 = arith.constant 0 : i32
    %59 = arith.cmpi eq, %c18_i32, %c0_i32 : i32
    %c1_i32 = arith.constant 1 : i32
    %60 = arith.select %59, %c1_i32, %c18_i32 : i32
    %61 = vector.broadcast %60 : i32 to vector<288x1xi32>
    %62 = arith.remsi %58, %61 : vector<288x1xi32>
    %c0_i32_47 = arith.constant 0 : i32
    %63 = vector.broadcast %c0_i32_47 : i32 to vector<288x1xi32>
    %64 = arith.cmpi ne, %62, %63 : vector<288x1xi32>
    %c0_i32_48 = arith.constant 0 : i32
    %65 = vector.broadcast %c0_i32_48 : i32 to vector<288x1xi32>
    %66 = arith.cmpi slt, %62, %65 : vector<288x1xi32>
    %c0_i32_49 = arith.constant 0 : i32
    %67 = arith.cmpi slt, %60, %c0_i32_49 : i32
    %68 = vector.broadcast %67 : i1 to vector<288x1xi1>
    %69 = vector.broadcast %68 : vector<288x1xi1> to vector<288x1xi1>
    %70 = arith.xori %66, %69 : vector<288x1xi1>
    %71 = arith.andi %70, %64 : vector<288x1xi1>
    %72 = vector.broadcast %60 : i32 to vector<288x1xi32>
    %73 = arith.addi %62, %72 : vector<288x1xi32>
    %74 = arith.select %71, %73, %62 : vector<288x1xi1>, vector<288x1xi32>
    %c1_i32_50 = arith.constant 1 : i32
    %75 = vector.broadcast %c1_i32_50 : i32 to vector<288x1xi32>
    %76 = arith.cmpi sge, %74, %75 : vector<288x1xi32>
    %c16_i32 = arith.constant 16 : i32
    %77 = vector.broadcast %c16_i32 : i32 to vector<288x1xi32>
    %78 = arith.cmpi sle, %74, %77 : vector<288x1xi32>
    %79 = arith.andi %76, %78 : vector<288x1xi1>
    %cst_51 = arith.constant 0.000000e+00 : f32
    %80 = vector.shape_cast %79 : vector<288x1xi1> to vector<288x1xi1>
    %81 = vector.broadcast %80 : vector<288x1xi1> to vector<288x8xi1>
    %82 = vector.broadcast %cst_51 : f32 to vector<288x8xf32>
    %83 = arith.select %81, %57, %82 : vector<288x8xi1>, vector<288x8xf32>
    %84 = arith.truncf %83 : vector<288x8xf32> to vector<288x8xbf16>
    %c0_52 = arith.constant 0 : index
    %c0_53 = arith.constant 0 : index
    %c0_54 = arith.constant 0 : index
    %85 = vector.load %arg6[%c0_52, %c0_53, %c0_54] : memref<1x288x8xbf16, #tpu.memory_space<vmem>>, vector<1x288x8xbf16>
    %86 = vector.shape_cast %85 : vector<1x288x8xbf16> to vector<288x8xbf16>
    %87 = vector.shape_cast %84 : vector<288x8xbf16> to vector<1x288x8xbf16>
    tpu.vector_store %arg6[%c0_52, %c0_53, %c0_54], %87 {strides = array<i32>} : memref<1x288x8xbf16, #tpu.memory_space<vmem>>, vector<1x288x8xbf16>,
    %c0_i32_55 = arith.constant 0 : i32
    %88 = arith.cmpi eq, %arg2, %c0_i32_55 : i32
    %89 = arith.extui %88 : i1 to i32
    %c0_i32_56 = arith.constant 0 : i32
    %90 = arith.cmpi ne, %89, %c0_i32_56 : i32
    scf.if %90 {
      %cst_71 = arith.constant 0.000000e+00 : f32
      %108 = vector.broadcast %cst_71 : f32 to vector<1x1x8xf32>
      %c0_72 = arith.constant 0 : index
      %c0_73 = arith.constant 0 : index
      %c0_74 = arith.constant 0 : index
      %109 = vector.load %arg7[%c0_72, %c0_73, %c0_74] : memref<1x1x8xf32, #tpu.memory_space<vmem>>, vector<1x1x8xf32>
      tpu.vector_store %arg7[%c0_72, %c0_73, %c0_74], %108 {strides = array<i32>} : memref<1x1x8xf32, #tpu.memory_space<vmem>>, vector<1x1x8xf32>,
      %cst_75 = arith.constant 0.000000e+00 : f32
      %110 = vector.broadcast %cst_75 : f32 to vector<1x1x8xf32>
      %c0_76 = arith.constant 0 : index
      %c0_77 = arith.constant 0 : index
      %c0_78 = arith.constant 0 : index
      %111 = vector.load %arg8[%c0_76, %c0_77, %c0_78] : memref<1x1x8xf32, #tpu.memory_space<vmem>>, vector<1x1x8xf32>
      tpu.vector_store %arg8[%c0_76, %c0_77, %c0_78], %110 {strides = array<i32>} : memref<1x1x8xf32, #tpu.memory_space<vmem>>, vector<1x1x8xf32>,
    } else {
    }
    %c0_57 = arith.constant 0 : index
    %c0_58 = arith.constant 0 : index
    %c0_59 = arith.constant 0 : index
    %91 = vector.load %arg7[%c0_57, %c0_58, %c0_59] : memref<1x1x8xf32, #tpu.memory_space<vmem>>, vector<1x1x8xf32>
    %92 = vector.shape_cast %91 : vector<1x1x8xf32> to vector<1x8xf32>
    %cst_60 = arith.constant dense<0.000000e+00> : vector<8xf32>
    %93 = vector.multi_reduction <add>, %83, %cst_60 [0] : vector<288x8xf32> to vector<8xf32>
    %94 = vector.shape_cast %93 : vector<8xf32> to vector<1x8xf32>
    %95 = arith.addf %92, %94 : vector<1x8xf32>
    %c0_61 = arith.constant 0 : index
    %c0_62 = arith.constant 0 : index
    %c0_63 = arith.constant 0 : index
    %96 = vector.load %arg7[%c0_61, %c0_62, %c0_63] : memref<1x1x8xf32, #tpu.memory_space<vmem>>, vector<1x1x8xf32>
    %97 = vector.shape_cast %96 : vector<1x1x8xf32> to vector<1x8xf32>
    %98 = vector.shape_cast %95 : vector<1x8xf32> to vector<1x1x8xf32>
    tpu.vector_store %arg7[%c0_61, %c0_62, %c0_63], %98 {strides = array<i32>} : memref<1x1x8xf32, #tpu.memory_space<vmem>>, vector<1x1x8xf32>,
    %c0_64 = arith.constant 0 : index
    %c0_65 = arith.constant 0 : index
    %c0_66 = arith.constant 0 : index
    %99 = vector.load %arg8[%c0_64, %c0_65, %c0_66] : memref<1x1x8xf32, #tpu.memory_space<vmem>>, vector<1x1x8xf32>
    %100 = vector.shape_cast %99 : vector<1x1x8xf32> to vector<1x8xf32>
    %101 = arith.mulf %83, %83 : vector<288x8xf32>
    %cst_67 = arith.constant dense<0.000000e+00> : vector<8xf32>
    %102 = vector.multi_reduction <add>, %101, %cst_67 [0] : vector<288x8xf32> to vector<8xf32>
    %103 = vector.shape_cast %102 : vector<8xf32> to vector<1x8xf32>
    %104 = arith.addf %100, %103 : vector<1x8xf32>
    %c0_68 = arith.constant 0 : index
    %c0_69 = arith.constant 0 : index
    %c0_70 = arith.constant 0 : index
    %105 = vector.load %arg8[%c0_68, %c0_69, %c0_70] : memref<1x1x8xf32, #tpu.memory_space<vmem>>, vector<1x1x8xf32>
    %106 = vector.shape_cast %105 : vector<1x1x8xf32> to vector<1x8xf32>
    %107 = vector.shape_cast %104 : vector<1x8xf32> to vector<1x1x8xf32>
    tpu.vector_store %arg8[%c0_68, %c0_69, %c0_70], %107 {strides = array<i32>} : memref<1x1x8xf32, #tpu.memory_space<vmem>>, vector<1x1x8xf32>,
    return
  }
  func.func @transform_0(%arg0: i32, %arg1: i32, %arg2: i32) -> (i32, i32, i32) {
    %c0_i32 = arith.constant 0 : i32
    %c0_i32_0 = arith.constant 0 : i32
    %c0_i32_1 = arith.constant 0 : i32
    return %arg1, %c0_i32, %c0_i32_0 : i32, i32, i32
  }
  func.func @transform_1(%arg0: i32, %arg1: i32, %arg2: i32) -> (i32, i32, i32) {
    %c0_i32 = arith.constant 0 : i32
    %c0_i32_0 = arith.constant 0 : i32
    %c0_i32_1 = arith.constant 0 : i32
    return %c0_i32, %c0_i32_0, %arg0 : i32, i32, i32
  }
  func.func @transform_2(%arg0: i32, %arg1: i32, %arg2: i32) -> (i32, i32) {
    %c0_i32 = arith.constant 0 : i32
    %c0_i32_0 = arith.constant 0 : i32
    return %c0_i32, %arg0 : i32, i32
  }
  func.func @transform_3(%arg0: i32, %arg1: i32, %arg2: i32) -> (i32, i32, i32) {
    %c0_i32 = arith.constant 0 : i32
    return %arg1, %arg2, %arg0 : i32, i32, i32
  }
  func.func @transform_4(%arg0: i32, %arg1: i32, %arg2: i32) -> (i32, i32, i32) {
    %c0_i32 = arith.constant 0 : i32
    %c0_i32_0 = arith.constant 0 : i32
    return %arg1, %c0_i32, %arg0 : i32, i32, i32
  }
  func.func @transform_5(%arg0: i32, %arg1: i32, %arg2: i32) -> (i32, i32, i32) {
    %c0_i32 = arith.constant 0 : i32
    %c0_i32_0 = arith.constant 0 : i32
    return %arg1, %c0_i32, %arg0 : i32, i32, i32
  }
}

module attributes {stable_mosaic.version = 11 : i64} {
  func.func @kernel(%arg0: i32, %arg1: i32, %arg2: i32, %arg3: memref<1x120x8xbf16, #tpu.memory_space<vmem>>, %arg4: memref<9x8x16xbf16, #tpu.memory_space<vmem>>, %arg5: memref<1x16xf32, #tpu.memory_space<vmem>>, %arg6: memref<1x80x16xbf16, #tpu.memory_space<vmem>>, %arg7: memref<1x1x16xf32, #tpu.memory_space<vmem>>, %arg8: memref<1x1x16xf32, #tpu.memory_space<vmem>>) attributes {dimension_semantics = [#tpu.dimension_semantics<parallel>, #tpu.dimension_semantics<parallel>, #tpu.dimension_semantics<arbitrary>], iteration_bounds = array<i64: 1, 2, 1>, scalar_prefetch = 0 : i64, scratch_operands = 0 : i64, tpu.core_type = #tpu.core_type<tc>, window_params = [{transform_indices = @transform_0, window_bounds = array<i64: 1, 120, 8>}, {transform_indices = @transform_1, window_bounds = array<i64: 9, 8, 16>}, {transform_indices = @transform_2, window_bounds = array<i64: 1, 16>}, {transform_indices = @transform_3, window_bounds = array<i64: 1, 80, 16>}, {transform_indices = @transform_4, window_bounds = array<i64: 1, 1, 16>}, {transform_indices = @transform_5, window_bounds = array<i64: 1, 1, 16>}]} {
    %cst = arith.constant 0.000000e+00 : f32
    %0 = vector.broadcast %cst : f32 to vector<80x16xf32>
    %c0 = arith.constant 0 : index
    %c9 = arith.constant 9 : index
    %c0_0 = arith.constant 0 : index
    %1 = vector.load %arg3[%c0, %c9, %c0_0] : memref<1x120x8xbf16, #tpu.memory_space<vmem>>, vector<1x80x8xbf16>
    %2 = vector.shape_cast %1 : vector<1x80x8xbf16> to vector<80x8xbf16>
    %c0_1 = arith.constant 0 : index
    %c0_2 = arith.constant 0 : index
    %c0_3 = arith.constant 0 : index
    %3 = vector.load %arg4[%c0_1, %c0_2, %c0_3] : memref<9x8x16xbf16, #tpu.memory_space<vmem>>, vector<1x8x16xbf16>
    %4 = vector.shape_cast %3 : vector<1x8x16xbf16> to vector<8x16xbf16>
    %cst_4 = arith.constant dense<0.000000e+00> : vector<80x16xf32>
    %5 = tpu.matmul %2, %4, %cst_4 {dimension_numbers = #tpu.dot_dimension_numbers<[1], [0], [0], [1], [0, 0, 1, 1], [], []>} : vector<80x8xbf16>, vector<8x16xbf16>, vector<80x16xf32> -> vector<80x16xf32>
    %6 = arith.addf %0, %5 : vector<80x16xf32>
    %c0_5 = arith.constant 0 : index
    %c10 = arith.constant 10 : index
    %c0_6 = arith.constant 0 : index
    %7 = vector.load %arg3[%c0_5, %c10, %c0_6] : memref<1x120x8xbf16, #tpu.memory_space<vmem>>, vector<1x80x8xbf16>
    %8 = vector.shape_cast %7 : vector<1x80x8xbf16> to vector<80x8xbf16>
    %c1 = arith.constant 1 : index
    %c0_7 = arith.constant 0 : index
    %c0_8 = arith.constant 0 : index
    %9 = vector.load %arg4[%c1, %c0_7, %c0_8] : memref<9x8x16xbf16, #tpu.memory_space<vmem>>, vector<1x8x16xbf16>
    %10 = vector.shape_cast %9 : vector<1x8x16xbf16> to vector<8x16xbf16>
    %cst_9 = arith.constant dense<0.000000e+00> : vector<80x16xf32>
    %11 = tpu.matmul %8, %10, %cst_9 {dimension_numbers = #tpu.dot_dimension_numbers<[1], [0], [0], [1], [0, 0, 1, 1], [], []>} : vector<80x8xbf16>, vector<8x16xbf16>, vector<80x16xf32> -> vector<80x16xf32>
    %12 = arith.addf %6, %11 : vector<80x16xf32>
    %c0_10 = arith.constant 0 : index
    %c11 = arith.constant 11 : index
    %c0_11 = arith.constant 0 : index
    %13 = vector.load %arg3[%c0_10, %c11, %c0_11] : memref<1x120x8xbf16, #tpu.memory_space<vmem>>, vector<1x80x8xbf16>
    %14 = vector.shape_cast %13 : vector<1x80x8xbf16> to vector<80x8xbf16>
    %c2 = arith.constant 2 : index
    %c0_12 = arith.constant 0 : index
    %c0_13 = arith.constant 0 : index
    %15 = vector.load %arg4[%c2, %c0_12, %c0_13] : memref<9x8x16xbf16, #tpu.memory_space<vmem>>, vector<1x8x16xbf16>
    %16 = vector.shape_cast %15 : vector<1x8x16xbf16> to vector<8x16xbf16>
    %cst_14 = arith.constant dense<0.000000e+00> : vector<80x16xf32>
    %17 = tpu.matmul %14, %16, %cst_14 {dimension_numbers = #tpu.dot_dimension_numbers<[1], [0], [0], [1], [0, 0, 1, 1], [], []>} : vector<80x8xbf16>, vector<8x16xbf16>, vector<80x16xf32> -> vector<80x16xf32>
    %18 = arith.addf %12, %17 : vector<80x16xf32>
    %c0_15 = arith.constant 0 : index
    %c19 = arith.constant 19 : index
    %c0_16 = arith.constant 0 : index
    %19 = vector.load %arg3[%c0_15, %c19, %c0_16] : memref<1x120x8xbf16, #tpu.memory_space<vmem>>, vector<1x80x8xbf16>
    %20 = vector.shape_cast %19 : vector<1x80x8xbf16> to vector<80x8xbf16>
    %c3 = arith.constant 3 : index
    %c0_17 = arith.constant 0 : index
    %c0_18 = arith.constant 0 : index
    %21 = vector.load %arg4[%c3, %c0_17, %c0_18] : memref<9x8x16xbf16, #tpu.memory_space<vmem>>, vector<1x8x16xbf16>
    %22 = vector.shape_cast %21 : vector<1x8x16xbf16> to vector<8x16xbf16>
    %cst_19 = arith.constant dense<0.000000e+00> : vector<80x16xf32>
    %23 = tpu.matmul %20, %22, %cst_19 {dimension_numbers = #tpu.dot_dimension_numbers<[1], [0], [0], [1], [0, 0, 1, 1], [], []>} : vector<80x8xbf16>, vector<8x16xbf16>, vector<80x16xf32> -> vector<80x16xf32>
    %24 = arith.addf %18, %23 : vector<80x16xf32>
    %c0_20 = arith.constant 0 : index
    %c20 = arith.constant 20 : index
    %c0_21 = arith.constant 0 : index
    %25 = vector.load %arg3[%c0_20, %c20, %c0_21] : memref<1x120x8xbf16, #tpu.memory_space<vmem>>, vector<1x80x8xbf16>
    %26 = vector.shape_cast %25 : vector<1x80x8xbf16> to vector<80x8xbf16>
    %c4 = arith.constant 4 : index
    %c0_22 = arith.constant 0 : index
    %c0_23 = arith.constant 0 : index
    %27 = vector.load %arg4[%c4, %c0_22, %c0_23] : memref<9x8x16xbf16, #tpu.memory_space<vmem>>, vector<1x8x16xbf16>
    %28 = vector.shape_cast %27 : vector<1x8x16xbf16> to vector<8x16xbf16>
    %cst_24 = arith.constant dense<0.000000e+00> : vector<80x16xf32>
    %29 = tpu.matmul %26, %28, %cst_24 {dimension_numbers = #tpu.dot_dimension_numbers<[1], [0], [0], [1], [0, 0, 1, 1], [], []>} : vector<80x8xbf16>, vector<8x16xbf16>, vector<80x16xf32> -> vector<80x16xf32>
    %30 = arith.addf %24, %29 : vector<80x16xf32>
    %c0_25 = arith.constant 0 : index
    %c21 = arith.constant 21 : index
    %c0_26 = arith.constant 0 : index
    %31 = vector.load %arg3[%c0_25, %c21, %c0_26] : memref<1x120x8xbf16, #tpu.memory_space<vmem>>, vector<1x80x8xbf16>
    %32 = vector.shape_cast %31 : vector<1x80x8xbf16> to vector<80x8xbf16>
    %c5 = arith.constant 5 : index
    %c0_27 = arith.constant 0 : index
    %c0_28 = arith.constant 0 : index
    %33 = vector.load %arg4[%c5, %c0_27, %c0_28] : memref<9x8x16xbf16, #tpu.memory_space<vmem>>, vector<1x8x16xbf16>
    %34 = vector.shape_cast %33 : vector<1x8x16xbf16> to vector<8x16xbf16>
    %cst_29 = arith.constant dense<0.000000e+00> : vector<80x16xf32>
    %35 = tpu.matmul %32, %34, %cst_29 {dimension_numbers = #tpu.dot_dimension_numbers<[1], [0], [0], [1], [0, 0, 1, 1], [], []>} : vector<80x8xbf16>, vector<8x16xbf16>, vector<80x16xf32> -> vector<80x16xf32>
    %36 = arith.addf %30, %35 : vector<80x16xf32>
    %c0_30 = arith.constant 0 : index
    %c29 = arith.constant 29 : index
    %c0_31 = arith.constant 0 : index
    %37 = vector.load %arg3[%c0_30, %c29, %c0_31] : memref<1x120x8xbf16, #tpu.memory_space<vmem>>, vector<1x80x8xbf16>
    %38 = vector.shape_cast %37 : vector<1x80x8xbf16> to vector<80x8xbf16>
    %c6 = arith.constant 6 : index
    %c0_32 = arith.constant 0 : index
    %c0_33 = arith.constant 0 : index
    %39 = vector.load %arg4[%c6, %c0_32, %c0_33] : memref<9x8x16xbf16, #tpu.memory_space<vmem>>, vector<1x8x16xbf16>
    %40 = vector.shape_cast %39 : vector<1x8x16xbf16> to vector<8x16xbf16>
    %cst_34 = arith.constant dense<0.000000e+00> : vector<80x16xf32>
    %41 = tpu.matmul %38, %40, %cst_34 {dimension_numbers = #tpu.dot_dimension_numbers<[1], [0], [0], [1], [0, 0, 1, 1], [], []>} : vector<80x8xbf16>, vector<8x16xbf16>, vector<80x16xf32> -> vector<80x16xf32>
    %42 = arith.addf %36, %41 : vector<80x16xf32>
    %c0_35 = arith.constant 0 : index
    %c30 = arith.constant 30 : index
    %c0_36 = arith.constant 0 : index
    %43 = vector.load %arg3[%c0_35, %c30, %c0_36] : memref<1x120x8xbf16, #tpu.memory_space<vmem>>, vector<1x80x8xbf16>
    %44 = vector.shape_cast %43 : vector<1x80x8xbf16> to vector<80x8xbf16>
    %c7 = arith.constant 7 : index
    %c0_37 = arith.constant 0 : index
    %c0_38 = arith.constant 0 : index
    %45 = vector.load %arg4[%c7, %c0_37, %c0_38] : memref<9x8x16xbf16, #tpu.memory_space<vmem>>, vector<1x8x16xbf16>
    %46 = vector.shape_cast %45 : vector<1x8x16xbf16> to vector<8x16xbf16>
    %cst_39 = arith.constant dense<0.000000e+00> : vector<80x16xf32>
    %47 = tpu.matmul %44, %46, %cst_39 {dimension_numbers = #tpu.dot_dimension_numbers<[1], [0], [0], [1], [0, 0, 1, 1], [], []>} : vector<80x8xbf16>, vector<8x16xbf16>, vector<80x16xf32> -> vector<80x16xf32>
    %48 = arith.addf %42, %47 : vector<80x16xf32>
    %c0_40 = arith.constant 0 : index
    %c31 = arith.constant 31 : index
    %c0_41 = arith.constant 0 : index
    %49 = vector.load %arg3[%c0_40, %c31, %c0_41] : memref<1x120x8xbf16, #tpu.memory_space<vmem>>, vector<1x80x8xbf16>
    %50 = vector.shape_cast %49 : vector<1x80x8xbf16> to vector<80x8xbf16>
    %c8 = arith.constant 8 : index
    %c0_42 = arith.constant 0 : index
    %c0_43 = arith.constant 0 : index
    %51 = vector.load %arg4[%c8, %c0_42, %c0_43] : memref<9x8x16xbf16, #tpu.memory_space<vmem>>, vector<1x8x16xbf16>
    %52 = vector.shape_cast %51 : vector<1x8x16xbf16> to vector<8x16xbf16>
    %cst_44 = arith.constant dense<0.000000e+00> : vector<80x16xf32>
    %53 = tpu.matmul %50, %52, %cst_44 {dimension_numbers = #tpu.dot_dimension_numbers<[1], [0], [0], [1], [0, 0, 1, 1], [], []>} : vector<80x8xbf16>, vector<8x16xbf16>, vector<80x16xf32> -> vector<80x16xf32>
    %54 = arith.addf %48, %53 : vector<80x16xf32>
    %c0_45 = arith.constant 0 : index
    %c0_46 = arith.constant 0 : index
    %55 = vector.load %arg5[%c0_45, %c0_46] : memref<1x16xf32, #tpu.memory_space<vmem>>, vector<1x16xf32>
    %56 = vector.broadcast %55 : vector<1x16xf32> to vector<80x16xf32>
    %57 = arith.addf %54, %56 : vector<80x16xf32>
    %58 = tpu.iota {dimensions = array<i32: 0>} : vector<80x1xi32>
    %c10_i32 = arith.constant 10 : i32
    %c0_i32 = arith.constant 0 : i32
    %59 = arith.cmpi eq, %c10_i32, %c0_i32 : i32
    %c1_i32 = arith.constant 1 : i32
    %60 = arith.select %59, %c1_i32, %c10_i32 : i32
    %61 = vector.broadcast %60 : i32 to vector<80x1xi32>
    %62 = arith.remsi %58, %61 : vector<80x1xi32>
    %c0_i32_47 = arith.constant 0 : i32
    %63 = vector.broadcast %c0_i32_47 : i32 to vector<80x1xi32>
    %64 = arith.cmpi ne, %62, %63 : vector<80x1xi32>
    %c0_i32_48 = arith.constant 0 : i32
    %65 = vector.broadcast %c0_i32_48 : i32 to vector<80x1xi32>
    %66 = arith.cmpi slt, %62, %65 : vector<80x1xi32>
    %c0_i32_49 = arith.constant 0 : i32
    %67 = arith.cmpi slt, %60, %c0_i32_49 : i32
    %68 = vector.broadcast %67 : i1 to vector<80x1xi1>
    %69 = vector.broadcast %68 : vector<80x1xi1> to vector<80x1xi1>
    %70 = arith.xori %66, %69 : vector<80x1xi1>
    %71 = arith.andi %70, %64 : vector<80x1xi1>
    %72 = vector.broadcast %60 : i32 to vector<80x1xi32>
    %73 = arith.addi %62, %72 : vector<80x1xi32>
    %74 = arith.select %71, %73, %62 : vector<80x1xi1>, vector<80x1xi32>
    %c1_i32_50 = arith.constant 1 : i32
    %75 = vector.broadcast %c1_i32_50 : i32 to vector<80x1xi32>
    %76 = arith.cmpi sge, %74, %75 : vector<80x1xi32>
    %c8_i32 = arith.constant 8 : i32
    %77 = vector.broadcast %c8_i32 : i32 to vector<80x1xi32>
    %78 = arith.cmpi sle, %74, %77 : vector<80x1xi32>
    %79 = arith.andi %76, %78 : vector<80x1xi1>
    %cst_51 = arith.constant 0.000000e+00 : f32
    %80 = vector.shape_cast %79 : vector<80x1xi1> to vector<80x1xi1>
    %81 = vector.broadcast %80 : vector<80x1xi1> to vector<80x16xi1>
    %82 = vector.broadcast %cst_51 : f32 to vector<80x16xf32>
    %83 = arith.select %81, %57, %82 : vector<80x16xi1>, vector<80x16xf32>
    %84 = arith.truncf %83 : vector<80x16xf32> to vector<80x16xbf16>
    %c0_52 = arith.constant 0 : index
    %c0_53 = arith.constant 0 : index
    %c0_54 = arith.constant 0 : index
    %85 = vector.load %arg6[%c0_52, %c0_53, %c0_54] : memref<1x80x16xbf16, #tpu.memory_space<vmem>>, vector<1x80x16xbf16>
    %86 = vector.shape_cast %85 : vector<1x80x16xbf16> to vector<80x16xbf16>
    %87 = vector.shape_cast %84 : vector<80x16xbf16> to vector<1x80x16xbf16>
    tpu.vector_store %arg6[%c0_52, %c0_53, %c0_54], %87 {strides = array<i32>} : memref<1x80x16xbf16, #tpu.memory_space<vmem>>, vector<1x80x16xbf16>,
    %c0_i32_55 = arith.constant 0 : i32
    %88 = arith.cmpi eq, %arg2, %c0_i32_55 : i32
    %89 = arith.extui %88 : i1 to i32
    %c0_i32_56 = arith.constant 0 : i32
    %90 = arith.cmpi ne, %89, %c0_i32_56 : i32
    scf.if %90 {
      %cst_71 = arith.constant 0.000000e+00 : f32
      %108 = vector.broadcast %cst_71 : f32 to vector<1x1x16xf32>
      %c0_72 = arith.constant 0 : index
      %c0_73 = arith.constant 0 : index
      %c0_74 = arith.constant 0 : index
      %109 = vector.load %arg7[%c0_72, %c0_73, %c0_74] : memref<1x1x16xf32, #tpu.memory_space<vmem>>, vector<1x1x16xf32>
      tpu.vector_store %arg7[%c0_72, %c0_73, %c0_74], %108 {strides = array<i32>} : memref<1x1x16xf32, #tpu.memory_space<vmem>>, vector<1x1x16xf32>,
      %cst_75 = arith.constant 0.000000e+00 : f32
      %110 = vector.broadcast %cst_75 : f32 to vector<1x1x16xf32>
      %c0_76 = arith.constant 0 : index
      %c0_77 = arith.constant 0 : index
      %c0_78 = arith.constant 0 : index
      %111 = vector.load %arg8[%c0_76, %c0_77, %c0_78] : memref<1x1x16xf32, #tpu.memory_space<vmem>>, vector<1x1x16xf32>
      tpu.vector_store %arg8[%c0_76, %c0_77, %c0_78], %110 {strides = array<i32>} : memref<1x1x16xf32, #tpu.memory_space<vmem>>, vector<1x1x16xf32>,
    } else {
    }
    %c0_57 = arith.constant 0 : index
    %c0_58 = arith.constant 0 : index
    %c0_59 = arith.constant 0 : index
    %91 = vector.load %arg7[%c0_57, %c0_58, %c0_59] : memref<1x1x16xf32, #tpu.memory_space<vmem>>, vector<1x1x16xf32>
    %92 = vector.shape_cast %91 : vector<1x1x16xf32> to vector<1x16xf32>
    %cst_60 = arith.constant dense<0.000000e+00> : vector<16xf32>
    %93 = vector.multi_reduction <add>, %83, %cst_60 [0] : vector<80x16xf32> to vector<16xf32>
    %94 = vector.shape_cast %93 : vector<16xf32> to vector<1x16xf32>
    %95 = arith.addf %92, %94 : vector<1x16xf32>
    %c0_61 = arith.constant 0 : index
    %c0_62 = arith.constant 0 : index
    %c0_63 = arith.constant 0 : index
    %96 = vector.load %arg7[%c0_61, %c0_62, %c0_63] : memref<1x1x16xf32, #tpu.memory_space<vmem>>, vector<1x1x16xf32>
    %97 = vector.shape_cast %96 : vector<1x1x16xf32> to vector<1x16xf32>
    %98 = vector.shape_cast %95 : vector<1x16xf32> to vector<1x1x16xf32>
    tpu.vector_store %arg7[%c0_61, %c0_62, %c0_63], %98 {strides = array<i32>} : memref<1x1x16xf32, #tpu.memory_space<vmem>>, vector<1x1x16xf32>,
    %c0_64 = arith.constant 0 : index
    %c0_65 = arith.constant 0 : index
    %c0_66 = arith.constant 0 : index
    %99 = vector.load %arg8[%c0_64, %c0_65, %c0_66] : memref<1x1x16xf32, #tpu.memory_space<vmem>>, vector<1x1x16xf32>
    %100 = vector.shape_cast %99 : vector<1x1x16xf32> to vector<1x16xf32>
    %101 = arith.mulf %83, %83 : vector<80x16xf32>
    %cst_67 = arith.constant dense<0.000000e+00> : vector<16xf32>
    %102 = vector.multi_reduction <add>, %101, %cst_67 [0] : vector<80x16xf32> to vector<16xf32>
    %103 = vector.shape_cast %102 : vector<16xf32> to vector<1x16xf32>
    %104 = arith.addf %100, %103 : vector<1x16xf32>
    %c0_68 = arith.constant 0 : index
    %c0_69 = arith.constant 0 : index
    %c0_70 = arith.constant 0 : index
    %105 = vector.load %arg8[%c0_68, %c0_69, %c0_70] : memref<1x1x16xf32, #tpu.memory_space<vmem>>, vector<1x1x16xf32>
    %106 = vector.shape_cast %105 : vector<1x1x16xf32> to vector<1x16xf32>
    %107 = vector.shape_cast %104 : vector<1x16xf32> to vector<1x1x16xf32>
    tpu.vector_store %arg8[%c0_68, %c0_69, %c0_70], %107 {strides = array<i32>} : memref<1x1x16xf32, #tpu.memory_space<vmem>>, vector<1x1x16xf32>,
    return
  }
  func.func @transform_0(%arg0: i32, %arg1: i32, %arg2: i32) -> (i32, i32, i32) {
    %c0_i32 = arith.constant 0 : i32
    %c0_i32_0 = arith.constant 0 : i32
    %c0_i32_1 = arith.constant 0 : i32
    return %arg1, %c0_i32, %c0_i32_0 : i32, i32, i32
  }
  func.func @transform_1(%arg0: i32, %arg1: i32, %arg2: i32) -> (i32, i32, i32) {
    %c0_i32 = arith.constant 0 : i32
    %c0_i32_0 = arith.constant 0 : i32
    %c0_i32_1 = arith.constant 0 : i32
    return %c0_i32, %c0_i32_0, %arg0 : i32, i32, i32
  }
  func.func @transform_2(%arg0: i32, %arg1: i32, %arg2: i32) -> (i32, i32) {
    %c0_i32 = arith.constant 0 : i32
    %c0_i32_0 = arith.constant 0 : i32
    return %c0_i32, %arg0 : i32, i32
  }
  func.func @transform_3(%arg0: i32, %arg1: i32, %arg2: i32) -> (i32, i32, i32) {
    %c0_i32 = arith.constant 0 : i32
    return %arg1, %arg2, %arg0 : i32, i32, i32
  }
  func.func @transform_4(%arg0: i32, %arg1: i32, %arg2: i32) -> (i32, i32, i32) {
    %c0_i32 = arith.constant 0 : i32
    %c0_i32_0 = arith.constant 0 : i32
    return %arg1, %c0_i32, %arg0 : i32, i32, i32
  }
  func.func @transform_5(%arg0: i32, %arg1: i32, %arg2: i32) -> (i32, i32, i32) {
    %c0_i32 = arith.constant 0 : i32
    %c0_i32_0 = arith.constant 0 : i32
    return %arg1, %c0_i32, %arg0 : i32, i32, i32
  }
}

module attributes {stable_mosaic.version = 11 : i64} {
  func.func @kernel(%arg0: i32, %arg1: i32, %arg2: memref<1x80x16xbf16, #tpu.memory_space<vmem>>, %arg3: memref<1x16xf32, #tpu.memory_space<vmem>>, %arg4: memref<1x16xf32, #tpu.memory_space<vmem>>, %arg5: memref<1x80x16xbf16, #tpu.memory_space<vmem>>) attributes {dimension_semantics = [#tpu.dimension_semantics<parallel>, #tpu.dimension_semantics<parallel>], iteration_bounds = array<i64: 2, 1>, scalar_prefetch = 0 : i64, scratch_operands = 0 : i64, tpu.core_type = #tpu.core_type<tc>, window_params = [{transform_indices = @transform_0, window_bounds = array<i64: 1, 80, 16>}, {pipeline_mode = #tpu.pipeline_mode<synchronous>, transform_indices = @transform_1, window_bounds = array<i64: 1, 16>}, {pipeline_mode = #tpu.pipeline_mode<synchronous>, transform_indices = @transform_2, window_bounds = array<i64: 1, 16>}, {transform_indices = @transform_3, window_bounds = array<i64: 1, 80, 16>}]} {
    %c0 = arith.constant 0 : index
    %c0_0 = arith.constant 0 : index
    %c0_1 = arith.constant 0 : index
    %0 = vector.load %arg2[%c0, %c0_0, %c0_1] : memref<1x80x16xbf16, #tpu.memory_space<vmem>>, vector<1x80x16xbf16>
    %1 = vector.shape_cast %0 : vector<1x80x16xbf16> to vector<80x16xbf16>
    %2 = arith.extf %1 : vector<80x16xbf16> to vector<80x16xf32>
    %c0_2 = arith.constant 0 : index
    %c0_3 = arith.constant 0 : index
    %3 = vector.load %arg3[%c0_2, %c0_3] : memref<1x16xf32, #tpu.memory_space<vmem>>, vector<1x16xf32>
    %4 = vector.broadcast %3 : vector<1x16xf32> to vector<80x16xf32>
    %5 = arith.mulf %2, %4 : vector<80x16xf32>
    %c0_4 = arith.constant 0 : index
    %c0_5 = arith.constant 0 : index
    %6 = vector.load %arg4[%c0_4, %c0_5] : memref<1x16xf32, #tpu.memory_space<vmem>>, vector<1x16xf32>
    %7 = vector.broadcast %6 : vector<1x16xf32> to vector<80x16xf32>
    %8 = arith.addf %5, %7 : vector<80x16xf32>
    %cst = arith.constant 0.000000e+00 : f32
    %9 = vector.broadcast %cst : f32 to vector<80x16xf32>
    %10 = arith.maximumf %8, %9 : vector<80x16xf32>
    %11 = tpu.iota {dimensions = array<i32: 0>} : vector<80x1xi32>
    %c10_i32 = arith.constant 10 : i32
    %c0_i32 = arith.constant 0 : i32
    %12 = arith.cmpi eq, %c10_i32, %c0_i32 : i32
    %c1_i32 = arith.constant 1 : i32
    %13 = arith.select %12, %c1_i32, %c10_i32 : i32
    %14 = vector.broadcast %13 : i32 to vector<80x1xi32>
    %15 = arith.remsi %11, %14 : vector<80x1xi32>
    %c0_i32_6 = arith.constant 0 : i32
    %16 = vector.broadcast %c0_i32_6 : i32 to vector<80x1xi32>
    %17 = arith.cmpi ne, %15, %16 : vector<80x1xi32>
    %c0_i32_7 = arith.constant 0 : i32
    %18 = vector.broadcast %c0_i32_7 : i32 to vector<80x1xi32>
    %19 = arith.cmpi slt, %15, %18 : vector<80x1xi32>
    %c0_i32_8 = arith.constant 0 : i32
    %20 = arith.cmpi slt, %13, %c0_i32_8 : i32
    %21 = vector.broadcast %20 : i1 to vector<80x1xi1>
    %22 = vector.broadcast %21 : vector<80x1xi1> to vector<80x1xi1>
    %23 = arith.xori %19, %22 : vector<80x1xi1>
    %24 = arith.andi %23, %17 : vector<80x1xi1>
    %25 = vector.broadcast %13 : i32 to vector<80x1xi32>
    %26 = arith.addi %15, %25 : vector<80x1xi32>
    %27 = arith.select %24, %26, %15 : vector<80x1xi1>, vector<80x1xi32>
    %c1_i32_9 = arith.constant 1 : i32
    %28 = vector.broadcast %c1_i32_9 : i32 to vector<80x1xi32>
    %29 = arith.cmpi sge, %27, %28 : vector<80x1xi32>
    %c8_i32 = arith.constant 8 : i32
    %30 = vector.broadcast %c8_i32 : i32 to vector<80x1xi32>
    %31 = arith.cmpi sle, %27, %30 : vector<80x1xi32>
    %32 = arith.andi %29, %31 : vector<80x1xi1>
    %cst_10 = arith.constant 0.000000e+00 : f32
    %33 = vector.shape_cast %32 : vector<80x1xi1> to vector<80x1xi1>
    %34 = vector.broadcast %33 : vector<80x1xi1> to vector<80x16xi1>
    %35 = vector.broadcast %cst_10 : f32 to vector<80x16xf32>
    %36 = arith.select %34, %10, %35 : vector<80x16xi1>, vector<80x16xf32>
    %37 = arith.truncf %36 : vector<80x16xf32> to vector<80x16xbf16>
    %c0_11 = arith.constant 0 : index
    %c0_12 = arith.constant 0 : index
    %c0_13 = arith.constant 0 : index
    %38 = vector.load %arg5[%c0_11, %c0_12, %c0_13] : memref<1x80x16xbf16, #tpu.memory_space<vmem>>, vector<1x80x16xbf16>
    %39 = vector.shape_cast %38 : vector<1x80x16xbf16> to vector<80x16xbf16>
    %40 = vector.shape_cast %37 : vector<80x16xbf16> to vector<1x80x16xbf16>
    tpu.vector_store %arg5[%c0_11, %c0_12, %c0_13], %40 {strides = array<i32>} : memref<1x80x16xbf16, #tpu.memory_space<vmem>>, vector<1x80x16xbf16>,
    return
  }
  func.func @transform_0(%arg0: i32, %arg1: i32) -> (i32, i32, i32) {
    %c0_i32 = arith.constant 0 : i32
    %c0_i32_0 = arith.constant 0 : i32
    return %arg0, %arg1, %c0_i32 : i32, i32, i32
  }
  func.func @transform_1(%arg0: i32, %arg1: i32) -> (i32, i32) {
    %c0_i32 = arith.constant 0 : i32
    %c0_i32_0 = arith.constant 0 : i32
    %c0_i32_1 = arith.constant 0 : i32
    return %c0_i32, %c0_i32_0 : i32, i32
  }
  func.func @transform_2(%arg0: i32, %arg1: i32) -> (i32, i32) {
    %c0_i32 = arith.constant 0 : i32
    %c0_i32_0 = arith.constant 0 : i32
    %c0_i32_1 = arith.constant 0 : i32
    return %c0_i32, %c0_i32_0 : i32, i32
  }
  func.func @transform_3(%arg0: i32, %arg1: i32) -> (i32, i32, i32) {
    %c0_i32 = arith.constant 0 : i32
    %c0_i32_0 = arith.constant 0 : i32
    return %arg0, %arg1, %c0_i32 : i32, i32, i32
  }
}

module attributes {stable_mosaic.version = 11 : i64} {
  func.func @kernel(%arg0: memref<2x256xf32, #tpu.memory_space<vmem>>, %arg1: memref<256x100xf32, #tpu.memory_space<vmem>>, %arg2: memref<1x100xf32, #tpu.memory_space<vmem>>, %arg3: memref<100x10xf32, #tpu.memory_space<vmem>>, %arg4: memref<1x10xf32, #tpu.memory_space<vmem>>, %arg5: memref<2x10xf32, #tpu.memory_space<vmem>>) attributes {dimension_semantics = [], scalar_prefetch = 0 : i64, scratch_operands = 0 : i64, tpu.core_type = #tpu.core_type<tc>} {
    %c0 = arith.constant 0 : index
    %c0_0 = arith.constant 0 : index
    %0 = vector.load %arg0[%c0, %c0_0] : memref<2x256xf32, #tpu.memory_space<vmem>>, vector<2x256xf32>
    %c0_1 = arith.constant 0 : index
    %c0_2 = arith.constant 0 : index
    %1 = vector.load %arg1[%c0_1, %c0_2] : memref<256x100xf32, #tpu.memory_space<vmem>>, vector<256x100xf32>
    %cst = arith.constant dense<0.000000e+00> : vector<2x100xf32>
    %2 = tpu.matmul %0, %1, %cst {dimension_numbers = #tpu.dot_dimension_numbers<[1], [0], [0], [1], [0, 0, 1, 1], [], []>} : vector<2x256xf32>, vector<256x100xf32>, vector<2x100xf32> -> vector<2x100xf32>
    %c0_3 = arith.constant 0 : index
    %c0_4 = arith.constant 0 : index
    %3 = vector.load %arg2[%c0_3, %c0_4] : memref<1x100xf32, #tpu.memory_space<vmem>>, vector<1x100xf32>
    %4 = vector.broadcast %3 : vector<1x100xf32> to vector<2x100xf32>
    %5 = arith.addf %2, %4 : vector<2x100xf32>
    %c0_5 = arith.constant 0 : index
    %c0_6 = arith.constant 0 : index
    %6 = vector.load %arg3[%c0_5, %c0_6] : memref<100x10xf32, #tpu.memory_space<vmem>>, vector<100x10xf32>
    %cst_7 = arith.constant dense<0.000000e+00> : vector<2x10xf32>
    %7 = tpu.matmul %5, %6, %cst_7 {dimension_numbers = #tpu.dot_dimension_numbers<[1], [0], [0], [1], [0, 0, 1, 1], [], []>} : vector<2x100xf32>, vector<100x10xf32>, vector<2x10xf32> -> vector<2x10xf32>
    %c0_8 = arith.constant 0 : index
    %c0_9 = arith.constant 0 : index
    %8 = vector.load %arg4[%c0_8, %c0_9] : memref<1x10xf32, #tpu.memory_space<vmem>>, vector<1x10xf32>
    %9 = vector.broadcast %8 : vector<1x10xf32> to vector<2x10xf32>
    %10 = arith.addf %7, %9 : vector<2x10xf32>
    %c0_10 = arith.constant 0 : index
    %c0_11 = arith.constant 0 : index
    %11 = vector.load %arg5[%c0_10, %c0_11] : memref<2x10xf32, #tpu.memory_space<vmem>>, vector<2x10xf32>
    tpu.vector_store %arg5[%c0_10, %c0_11], %10 {strides = array<i32>} : memref<2x10xf32, #tpu.memory_space<vmem>>, vector<2x10xf32>,
    return
  }
}

</mosaic_0001>

<llo_original>
// kernel: _lambda_.6
$region0: #{_lambda_.6}
  #allocation0 [shape = 'u32[]', space=smem, size = 0x4, offset = 0x4, fixed_abs, tag = 'smem constant byte address 0x4 - core index']
  #allocation1 [shape = 'u32[144,128]{1,0:T(1,128)}', space=vmem, size = 0x12000, scoped, tag = 'internal scratch']
  %s0 = inlined_call_operand.vmem [shape: bf16[2,288,8], index: 0, kind: input, shape index: {}]
  %s1 = inlined_call_operand.vmem [shape: f32[1,8], index: 1, kind: input, shape index: {}]
  %s2 = inlined_call_operand.vmem [shape: f32[1,8], index: 2, kind: input, shape index: {}]
  %s3 = inlined_call_operand.vmem [shape: bf16[2,288,8], index: 3, kind: output, shape index: {}]
  %s4 = sld [smem:[#allocation0]]
  $region45: #{_lambda_.6} parent=0
    _
  %s6 = ssub.s32 1, %s4
  %s7 = scalar_select 0, %s6, %s4
  loop: start=0, step=1, limit=4
  $region2: #{_lambda_.6} parent=0 // loop_pre_header
    _
  $region3: #{_lambda_.6} parent=0 // loop_header
    %s9 = sphi 0, %s13
    %p10 = scmp.ge.s32.totalorder %s9, 4
    %s16 = sphi 0, %s28
    %s17 = sphi 0, %s24
    %s18 = sphi 0, %s16
    %s19 = sphi 0, %s17
    %s20 = sphi 0, %s18
    %s21 = sphi 0, %s19
    %s33 = sphi 0, %s35
    %s36 = sphi 0, %s33
    %s37 = sphi 0, %s36
    %s53 = sphi 0, %s37
    %s57 = sphi 0, %s57
    %s59 = sphi 0, %s57
    %s60 = sphi 0, %s59
    %s74 = sphi 0, %s60
    %s78 = sphi 0, %s78
    %s80 = sphi 0, %s78
    %s81 = sphi 0, %s80
    %s95 = sphi 0, %s81
    %s103 = sphi 0, %s105
    %s106 = sphi 0, %s103
    %s107 = sphi 0, %s106
    %s123 = sphi 0, %s107
  $region4: #{_lambda_.6} parent=0 // loop_header_branch
    %12 = sbr.rel (%p10) target = $region8
  $region5: #{_lambda_.6} parent=0 // loop_body
    %s14 = ssub.s32 %s9, 1
    %s15 = ssub.s32 %s9, 2
    %s22 = sadd.s32 1, %s17
    %p23 = scmp.ge.s32.totalorder %s22, 1
    %s24 = scalar_select %p23, 0, %s22
    %s25 = sadd.s32 1, %s16
    %s26 = scalar_select %p23, %s25, %s16
    %p27 = scmp.ge.s32.totalorder %s26, 2
    %s28 = scalar_select %p27, 0, %s26
    %s29 = ssub.s32 %s16, %s28
    %s30 = ssub.s32 %s17, %s24
    %s31 = sor.u32 %s29, %s30
    %p32 = scmp.eq.s32.totalorder %s31, 0
    %s34 = sadd.s32 %s33, 1
    %s35 = scalar_select %p32, %s33, %s34
    %p38 = pneg %p32
    %p39 = scmp.eq.s32.totalorder %s9, 1
    %p40 = por %p38, %p39
    %p41 = scmp.ne.s32.totalorder %s33, %s36
    %p42 = scmp.eq.s32.totalorder %s9, 0
    %p43 = por %p41, %p42
    %p44 = scmp.ne.s32.totalorder %s33, %s36
    %p45 = scmp.eq.s32.totalorder %s14, 1
    %p46 = por %p44, %p45
    %p47 = scmp.ne.s32.totalorder %s36, %s37
    %p48 = scmp.eq.s32.totalorder %s14, 0
    %p49 = por %p47, %p48
    %p50 = scmp.ne.s32.totalorder %s36, %s37
    %p51 = scmp.eq.s32.totalorder %s15, 1
    %p52 = por %p50, %p51
    %p54 = scmp.ne.s32.totalorder %s37, %s53
    %p55 = scmp.eq.s32.totalorder %s15, 0
    %p56 = por %p54, %p55
    %s58 = sadd.s32 %s57, 1
    %p61 = scmp.eq.s32.totalorder %s9, 1
    %p62 = scmp.ne.s32.totalorder %s57, %s59
    %p63 = scmp.eq.s32.totalorder %s9, 0
    %p64 = por %p62, %p63
    %p65 = scmp.ne.s32.totalorder %s57, %s59
    %p66 = scmp.eq.s32.totalorder %s14, 1
    %p67 = por %p65, %p66
    %p68 = scmp.ne.s32.totalorder %s59, %s60
    %p69 = scmp.eq.s32.totalorder %s14, 0
    %p70 = por %p68, %p69
    %p71 = scmp.ne.s32.totalorder %s59, %s60
    %p72 = scmp.eq.s32.totalorder %s15, 1
    %p73 = por %p71, %p72
    %p75 = scmp.ne.s32.totalorder %s60, %s74
    %p76 = scmp.eq.s32.totalorder %s15, 0
    %p77 = por %p75, %p76
    %s79 = sadd.s32 %s78, 1
    %p82 = scmp.eq.s32.totalorder %s9, 1
    %p83 = scmp.ne.s32.totalorder %s78, %s80
    %p84 = scmp.eq.s32.totalorder %s9, 0
    %p85 = por %p83, %p84
    %p86 = scmp.ne.s32.totalorder %s78, %s80
    %p87 = scmp.eq.s32.totalorder %s14, 1
    %p88 = por %p86, %p87
    %p89 = scmp.ne.s32.totalorder %s80, %s81
    %p90 = scmp.eq.s32.totalorder %s14, 0
    %p91 = por %p89, %p90
    %p92 = scmp.ne.s32.totalorder %s80, %s81
    %p93 = scmp.eq.s32.totalorder %s15, 1
    %p94 = por %p92, %p93
    %p96 = scmp.ne.s32.totalorder %s81, %s95
    %p97 = scmp.eq.s32.totalorder %s15, 0
    %p98 = por %p96, %p97
    %s99 = ssub.s32 %s16, %s28
    %s100 = ssub.s32 %s17, %s24
    %s101 = sor.u32 %s99, %s100
    %p102 = scmp.eq.s32.totalorder %s101, 0
    %s104 = sadd.s32 %s103, 1
    %s105 = scalar_select %p102, %s103, %s104
    %p108 = pneg %p102
    %p109 = scmp.eq.s32.totalorder %s9, 1
    %p110 = por %p108, %p109
    %p111 = scmp.ne.s32.totalorder %s103, %s106
    %p112 = scmp.eq.s32.totalorder %s9, 0
    %p113 = por %p111, %p112
    %p114 = scmp.ne.s32.totalorder %s103, %s106
    %p115 = scmp.eq.s32.totalorder %s14, 1
    %p116 = por %p114, %p115
    %p117 = scmp.ne.s32.totalorder %s106, %s107
    %p118 = scmp.eq.s32.totalorder %s14, 0
    %p119 = por %p117, %p118
    %p120 = scmp.ne.s32.totalorder %s106, %s107
    %p121 = scmp.eq.s32.totalorder %s15, 1
    %p122 = por %p120, %p121
    %p124 = scmp.ne.s32.totalorder %s107, %s123
    %p125 = scmp.eq.s32.totalorder %s15, 0
    %p126 = por %p124, %p125
    %p127 = scmp.le.s32.totalorder 1, %s9
    %p128 = scmp.lt.s32.totalorder %s9, 3
    %p129 = pnand %p127, %p128
    %p130 = pneg %p129
    // Predicated region
    $region9: #{_lambda_.6} parent=5 // pred_check
      _
    $region10: #{_lambda_.6} parent=5 // pred_check_branch
      %132 = sbr.rel (%p129) target = $region12
    $region11: #{_lambda_.6} parent=5 // pred_region
      %s133 = ssub.s32 %s9, 1
      // Predicated region
      $region13: #{_lambda_.6} parent=11 // pred_check
        %p134 = pneg %p70
      $region14: #{_lambda_.6} parent=11 // pred_check_branch
        %136 = sbr.rel (%p134) target = $region16
      $region15: #{_lambda_.6} parent=11 // pred_region
        _
      $region16: #{_lambda_.6} parent=11 // pred_fallthru
        _
      // Predicated region
      $region17: #{_lambda_.6} parent=11 // pred_check
        %p137 = pneg %p91
      $region18: #{_lambda_.6} parent=11 // pred_check_branch
        %139 = sbr.rel (%p137) target = $region20
      $region19: #{_lambda_.6} parent=11 // pred_region
        _
      $region20: #{_lambda_.6} parent=11 // pred_fallthru
        _
    $region12: #{_lambda_.6} parent=5 // pred_fallthru
      _
    %p140 = scmp.lt.s32.totalorder %s9, 2
    // Predicated region
    $region21: #{_lambda_.6} parent=5 // pred_check
      %p141 = pneg %p140
    $region22: #{_lambda_.6} parent=5 // pred_check_branch
      %143 = sbr.rel (%p141) target = $region24
    $region23: #{_lambda_.6} parent=5 // pred_region
      // Predicated region
      $region25: #{_lambda_.6} parent=23 // pred_check
        %p144 = pneg %p43
      $region26: #{_lambda_.6} parent=23 // pred_check_branch
        %146 = sbr.rel (%p144) target = $region28
      $region27: #{_lambda_.6} parent=23 // pred_region
        %s147 = smul.u32 36, %s17
        %p148 = scmp.lt.s32.totalorder %s16, 1
        %s149 = scalar_select %p148, %s16, 1
        %p150 = scmp.lt.s32.totalorder %s147, 35
        %s151 = scalar_select %p150, %s147, 35
        %s152 = smul.addr %s149, 36
        %s153 = sadd.s32 %s151, %s152
        %s154 = smul.addr %s153, 4
        %s155 = scalar_lea.vmem %s0, %s154
        %s156 = smul.u32 36, %s17
      $region28: #{_lambda_.6} parent=23 // pred_fallthru
        _
    $region24: #{_lambda_.6} parent=5 // pred_fallthru
      _
    %p157 = scmp.le.s32.totalorder 1, %s9
    %p158 = scmp.lt.s32.totalorder %s9, 3
    %p159 = pnand %p157, %p158
    %p160 = pneg %p159
    // Predicated region
    $region29: #{_lambda_.6} parent=5 // pred_check
      _
    $region30: #{_lambda_.6} parent=5 // pred_check_branch
      %162 = sbr.rel (%p159) target = $region32
    $region31: #{_lambda_.6} parent=5 // pred_region
      %s163 = ssub.s32 %s9, 1
      %s164 = smul.u32 36, %s19
      %p165 = scmp.lt.s32.totalorder %s18, 1
      %s166 = scalar_select %p165, %s18, 1
      %p167 = scmp.lt.s32.totalorder %s164, 35
      %s168 = scalar_select %p167, %s164, 35
      %s169 = smul.addr %s166, 36
      %s170 = sadd.s32 %s168, %s169
      %s171 = smul.addr %s170, 4
      %s172 = scalar_lea.vmem %s0, %s171
      %p173 = pneg %p49
      %p174 = pneg %p46
      %p175 = pneg %p70
      %p176 = pneg %p67
      %p177 = pneg %p91
      %p178 = pneg %p88
      %p179 = pneg %p119
      %p180 = pneg %p116
      %s181 = smul.u32 36, %s19
      %p182 = scmp.lt.s32.totalorder %s18, 1
      %s183 = scalar_select %p182, %s18, 1
      %p184 = scmp.lt.s32.totalorder %s181, 35
      %s185 = scalar_select %p184, %s181, 35
      %s186 = smul.addr %s183, 36
      %s187 = sadd.s32 %s185, %s186
      %s188 = smul.addr %s187, 4
      %s189 = scalar_lea.vmem %s3, %s188
      %s190 = smul.u32 36, %s19
      %p191 = scmp.lt.s32.totalorder %s18, 1
      %s192 = scalar_select %p191, %s18, 1
      %p193 = scmp.lt.s32.totalorder %s190, 35
      %s194 = scalar_select %p193, %s190, 35
      %s195 = smul.addr %s192, 36
      %s196 = sadd.s32 %s194, %s195
      %s197 = smul.addr %s196, 4
      %s198 = scalar_lea.vmem %s0, %s197
      %s199 = smul.u32 36, %s19
      %s200 = smul.u32 36, %s19
      %p201 = scmp.lt.s32.totalorder %s18, 1
      %s202 = scalar_select %p201, %s18, 1
      %p203 = scmp.lt.s32.totalorder %s200, 35
      %s204 = scalar_select %p203, %s200, 35
      %s205 = smul.addr %s202, 36
      %s206 = sadd.s32 %s204, %s205
      %s207 = smul.addr %s206, 4
      %s208 = scalar_lea.vmem %s3, %s207
      %s209 = smul.u32 36, %s19
      %v210 = vld [vmem:[%s198] sm:$0xf]
      %v211 = vld [vmem:[%s198 + $0x4] sm:$0xf]
      %v212 = vld [vmem:[%s198 + $0x8] sm:$0xf]
      %v213 = vld [vmem:[%s198 + $0xc] sm:$0xf]
      %v214 = vld [vmem:[%s198 + $0x10] sm:$0xf]
      %v215 = vld [vmem:[%s198 + $0x14] sm:$0xf]
      %v216 = vld [vmem:[%s198 + $0x18] sm:$0xf]
      %v217 = vld [vmem:[%s198 + $0x1c] sm:$0xf]
      %v218 = vld [vmem:[%s198 + $0x20] sm:$0xf]
      %v219 = vld [vmem:[%s198 + $0x24] sm:$0xf]
      %v220 = vld [vmem:[%s198 + $0x28] sm:$0xf]
      %v221 = vld [vmem:[%s198 + $0x2c] sm:$0xf]
      %v222 = vld [vmem:[%s198 + $0x30] sm:$0xf]
      %v223 = vld [vmem:[%s198 + $0x34] sm:$0xf]
      %v224 = vld [vmem:[%s198 + $0x38] sm:$0xf]
      %v225 = vld [vmem:[%s198 + $0x3c] sm:$0xf]
      %v226 = vld [vmem:[%s198 + $0x40] sm:$0xf]
      %v227 = vld [vmem:[%s198 + $0x44] sm:$0xf]
      %v228 = vld [vmem:[%s198 + $0x48] sm:$0xf]
      %v229 = vld [vmem:[%s198 + $0x4c] sm:$0xf]
      %v230 = vld [vmem:[%s198 + $0x50] sm:$0xf]
      %v231 = vld [vmem:[%s198 + $0x54] sm:$0xf]
      %v232 = vld [vmem:[%s198 + $0x58] sm:$0xf]
      %v233 = vld [vmem:[%s198 + $0x5c] sm:$0xf]
      %v234 = vld [vmem:[%s198 + $0x60] sm:$0xf]
      %v235 = vld [vmem:[%s198 + $0x64] sm:$0xf]
      %v236 = vld [vmem:[%s198 + $0x68] sm:$0xf]
      %v237 = vld [vmem:[%s198 + $0x6c] sm:$0xf]
      %v238 = vld [vmem:[%s198 + $0x70] sm:$0xf]
      %v239 = vld [vmem:[%s198 + $0x74] sm:$0xf]
      %v240 = vld [vmem:[%s198 + $0x78] sm:$0xf]
      %v241 = vld [vmem:[%s198 + $0x7c] sm:$0xf]
      %v242 = vld [vmem:[%s198 + $0x80] sm:$0xf]
      %v243 = vld [vmem:[%s198 + $0x84] sm:$0xf]
      %v244 = vld [vmem:[%s198 + $0x88] sm:$0xf]
      %v245 = vld [vmem:[%s198 + $0x8c] sm:$0xf]
      %v246 = vunpack.c.l.bf16 %v210
      %v247 = vunpack.c.l.bf16 %v211
      %v248 = vunpack.c.l.bf16 %v212
      %v249 = vunpack.c.l.bf16 %v213
      %v250 = vunpack.c.l.bf16 %v214
      %v251 = vunpack.c.l.bf16 %v215
      %v252 = vunpack.c.l.bf16 %v216
      %v253 = vunpack.c.l.bf16 %v217
      %v254 = vunpack.c.l.bf16 %v218
      %v255 = vunpack.c.l.bf16 %v219
      %v256 = vunpack.c.l.bf16 %v220
      %v257 = vunpack.c.l.bf16 %v221
      %v258 = vunpack.c.l.bf16 %v222
      %v259 = vunpack.c.l.bf16 %v223
      %v260 = vunpack.c.l.bf16 %v224
      %v261 = vunpack.c.l.bf16 %v225
      %v262 = vunpack.c.l.bf16 %v226
      %v263 = vunpack.c.l.bf16 %v227
      %v264 = vunpack.c.l.bf16 %v228
      %v265 = vunpack.c.l.bf16 %v229
      %v266 = vunpack.c.l.bf16 %v230
      %v267 = vunpack.c.l.bf16 %v231
      %v268 = vunpack.c.l.bf16 %v232
      %v269 = vunpack.c.l.bf16 %v233
      %v270 = vunpack.c.l.bf16 %v234
      %v271 = vunpack.c.l.bf16 %v235
      %v272 = vunpack.c.l.bf16 %v236
      %v273 = vunpack.c.l.bf16 %v237
      %v274 = vunpack.c.l.bf16 %v238
      %v275 = vunpack.c.l.bf16 %v239
      %v276 = vunpack.c.l.bf16 %v240
      %v277 = vunpack.c.l.bf16 %v241
      %v278 = vunpack.c.l.bf16 %v242
      %v279 = vunpack.c.l.bf16 %v243
      %v280 = vunpack.c.l.bf16 %v244
      %v281 = vunpack.c.l.bf16 %v245
      %v282 = vld [vmem:[%s1] sm:$0x1]
      %v284 = vlaneseq
      %v285 = vshrl.u32 %v284, 7
      %v286 = vsub.s32 0, %v285
      %v287 = vrot.slane %v282, %v286
      %v289 = vmul.f32 %v246, %v287
      %v290 = vmul.f32 %v247, %v287
      %v291 = vmul.f32 %v248, %v287
      %v292 = vmul.f32 %v249, %v287
      %v293 = vmul.f32 %v250, %v287
      %v294 = vmul.f32 %v251, %v287
      %v295 = vmul.f32 %v252, %v287
      %v296 = vmul.f32 %v253, %v287
      %v297 = vmul.f32 %v254, %v287
      %v298 = vmul.f32 %v255, %v287
      %v299 = vmul.f32 %v256, %v287
      %v300 = vmul.f32 %v257, %v287
      %v301 = vmul.f32 %v258, %v287
      %v302 = vmul.f32 %v259, %v287
      %v303 = vmul.f32 %v260, %v287
      %v304 = vmul.f32 %v261, %v287
      %v305 = vmul.f32 %v262, %v287
      %v306 = vmul.f32 %v263, %v287
      %v307 = vmul.f32 %v264, %v287
      %v308 = vmul.f32 %v265, %v287
      %v309 = vmul.f32 %v266, %v287
      %v310 = vmul.f32 %v267, %v287
      %v311 = vmul.f32 %v268, %v287
      %v312 = vmul.f32 %v269, %v287
      %v313 = vmul.f32 %v270, %v287
      %v314 = vmul.f32 %v271, %v287
      %v315 = vmul.f32 %v272, %v287
      %v316 = vmul.f32 %v273, %v287
      %v317 = vmul.f32 %v274, %v287
      %v318 = vmul.f32 %v275, %v287
      %v319 = vmul.f32 %v276, %v287
      %v320 = vmul.f32 %v277, %v287
      %v321 = vmul.f32 %v278, %v287
      %v322 = vmul.f32 %v279, %v287
      %v323 = vmul.f32 %v280, %v287
      %v324 = vmul.f32 %v281, %v287
      %v325 = vld [vmem:[%s2] sm:$0x1]
      %v327 = vlaneseq
      %v328 = vshrl.u32 %v327, 7
      %v329 = vsub.s32 0, %v328
      %v330 = vrot.slane %v325, %v329
      %v332 = vadd.f32 %v289, %v330
      %v333 = vadd.f32 %v290, %v330
      %v334 = vadd.f32 %v291, %v330
      %v335 = vadd.f32 %v292, %v330
      %v336 = vadd.f32 %v293, %v330
      %v337 = vadd.f32 %v294, %v330
      %v338 = vadd.f32 %v295, %v330
      %v339 = vadd.f32 %v296, %v330
      %v340 = vadd.f32 %v297, %v330
      %v341 = vadd.f32 %v298, %v330
      %v342 = vadd.f32 %v299, %v330
      %v343 = vadd.f32 %v300, %v330
      %v344 = vadd.f32 %v301, %v330
      %v345 = vadd.f32 %v302, %v330
      %v346 = vadd.f32 %v303, %v330
      %v347 = vadd.f32 %v304, %v330
      %v348 = vadd.f32 %v305, %v330
      %v349 = vadd.f32 %v306, %v330
      %v350 = vadd.f32 %v307, %v330
      %v351 = vadd.f32 %v308, %v330
      %v352 = vadd.f32 %v309, %v330
      %v353 = vadd.f32 %v310, %v330
      %v354 = vadd.f32 %v311, %v330
      %v355 = vadd.f32 %v312, %v330
      %v356 = vadd.f32 %v313, %v330
      %v357 = vadd.f32 %v314, %v330
      %v358 = vadd.f32 %v315, %v330
      %v359 = vadd.f32 %v316, %v330
      %v360 = vadd.f32 %v317, %v330
      %v361 = vadd.f32 %v318, %v330
      %v362 = vadd.f32 %v319, %v330
      %v363 = vadd.f32 %v320, %v330
      %v364 = vadd.f32 %v321, %v330
      %v365 = vadd.f32 %v322, %v330
      %v366 = vadd.f32 %v323, %v330
      %v367 = vadd.f32 %v324, %v330
      %v368 = vmax.f32 %v332, 0.0
      %v369 = vmax.f32 %v333, 0.0
      %v370 = vmax.f32 %v334, 0.0
      %v371 = vmax.f32 %v335, 0.0
      %v372 = vmax.f32 %v336, 0.0
      %v373 = vmax.f32 %v337, 0.0
      %v374 = vmax.f32 %v338, 0.0
      %v375 = vmax.f32 %v339, 0.0
      %v376 = vmax.f32 %v340, 0.0
      %v377 = vmax.f32 %v341, 0.0
      %v378 = vmax.f32 %v342, 0.0
      %v379 = vmax.f32 %v343, 0.0
      %v380 = vmax.f32 %v344, 0.0
      %v381 = vmax.f32 %v345, 0.0
      %v382 = vmax.f32 %v346, 0.0
      %v383 = vmax.f32 %v347, 0.0
      %v384 = vmax.f32 %v348, 0.0
      %v385 = vmax.f32 %v349, 0.0
      %v386 = vmax.f32 %v350, 0.0
      %v387 = vmax.f32 %v351, 0.0
      %v388 = vmax.f32 %v352, 0.0
      %v389 = vmax.f32 %v353, 0.0
      %v390 = vmax.f32 %v354, 0.0
      %v391 = vmax.f32 %v355, 0.0
      %v392 = vmax.f32 %v356, 0.0
      %v393 = vmax.f32 %v357, 0.0
      %v394 = vmax.f32 %v358, 0.0
      %v395 = vmax.f32 %v359, 0.0
      %v396 = vmax.f32 %v360, 0.0
      %v397 = vmax.f32 %v361, 0.0
      %v398 = vmax.f32 %v362, 0.0
      %v399 = vmax.f32 %v363, 0.0
      %v400 = vmax.f32 %v364, 0.0
      %v401 = vmax.f32 %v365, 0.0
      %v402 = vmax.f32 %v366, 0.0
      %v403 = vmax.f32 %v367, 0.0
      %v404 = vlaneseq
      %v405 = vshrl.u32 %v404, 7
      %v406 = vadd.s32 %v405, 8
      %v407 = vadd.s32 %v405, 16
      %v408 = vadd.s32 %v405, 24
      %v409 = vadd.s32 %v405, 32
      %v410 = vadd.s32 %v405, 40
      %v411 = vadd.s32 %v405, 48
      %v412 = vadd.s32 %v405, 56
      %v413 = vadd.s32 %v405, 64
      %v414 = vadd.s32 %v405, 72
      %v415 = vadd.s32 %v405, 80
      %v416 = vadd.s32 %v405, 88
      %v417 = vadd.s32 %v405, 96
      %v418 = vadd.s32 %v405, 104
      %v419 = vadd.s32 %v405, 112
      %v420 = vadd.s32 %v405, 120
      %v421 = vadd.s32 %v405, 128
      %v422 = vadd.s32 %v405, 136
      %v423 = vadd.s32 %v405, 144
      %v424 = vadd.s32 %v405, 152
      %v425 = vadd.s32 %v405, 160
      %v426 = vadd.s32 %v405, 168
      %v427 = vadd.s32 %v405, 176
      %v428 = vadd.s32 %v405, 184
      %v429 = vadd.s32 %v405, 192
      %v430 = vadd.s32 %v405, 200
      %v431 = vadd.s32 %v405, 208
      %v432 = vadd.s32 %v405, 216
      %v433 = vadd.s32 %v405, 224
      %v434 = vadd.s32 %v405, 232
      %v435 = vadd.s32 %v405, 240
      %v436 = vadd.s32 %v405, 248
      %v437 = vadd.s32 %v405, 256
      %v438 = vadd.s32 %v405, 264
      %v439 = vadd.s32 %v405, 272
      %v440 = vadd.s32 %v405, 280
      %vm441 = vcmp.lt.s32.totalorder %v405, 0
      %v442 = vsub.s32 0, %v405
      %v443 = vsel %vm441, %v442, %v405
      %v444 = vmul.u32.u64.compose %v443, 3817748708
      %v445 = vextract.low.u32 %v444
      %v446 = vextract.high.u32 %v444
      %v447 = vshrl.u32 %v446, 4
      %v448 = vmul.u32 %v447, 18
      %v449 = vsub.s32 %v443, %v448
      %v450 = vsub.s32 0, %v449
      %v451 = vsel %vm441, %v450, %v449
      %vm452 = vcmp.lt.s32.totalorder %v406, 0
      %v453 = vsub.s32 0, %v406
      %v454 = vsel %vm452, %v453, %v406
      %v455 = vmul.u32.u64.compose %v454, 3817748708
      %v456 = vextract.low.u32 %v455
      %v457 = vextract.high.u32 %v455
      %v458 = vshrl.u32 %v457, 4
      %v459 = vmul.u32 %v458, 18
      %v460 = vsub.s32 %v454, %v459
      %v461 = vsub.s32 0, %v460
      %v462 = vsel %vm452, %v461, %v460
      %vm463 = vcmp.lt.s32.totalorder %v407, 0
      %v464 = vsub.s32 0, %v407
      %v465 = vsel %vm463, %v464, %v407
      %v466 = vmul.u32.u64.compose %v465, 3817748708
      %v467 = vextract.low.u32 %v466
      %v468 = vextract.high.u32 %v466
      %v469 = vshrl.u32 %v468, 4
      %v470 = vmul.u32 %v469, 18
      %v471 = vsub.s32 %v465, %v470
      %v472 = vsub.s32 0, %v471
      %v473 = vsel %vm463, %v472, %v471
      %vm474 = vcmp.lt.s32.totalorder %v408, 0
      %v475 = vsub.s32 0, %v408
      %v476 = vsel %vm474, %v475, %v408
      %v477 = vmul.u32.u64.compose %v476, 3817748708
      %v478 = vextract.low.u32 %v477
      %v479 = vextract.high.u32 %v477
      %v480 = vshrl.u32 %v479, 4
      %v481 = vmul.u32 %v480, 18
      %v482 = vsub.s32 %v476, %v481
      %v483 = vsub.s32 0, %v482
      %v484 = vsel %vm474, %v483, %v482
      %vm485 = vcmp.lt.s32.totalorder %v409, 0
      %v486 = vsub.s32 0, %v409
      %v487 = vsel %vm485, %v486, %v409
      %v488 = vmul.u32.u64.compose %v487, 3817748708
      %v489 = vextract.low.u32 %v488
      %v490 = vextract.high.u32 %v488
      %v491 = vshrl.u32 %v490, 4
      %v492 = vmul.u32 %v491, 18
      %v493 = vsub.s32 %v487, %v492
      %v494 = vsub.s32 0, %v493
      %v495 = vsel %vm485, %v494, %v493
      %vm496 = vcmp.lt.s32.totalorder %v410, 0
      %v497 = vsub.s32 0, %v410
      %v498 = vsel %vm496, %v497, %v410
      %v499 = vmul.u32.u64.compose %v498, 3817748708
      %v500 = vextract.low.u32 %v499
      %v501 = vextract.high.u32 %v499
      %v502 = vshrl.u32 %v501, 4
      %v503 = vmul.u32 %v502, 18
      %v504 = vsub.s32 %v498, %v503
      %v505 = vsub.s32 0, %v504
      %v506 = vsel %vm496, %v505, %v504
      %vm507 = vcmp.lt.s32.totalorder %v411, 0
      %v508 = vsub.s32 0, %v411
      %v509 = vsel %vm507, %v508, %v411
      %v510 = vmul.u32.u64.compose %v509, 3817748708
      %v511 = vextract.low.u32 %v510
      %v512 = vextract.high.u32 %v510
      %v513 = vshrl.u32 %v512, 4
      %v514 = vmul.u32 %v513, 18
      %v515 = vsub.s32 %v509, %v514
      %v516 = vsub.s32 0, %v515
      %v517 = vsel %vm507, %v516, %v515
      %vm518 = vcmp.lt.s32.totalorder %v412, 0
      %v519 = vsub.s32 0, %v412
      %v520 = vsel %vm518, %v519, %v412
      %v521 = vmul.u32.u64.compose %v520, 3817748708
      %v522 = vextract.low.u32 %v521
      %v523 = vextract.high.u32 %v521
      %v524 = vshrl.u32 %v523, 4
      %v525 = vmul.u32 %v524, 18
      %v526 = vsub.s32 %v520, %v525
      %v527 = vsub.s32 0, %v526
      %v528 = vsel %vm518, %v527, %v526
      %vm529 = vcmp.lt.s32.totalorder %v413, 0
      %v530 = vsub.s32 0, %v413
      %v531 = vsel %vm529, %v530, %v413
      %v532 = vmul.u32.u64.compose %v531, 3817748708
      %v533 = vextract.low.u32 %v532
      %v534 = vextract.high.u32 %v532
      %v535 = vshrl.u32 %v534, 4
      %v536 = vmul.u32 %v535, 18
      %v537 = vsub.s32 %v531, %v536
      %v538 = vsub.s32 0, %v537
      %v539 = vsel %vm529, %v538, %v537
      %vm540 = vcmp.lt.s32.totalorder %v414, 0
      %v541 = vsub.s32 0, %v414
      %v542 = vsel %vm540, %v541, %v414
      %v543 = vmul.u32.u64.compose %v542, 3817748708
      %v544 = vextract.low.u32 %v543
      %v545 = vextract.high.u32 %v543
      %v546 = vshrl.u32 %v545, 4
      %v547 = vmul.u32 %v546, 18
      %v548 = vsub.s32 %v542, %v547
      %v549 = vsub.s32 0, %v548
      %v550 = vsel %vm540, %v549, %v548
      %vm551 = vcmp.lt.s32.totalorder %v415, 0
      %v552 = vsub.s32 0, %v415
      %v553 = vsel %vm551, %v552, %v415
      %v554 = vmul.u32.u64.compose %v553, 3817748708
      %v555 = vextract.low.u32 %v554
      %v556 = vextract.high.u32 %v554
      %v557 = vshrl.u32 %v556, 4
      %v558 = vmul.u32 %v557, 18
      %v559 = vsub.s32 %v553, %v558
      %v560 = vsub.s32 0, %v559
      %v561 = vsel %vm551, %v560, %v559
      %vm562 = vcmp.lt.s32.totalorder %v416, 0
      %v563 = vsub.s32 0, %v416
      %v564 = vsel %vm562, %v563, %v416
      %v565 = vmul.u32.u64.compose %v564, 3817748708
      %v566 = vextract.low.u32 %v565
      %v567 = vextract.high.u32 %v565
      %v568 = vshrl.u32 %v567, 4
      %v569 = vmul.u32 %v568, 18
      %v570 = vsub.s32 %v564, %v569
      %v571 = vsub.s32 0, %v570
      %v572 = vsel %vm562, %v571, %v570
      %vm573 = vcmp.lt.s32.totalorder %v417, 0
      %v574 = vsub.s32 0, %v417
      %v575 = vsel %vm573, %v574, %v417
      %v576 = vmul.u32.u64.compose %v575, 3817748708
      %v577 = vextract.low.u32 %v576
      %v578 = vextract.high.u32 %v576
      %v579 = vshrl.u32 %v578, 4
      %v580 = vmul.u32 %v579, 18
      %v581 = vsub.s32 %v575, %v580
      %v582 = vsub.s32 0, %v581
      %v583 = vsel %vm573, %v582, %v581
      %vm584 = vcmp.lt.s32.totalorder %v418, 0
      %v585 = vsub.s32 0, %v418
      %v586 = vsel %vm584, %v585, %v418
      %v587 = vmul.u32.u64.compose %v586, 3817748708
      %v588 = vextract.low.u32 %v587
      %v589 = vextract.high.u32 %v587
      %v590 = vshrl.u32 %v589, 4
      %v591 = vmul.u32 %v590, 18
      %v592 = vsub.s32 %v586, %v591
      %v593 = vsub.s32 0, %v592
      %v594 = vsel %vm584, %v593, %v592
      %vm595 = vcmp.lt.s32.totalorder %v419, 0
      %v596 = vsub.s32 0, %v419
      %v597 = vsel %vm595, %v596, %v419
      %v598 = vmul.u32.u64.compose %v597, 3817748708
      %v599 = vextract.low.u32 %v598
      %v600 = vextract.high.u32 %v598
      %v601 = vshrl.u32 %v600, 4
      %v602 = vmul.u32 %v601, 18
      %v603 = vsub.s32 %v597, %v602
      %v604 = vsub.s32 0, %v603
      %v605 = vsel %vm595, %v604, %v603
      %vm606 = vcmp.lt.s32.totalorder %v420, 0
      %v607 = vsub.s32 0, %v420
      %v608 = vsel %vm606, %v607, %v420
      %v609 = vmul.u32.u64.compose %v608, 3817748708
      %v610 = vextract.low.u32 %v609
      %v611 = vextract.high.u32 %v609
      %v612 = vshrl.u32 %v611, 4
      %v613 = vmul.u32 %v612, 18
      %v614 = vsub.s32 %v608, %v613
      %v615 = vsub.s32 0, %v614
      %v616 = vsel %vm606, %v615, %v614
      %vm617 = vcmp.lt.s32.totalorder %v421, 0
      %v618 = vsub.s32 0, %v421
      %v619 = vsel %vm617, %v618, %v421
      %v620 = vmul.u32.u64.compose %v619, 3817748708
      %v621 = vextract.low.u32 %v620
      %v622 = vextract.high.u32 %v620
      %v623 = vshrl.u32 %v622, 4
      %v624 = vmul.u32 %v623, 18
      %v625 = vsub.s32 %v619, %v624
      %v626 = vsub.s32 0, %v625
      %v627 = vsel %vm617, %v626, %v625
      %vm628 = vcmp.lt.s32.totalorder %v422, 0
      %v629 = vsub.s32 0, %v422
      %v630 = vsel %vm628, %v629, %v422
      %v631 = vmul.u32.u64.compose %v630, 3817748708
      %v632 = vextract.low.u32 %v631
      %v633 = vextract.high.u32 %v631
      %v634 = vshrl.u32 %v633, 4
      %v635 = vmul.u32 %v634, 18
      %v636 = vsub.s32 %v630, %v635
      %v637 = vsub.s32 0, %v636
      %v638 = vsel %vm628, %v637, %v636
      %vm639 = vcmp.lt.s32.totalorder %v423, 0
      %v640 = vsub.s32 0, %v423
      %v641 = vsel %vm639, %v640, %v423
      %v642 = vmul.u32.u64.compose %v641, 3817748708
      %v643 = vextract.low.u32 %v642
      %v644 = vextract.high.u32 %v642
      %v645 = vshrl.u32 %v644, 4
      %v646 = vmul.u32 %v645, 18
      %v647 = vsub.s32 %v641, %v646
      %v648 = vsub.s32 0, %v647
      %v649 = vsel %vm639, %v648, %v647
      %vm650 = vcmp.lt.s32.totalorder %v424, 0
      %v651 = vsub.s32 0, %v424
      %v652 = vsel %vm650, %v651, %v424
      %v653 = vmul.u32.u64.compose %v652, 3817748708
      %v654 = vextract.low.u32 %v653
      %v655 = vextract.high.u32 %v653
      %v656 = vshrl.u32 %v655, 4
      %v657 = vmul.u32 %v656, 18
      %v658 = vsub.s32 %v652, %v657
      %v659 = vsub.s32 0, %v658
      %v660 = vsel %vm650, %v659, %v658
      %vm661 = vcmp.lt.s32.totalorder %v425, 0
      %v662 = vsub.s32 0, %v425
      %v663 = vsel %vm661, %v662, %v425
      %v664 = vmul.u32.u64.compose %v663, 3817748708
      %v665 = vextract.low.u32 %v664
      %v666 = vextract.high.u32 %v664
      %v667 = vshrl.u32 %v666, 4
      %v668 = vmul.u32 %v667, 18
      %v669 = vsub.s32 %v663, %v668
      %v670 = vsub.s32 0, %v669
      %v671 = vsel %vm661, %v670, %v669
      %vm672 = vcmp.lt.s32.totalorder %v426, 0
      %v673 = vsub.s32 0, %v426
      %v674 = vsel %vm672, %v673, %v426
      %v675 = vmul.u32.u64.compose %v674, 3817748708
      %v676 = vextract.low.u32 %v675
      %v677 = vextract.high.u32 %v675
      %v678 = vshrl.u32 %v677, 4
      %v679 = vmul.u32 %v678, 18
      %v680 = vsub.s32 %v674, %v679
      %v681 = vsub.s32 0, %v680
      %v682 = vsel %vm672, %v681, %v680
      %vm683 = vcmp.lt.s32.totalorder %v427, 0
      %v684 = vsub.s32 0, %v427
      %v685 = vsel %vm683, %v684, %v427
      %v686 = vmul.u32.u64.compose %v685, 3817748708
      %v687 = vextract.low.u32 %v686
      %v688 = vextract.high.u32 %v686
      %v689 = vshrl.u32 %v688, 4
      %v690 = vmul.u32 %v689, 18
      %v691 = vsub.s32 %v685, %v690
      %v692 = vsub.s32 0, %v691
      %v693 = vsel %vm683, %v692, %v691
      %vm694 = vcmp.lt.s32.totalorder %v428, 0
      %v695 = vsub.s32 0, %v428
      %v696 = vsel %vm694, %v695, %v428
      %v697 = vmul.u32.u64.compose %v696, 3817748708
      %v698 = vextract.low.u32 %v697
      %v699 = vextract.high.u32 %v697
      %v700 = vshrl.u32 %v699, 4
      %v701 = vmul.u32 %v700, 18
      %v702 = vsub.s32 %v696, %v701
      %v703 = vsub.s32 0, %v702
      %v704 = vsel %vm694, %v703, %v702
      %vm705 = vcmp.lt.s32.totalorder %v429, 0
      %v706 = vsub.s32 0, %v429
      %v707 = vsel %vm705, %v706, %v429
      %v708 = vmul.u32.u64.compose %v707, 3817748708
      %v709 = vextract.low.u32 %v708
      %v710 = vextract.high.u32 %v708
      %v711 = vshrl.u32 %v710, 4
      %v712 = vmul.u32 %v711, 18
      %v713 = vsub.s32 %v707, %v712
      %v714 = vsub.s32 0, %v713
      %v715 = vsel %vm705, %v714, %v713
      %vm716 = vcmp.lt.s32.totalorder %v430, 0
      %v717 = vsub.s32 0, %v430
      %v718 = vsel %vm716, %v717, %v430
      %v719 = vmul.u32.u64.compose %v718, 3817748708
      %v720 = vextract.low.u32 %v719
      %v721 = vextract.high.u32 %v719
      %v722 = vshrl.u32 %v721, 4
      %v723 = vmul.u32 %v722, 18
      %v724 = vsub.s32 %v718, %v723
      %v725 = vsub.s32 0, %v724
      %v726 = vsel %vm716, %v725, %v724
      %vm727 = vcmp.lt.s32.totalorder %v431, 0
      %v728 = vsub.s32 0, %v431
      %v729 = vsel %vm727, %v728, %v431
      %v730 = vmul.u32.u64.compose %v729, 3817748708
      %v731 = vextract.low.u32 %v730
      %v732 = vextract.high.u32 %v730
      %v733 = vshrl.u32 %v732, 4
      %v734 = vmul.u32 %v733, 18
      %v735 = vsub.s32 %v729, %v734
      %v736 = vsub.s32 0, %v735
      %v737 = vsel %vm727, %v736, %v735
      %vm738 = vcmp.lt.s32.totalorder %v432, 0
      %v739 = vsub.s32 0, %v432
      %v740 = vsel %vm738, %v739, %v432
      %v741 = vmul.u32.u64.compose %v740, 3817748708
      %v742 = vextract.low.u32 %v741
      %v743 = vextract.high.u32 %v741
      %v744 = vshrl.u32 %v743, 4
      %v745 = vmul.u32 %v744, 18
      %v746 = vsub.s32 %v740, %v745
      %v747 = vsub.s32 0, %v746
      %v748 = vsel %vm738, %v747, %v746
      %vm749 = vcmp.lt.s32.totalorder %v433, 0
      %v750 = vsub.s32 0, %v433
      %v751 = vsel %vm749, %v750, %v433
      %v752 = vmul.u32.u64.compose %v751, 3817748708
      %v753 = vextract.low.u32 %v752
      %v754 = vextract.high.u32 %v752
      %v755 = vshrl.u32 %v754, 4
      %v756 = vmul.u32 %v755, 18
      %v757 = vsub.s32 %v751, %v756
      %v758 = vsub.s32 0, %v757
      %v759 = vsel %vm749, %v758, %v757
      %vm760 = vcmp.lt.s32.totalorder %v434, 0
      %v761 = vsub.s32 0, %v434
      %v762 = vsel %vm760, %v761, %v434
      %v763 = vmul.u32.u64.compose %v762, 3817748708
      %v764 = vextract.low.u32 %v763
      %v765 = vextract.high.u32 %v763
      %v766 = vshrl.u32 %v765, 4
      %v767 = vmul.u32 %v766, 18
      %v768 = vsub.s32 %v762, %v767
      %v769 = vsub.s32 0, %v768
      %v770 = vsel %vm760, %v769, %v768
      %vm771 = vcmp.lt.s32.totalorder %v435, 0
      %v772 = vsub.s32 0, %v435
      %v773 = vsel %vm771, %v772, %v435
      %v774 = vmul.u32.u64.compose %v773, 3817748708
      %v775 = vextract.low.u32 %v774
      %v776 = vextract.high.u32 %v774
      %v777 = vshrl.u32 %v776, 4
      %v778 = vmul.u32 %v777, 18
      %v779 = vsub.s32 %v773, %v778
      %v780 = vsub.s32 0, %v779
      %v781 = vsel %vm771, %v780, %v779
      %vm782 = vcmp.lt.s32.totalorder %v436, 0
      %v783 = vsub.s32 0, %v436
      %v784 = vsel %vm782, %v783, %v436
      %v785 = vmul.u32.u64.compose %v784, 3817748708
      %v786 = vextract.low.u32 %v785
      %v787 = vextract.high.u32 %v785
      %v788 = vshrl.u32 %v787, 4
      %v789 = vmul.u32 %v788, 18
      %v790 = vsub.s32 %v784, %v789
      %v791 = vsub.s32 0, %v790
      %v792 = vsel %vm782, %v791, %v790
      %vm793 = vcmp.lt.s32.totalorder %v437, 0
      %v794 = vsub.s32 0, %v437
      %v795 = vsel %vm793, %v794, %v437
      %v796 = vmul.u32.u64.compose %v795, 3817748708
      %v797 = vextract.low.u32 %v796
      %v798 = vextract.high.u32 %v796
      %v799 = vshrl.u32 %v798, 4
      %v800 = vmul.u32 %v799, 18
      %v801 = vsub.s32 %v795, %v800
      %v802 = vsub.s32 0, %v801
      %v803 = vsel %vm793, %v802, %v801
      %vm804 = vcmp.lt.s32.totalorder %v438, 0
      %v805 = vsub.s32 0, %v438
      %v806 = vsel %vm804, %v805, %v438
      %v807 = vmul.u32.u64.compose %v806, 3817748708
      %v808 = vextract.low.u32 %v807
      %v809 = vextract.high.u32 %v807
      %v810 = vshrl.u32 %v809, 4
      %v811 = vmul.u32 %v810, 18
      %v812 = vsub.s32 %v806, %v811
      %v813 = vsub.s32 0, %v812
      %v814 = vsel %vm804, %v813, %v812
      %vm815 = vcmp.lt.s32.totalorder %v439, 0
      %v816 = vsub.s32 0, %v439
      %v817 = vsel %vm815, %v816, %v439
      %v818 = vmul.u32.u64.compose %v817, 3817748708
      %v819 = vextract.low.u32 %v818
      %v820 = vextract.high.u32 %v818
      %v821 = vshrl.u32 %v820, 4
      %v822 = vmul.u32 %v821, 18
      %v823 = vsub.s32 %v817, %v822
      %v824 = vsub.s32 0, %v823
      %v825 = vsel %vm815, %v824, %v823
      %vm826 = vcmp.lt.s32.totalorder %v440, 0
      %v827 = vsub.s32 0, %v440
      %v828 = vsel %vm826, %v827, %v440
      %v829 = vmul.u32.u64.compose %v828, 3817748708
      %v830 = vextract.low.u32 %v829
      %v831 = vextract.high.u32 %v829
      %v832 = vshrl.u32 %v831, 4
      %v833 = vmul.u32 %v832, 18
      %v834 = vsub.s32 %v828, %v833
      %v835 = vsub.s32 0, %v834
      %v836 = vsel %vm826, %v835, %v834
      %vm837 = vcmp.ne.s32.totalorder %v451, 0
      %vm838 = vcmp.ne.s32.totalorder %v462, 0
      %vm839 = vcmp.ne.s32.totalorder %v473, 0
      %vm840 = vcmp.ne.s32.totalorder %v484, 0
      %vm841 = vcmp.ne.s32.totalorder %v495, 0
      %vm842 = vcmp.ne.s32.totalorder %v506, 0
      %vm843 = vcmp.ne.s32.totalorder %v517, 0
      %vm844 = vcmp.ne.s32.totalorder %v528, 0
      %vm845 = vcmp.ne.s32.totalorder %v539, 0
      %vm846 = vcmp.ne.s32.totalorder %v550, 0
      %vm847 = vcmp.ne.s32.totalorder %v561, 0
      %vm848 = vcmp.ne.s32.totalorder %v572, 0
      %vm849 = vcmp.ne.s32.totalorder %v583, 0
      %vm850 = vcmp.ne.s32.totalorder %v594, 0
      %vm851 = vcmp.ne.s32.totalorder %v605, 0
      %vm852 = vcmp.ne.s32.totalorder %v616, 0
      %vm853 = vcmp.ne.s32.totalorder %v627, 0
      %vm854 = vcmp.ne.s32.totalorder %v638, 0
      %vm855 = vcmp.ne.s32.totalorder %v649, 0
      %vm856 = vcmp.ne.s32.totalorder %v660, 0
      %vm857 = vcmp.ne.s32.totalorder %v671, 0
      %vm858 = vcmp.ne.s32.totalorder %v682, 0
      %vm859 = vcmp.ne.s32.totalorder %v693, 0
      %vm860 = vcmp.ne.s32.totalorder %v704, 0
      %vm861 = vcmp.ne.s32.totalorder %v715, 0
      %vm862 = vcmp.ne.s32.totalorder %v726, 0
      %vm863 = vcmp.ne.s32.totalorder %v737, 0
      %vm864 = vcmp.ne.s32.totalorder %v748, 0
      %vm865 = vcmp.ne.s32.totalorder %v759, 0
      %vm866 = vcmp.ne.s32.totalorder %v770, 0
      %vm867 = vcmp.ne.s32.totalorder %v781, 0
      %vm868 = vcmp.ne.s32.totalorder %v792, 0
      %vm869 = vcmp.ne.s32.totalorder %v803, 0
      %vm870 = vcmp.ne.s32.totalorder %v814, 0
      %vm871 = vcmp.ne.s32.totalorder %v825, 0
      %vm872 = vcmp.ne.s32.totalorder %v836, 0
      %vm873 = vcmp.lt.s32.totalorder %v451, 0
      %vm874 = vcmp.lt.s32.totalorder %v462, 0
      %vm875 = vcmp.lt.s32.totalorder %v473, 0
      %vm876 = vcmp.lt.s32.totalorder %v484, 0
      %vm877 = vcmp.lt.s32.totalorder %v495, 0
      %vm878 = vcmp.lt.s32.totalorder %v506, 0
      %vm879 = vcmp.lt.s32.totalorder %v517, 0
      %vm880 = vcmp.lt.s32.totalorder %v528, 0
      %vm881 = vcmp.lt.s32.totalorder %v539, 0
      %vm882 = vcmp.lt.s32.totalorder %v550, 0
      %vm883 = vcmp.lt.s32.totalorder %v561, 0
      %vm884 = vcmp.lt.s32.totalorder %v572, 0
      %vm885 = vcmp.lt.s32.totalorder %v583, 0
      %vm886 = vcmp.lt.s32.totalorder %v594, 0
      %vm887 = vcmp.lt.s32.totalorder %v605, 0
      %vm888 = vcmp.lt.s32.totalorder %v616, 0
      %vm889 = vcmp.lt.s32.totalorder %v627, 0
      %vm890 = vcmp.lt.s32.totalorder %v638, 0
      %vm891 = vcmp.lt.s32.totalorder %v649, 0
      %vm892 = vcmp.lt.s32.totalorder %v660, 0
      %vm893 = vcmp.lt.s32.totalorder %v671, 0
      %vm894 = vcmp.lt.s32.totalorder %v682, 0
      %vm895 = vcmp.lt.s32.totalorder %v693, 0
      %vm896 = vcmp.lt.s32.totalorder %v704, 0
      %vm897 = vcmp.lt.s32.totalorder %v715, 0
      %vm898 = vcmp.lt.s32.totalorder %v726, 0
      %vm899 = vcmp.lt.s32.totalorder %v737, 0
      %vm900 = vcmp.lt.s32.totalorder %v748, 0
      %vm901 = vcmp.lt.s32.totalorder %v759, 0
      %vm902 = vcmp.lt.s32.totalorder %v770, 0
      %vm903 = vcmp.lt.s32.totalorder %v781, 0
      %vm904 = vcmp.lt.s32.totalorder %v792, 0
      %vm905 = vcmp.lt.s32.totalorder %v803, 0
      %vm906 = vcmp.lt.s32.totalorder %v814, 0
      %vm907 = vcmp.lt.s32.totalorder %v825, 0
      %vm908 = vcmp.lt.s32.totalorder %v836, 0
      %vm909 = vmand %vm873, %vm837
      %vm910 = vmand %vm874, %vm838
      %vm911 = vmand %vm875, %vm839
      %vm912 = vmand %vm876, %vm840
      %vm913 = vmand %vm877, %vm841
      %vm914 = vmand %vm878, %vm842
      %vm915 = vmand %vm879, %vm843
      %vm916 = vmand %vm880, %vm844
      %vm917 = vmand %vm881, %vm845
      %vm918 = vmand %vm882, %vm846
      %vm919 = vmand %vm883, %vm847
      %vm920 = vmand %vm884, %vm848
      %vm921 = vmand %vm885, %vm849
      %vm922 = vmand %vm886, %vm850
      %vm923 = vmand %vm887, %vm851
      %vm924 = vmand %vm888, %vm852
      %vm925 = vmand %vm889, %vm853
      %vm926 = vmand %vm890, %vm854
      %vm927 = vmand %vm891, %vm855
      %vm928 = vmand %vm892, %vm856
      %vm929 = vmand %vm893, %vm857
      %vm930 = vmand %vm894, %vm858
      %vm931 = vmand %vm895, %vm859
      %vm932 = vmand %vm896, %vm860
      %vm933 = vmand %vm897, %vm861
      %vm934 = vmand %vm898, %vm862
      %vm935 = vmand %vm899, %vm863
      %vm936 = vmand %vm900, %vm864
      %vm937 = vmand %vm901, %vm865
      %vm938 = vmand %vm902, %vm866
      %vm939 = vmand %vm903, %vm867
      %vm940 = vmand %vm904, %vm868
      %vm941 = vmand %vm905, %vm869
      %vm942 = vmand %vm906, %vm870
      %vm943 = vmand %vm907, %vm871
      %vm944 = vmand %vm908, %vm872
      %v945 = vadd.s32 %v451, 18
      %v946 = vadd.s32 %v462, 18
      %v947 = vadd.s32 %v473, 18
      %v948 = vadd.s32 %v484, 18
      %v949 = vadd.s32 %v495, 18
      %v950 = vadd.s32 %v506, 18
      %v951 = vadd.s32 %v517, 18
      %v952 = vadd.s32 %v528, 18
      %v953 = vadd.s32 %v539, 18
      %v954 = vadd.s32 %v550, 18
      %v955 = vadd.s32 %v561, 18
      %v956 = vadd.s32 %v572, 18
      %v957 = vadd.s32 %v583, 18
      %v958 = vadd.s32 %v594, 18
      %v959 = vadd.s32 %v605, 18
      %v960 = vadd.s32 %v616, 18
      %v961 = vadd.s32 %v627, 18
      %v962 = vadd.s32 %v638, 18
      %v963 = vadd.s32 %v649, 18
      %v964 = vadd.s32 %v660, 18
      %v965 = vadd.s32 %v671, 18
      %v966 = vadd.s32 %v682, 18
      %v967 = vadd.s32 %v693, 18
      %v968 = vadd.s32 %v704, 18
      %v969 = vadd.s32 %v715, 18
      %v970 = vadd.s32 %v726, 18
      %v971 = vadd.s32 %v737, 18
      %v972 = vadd.s32 %v748, 18
      %v973 = vadd.s32 %v759, 18
      %v974 = vadd.s32 %v770, 18
      %v975 = vadd.s32 %v781, 18
      %v976 = vadd.s32 %v792, 18
      %v977 = vadd.s32 %v803, 18
      %v978 = vadd.s32 %v814, 18
      %v979 = vadd.s32 %v825, 18
      %v980 = vadd.s32 %v836, 18
      %v981 = vsel %vm909, %v945, %v451
      %v982 = vsel %vm910, %v946, %v462
      %v983 = vsel %vm911, %v947, %v473
      %v984 = vsel %vm912, %v948, %v484
      %v985 = vsel %vm913, %v949, %v495
      %v986 = vsel %vm914, %v950, %v506
      %v987 = vsel %vm915, %v951, %v517
      %v988 = vsel %vm916, %v952, %v528
      %v989 = vsel %vm917, %v953, %v539
      %v990 = vsel %vm918, %v954, %v550
      %v991 = vsel %vm919, %v955, %v561
      %v992 = vsel %vm920, %v956, %v572
      %v993 = vsel %vm921, %v957, %v583
      %v994 = vsel %vm922, %v958, %v594
      %v995 = vsel %vm923, %v959, %v605
      %v996 = vsel %vm924, %v960, %v616
      %v997 = vsel %vm925, %v961, %v627
      %v998 = vsel %vm926, %v962, %v638
      %v999 = vsel %vm927, %v963, %v649
      %v1000 = vsel %vm928, %v964, %v660
      %v1001 = vsel %vm929, %v965, %v671
      %v1002 = vsel %vm930, %v966, %v682
      %v1003 = vsel %vm931, %v967, %v693
      %v1004 = vsel %vm932, %v968, %v704
      %v1005 = vsel %vm933, %v969, %v715
      %v1006 = vsel %vm934, %v970, %v726
      %v1007 = vsel %vm935, %v971, %v737
      %v1008 = vsel %vm936, %v972, %v748
      %v1009 = vsel %vm937, %v973, %v759
      %v1010 = vsel %vm938, %v974, %v770
      %v1011 = vsel %vm939, %v975, %v781
      %v1012 = vsel %vm940, %v976, %v792
      %v1013 = vsel %vm941, %v977, %v803
      %v1014 = vsel %vm942, %v978, %v814
      %v1015 = vsel %vm943, %v979, %v825
      %v1016 = vsel %vm944, %v980, %v836
      %vm1017 = vcmp.ge.s32.totalorder %v981, 1
      %vm1018 = vcmp.ge.s32.totalorder %v982, 1
      %vm1019 = vcmp.ge.s32.totalorder %v983, 1
      %vm1020 = vcmp.ge.s32.totalorder %v984, 1
      %vm1021 = vcmp.ge.s32.totalorder %v985, 1
      %vm1022 = vcmp.ge.s32.totalorder %v986, 1
      %vm1023 = vcmp.ge.s32.totalorder %v987, 1
      %vm1024 = vcmp.ge.s32.totalorder %v988, 1
      %vm1025 = vcmp.ge.s32.totalorder %v989, 1
      %vm1026 = vcmp.ge.s32.totalorder %v990, 1
      %vm1027 = vcmp.ge.s32.totalorder %v991, 1
      %vm1028 = vcmp.ge.s32.totalorder %v992, 1
      %vm1029 = vcmp.ge.s32.totalorder %v993, 1
      %vm1030 = vcmp.ge.s32.totalorder %v994, 1
      %vm1031 = vcmp.ge.s32.totalorder %v995, 1
      %vm1032 = vcmp.ge.s32.totalorder %v996, 1
      %vm1033 = vcmp.ge.s32.totalorder %v997, 1
      %vm1034 = vcmp.ge.s32.totalorder %v998, 1
      %vm1035 = vcmp.ge.s32.totalorder %v999, 1
      %vm1036 = vcmp.ge.s32.totalorder %v1000, 1
      %vm1037 = vcmp.ge.s32.totalorder %v1001, 1
      %vm1038 = vcmp.ge.s32.totalorder %v1002, 1
      %vm1039 = vcmp.ge.s32.totalorder %v1003, 1
      %vm1040 = vcmp.ge.s32.totalorder %v1004, 1
      %vm1041 = vcmp.ge.s32.totalorder %v1005, 1
      %vm1042 = vcmp.ge.s32.totalorder %v1006, 1
      %vm1043 = vcmp.ge.s32.totalorder %v1007, 1
      %vm1044 = vcmp.ge.s32.totalorder %v1008, 1
      %vm1045 = vcmp.ge.s32.totalorder %v1009, 1
      %vm1046 = vcmp.ge.s32.totalorder %v1010, 1
      %vm1047 = vcmp.ge.s32.totalorder %v1011, 1
      %vm1048 = vcmp.ge.s32.totalorder %v1012, 1
      %vm1049 = vcmp.ge.s32.totalorder %v1013, 1
      %vm1050 = vcmp.ge.s32.totalorder %v1014, 1
      %vm1051 = vcmp.ge.s32.totalorder %v1015, 1
      %vm1052 = vcmp.ge.s32.totalorder %v1016, 1
      %vm1053 = vcmp.le.s32.totalorder %v981, 16
      %vm1054 = vcmp.le.s32.totalorder %v982, 16
      %vm1055 = vcmp.le.s32.totalorder %v983, 16
      %vm1056 = vcmp.le.s32.totalorder %v984, 16
      %vm1057 = vcmp.le.s32.totalorder %v985, 16
      %vm1058 = vcmp.le.s32.totalorder %v986, 16
      %vm1059 = vcmp.le.s32.totalorder %v987, 16
      %vm1060 = vcmp.le.s32.totalorder %v988, 16
      %vm1061 = vcmp.le.s32.totalorder %v989, 16
      %vm1062 = vcmp.le.s32.totalorder %v990, 16
      %vm1063 = vcmp.le.s32.totalorder %v991, 16
      %vm1064 = vcmp.le.s32.totalorder %v992, 16
      %vm1065 = vcmp.le.s32.totalorder %v993, 16
      %vm1066 = vcmp.le.s32.totalorder %v994, 16
      %vm1067 = vcmp.le.s32.totalorder %v995, 16
      %vm1068 = vcmp.le.s32.totalorder %v996, 16
      %vm1069 = vcmp.le.s32.totalorder %v997, 16
      %vm1070 = vcmp.le.s32.totalorder %v998, 16
      %vm1071 = vcmp.le.s32.totalorder %v999, 16
      %vm1072 = vcmp.le.s32.totalorder %v1000, 16
      %vm1073 = vcmp.le.s32.totalorder %v1001, 16
      %vm1074 = vcmp.le.s32.totalorder %v1002, 16
      %vm1075 = vcmp.le.s32.totalorder %v1003, 16
      %vm1076 = vcmp.le.s32.totalorder %v1004, 16
      %vm1077 = vcmp.le.s32.totalorder %v1005, 16
      %vm1078 = vcmp.le.s32.totalorder %v1006, 16
      %vm1079 = vcmp.le.s32.totalorder %v1007, 16
      %vm1080 = vcmp.le.s32.totalorder %v1008, 16
      %vm1081 = vcmp.le.s32.totalorder %v1009, 16
      %vm1082 = vcmp.le.s32.totalorder %v1010, 16
      %vm1083 = vcmp.le.s32.totalorder %v1011, 16
      %vm1084 = vcmp.le.s32.totalorder %v1012, 16
      %vm1085 = vcmp.le.s32.totalorder %v1013, 16
      %vm1086 = vcmp.le.s32.totalorder %v1014, 16
      %vm1087 = vcmp.le.s32.totalorder %v1015, 16
      %vm1088 = vcmp.le.s32.totalorder %v1016, 16
      %vm1089 = vmand %vm1017, %vm1053
      %vm1090 = vmand %vm1018, %vm1054
      %vm1091 = vmand %vm1019, %vm1055
      %vm1092 = vmand %vm1020, %vm1056
      %vm1093 = vmand %vm1021, %vm1057
      %vm1094 = vmand %vm1022, %vm1058
      %vm1095 = vmand %vm1023, %vm1059
      %vm1096 = vmand %vm1024, %vm1060
      %vm1097 = vmand %vm1025, %vm1061
      %vm1098 = vmand %vm1026, %vm1062
      %vm1099 = vmand %vm1027, %vm1063
      %vm1100 = vmand %vm1028, %vm1064
      %vm1101 = vmand %vm1029, %vm1065
      %vm1102 = vmand %vm1030, %vm1066
      %vm1103 = vmand %vm1031, %vm1067
      %vm1104 = vmand %vm1032, %vm1068
      %vm1105 = vmand %vm1033, %vm1069
      %vm1106 = vmand %vm1034, %vm1070
      %vm1107 = vmand %vm1035, %vm1071
      %vm1108 = vmand %vm1036, %vm1072
      %vm1109 = vmand %vm1037, %vm1073
      %vm1110 = vmand %vm1038, %vm1074
      %vm1111 = vmand %vm1039, %vm1075
      %vm1112 = vmand %vm1040, %vm1076
      %vm1113 = vmand %vm1041, %vm1077
      %vm1114 = vmand %vm1042, %vm1078
      %vm1115 = vmand %vm1043, %vm1079
      %vm1116 = vmand %vm1044, %vm1080
      %vm1117 = vmand %vm1045, %vm1081
      %vm1118 = vmand %vm1046, %vm1082
      %vm1119 = vmand %vm1047, %vm1083
      %vm1120 = vmand %vm1048, %vm1084
      %vm1121 = vmand %vm1049, %vm1085
      %vm1122 = vmand %vm1050, %vm1086
      %vm1123 = vmand %vm1051, %vm1087
      %vm1124 = vmand %vm1052, %vm1088
      %v1125 = vsel %vm1089, 1, 0
      %v1126 = vsel %vm1090, 1, 0
      %v1127 = vsel %vm1091, 1, 0
      %v1128 = vsel %vm1092, 1, 0
      %v1129 = vsel %vm1093, 1, 0
      %v1130 = vsel %vm1094, 1, 0
      %v1131 = vsel %vm1095, 1, 0
      %v1132 = vsel %vm1096, 1, 0
      %v1133 = vsel %vm1097, 1, 0
      %v1134 = vsel %vm1098, 1, 0
      %v1135 = vsel %vm1099, 1, 0
      %v1136 = vsel %vm1100, 1, 0
      %v1137 = vsel %vm1101, 1, 0
      %v1138 = vsel %vm1102, 1, 0
      %v1139 = vsel %vm1103, 1, 0
      %v1140 = vsel %vm1104, 1, 0
      %v1141 = vsel %vm1105, 1, 0
      %v1142 = vsel %vm1106, 1, 0
      %v1143 = vsel %vm1107, 1, 0
      %v1144 = vsel %vm1108, 1, 0
      %v1145 = vsel %vm1109, 1, 0
      %v1146 = vsel %vm1110, 1, 0
      %v1147 = vsel %vm1111, 1, 0
      %v1148 = vsel %vm1112, 1, 0
      %v1149 = vsel %vm1113, 1, 0
      %v1150 = vsel %vm1114, 1, 0
      %v1151 = vsel %vm1115, 1, 0
      %v1152 = vsel %vm1116, 1, 0
      %v1153 = vsel %vm1117, 1, 0
      %v1154 = vsel %vm1118, 1, 0
      %v1155 = vsel %vm1119, 1, 0
      %v1156 = vsel %vm1120, 1, 0
      %v1157 = vsel %vm1121, 1, 0
      %v1158 = vsel %vm1122, 1, 0
      %v1159 = vsel %vm1123, 1, 0
      %v1160 = vsel %vm1124, 1, 0
      %vm1161 = vcmp.eq.s32.totalorder %v1125, 1
      %vm1162 = vcmp.eq.s32.totalorder %v1126, 1
      %vm1163 = vcmp.eq.s32.totalorder %v1127, 1
      %vm1164 = vcmp.eq.s32.totalorder %v1128, 1
      %vm1165 = vcmp.eq.s32.totalorder %v1129, 1
      %vm1166 = vcmp.eq.s32.totalorder %v1130, 1
      %vm1167 = vcmp.eq.s32.totalorder %v1131, 1
      %vm1168 = vcmp.eq.s32.totalorder %v1132, 1
      %vm1169 = vcmp.eq.s32.totalorder %v1133, 1
      %vm1170 = vcmp.eq.s32.totalorder %v1134, 1
      %vm1171 = vcmp.eq.s32.totalorder %v1135, 1
      %vm1172 = vcmp.eq.s32.totalorder %v1136, 1
      %vm1173 = vcmp.eq.s32.totalorder %v1137, 1
      %vm1174 = vcmp.eq.s32.totalorder %v1138, 1
      %vm1175 = vcmp.eq.s32.totalorder %v1139, 1
      %vm1176 = vcmp.eq.s32.totalorder %v1140, 1
      %vm1177 = vcmp.eq.s32.totalorder %v1141, 1
      %vm1178 = vcmp.eq.s32.totalorder %v1142, 1
      %vm1179 = vcmp.eq.s32.totalorder %v1143, 1
      %vm1180 = vcmp.eq.s32.totalorder %v1144, 1
      %vm1181 = vcmp.eq.s32.totalorder %v1145, 1
      %vm1182 = vcmp.eq.s32.totalorder %v1146, 1
      %vm1183 = vcmp.eq.s32.totalorder %v1147, 1
      %vm1184 = vcmp.eq.s32.totalorder %v1148, 1
      %vm1185 = vcmp.eq.s32.totalorder %v1149, 1
      %vm1186 = vcmp.eq.s32.totalorder %v1150, 1
      %vm1187 = vcmp.eq.s32.totalorder %v1151, 1
      %vm1188 = vcmp.eq.s32.totalorder %v1152, 1
      %vm1189 = vcmp.eq.s32.totalorder %v1153, 1
      %vm1190 = vcmp.eq.s32.totalorder %v1154, 1
      %vm1191 = vcmp.eq.s32.totalorder %v1155, 1
      %vm1192 = vcmp.eq.s32.totalorder %v1156, 1
      %vm1193 = vcmp.eq.s32.totalorder %v1157, 1
      %vm1194 = vcmp.eq.s32.totalorder %v1158, 1
      %vm1195 = vcmp.eq.s32.totalorder %v1159, 1
      %vm1196 = vcmp.eq.s32.totalorder %v1160, 1
      %v1197 = vsel %vm1161, %v368, 0.0
      %v1198 = vsel %vm1162, %v369, 0.0
      %v1199 = vsel %vm1163, %v370, 0.0
      %v1200 = vsel %vm1164, %v371, 0.0
      %v1201 = vsel %vm1165, %v372, 0.0
      %v1202 = vsel %vm1166, %v373, 0.0
      %v1203 = vsel %vm1167, %v374, 0.0
      %v1204 = vsel %vm1168, %v375, 0.0
      %v1205 = vsel %vm1169, %v376, 0.0
      %v1206 = vsel %vm1170, %v377, 0.0
      %v1207 = vsel %vm1171, %v378, 0.0
      %v1208 = vsel %vm1172, %v379, 0.0
      %v1209 = vsel %vm1173, %v380, 0.0
      %v1210 = vsel %vm1174, %v381, 0.0
      %v1211 = vsel %vm1175, %v382, 0.0
      %v1212 = vsel %vm1176, %v383, 0.0
      %v1213 = vsel %vm1177, %v384, 0.0
      %v1214 = vsel %vm1178, %v385, 0.0
      %v1215 = vsel %vm1179, %v386, 0.0
      %v1216 = vsel %vm1180, %v387, 0.0
      %v1217 = vsel %vm1181, %v388, 0.0
      %v1218 = vsel %vm1182, %v389, 0.0
      %v1219 = vsel %vm1183, %v390, 0.0
      %v1220 = vsel %vm1184, %v391, 0.0
      %v1221 = vsel %vm1185, %v392, 0.0
      %v1222 = vsel %vm1186, %v393, 0.0
      %v1223 = vsel %vm1187, %v394, 0.0
      %v1224 = vsel %vm1188, %v395, 0.0
      %v1225 = vsel %vm1189, %v396, 0.0
      %v1226 = vsel %vm1190, %v397, 0.0
      %v1227 = vsel %vm1191, %v398, 0.0
      %v1228 = vsel %vm1192, %v399, 0.0
      %v1229 = vsel %vm1193, %v400, 0.0
      %v1230 = vsel %vm1194, %v401, 0.0
      %v1231 = vsel %vm1195, %v402, 0.0
      %v1232 = vsel %vm1196, %v403, 0.0
      %v1233 = vpack.c.bf16 %v1198, %v1197
      %v1234 = vpack.c.bf16 %v1200, %v1199
      %v1235 = vpack.c.bf16 %v1202, %v1201
      %v1236 = vpack.c.bf16 %v1204, %v1203
      %v1237 = vpack.c.bf16 %v1206, %v1205
      %v1238 = vpack.c.bf16 %v1208, %v1207
      %v1239 = vpack.c.bf16 %v1210, %v1209
      %v1240 = vpack.c.bf16 %v1212, %v1211
      %v1241 = vpack.c.bf16 %v1214, %v1213
      %v1242 = vpack.c.bf16 %v1216, %v1215
      %v1243 = vpack.c.bf16 %v1218, %v1217
      %v1244 = vpack.c.bf16 %v1220, %v1219
      %v1245 = vpack.c.bf16 %v1222, %v1221
      %v1246 = vpack.c.bf16 %v1224, %v1223
      %v1247 = vpack.c.bf16 %v1226, %v1225
      %v1248 = vpack.c.bf16 %v1228, %v1227
      %v1249 = vpack.c.bf16 %v1230, %v1229
      %v1250 = vpack.c.bf16 %v1232, %v1231
      %v1269 = vunpack.c.l.b16 %v1233
      %v1270 = vunpack.c.h.b16 %v1233
      %v1271 = vunpack.c.l.b16 %v1234
      %v1272 = vunpack.c.h.b16 %v1234
      %v1273 = vunpack.c.l.b16 %v1235
      %v1274 = vunpack.c.h.b16 %v1235
      %v1275 = vunpack.c.l.b16 %v1236
      %v1276 = vunpack.c.h.b16 %v1236
      %v1277 = vunpack.c.l.b16 %v1237
      %v1278 = vunpack.c.h.b16 %v1237
      %v1279 = vunpack.c.l.b16 %v1238
      %v1280 = vunpack.c.h.b16 %v1238
      %v1281 = vunpack.c.l.b16 %v1239
      %v1282 = vunpack.c.h.b16 %v1239
      %v1283 = vunpack.c.l.b16 %v1240
      %v1284 = vunpack.c.h.b16 %v1240
      %v1285 = vunpack.c.l.b16 %v1241
      %v1286 = vunpack.c.h.b16 %v1241
      %v1287 = vunpack.c.l.b16 %v1242
      %v1288 = vunpack.c.h.b16 %v1242
      %v1289 = vunpack.c.l.b16 %v1243
      %v1290 = vunpack.c.h.b16 %v1243
      %v1291 = vunpack.c.l.b16 %v1244
      %v1292 = vunpack.c.h.b16 %v1244
      %v1293 = vunpack.c.l.b16 %v1245
      %v1294 = vunpack.c.h.b16 %v1245
      %v1295 = vunpack.c.l.b16 %v1246
      %v1296 = vunpack.c.h.b16 %v1246
      %v1297 = vunpack.c.l.b16 %v1247
      %v1298 = vunpack.c.h.b16 %v1247
      %v1299 = vunpack.c.l.b16 %v1248
      %v1300 = vunpack.c.h.b16 %v1248
      %v1301 = vunpack.c.l.b16 %v1249
      %v1302 = vunpack.c.h.b16 %v1249
      %v1303 = vunpack.c.l.b16 %v1250
      %v1304 = vunpack.c.h.b16 %v1250
      %v1305 = vpack.c.b16 %v1269, %v1269
      %v1306 = vpack.c.b16 %v1270, %v1270
      %v1307 = vpack.c.b16 %v1271, %v1271
      %v1308 = vpack.c.b16 %v1272, %v1272
      %v1309 = vpack.c.b16 %v1273, %v1273
      %v1310 = vpack.c.b16 %v1274, %v1274
      %v1311 = vpack.c.b16 %v1275, %v1275
      %v1312 = vpack.c.b16 %v1276, %v1276
      %v1313 = vpack.c.b16 %v1277, %v1277
      %v1314 = vpack.c.b16 %v1278, %v1278
      %v1315 = vpack.c.b16 %v1279, %v1279
      %v1316 = vpack.c.b16 %v1280, %v1280
      %v1317 = vpack.c.b16 %v1281, %v1281
      %v1318 = vpack.c.b16 %v1282, %v1282
      %v1319 = vpack.c.b16 %v1283, %v1283
      %v1320 = vpack.c.b16 %v1284, %v1284
      %v1321 = vpack.c.b16 %v1285, %v1285
      %v1322 = vpack.c.b16 %v1286, %v1286
      %v1323 = vpack.c.b16 %v1287, %v1287
      %v1324 = vpack.c.b16 %v1288, %v1288
      %v1325 = vpack.c.b16 %v1289, %v1289
      %v1326 = vpack.c.b16 %v1290, %v1290
      %v1327 = vpack.c.b16 %v1291, %v1291
      %v1328 = vpack.c.b16 %v1292, %v1292
      %v1329 = vpack.c.b16 %v1293, %v1293
      %v1330 = vpack.c.b16 %v1294, %v1294
      %v1331 = vpack.c.b16 %v1295, %v1295
      %v1332 = vpack.c.b16 %v1296, %v1296
      %v1333 = vpack.c.b16 %v1297, %v1297
      %v1334 = vpack.c.b16 %v1298, %v1298
      %v1335 = vpack.c.b16 %v1299, %v1299
      %v1336 = vpack.c.b16 %v1300, %v1300
      %v1337 = vpack.c.b16 %v1301, %v1301
      %v1338 = vpack.c.b16 %v1302, %v1302
      %v1339 = vpack.c.b16 %v1303, %v1303
      %v1340 = vpack.c.b16 %v1304, %v1304
      %vm1377 = vcmask 60416
      %1378 = vst.msk [vmem:[%s208] sm:$0xf] %vm1377, %v1305
      %1379 = vst.msk [vmem:[%s208 + $0x4] sm:$0xf] %vm1377, %v1306
      %1380 = vst.msk [vmem:[%s208 + $0x8] sm:$0xf] %vm1377, %v1307
      %1381 = vst.msk [vmem:[%s208 + $0xc] sm:$0xf] %vm1377, %v1308
      %1382 = vst.msk [vmem:[%s208 + $0x10] sm:$0xf] %vm1377, %v1309
      %1383 = vst.msk [vmem:[%s208 + $0x14] sm:$0xf] %vm1377, %v1310
      %1384 = vst.msk [vmem:[%s208 + $0x18] sm:$0xf] %vm1377, %v1311
      %1385 = vst.msk [vmem:[%s208 + $0x1c] sm:$0xf] %vm1377, %v1312
      %1386 = vst.msk [vmem:[%s208 + $0x20] sm:$0xf] %vm1377, %v1313
      %1387 = vst.msk [vmem:[%s208 + $0x24] sm:$0xf] %vm1377, %v1314
      %1388 = vst.msk [vmem:[%s208 + $0x28] sm:$0xf] %vm1377, %v1315
      %1389 = vst.msk [vmem:[%s208 + $0x2c] sm:$0xf] %vm1377, %v1316
      %1390 = vst.msk [vmem:[%s208 + $0x30] sm:$0xf] %vm1377, %v1317
      %1391 = vst.msk [vmem:[%s208 + $0x34] sm:$0xf] %vm1377, %v1318
      %1392 = vst.msk [vmem:[%s208 + $0x38] sm:$0xf] %vm1377, %v1319
      %1393 = vst.msk [vmem:[%s208 + $0x3c] sm:$0xf] %vm1377, %v1320
      %1394 = vst.msk [vmem:[%s208 + $0x40] sm:$0xf] %vm1377, %v1321
      %1395 = vst.msk [vmem:[%s208 + $0x44] sm:$0xf] %vm1377, %v1322
      %1396 = vst.msk [vmem:[%s208 + $0x48] sm:$0xf] %vm1377, %v1323
      %1397 = vst.msk [vmem:[%s208 + $0x4c] sm:$0xf] %vm1377, %v1324
      %1398 = vst.msk [vmem:[%s208 + $0x50] sm:$0xf] %vm1377, %v1325
      %1399 = vst.msk [vmem:[%s208 + $0x54] sm:$0xf] %vm1377, %v1326
      %1400 = vst.msk [vmem:[%s208 + $0x58] sm:$0xf] %vm1377, %v1327
      %1401 = vst.msk [vmem:[%s208 + $0x5c] sm:$0xf] %vm1377, %v1328
      %1402 = vst.msk [vmem:[%s208 + $0x60] sm:$0xf] %vm1377, %v1329
      %1403 = vst.msk [vmem:[%s208 + $0x64] sm:$0xf] %vm1377, %v1330
      %1404 = vst.msk [vmem:[%s208 + $0x68] sm:$0xf] %vm1377, %v1331
      %1405 = vst.msk [vmem:[%s208 + $0x6c] sm:$0xf] %vm1377, %v1332
      %1406 = vst.msk [vmem:[%s208 + $0x70] sm:$0xf] %vm1377, %v1333
      %1407 = vst.msk [vmem:[%s208 + $0x74] sm:$0xf] %vm1377, %v1334
      %1408 = vst.msk [vmem:[%s208 + $0x78] sm:$0xf] %vm1377, %v1335
      %1409 = vst.msk [vmem:[%s208 + $0x7c] sm:$0xf] %vm1377, %v1336
      %1410 = vst.msk [vmem:[%s208 + $0x80] sm:$0xf] %vm1377, %v1337
      %1411 = vst.msk [vmem:[%s208 + $0x84] sm:$0xf] %vm1377, %v1338
      %1412 = vst.msk [vmem:[%s208 + $0x88] sm:$0xf] %vm1377, %v1339
      %1413 = vst.msk [vmem:[%s208 + $0x8c] sm:$0xf] %vm1377, %v1340
      %s1414 = smul.u32 36, %s19
      %p1415 = scmp.lt.s32.totalorder %s18, 1
      %s1416 = scalar_select %p1415, %s18, 1
      %p1417 = scmp.lt.s32.totalorder %s1414, 35
      %s1418 = scalar_select %p1417, %s1414, 35
      %s1419 = smul.addr %s1416, 36
      %s1420 = sadd.s32 %s1418, %s1419
      %s1421 = smul.addr %s1420, 4
      %s1422 = scalar_lea.vmem %s3, %s1421
      // Predicated region
      $region33: #{_lambda_.6} parent=31 // pred_check
        %p1423 = pneg %p116
      $region34: #{_lambda_.6} parent=31 // pred_check_branch
        %1425 = sbr.rel (%p1423) target = $region36
      $region35: #{_lambda_.6} parent=31 // pred_region
        %s1426 = smul.u32 36, %s19
      $region36: #{_lambda_.6} parent=31 // pred_fallthru
        _
    $region32: #{_lambda_.6} parent=5 // pred_fallthru
      _
    %p1427 = scmp.le.s32.totalorder 2, %s9
    // Predicated region
    $region37: #{_lambda_.6} parent=5 // pred_check
      %p1428 = pneg %p1427
    $region38: #{_lambda_.6} parent=5 // pred_check_branch
      %1430 = sbr.rel (%p1428) target = $region40
    $region39: #{_lambda_.6} parent=5 // pred_region
      %s1431 = ssub.s32 %s9, 2
      // Predicated region
      $region41: #{_lambda_.6} parent=39 // pred_check
        %p1432 = pneg %p122
      $region42: #{_lambda_.6} parent=39 // pred_check_branch
        %1434 = sbr.rel (%p1432) target = $region44
      $region43: #{_lambda_.6} parent=39 // pred_region
        %s1435 = smul.u32 36, %s21
        %p1436 = scmp.lt.s32.totalorder %s20, 1
        %s1437 = scalar_select %p1436, %s20, 1
        %p1438 = scmp.lt.s32.totalorder %s1435, 35
        %s1439 = scalar_select %p1438, %s1435, 35
        %s1440 = smul.addr %s1437, 36
        %s1441 = sadd.s32 %s1439, %s1440
        %s1442 = smul.addr %s1441, 4
        %s1443 = scalar_lea.vmem %s3, %s1442
      $region44: #{_lambda_.6} parent=39 // pred_fallthru
        _
    $region40: #{_lambda_.6} parent=5 // pred_fallthru
      _
  $region6: #{_lambda_.6} parent=0 // loop_footer
    %s13 = sadd.s32 1, %s9
  $region7: #{_lambda_.6} parent=0 // loop_footer_branch
    %8 = sbr.rel target = $region3
  $region8: #{_lambda_.6} parent=0 // loop_exit
    _

// kernel: _lambda_.8
$region0: #{_lambda_.8}
  #allocation0 [shape = 'u32[]', space=smem, size = 0x4, offset = 0x4, fixed_abs, tag = 'smem constant byte address 0x4 - core index']
  #allocation1 [shape = 'u32[144,128]{1,0:T(1,128)}', space=vmem, size = 0x12000, scoped, tag = 'internal scratch']
  %s0 = inlined_call_operand.vmem [shape: bf16[2,80,16], index: 0, kind: input, shape index: {}]
  %s1 = inlined_call_operand.vmem [shape: f32[1,16], index: 1, kind: input, shape index: {}]
  %s2 = inlined_call_operand.vmem [shape: f32[1,16], index: 2, kind: input, shape index: {}]
  %s3 = inlined_call_operand.vmem [shape: bf16[2,80,16], index: 3, kind: output, shape index: {}]
  %s4 = sld [smem:[#allocation0]]
  $region45: #{_lambda_.8} parent=0
    _
  %s6 = ssub.s32 1, %s4
  %s7 = scalar_select 0, %s6, %s4
  loop: start=0, step=1, limit=4
  $region2: #{_lambda_.8} parent=0 // loop_pre_header
    _
  $region3: #{_lambda_.8} parent=0 // loop_header
    %s9 = sphi 0, %s13
    %p10 = scmp.ge.s32.totalorder %s9, 4
    %s16 = sphi 0, %s28
    %s17 = sphi 0, %s24
    %s18 = sphi 0, %s16
    %s19 = sphi 0, %s17
    %s20 = sphi 0, %s18
    %s21 = sphi 0, %s19
    %s33 = sphi 0, %s35
    %s36 = sphi 0, %s33
    %s37 = sphi 0, %s36
    %s53 = sphi 0, %s37
    %s57 = sphi 0, %s57
    %s59 = sphi 0, %s57
    %s60 = sphi 0, %s59
    %s74 = sphi 0, %s60
    %s78 = sphi 0, %s78
    %s80 = sphi 0, %s78
    %s81 = sphi 0, %s80
    %s95 = sphi 0, %s81
    %s103 = sphi 0, %s105
    %s106 = sphi 0, %s103
    %s107 = sphi 0, %s106
    %s123 = sphi 0, %s107
  $region4: #{_lambda_.8} parent=0 // loop_header_branch
    %12 = sbr.rel (%p10) target = $region8
  $region5: #{_lambda_.8} parent=0 // loop_body
    %s14 = ssub.s32 %s9, 1
    %s15 = ssub.s32 %s9, 2
    %s22 = sadd.s32 1, %s17
    %p23 = scmp.ge.s32.totalorder %s22, 1
    %s24 = scalar_select %p23, 0, %s22
    %s25 = sadd.s32 1, %s16
    %s26 = scalar_select %p23, %s25, %s16
    %p27 = scmp.ge.s32.totalorder %s26, 2
    %s28 = scalar_select %p27, 0, %s26
    %s29 = ssub.s32 %s16, %s28
    %s30 = ssub.s32 %s17, %s24
    %s31 = sor.u32 %s29, %s30
    %p32 = scmp.eq.s32.totalorder %s31, 0
    %s34 = sadd.s32 %s33, 1
    %s35 = scalar_select %p32, %s33, %s34
    %p38 = pneg %p32
    %p39 = scmp.eq.s32.totalorder %s9, 1
    %p40 = por %p38, %p39
    %p41 = scmp.ne.s32.totalorder %s33, %s36
    %p42 = scmp.eq.s32.totalorder %s9, 0
    %p43 = por %p41, %p42
    %p44 = scmp.ne.s32.totalorder %s33, %s36
    %p45 = scmp.eq.s32.totalorder %s14, 1
    %p46 = por %p44, %p45
    %p47 = scmp.ne.s32.totalorder %s36, %s37
    %p48 = scmp.eq.s32.totalorder %s14, 0
    %p49 = por %p47, %p48
    %p50 = scmp.ne.s32.totalorder %s36, %s37
    %p51 = scmp.eq.s32.totalorder %s15, 1
    %p52 = por %p50, %p51
    %p54 = scmp.ne.s32.totalorder %s37, %s53
    %p55 = scmp.eq.s32.totalorder %s15, 0
    %p56 = por %p54, %p55
    %s58 = sadd.s32 %s57, 1
    %p61 = scmp.eq.s32.totalorder %s9, 1
    %p62 = scmp.ne.s32.totalorder %s57, %s59
    %p63 = scmp.eq.s32.totalorder %s9, 0
    %p64 = por %p62, %p63
    %p65 = scmp.ne.s32.totalorder %s57, %s59
    %p66 = scmp.eq.s32.totalorder %s14, 1
    %p67 = por %p65, %p66
    %p68 = scmp.ne.s32.totalorder %s59, %s60
    %p69 = scmp.eq.s32.totalorder %s14, 0
    %p70 = por %p68, %p69
    %p71 = scmp.ne.s32.totalorder %s59, %s60
    %p72 = scmp.eq.s32.totalorder %s15, 1
    %p73 = por %p71, %p72
    %p75 = scmp.ne.s32.totalorder %s60, %s74
    %p76 = scmp.eq.s32.totalorder %s15, 0
    %p77 = por %p75, %p76
    %s79 = sadd.s32 %s78, 1
    %p82 = scmp.eq.s32.totalorder %s9, 1
    %p83 = scmp.ne.s32.totalorder %s78, %s80
    %p84 = scmp.eq.s32.totalorder %s9, 0
    %p85 = por %p83, %p84
    %p86 = scmp.ne.s32.totalorder %s78, %s80
    %p87 = scmp.eq.s32.totalorder %s14, 1
    %p88 = por %p86, %p87
    %p89 = scmp.ne.s32.totalorder %s80, %s81
    %p90 = scmp.eq.s32.totalorder %s14, 0
    %p91 = por %p89, %p90
    %p92 = scmp.ne.s32.totalorder %s80, %s81
    %p93 = scmp.eq.s32.totalorder %s15, 1
    %p94 = por %p92, %p93
    %p96 = scmp.ne.s32.totalorder %s81, %s95
    %p97 = scmp.eq.s32.totalorder %s15, 0
    %p98 = por %p96, %p97
    %s99 = ssub.s32 %s16, %s28
    %s100 = ssub.s32 %s17, %s24
    %s101 = sor.u32 %s99, %s100
    %p102 = scmp.eq.s32.totalorder %s101, 0
    %s104 = sadd.s32 %s103, 1
    %s105 = scalar_select %p102, %s103, %s104
    %p108 = pneg %p102
    %p109 = scmp.eq.s32.totalorder %s9, 1
    %p110 = por %p108, %p109
    %p111 = scmp.ne.s32.totalorder %s103, %s106
    %p112 = scmp.eq.s32.totalorder %s9, 0
    %p113 = por %p111, %p112
    %p114 = scmp.ne.s32.totalorder %s103, %s106
    %p115 = scmp.eq.s32.totalorder %s14, 1
    %p116 = por %p114, %p115
    %p117 = scmp.ne.s32.totalorder %s106, %s107
    %p118 = scmp.eq.s32.totalorder %s14, 0
    %p119 = por %p117, %p118
    %p120 = scmp.ne.s32.totalorder %s106, %s107
    %p121 = scmp.eq.s32.totalorder %s15, 1
    %p122 = por %p120, %p121
    %p124 = scmp.ne.s32.totalorder %s107, %s123
    %p125 = scmp.eq.s32.totalorder %s15, 0
    %p126 = por %p124, %p125
    %p127 = scmp.le.s32.totalorder 1, %s9
    %p128 = scmp.lt.s32.totalorder %s9, 3
    %p129 = pnand %p127, %p128
    %p130 = pneg %p129
    // Predicated region
    $region9: #{_lambda_.8} parent=5 // pred_check
      _
    $region10: #{_lambda_.8} parent=5 // pred_check_branch
      %132 = sbr.rel (%p129) target = $region12
    $region11: #{_lambda_.8} parent=5 // pred_region
      %s133 = ssub.s32 %s9, 1
      // Predicated region
      $region13: #{_lambda_.8} parent=11 // pred_check
        %p134 = pneg %p70
      $region14: #{_lambda_.8} parent=11 // pred_check_branch
        %136 = sbr.rel (%p134) target = $region16
      $region15: #{_lambda_.8} parent=11 // pred_region
        _
      $region16: #{_lambda_.8} parent=11 // pred_fallthru
        _
      // Predicated region
      $region17: #{_lambda_.8} parent=11 // pred_check
        %p137 = pneg %p91
      $region18: #{_lambda_.8} parent=11 // pred_check_branch
        %139 = sbr.rel (%p137) target = $region20
      $region19: #{_lambda_.8} parent=11 // pred_region
        _
      $region20: #{_lambda_.8} parent=11 // pred_fallthru
        _
    $region12: #{_lambda_.8} parent=5 // pred_fallthru
      _
    %p140 = scmp.lt.s32.totalorder %s9, 2
    // Predicated region
    $region21: #{_lambda_.8} parent=5 // pred_check
      %p141 = pneg %p140
    $region22: #{_lambda_.8} parent=5 // pred_check_branch
      %143 = sbr.rel (%p141) target = $region24
    $region23: #{_lambda_.8} parent=5 // pred_region
      // Predicated region
      $region25: #{_lambda_.8} parent=23 // pred_check
        %p144 = pneg %p43
      $region26: #{_lambda_.8} parent=23 // pred_check_branch
        %146 = sbr.rel (%p144) target = $region28
      $region27: #{_lambda_.8} parent=23 // pred_region
        %s147 = smul.u32 10, %s17
        %p148 = scmp.lt.s32.totalorder %s16, 1
        %s149 = scalar_select %p148, %s16, 1
        %p150 = scmp.lt.s32.totalorder %s147, 9
        %s151 = scalar_select %p150, %s147, 9
        %s152 = smul.addr %s149, 10
        %s153 = sadd.s32 %s151, %s152
        %s154 = smul.addr %s153, 4
        %s155 = scalar_lea.vmem %s0, %s154
        %s156 = smul.u32 10, %s17
      $region28: #{_lambda_.8} parent=23 // pred_fallthru
        _
    $region24: #{_lambda_.8} parent=5 // pred_fallthru
      _
    %p157 = scmp.le.s32.totalorder 1, %s9
    %p158 = scmp.lt.s32.totalorder %s9, 3
    %p159 = pnand %p157, %p158
    %p160 = pneg %p159
    // Predicated region
    $region29: #{_lambda_.8} parent=5 // pred_check
      _
    $region30: #{_lambda_.8} parent=5 // pred_check_branch
      %162 = sbr.rel (%p159) target = $region32
    $region31: #{_lambda_.8} parent=5 // pred_region
      %s163 = ssub.s32 %s9, 1
      %s164 = smul.u32 10, %s19
      %p165 = scmp.lt.s32.totalorder %s18, 1
      %s166 = scalar_select %p165, %s18, 1
      %p167 = scmp.lt.s32.totalorder %s164, 9
      %s168 = scalar_select %p167, %s164, 9
      %s169 = smul.addr %s166, 10
      %s170 = sadd.s32 %s168, %s169
      %s171 = smul.addr %s170, 4
      %s172 = scalar_lea.vmem %s0, %s171
      %p173 = pneg %p49
      %p174 = pneg %p46
      %p175 = pneg %p70
      %p176 = pneg %p67
      %p177 = pneg %p91
      %p178 = pneg %p88
      %p179 = pneg %p119
      %p180 = pneg %p116
      %s181 = smul.u32 10, %s19
      %p182 = scmp.lt.s32.totalorder %s18, 1
      %s183 = scalar_select %p182, %s18, 1
      %p184 = scmp.lt.s32.totalorder %s181, 9
      %s185 = scalar_select %p184, %s181, 9
      %s186 = smul.addr %s183, 10
      %s187 = sadd.s32 %s185, %s186
      %s188 = smul.addr %s187, 4
      %s189 = scalar_lea.vmem %s3, %s188
      %s190 = smul.u32 10, %s19
      %p191 = scmp.lt.s32.totalorder %s18, 1
      %s192 = scalar_select %p191, %s18, 1
      %p193 = scmp.lt.s32.totalorder %s190, 9
      %s194 = scalar_select %p193, %s190, 9
      %s195 = smul.addr %s192, 10
      %s196 = sadd.s32 %s194, %s195
      %s197 = smul.addr %s196, 4
      %s198 = scalar_lea.vmem %s0, %s197
      %s199 = smul.u32 10, %s19
      %s200 = smul.u32 10, %s19
      %p201 = scmp.lt.s32.totalorder %s18, 1
      %s202 = scalar_select %p201, %s18, 1
      %p203 = scmp.lt.s32.totalorder %s200, 9
      %s204 = scalar_select %p203, %s200, 9
      %s205 = smul.addr %s202, 10
      %s206 = sadd.s32 %s204, %s205
      %s207 = smul.addr %s206, 4
      %s208 = scalar_lea.vmem %s3, %s207
      %s209 = smul.u32 10, %s19
      %v210 = vld [vmem:[%s198] sm:$0xf]
      %v211 = vld [vmem:[%s198 + $0x4] sm:$0xf]
      %v212 = vld [vmem:[%s198 + $0x8] sm:$0xf]
      %v213 = vld [vmem:[%s198 + $0xc] sm:$0xf]
      %v214 = vld [vmem:[%s198 + $0x10] sm:$0xf]
      %v215 = vld [vmem:[%s198 + $0x14] sm:$0xf]
      %v216 = vld [vmem:[%s198 + $0x18] sm:$0xf]
      %v217 = vld [vmem:[%s198 + $0x1c] sm:$0xf]
      %v218 = vld [vmem:[%s198 + $0x20] sm:$0xf]
      %v219 = vld [vmem:[%s198 + $0x24] sm:$0xf]
      %v220 = vunpack.c.l.bf16 %v210
      %v221 = vunpack.c.l.bf16 %v211
      %v222 = vunpack.c.l.bf16 %v212
      %v223 = vunpack.c.l.bf16 %v213
      %v224 = vunpack.c.l.bf16 %v214
      %v225 = vunpack.c.l.bf16 %v215
      %v226 = vunpack.c.l.bf16 %v216
      %v227 = vunpack.c.l.bf16 %v217
      %v228 = vunpack.c.l.bf16 %v218
      %v229 = vunpack.c.l.bf16 %v219
      %v230 = vld [vmem:[%s1] sm:$0x1]
      %v232 = vlaneseq
      %v233 = vshrl.u32 %v232, 7
      %v234 = vsub.s32 0, %v233
      %v235 = vrot.slane %v230, %v234
      %v237 = vmul.f32 %v220, %v235
      %v238 = vmul.f32 %v221, %v235
      %v239 = vmul.f32 %v222, %v235
      %v240 = vmul.f32 %v223, %v235
      %v241 = vmul.f32 %v224, %v235
      %v242 = vmul.f32 %v225, %v235
      %v243 = vmul.f32 %v226, %v235
      %v244 = vmul.f32 %v227, %v235
      %v245 = vmul.f32 %v228, %v235
      %v246 = vmul.f32 %v229, %v235
      %v247 = vld [vmem:[%s2] sm:$0x1]
      %v249 = vlaneseq
      %v250 = vshrl.u32 %v249, 7
      %v251 = vsub.s32 0, %v250
      %v252 = vrot.slane %v247, %v251
      %v254 = vadd.f32 %v237, %v252
      %v255 = vadd.f32 %v238, %v252
      %v256 = vadd.f32 %v239, %v252
      %v257 = vadd.f32 %v240, %v252
      %v258 = vadd.f32 %v241, %v252
      %v259 = vadd.f32 %v242, %v252
      %v260 = vadd.f32 %v243, %v252
      %v261 = vadd.f32 %v244, %v252
      %v262 = vadd.f32 %v245, %v252
      %v263 = vadd.f32 %v246, %v252
      %v264 = vmax.f32 %v254, 0.0
      %v265 = vmax.f32 %v255, 0.0
      %v266 = vmax.f32 %v256, 0.0
      %v267 = vmax.f32 %v257, 0.0
      %v268 = vmax.f32 %v258, 0.0
      %v269 = vmax.f32 %v259, 0.0
      %v270 = vmax.f32 %v260, 0.0
      %v271 = vmax.f32 %v261, 0.0
      %v272 = vmax.f32 %v262, 0.0
      %v273 = vmax.f32 %v263, 0.0
      %v274 = vlaneseq
      %v275 = vshrl.u32 %v274, 7
      %v276 = vadd.s32 %v275, 8
      %v277 = vadd.s32 %v275, 16
      %v278 = vadd.s32 %v275, 24
      %v279 = vadd.s32 %v275, 32
      %v280 = vadd.s32 %v275, 40
      %v281 = vadd.s32 %v275, 48
      %v282 = vadd.s32 %v275, 56
      %v283 = vadd.s32 %v275, 64
      %v284 = vadd.s32 %v275, 72
      %vm285 = vcmp.lt.s32.totalorder %v275, 0
      %v286 = vsub.s32 0, %v275
      %v287 = vsel %vm285, %v286, %v275
      %v288 = vmul.u32.u64.compose %v287, 3435973837
      %v289 = vextract.low.u32 %v288
      %v290 = vextract.high.u32 %v288
      %v291 = vshrl.u32 %v290, 3
      %v292 = vmul.u32 %v291, 10
      %v293 = vsub.s32 %v287, %v292
      %v294 = vsub.s32 0, %v293
      %v295 = vsel %vm285, %v294, %v293
      %vm296 = vcmp.lt.s32.totalorder %v276, 0
      %v297 = vsub.s32 0, %v276
      %v298 = vsel %vm296, %v297, %v276
      %v299 = vmul.u32.u64.compose %v298, 3435973837
      %v300 = vextract.low.u32 %v299
      %v301 = vextract.high.u32 %v299
      %v302 = vshrl.u32 %v301, 3
      %v303 = vmul.u32 %v302, 10
      %v304 = vsub.s32 %v298, %v303
      %v305 = vsub.s32 0, %v304
      %v306 = vsel %vm296, %v305, %v304
      %vm307 = vcmp.lt.s32.totalorder %v277, 0
      %v308 = vsub.s32 0, %v277
      %v309 = vsel %vm307, %v308, %v277
      %v310 = vmul.u32.u64.compose %v309, 3435973837
      %v311 = vextract.low.u32 %v310
      %v312 = vextract.high.u32 %v310
      %v313 = vshrl.u32 %v312, 3
      %v314 = vmul.u32 %v313, 10
      %v315 = vsub.s32 %v309, %v314
      %v316 = vsub.s32 0, %v315
      %v317 = vsel %vm307, %v316, %v315
      %vm318 = vcmp.lt.s32.totalorder %v278, 0
      %v319 = vsub.s32 0, %v278
      %v320 = vsel %vm318, %v319, %v278
      %v321 = vmul.u32.u64.compose %v320, 3435973837
      %v322 = vextract.low.u32 %v321
      %v323 = vextract.high.u32 %v321
      %v324 = vshrl.u32 %v323, 3
      %v325 = vmul.u32 %v324, 10
      %v326 = vsub.s32 %v320, %v325
      %v327 = vsub.s32 0, %v326
      %v328 = vsel %vm318, %v327, %v326
      %vm329 = vcmp.lt.s32.totalorder %v279, 0
      %v330 = vsub.s32 0, %v279
      %v331 = vsel %vm329, %v330, %v279
      %v332 = vmul.u32.u64.compose %v331, 3435973837
      %v333 = vextract.low.u32 %v332
      %v334 = vextract.high.u32 %v332
      %v335 = vshrl.u32 %v334, 3
      %v336 = vmul.u32 %v335, 10
      %v337 = vsub.s32 %v331, %v336
      %v338 = vsub.s32 0, %v337
      %v339 = vsel %vm329, %v338, %v337
      %vm340 = vcmp.lt.s32.totalorder %v280, 0
      %v341 = vsub.s32 0, %v280
      %v342 = vsel %vm340, %v341, %v280
      %v343 = vmul.u32.u64.compose %v342, 3435973837
      %v344 = vextract.low.u32 %v343
      %v345 = vextract.high.u32 %v343
      %v346 = vshrl.u32 %v345, 3
      %v347 = vmul.u32 %v346, 10
      %v348 = vsub.s32 %v342, %v347
      %v349 = vsub.s32 0, %v348
      %v350 = vsel %vm340, %v349, %v348
      %vm351 = vcmp.lt.s32.totalorder %v281, 0
      %v352 = vsub.s32 0, %v281
      %v353 = vsel %vm351, %v352, %v281
      %v354 = vmul.u32.u64.compose %v353, 3435973837
      %v355 = vextract.low.u32 %v354
      %v356 = vextract.high.u32 %v354
      %v357 = vshrl.u32 %v356, 3
      %v358 = vmul.u32 %v357, 10
      %v359 = vsub.s32 %v353, %v358
      %v360 = vsub.s32 0, %v359
      %v361 = vsel %vm351, %v360, %v359
      %vm362 = vcmp.lt.s32.totalorder %v282, 0
      %v363 = vsub.s32 0, %v282
      %v364 = vsel %vm362, %v363, %v282
      %v365 = vmul.u32.u64.compose %v364, 3435973837
      %v366 = vextract.low.u32 %v365
      %v367 = vextract.high.u32 %v365
      %v368 = vshrl.u32 %v367, 3
      %v369 = vmul.u32 %v368, 10
      %v370 = vsub.s32 %v364, %v369
      %v371 = vsub.s32 0, %v370
      %v372 = vsel %vm362, %v371, %v370
      %vm373 = vcmp.lt.s32.totalorder %v283, 0
      %v374 = vsub.s32 0, %v283
      %v375 = vsel %vm373, %v374, %v283
      %v376 = vmul.u32.u64.compose %v375, 3435973837
      %v377 = vextract.low.u32 %v376
      %v378 = vextract.high.u32 %v376
      %v379 = vshrl.u32 %v378, 3
      %v380 = vmul.u32 %v379, 10
      %v381 = vsub.s32 %v375, %v380
      %v382 = vsub.s32 0, %v381
      %v383 = vsel %vm373, %v382, %v381
      %vm384 = vcmp.lt.s32.totalorder %v284, 0
      %v385 = vsub.s32 0, %v284
      %v386 = vsel %vm384, %v385, %v284
      %v387 = vmul.u32.u64.compose %v386, 3435973837
      %v388 = vextract.low.u32 %v387
      %v389 = vextract.high.u32 %v387
      %v390 = vshrl.u32 %v389, 3
      %v391 = vmul.u32 %v390, 10
      %v392 = vsub.s32 %v386, %v391
      %v393 = vsub.s32 0, %v392
      %v394 = vsel %vm384, %v393, %v392
      %vm395 = vcmp.ne.s32.totalorder %v295, 0
      %vm396 = vcmp.ne.s32.totalorder %v306, 0
      %vm397 = vcmp.ne.s32.totalorder %v317, 0
      %vm398 = vcmp.ne.s32.totalorder %v328, 0
      %vm399 = vcmp.ne.s32.totalorder %v339, 0
      %vm400 = vcmp.ne.s32.totalorder %v350, 0
      %vm401 = vcmp.ne.s32.totalorder %v361, 0
      %vm402 = vcmp.ne.s32.totalorder %v372, 0
      %vm403 = vcmp.ne.s32.totalorder %v383, 0
      %vm404 = vcmp.ne.s32.totalorder %v394, 0
      %vm405 = vcmp.lt.s32.totalorder %v295, 0
      %vm406 = vcmp.lt.s32.totalorder %v306, 0
      %vm407 = vcmp.lt.s32.totalorder %v317, 0
      %vm408 = vcmp.lt.s32.totalorder %v328, 0
      %vm409 = vcmp.lt.s32.totalorder %v339, 0
      %vm410 = vcmp.lt.s32.totalorder %v350, 0
      %vm411 = vcmp.lt.s32.totalorder %v361, 0
      %vm412 = vcmp.lt.s32.totalorder %v372, 0
      %vm413 = vcmp.lt.s32.totalorder %v383, 0
      %vm414 = vcmp.lt.s32.totalorder %v394, 0
      %vm415 = vmand %vm405, %vm395
      %vm416 = vmand %vm406, %vm396
      %vm417 = vmand %vm407, %vm397
      %vm418 = vmand %vm408, %vm398
      %vm419 = vmand %vm409, %vm399
      %vm420 = vmand %vm410, %vm400
      %vm421 = vmand %vm411, %vm401
      %vm422 = vmand %vm412, %vm402
      %vm423 = vmand %vm413, %vm403
      %vm424 = vmand %vm414, %vm404
      %v425 = vadd.s32 %v295, 10
      %v426 = vadd.s32 %v306, 10
      %v427 = vadd.s32 %v317, 10
      %v428 = vadd.s32 %v328, 10
      %v429 = vadd.s32 %v339, 10
      %v430 = vadd.s32 %v350, 10
      %v431 = vadd.s32 %v361, 10
      %v432 = vadd.s32 %v372, 10
      %v433 = vadd.s32 %v383, 10
      %v434 = vadd.s32 %v394, 10
      %v435 = vsel %vm415, %v425, %v295
      %v436 = vsel %vm416, %v426, %v306
      %v437 = vsel %vm417, %v427, %v317
      %v438 = vsel %vm418, %v428, %v328
      %v439 = vsel %vm419, %v429, %v339
      %v440 = vsel %vm420, %v430, %v350
      %v441 = vsel %vm421, %v431, %v361
      %v442 = vsel %vm422, %v432, %v372
      %v443 = vsel %vm423, %v433, %v383
      %v444 = vsel %vm424, %v434, %v394
      %vm445 = vcmp.ge.s32.totalorder %v435, 1
      %vm446 = vcmp.ge.s32.totalorder %v436, 1
      %vm447 = vcmp.ge.s32.totalorder %v437, 1
      %vm448 = vcmp.ge.s32.totalorder %v438, 1
      %vm449 = vcmp.ge.s32.totalorder %v439, 1
      %vm450 = vcmp.ge.s32.totalorder %v440, 1
      %vm451 = vcmp.ge.s32.totalorder %v441, 1
      %vm452 = vcmp.ge.s32.totalorder %v442, 1
      %vm453 = vcmp.ge.s32.totalorder %v443, 1
      %vm454 = vcmp.ge.s32.totalorder %v444, 1
      %vm455 = vcmp.le.s32.totalorder %v435, 8
      %vm456 = vcmp.le.s32.totalorder %v436, 8
      %vm457 = vcmp.le.s32.totalorder %v437, 8
      %vm458 = vcmp.le.s32.totalorder %v438, 8
      %vm459 = vcmp.le.s32.totalorder %v439, 8
      %vm460 = vcmp.le.s32.totalorder %v440, 8
      %vm461 = vcmp.le.s32.totalorder %v441, 8
      %vm462 = vcmp.le.s32.totalorder %v442, 8
      %vm463 = vcmp.le.s32.totalorder %v443, 8
      %vm464 = vcmp.le.s32.totalorder %v444, 8
      %vm465 = vmand %vm445, %vm455
      %vm466 = vmand %vm446, %vm456
      %vm467 = vmand %vm447, %vm457
      %vm468 = vmand %vm448, %vm458
      %vm469 = vmand %vm449, %vm459
      %vm470 = vmand %vm450, %vm460
      %vm471 = vmand %vm451, %vm461
      %vm472 = vmand %vm452, %vm462
      %vm473 = vmand %vm453, %vm463
      %vm474 = vmand %vm454, %vm464
      %v475 = vsel %vm465, 1, 0
      %v476 = vsel %vm466, 1, 0
      %v477 = vsel %vm467, 1, 0
      %v478 = vsel %vm468, 1, 0
      %v479 = vsel %vm469, 1, 0
      %v480 = vsel %vm470, 1, 0
      %v481 = vsel %vm471, 1, 0
      %v482 = vsel %vm472, 1, 0
      %v483 = vsel %vm473, 1, 0
      %v484 = vsel %vm474, 1, 0
      %vm485 = vcmp.eq.s32.totalorder %v475, 1
      %vm486 = vcmp.eq.s32.totalorder %v476, 1
      %vm487 = vcmp.eq.s32.totalorder %v477, 1
      %vm488 = vcmp.eq.s32.totalorder %v478, 1
      %vm489 = vcmp.eq.s32.totalorder %v479, 1
      %vm490 = vcmp.eq.s32.totalorder %v480, 1
      %vm491 = vcmp.eq.s32.totalorder %v481, 1
      %vm492 = vcmp.eq.s32.totalorder %v482, 1
      %vm493 = vcmp.eq.s32.totalorder %v483, 1
      %vm494 = vcmp.eq.s32.totalorder %v484, 1
      %v495 = vsel %vm485, %v264, 0.0
      %v496 = vsel %vm486, %v265, 0.0
      %v497 = vsel %vm487, %v266, 0.0
      %v498 = vsel %vm488, %v267, 0.0
      %v499 = vsel %vm489, %v268, 0.0
      %v500 = vsel %vm490, %v269, 0.0
      %v501 = vsel %vm491, %v270, 0.0
      %v502 = vsel %vm492, %v271, 0.0
      %v503 = vsel %vm493, %v272, 0.0
      %v504 = vsel %vm494, %v273, 0.0
      %v505 = vpack.c.bf16 %v496, %v495
      %v506 = vpack.c.bf16 %v498, %v497
      %v507 = vpack.c.bf16 %v500, %v499
      %v508 = vpack.c.bf16 %v502, %v501
      %v509 = vpack.c.bf16 %v504, %v503
      %v515 = vunpack.c.l.b16 %v505
      %v516 = vunpack.c.h.b16 %v505
      %v517 = vunpack.c.l.b16 %v506
      %v518 = vunpack.c.h.b16 %v506
      %v519 = vunpack.c.l.b16 %v507
      %v520 = vunpack.c.h.b16 %v507
      %v521 = vunpack.c.l.b16 %v508
      %v522 = vunpack.c.h.b16 %v508
      %v523 = vunpack.c.l.b16 %v509
      %v524 = vunpack.c.h.b16 %v509
      %v525 = vpack.c.b16 %v515, %v515
      %v526 = vpack.c.b16 %v516, %v516
      %v527 = vpack.c.b16 %v517, %v517
      %v528 = vpack.c.b16 %v518, %v518
      %v529 = vpack.c.b16 %v519, %v519
      %v530 = vpack.c.b16 %v520, %v520
      %v531 = vpack.c.b16 %v521, %v521
      %v532 = vpack.c.b16 %v522, %v522
      %v533 = vpack.c.b16 %v523, %v523
      %v534 = vpack.c.b16 %v524, %v524
      %vm545 = vcmask 125952
      %546 = vst.msk [vmem:[%s208] sm:$0xf] %vm545, %v525
      %547 = vst.msk [vmem:[%s208 + $0x4] sm:$0xf] %vm545, %v526
      %548 = vst.msk [vmem:[%s208 + $0x8] sm:$0xf] %vm545, %v527
      %549 = vst.msk [vmem:[%s208 + $0xc] sm:$0xf] %vm545, %v528
      %550 = vst.msk [vmem:[%s208 + $0x10] sm:$0xf] %vm545, %v529
      %551 = vst.msk [vmem:[%s208 + $0x14] sm:$0xf] %vm545, %v530
      %552 = vst.msk [vmem:[%s208 + $0x18] sm:$0xf] %vm545, %v531
      %553 = vst.msk [vmem:[%s208 + $0x1c] sm:$0xf] %vm545, %v532
      %554 = vst.msk [vmem:[%s208 + $0x20] sm:$0xf] %vm545, %v533
      %555 = vst.msk [vmem:[%s208 + $0x24] sm:$0xf] %vm545, %v534
      %s556 = smul.u32 10, %s19
      %p557 = scmp.lt.s32.totalorder %s18, 1
      %s558 = scalar_select %p557, %s18, 1
      %p559 = scmp.lt.s32.totalorder %s556, 9
      %s560 = scalar_select %p559, %s556, 9
      %s561 = smul.addr %s558, 10
      %s562 = sadd.s32 %s560, %s561
      %s563 = smul.addr %s562, 4
      %s564 = scalar_lea.vmem %s3, %s563
      // Predicated region
      $region33: #{_lambda_.8} parent=31 // pred_check
        %p565 = pneg %p116
      $region34: #{_lambda_.8} parent=31 // pred_check_branch
        %567 = sbr.rel (%p565) target = $region36
      $region35: #{_lambda_.8} parent=31 // pred_region
        %s568 = smul.u32 10, %s19
      $region36: #{_lambda_.8} parent=31 // pred_fallthru
        _
    $region32: #{_lambda_.8} parent=5 // pred_fallthru
      _
    %p569 = scmp.le.s32.totalorder 2, %s9
    // Predicated region
    $region37: #{_lambda_.8} parent=5 // pred_check
      %p570 = pneg %p569
    $region38: #{_lambda_.8} parent=5 // pred_check_branch
      %572 = sbr.rel (%p570) target = $region40
    $region39: #{_lambda_.8} parent=5 // pred_region
      %s573 = ssub.s32 %s9, 2
      // Predicated region
      $region41: #{_lambda_.8} parent=39 // pred_check
        %p574 = pneg %p122
      $region42: #{_lambda_.8} parent=39 // pred_check_branch
        %576 = sbr.rel (%p574) target = $region44
      $region43: #{_lambda_.8} parent=39 // pred_region
        %s577 = smul.u32 10, %s21
        %p578 = scmp.lt.s32.totalorder %s20, 1
        %s579 = scalar_select %p578, %s20, 1
        %p580 = scmp.lt.s32.totalorder %s577, 9
        %s581 = scalar_select %p580, %s577, 9
        %s582 = smul.addr %s579, 10
        %s583 = sadd.s32 %s581, %s582
        %s584 = smul.addr %s583, 4
        %s585 = scalar_lea.vmem %s3, %s584
      $region44: #{_lambda_.8} parent=39 // pred_fallthru
        _
    $region40: #{_lambda_.8} parent=5 // pred_fallthru
      _
  $region6: #{_lambda_.8} parent=0 // loop_footer
    %s13 = sadd.s32 1, %s9
  $region7: #{_lambda_.8} parent=0 // loop_footer_branch
    %8 = sbr.rel target = $region3
  $region8: #{_lambda_.8} parent=0 // loop_exit
    _

// kernel: _lambda_.7
$region0: #{_lambda_.7}
  #allocation0 [shape = 'u32[]', space=smem, size = 0x4, offset = 0x4, fixed_abs, tag = 'smem constant byte address 0x4 - core index']
  #allocation1 [shape = 'u32[144,128]{1,0:T(1,128)}', space=vmem, size = 0x12000, scoped, tag = 'internal scratch']
  %s0 = inlined_call_operand.vmem [shape: bf16[2,120,8], index: 0, kind: input, shape index: {}]
  %s1 = inlined_call_operand.vmem [shape: bf16[9,8,16], index: 1, kind: input, shape index: {}]
  %s2 = inlined_call_operand.vmem [shape: f32[1,16], index: 2, kind: input, shape index: {}]
  %s3 = inlined_call_operand.vmem [shape: bf16[2,80,16], index: 3, kind: output, shape index: {0}]
  %s4 = inlined_call_operand.vmem [shape: f32[2,1,16], index: 4, kind: output, shape index: {1}]
  %s5 = inlined_call_operand.vmem [shape: f32[2,1,16], index: 5, kind: output, shape index: {2}]
  %6 = xla_tuple %s3, %s4, %s5
  %s7 = sld [smem:[#allocation0]]
  $region65: #{_lambda_.7} parent=0
    _
  %s9 = ssub.s32 1, %s7
  %s10 = scalar_select 0, %s9, %s7
  loop: start=0, step=1, limit=4
  $region2: #{_lambda_.7} parent=0 // loop_pre_header
    _
  $region3: #{_lambda_.7} parent=0 // loop_header
    %s12 = sphi 0, %s16
    %p13 = scmp.ge.s32.totalorder %s12, 4
    %s19 = sphi 0, %s38
    %s20 = sphi 0, %s34
    %s21 = sphi 0, %s30
    %s22 = sphi 0, %s19
    %s23 = sphi 0, %s20
    %s24 = sphi 0, %s21
    %s25 = sphi 0, %s22
    %s26 = sphi 0, %s23
    %s27 = sphi 0, %s24
    %s41 = sphi 0, %s43
    %s44 = sphi 0, %s41
    %s45 = sphi 0, %s44
    %s61 = sphi 0, %s45
    %s67 = sphi 0, %s69
    %s70 = sphi 0, %s67
    %s71 = sphi 0, %s70
    %s87 = sphi 0, %s71
    %s93 = sphi 0, %s95
    %s96 = sphi 0, %s93
    %s97 = sphi 0, %s96
    %s113 = sphi 0, %s97
    %s123 = sphi 0, %s125
    %s126 = sphi 0, %s123
    %s127 = sphi 0, %s126
    %s143 = sphi 0, %s127
    %s151 = sphi 0, %s153
    %s154 = sphi 0, %s151
    %s155 = sphi 0, %s154
    %s171 = sphi 0, %s155
    %s179 = sphi 0, %s181
    %s182 = sphi 0, %s179
    %s183 = sphi 0, %s182
    %s199 = sphi 0, %s183
  $region4: #{_lambda_.7} parent=0 // loop_header_branch
    %15 = sbr.rel (%p13) target = $region8
  $region5: #{_lambda_.7} parent=0 // loop_body
    %s17 = ssub.s32 %s12, 1
    %s18 = ssub.s32 %s12, 2
    %s28 = sadd.s32 1, %s21
    %p29 = scmp.ge.s32.totalorder %s28, 1
    %s30 = scalar_select %p29, 0, %s28
    %s31 = sadd.s32 1, %s20
    %s32 = scalar_select %p29, %s31, %s20
    %p33 = scmp.ge.s32.totalorder %s32, 2
    %s34 = scalar_select %p33, 0, %s32
    %s35 = sadd.s32 1, %s19
    %s36 = scalar_select %p33, %s35, %s19
    %p37 = scmp.ge.s32.totalorder %s36, 1
    %s38 = scalar_select %p37, 0, %s36
    %s39 = ssub.s32 %s20, %s34
    %p40 = scmp.eq.s32.totalorder %s39, 0
    %s42 = sadd.s32 %s41, 1
    %s43 = scalar_select %p40, %s41, %s42
    %p46 = pneg %p40
    %p47 = scmp.eq.s32.totalorder %s12, 1
    %p48 = por %p46, %p47
    %p49 = scmp.ne.s32.totalorder %s41, %s44
    %p50 = scmp.eq.s32.totalorder %s12, 0
    %p51 = por %p49, %p50
    %p52 = scmp.ne.s32.totalorder %s41, %s44
    %p53 = scmp.eq.s32.totalorder %s17, 1
    %p54 = por %p52, %p53
    %p55 = scmp.ne.s32.totalorder %s44, %s45
    %p56 = scmp.eq.s32.totalorder %s17, 0
    %p57 = por %p55, %p56
    %p58 = scmp.ne.s32.totalorder %s44, %s45
    %p59 = scmp.eq.s32.totalorder %s18, 1
    %p60 = por %p58, %p59
    %p62 = scmp.ne.s32.totalorder %s45, %s61
    %p63 = scmp.eq.s32.totalorder %s18, 0
    %p64 = por %p62, %p63
    %s65 = ssub.s32 %s19, %s38
    %p66 = scmp.eq.s32.totalorder %s65, 0
    %s68 = sadd.s32 %s67, 1
    %s69 = scalar_select %p66, %s67, %s68
    %p72 = pneg %p66
    %p73 = scmp.eq.s32.totalorder %s12, 1
    %p74 = por %p72, %p73
    %p75 = scmp.ne.s32.totalorder %s67, %s70
    %p76 = scmp.eq.s32.totalorder %s12, 0
    %p77 = por %p75, %p76
    %p78 = scmp.ne.s32.totalorder %s67, %s70
    %p79 = scmp.eq.s32.totalorder %s17, 1
    %p80 = por %p78, %p79
    %p81 = scmp.ne.s32.totalorder %s70, %s71
    %p82 = scmp.eq.s32.totalorder %s17, 0
    %p83 = por %p81, %p82
    %p84 = scmp.ne.s32.totalorder %s70, %s71
    %p85 = scmp.eq.s32.totalorder %s18, 1
    %p86 = por %p84, %p85
    %p88 = scmp.ne.s32.totalorder %s71, %s87
    %p89 = scmp.eq.s32.totalorder %s18, 0
    %p90 = por %p88, %p89
    %s91 = ssub.s32 %s19, %s38
    %p92 = scmp.eq.s32.totalorder %s91, 0
    %s94 = sadd.s32 %s93, 1
    %s95 = scalar_select %p92, %s93, %s94
    %p98 = pneg %p92
    %p99 = scmp.eq.s32.totalorder %s12, 1
    %p100 = por %p98, %p99
    %p101 = scmp.ne.s32.totalorder %s93, %s96
    %p102 = scmp.eq.s32.totalorder %s12, 0
    %p103 = por %p101, %p102
    %p104 = scmp.ne.s32.totalorder %s93, %s96
    %p105 = scmp.eq.s32.totalorder %s17, 1
    %p106 = por %p104, %p105
    %p107 = scmp.ne.s32.totalorder %s96, %s97
    %p108 = scmp.eq.s32.totalorder %s17, 0
    %p109 = por %p107, %p108
    %p110 = scmp.ne.s32.totalorder %s96, %s97
    %p111 = scmp.eq.s32.totalorder %s18, 1
    %p112 = por %p110, %p111
    %p114 = scmp.ne.s32.totalorder %s97, %s113
    %p115 = scmp.eq.s32.totalorder %s18, 0
    %p116 = por %p114, %p115
    %s117 = ssub.s32 %s20, %s34
    %s118 = ssub.s32 %s21, %s30
    %s119 = sor.u32 %s117, %s118
    %s120 = ssub.s32 %s19, %s38
    %s121 = sor.u32 %s119, %s120
    %p122 = scmp.eq.s32.totalorder %s121, 0
    %s124 = sadd.s32 %s123, 1
    %s125 = scalar_select %p122, %s123, %s124
    %p128 = pneg %p122
    %p129 = scmp.eq.s32.totalorder %s12, 1
    %p130 = por %p128, %p129
    %p131 = scmp.ne.s32.totalorder %s123, %s126
    %p132 = scmp.eq.s32.totalorder %s12, 0
    %p133 = por %p131, %p132
    %p134 = scmp.ne.s32.totalorder %s123, %s126
    %p135 = scmp.eq.s32.totalorder %s17, 1
    %p136 = por %p134, %p135
    %p137 = scmp.ne.s32.totalorder %s126, %s127
    %p138 = scmp.eq.s32.totalorder %s17, 0
    %p139 = por %p137, %p138
    %p140 = scmp.ne.s32.totalorder %s126, %s127
    %p141 = scmp.eq.s32.totalorder %s18, 1
    %p142 = por %p140, %p141
    %p144 = scmp.ne.s32.totalorder %s127, %s143
    %p145 = scmp.eq.s32.totalorder %s18, 0
    %p146 = por %p144, %p145
    %s147 = ssub.s32 %s20, %s34
    %s148 = ssub.s32 %s19, %s38
    %s149 = sor.u32 %s147, %s148
    %p150 = scmp.eq.s32.totalorder %s149, 0
    %s152 = sadd.s32 %s151, 1
    %s153 = scalar_select %p150, %s151, %s152
    %p156 = pneg %p150
    %p157 = scmp.eq.s32.totalorder %s12, 1
    %p158 = por %p156, %p157
    %p159 = scmp.ne.s32.totalorder %s151, %s154
    %p160 = scmp.eq.s32.totalorder %s12, 0
    %p161 = por %p159, %p160
    %p162 = scmp.ne.s32.totalorder %s151, %s154
    %p163 = scmp.eq.s32.totalorder %s17, 1
    %p164 = por %p162, %p163
    %p165 = scmp.ne.s32.totalorder %s154, %s155
    %p166 = scmp.eq.s32.totalorder %s17, 0
    %p167 = por %p165, %p166
    %p168 = scmp.ne.s32.totalorder %s154, %s155
    %p169 = scmp.eq.s32.totalorder %s18, 1
    %p170 = por %p168, %p169
    %p172 = scmp.ne.s32.totalorder %s155, %s171
    %p173 = scmp.eq.s32.totalorder %s18, 0
    %p174 = por %p172, %p173
    %s175 = ssub.s32 %s20, %s34
    %s176 = ssub.s32 %s19, %s38
    %s177 = sor.u32 %s175, %s176
    %p178 = scmp.eq.s32.totalorder %s177, 0
    %s180 = sadd.s32 %s179, 1
    %s181 = scalar_select %p178, %s179, %s180
    %p184 = pneg %p178
    %p185 = scmp.eq.s32.totalorder %s12, 1
    %p186 = por %p184, %p185
    %p187 = scmp.ne.s32.totalorder %s179, %s182
    %p188 = scmp.eq.s32.totalorder %s12, 0
    %p189 = por %p187, %p188
    %p190 = scmp.ne.s32.totalorder %s179, %s182
    %p191 = scmp.eq.s32.totalorder %s17, 1
    %p192 = por %p190, %p191
    %p193 = scmp.ne.s32.totalorder %s182, %s183
    %p194 = scmp.eq.s32.totalorder %s17, 0
    %p195 = por %p193, %p194
    %p196 = scmp.ne.s32.totalorder %s182, %s183
    %p197 = scmp.eq.s32.totalorder %s18, 1
    %p198 = por %p196, %p197
    %p200 = scmp.ne.s32.totalorder %s183, %s199
    %p201 = scmp.eq.s32.totalorder %s18, 0
    %p202 = por %p200, %p201
    %p203 = scmp.le.s32.totalorder 1, %s12
    %p204 = scmp.lt.s32.totalorder %s12, 3
    %p205 = pnand %p203, %p204
    %p206 = pneg %p205
    // Predicated region
    $region9: #{_lambda_.7} parent=5 // pred_check
      _
    $region10: #{_lambda_.7} parent=5 // pred_check_branch
      %208 = sbr.rel (%p205) target = $region12
    $region11: #{_lambda_.7} parent=5 // pred_region
      %s209 = ssub.s32 %s12, 1
      // Predicated region
      $region13: #{_lambda_.7} parent=11 // pred_check
        %p210 = pneg %p83
      $region14: #{_lambda_.7} parent=11 // pred_check_branch
        %212 = sbr.rel (%p210) target = $region16
      $region15: #{_lambda_.7} parent=11 // pred_region
        %p213 = scmp.lt.s32.totalorder %s22, 0
        %s214 = scalar_select %p213, %s22, 0
        %s215 = smul.addr %s214, 4
        %s216 = scalar_lea.vmem %s1, %s215
      $region16: #{_lambda_.7} parent=11 // pred_fallthru
        _
      // Predicated region
      $region17: #{_lambda_.7} parent=11 // pred_check
        %p217 = pneg %p109
      $region18: #{_lambda_.7} parent=11 // pred_check_branch
        %219 = sbr.rel (%p217) target = $region20
      $region19: #{_lambda_.7} parent=11 // pred_region
        %p220 = scmp.lt.s32.totalorder %s22, 0
        %s221 = scalar_select %p220, %s22, 0
        %s222 = scalar_lea.vmem %s2, %s221
      $region20: #{_lambda_.7} parent=11 // pred_fallthru
        _
    $region12: #{_lambda_.7} parent=5 // pred_fallthru
      _
    %p223 = scmp.lt.s32.totalorder %s12, 2
    // Predicated region
    $region21: #{_lambda_.7} parent=5 // pred_check
      %p224 = pneg %p223
    $region22: #{_lambda_.7} parent=5 // pred_check_branch
      %226 = sbr.rel (%p224) target = $region24
    $region23: #{_lambda_.7} parent=5 // pred_region
      // Predicated region
      $region25: #{_lambda_.7} parent=23 // pred_check
        %p227 = pneg %p51
      $region26: #{_lambda_.7} parent=23 // pred_check_branch
        %229 = sbr.rel (%p227) target = $region28
      $region27: #{_lambda_.7} parent=23 // pred_region
        %p230 = scmp.lt.s32.totalorder %s20, 1
        %s231 = scalar_select %p230, %s20, 1
        %s232 = smul.addr %s231, 15
        %s233 = smul.addr %s232, 4
        %s234 = scalar_lea.vmem %s0, %s233
      $region28: #{_lambda_.7} parent=23 // pred_fallthru
        _
    $region24: #{_lambda_.7} parent=5 // pred_fallthru
      _
    %p235 = scmp.le.s32.totalorder 1, %s12
    %p236 = scmp.lt.s32.totalorder %s12, 3
    %p237 = pnand %p235, %p236
    %p238 = pneg %p237
    // Predicated region
    $region29: #{_lambda_.7} parent=5 // pred_check
      _
    $region30: #{_lambda_.7} parent=5 // pred_check_branch
      %240 = sbr.rel (%p237) target = $region32
    $region31: #{_lambda_.7} parent=5 // pred_region
      %s241 = ssub.s32 %s12, 1
      %p242 = scmp.lt.s32.totalorder %s23, 1
      %s243 = scalar_select %p242, %s23, 1
      %s244 = smul.addr %s243, 15
      %s245 = smul.addr %s244, 4
      %s246 = scalar_lea.vmem %s0, %s245
      %p247 = pneg %p57
      %p248 = pneg %p54
      %p249 = scmp.lt.s32.totalorder %s22, 0
      %s250 = scalar_select %p249, %s22, 0
      %s251 = smul.addr %s250, 4
      %s252 = scalar_lea.vmem %s1, %s251
      %p253 = pneg %p83
      %p254 = pneg %p80
      %p255 = scmp.lt.s32.totalorder %s22, 0
      %s256 = scalar_select %p255, %s22, 0
      %s257 = scalar_lea.vmem %s2, %s256
      %p258 = pneg %p109
      %p259 = pneg %p106
      %p260 = pneg %p139
      %p261 = pneg %p136
      %s262 = smul.u32 10, %s24
      %p263 = scmp.lt.s32.totalorder %s23, 1
      %s264 = scalar_select %p263, %s23, 1
      %p265 = scmp.lt.s32.totalorder %s262, 9
      %s266 = scalar_select %p265, %s262, 9
      %p267 = scmp.lt.s32.totalorder %s22, 0
      %s268 = scalar_select %p267, %s22, 0
      %s269 = sadd.s32 %s268, %s266
      %s270 = smul.addr %s264, 10
      %s271 = sadd.s32 %s269, %s270
      %s272 = smul.addr %s271, 4
      %s273 = scalar_lea.vmem %s3, %s272
      %p274 = pneg %p167
      %p275 = pneg %p164
      %p276 = scmp.lt.s32.totalorder %s23, 1
      %s277 = scalar_select %p276, %s23, 1
      %p278 = scmp.lt.s32.totalorder %s22, 0
      %s279 = scalar_select %p278, %s22, 0
      %s280 = sadd.s32 %s279, %s277
      %s281 = scalar_lea.vmem %s4, %s280
      %p282 = pneg %p195
      %p283 = pneg %p192
      %p284 = scmp.lt.s32.totalorder %s23, 1
      %s285 = scalar_select %p284, %s23, 1
      %p286 = scmp.lt.s32.totalorder %s22, 0
      %s287 = scalar_select %p286, %s22, 0
      %s288 = sadd.s32 %s287, %s285
      %s289 = scalar_lea.vmem %s5, %s288
      %p290 = scmp.lt.s32.totalorder %s23, 1
      %s291 = scalar_select %p290, %s23, 1
      %s292 = smul.addr %s291, 15
      %s293 = smul.addr %s292, 4
      %s294 = scalar_lea.vmem %s0, %s293
      %p295 = scmp.lt.s32.totalorder %s22, 0
      %s296 = scalar_select %p295, %s22, 0
      %s297 = smul.addr %s296, 4
      %s298 = scalar_lea.vmem %s1, %s297
      %p299 = scmp.lt.s32.totalorder %s22, 0
      %s300 = scalar_select %p299, %s22, 0
      %s301 = scalar_lea.vmem %s2, %s300
      %s302 = smul.u32 10, %s24
      %p303 = scmp.lt.s32.totalorder %s23, 1
      %s304 = scalar_select %p303, %s23, 1
      %p305 = scmp.lt.s32.totalorder %s302, 9
      %s306 = scalar_select %p305, %s302, 9
      %p307 = scmp.lt.s32.totalorder %s22, 0
      %s308 = scalar_select %p307, %s22, 0
      %s309 = sadd.s32 %s308, %s306
      %s310 = smul.addr %s304, 10
      %s311 = sadd.s32 %s309, %s310
      %s312 = smul.addr %s311, 4
      %s313 = scalar_lea.vmem %s3, %s312
      %s314 = smul.u32 10, %s24
      %p315 = scmp.lt.s32.totalorder %s23, 1
      %s316 = scalar_select %p315, %s23, 1
      %p317 = scmp.lt.s32.totalorder %s22, 0
      %s318 = scalar_select %p317, %s22, 0
      %s319 = sadd.s32 %s318, %s316
      %s320 = scalar_lea.vmem %s4, %s319
      %p321 = scmp.lt.s32.totalorder %s23, 1
      %s322 = scalar_select %p321, %s23, 1
      %p323 = scmp.lt.s32.totalorder %s22, 0
      %s324 = scalar_select %p323, %s22, 0
      %s325 = sadd.s32 %s324, %s322
      %s326 = scalar_lea.vmem %s5, %s325
      %v328 = vld [vmem:[%s294 + $0x4] sm:$0xf]
      %v329 = vld [vmem:[%s294 + $0x8] sm:$0xf]
      %v330 = vld [vmem:[%s294 + $0xc] sm:$0xf]
      %v331 = vld [vmem:[%s294 + $0x10] sm:$0xf]
      %v332 = vld [vmem:[%s294 + $0x14] sm:$0xf]
      %v333 = vld [vmem:[%s294 + $0x18] sm:$0xf]
      %v334 = vld [vmem:[%s294 + $0x1c] sm:$0xf]
      %v335 = vld [vmem:[%s294 + $0x20] sm:$0xf]
      %v336 = vld [vmem:[%s294 + $0x24] sm:$0xf]
      %v337 = vld [vmem:[%s294 + $0x28] sm:$0xf]
      %v338 = vld [vmem:[%s294 + $0x2c] sm:$0x1]
      %v339 = vld [vmem:[%s298] sm:$0xf]
      %v340 = vld [vmem:[%s294 + $0x4] sm:$0xe]
      %s341 = scalar_lea.vmem %s298, 4
      %v342 = vld [vmem:[%s341] sm:$0xf]
      %v354 = vunpack.c.l.b16 %v340
      %v355 = vunpack.c.l.b16 %v329
      %v356 = vunpack.c.l.b16 %v330
      %v357 = vunpack.c.l.b16 %v331
      %v358 = vunpack.c.l.b16 %v332
      %v359 = vunpack.c.l.b16 %v333
      %v360 = vunpack.c.l.b16 %v334
      %v361 = vunpack.c.l.b16 %v335
      %v362 = vunpack.c.l.b16 %v336
      %v363 = vunpack.c.l.b16 %v337
      %v364 = vunpack.c.l.b16 %v338
      %v365 = vpack.c.b16 %v355, %v354
      %v366 = vpack.c.b16 %v357, %v356
      %v367 = vpack.c.b16 %v359, %v358
      %v368 = vpack.c.b16 %v361, %v360
      %v369 = vpack.c.b16 %v363, %v362
      %v370 = vpack.c.b16 %v364, %v364
      %vm371 = vcmask 1046528
      %v372 = vrot.slane %v365, 1
      %v373 = vrot.slane %v366, 1
      %v374 = vsel %vm371, %v372, %v373
      %v375 = vrot.slane %v367, 1
      %v376 = vsel %vm371, %v373, %v375
      %v377 = vrot.slane %v368, 1
      %v378 = vsel %vm371, %v375, %v377
      %v379 = vrot.slane %v369, 1
      %v380 = vsel %vm371, %v377, %v379
      %v381 = vrot.slane %v370, 1
      %v382 = vsel %vm371, %v379, %v381
      %vm383 = vcmask 64512
      %v385 = vsel %vm383, %v374, 0
      %v388 = vsel %vm383, %v376, 0
      %v391 = vsel %vm383, %v378, 0
      %v394 = vsel %vm383, %v380, 0
      %v397 = vsel %vm383, %v382, 0
      %vm399 = vcmask 1043456
      %v401 = vsel %vm399, %v342, 0
      %403 = vmatprep.subr.bf16.mxu0 0
      %404 = vmatpush1.bf16.msra.mxu0 %v401
      %405 = vmatprep.subr.bf16.mxu0 0
      %406 = vmatpush1.bf16.msra.mxu0 0
      %407 = vmatprep.subr.bf16.mxu0 0
      %408 = vmatpush1.bf16.msra.mxu0 0
      %409 = vmatprep.subr.bf16.mxu0 0
      %410 = vmatpush1.bf16.msra.mxu0 0
      %411 = vmatprep.subr.bf16.mxu0 0
      %412 = vmatpush1.bf16.msra.mxu0 0
      %413 = vmatprep.subr.bf16.mxu0 0
      %414 = vmatpush1.bf16.msra.mxu0 0
      %415 = vmatprep.subr.bf16.mxu0 0
      %416 = vmatpush1.bf16.msra.mxu0 0
      %417 = vmatprep.subr.bf16.mxu0 0
      %418 = vmatpush1.bf16.msra.mxu0 0
      %419 = vmatprep.subr.bf16.mxu0 0
      %420 = vmatpush1.bf16.msra.mxu0 0
      %421 = vmatprep.subr.bf16.mxu0 0
      %422 = vmatpush1.bf16.msra.mxu0 0
      %423 = vmatprep.subr.bf16.mxu0 0
      %424 = vmatpush1.bf16.msra.mxu0 0
      %425 = vmatprep.subr.bf16.mxu0 0
      %426 = vmatpush1.bf16.msra.mxu0 0
      %427 = vmatprep.subr.bf16.mxu0 0
      %428 = vmatpush1.bf16.msra.mxu0 0
      %429 = vmatprep.subr.bf16.mxu0 0
      %430 = vmatpush1.bf16.msra.mxu0 0
      %431 = vmatprep.subr.bf16.mxu0 0
      %432 = vmatpush1.bf16.msra.mxu0 0
      %433 = vmatprep.subr.bf16.mxu0 0
      %434 = vmatpush1.bf16.msra.mxu0 0
      %435 = vmatprep.mubr.bf16.mxu0 0
      %436 = vmatmul.mubr.bf16.gmra.mrb[0].mxu0 %v385
      %v437 = vpop.f32.mrb[0].mxu0
      %v438 = vadd.f32 0.0, %v437
      %v439 = vpop.f32.mrb[0].mxu0
      %v440 = vpop.f32.mrb[0].mxu0
      %v441 = vadd.f32 0.0, %v440
      %v442 = vpop.f32.mrb[0].mxu0
      %443 = vmatprep.mubr.bf16.mxu0 0
      %444 = vmatmul.mubr.bf16.gmra.mrb[0].mxu0 %v388
      %v445 = vpop.f32.mrb[0].mxu0
      %v446 = vadd.f32 0.0, %v445
      %v447 = vpop.f32.mrb[0].mxu0
      %v448 = vpop.f32.mrb[0].mxu0
      %v449 = vadd.f32 0.0, %v448
      %v450 = vpop.f32.mrb[0].mxu0
      %451 = vmatprep.mubr.bf16.mxu0 0
      %452 = vmatmul.mubr.bf16.gmra.mrb[0].mxu0 %v391
      %v453 = vpop.f32.mrb[0].mxu0
      %v454 = vadd.f32 0.0, %v453
      %v455 = vpop.f32.mrb[0].mxu0
      %v456 = vpop.f32.mrb[0].mxu0
      %v457 = vadd.f32 0.0, %v456
      %v458 = vpop.f32.mrb[0].mxu0
      %459 = vmatprep.mubr.bf16.mxu0 0
      %460 = vmatmul.mubr.bf16.gmra.mrb[0].mxu0 %v394
      %v461 = vpop.f32.mrb[0].mxu0
      %v462 = vadd.f32 0.0, %v461
      %v463 = vpop.f32.mrb[0].mxu0
      %v464 = vpop.f32.mrb[0].mxu0
      %v465 = vadd.f32 0.0, %v464
      %v466 = vpop.f32.mrb[0].mxu0
      %467 = vmatprep.mubr.bf16.mxu0 0
      %468 = vmatmul.mubr.bf16.gmra.mrb[0].mxu0 %v397
      %v469 = vpop.f32.mrb[0].mxu0
      %v470 = vadd.f32 0.0, %v469
      %v471 = vpop.f32.mrb[0].mxu0
      %v472 = vpop.f32.mrb[0].mxu0
      %v473 = vadd.f32 0.0, %v472
      %v474 = vpop.f32.mrb[0].mxu0
      %475 = vdwg.mxu0
      %v477 = vunpack.c.l.b16 %v328
      %v478 = vpack.c.b16 %v355, %v477
      %vm479 = vsmask.f32 7424
      %v481 = vshrl.u32 %v478, 16
      %v483 = vshll.u32 %v478, 16
      %v485 = vrot.slane %v483, 1
      %v486 = vor.u32 %v481, %v485
      %v488 = vshll.u32 %v366, 16
      %v490 = vrot.slane %v488, 1
      %v491 = vsel %vm479, %v486, %v490
      %v492 = vshrl.u32 %v366, 16
      %v494 = vor.u32 %v492, %v490
      %v496 = vshll.u32 %v367, 16
      %v498 = vrot.slane %v496, 1
      %v499 = vsel %vm479, %v494, %v498
      %v500 = vshrl.u32 %v367, 16
      %v502 = vor.u32 %v500, %v498
      %v504 = vshll.u32 %v368, 16
      %v506 = vrot.slane %v504, 1
      %v507 = vsel %vm479, %v502, %v506
      %v508 = vshrl.u32 %v368, 16
      %v510 = vor.u32 %v508, %v506
      %v512 = vshll.u32 %v369, 16
      %v514 = vrot.slane %v512, 1
      %v515 = vsel %vm479, %v510, %v514
      %v516 = vshrl.u32 %v369, 16
      %v518 = vor.u32 %v516, %v514
      %v520 = vshll.u32 %v370, 16
      %v522 = vrot.slane %v520, 1
      %v523 = vsel %vm479, %v518, %v522
      %v525 = vsel %vm383, %v491, 0
      %v528 = vsel %vm383, %v499, 0
      %v531 = vsel %vm383, %v507, 0
      %v534 = vsel %vm383, %v515, 0
      %v537 = vsel %vm383, %v523, 0
      %v540 = vsel %vm399, %v339, 0
      %542 = vmatprep.subr.bf16.mxu0 0
      %543 = vmatpush1.bf16.msra.mxu0 %v540
      %544 = vmatprep.subr.bf16.mxu0 0
      %545 = vmatpush1.bf16.msra.mxu0 0
      %546 = vmatprep.subr.bf16.mxu0 0
      %547 = vmatpush1.bf16.msra.mxu0 0
      %548 = vmatprep.subr.bf16.mxu0 0
      %549 = vmatpush1.bf16.msra.mxu0 0
      %550 = vmatprep.subr.bf16.mxu0 0
      %551 = vmatpush1.bf16.msra.mxu0 0
      %552 = vmatprep.subr.bf16.mxu0 0
      %553 = vmatpush1.bf16.msra.mxu0 0
      %554 = vmatprep.subr.bf16.mxu0 0
      %555 = vmatpush1.bf16.msra.mxu0 0
      %556 = vmatprep.subr.bf16.mxu0 0
      %557 = vmatpush1.bf16.msra.mxu0 0
      %558 = vmatprep.subr.bf16.mxu0 0
      %559 = vmatpush1.bf16.msra.mxu0 0
      %560 = vmatprep.subr.bf16.mxu0 0
      %561 = vmatpush1.bf16.msra.mxu0 0
      %562 = vmatprep.subr.bf16.mxu0 0
      %563 = vmatpush1.bf16.msra.mxu0 0
      %564 = vmatprep.subr.bf16.mxu0 0
      %565 = vmatpush1.bf16.msra.mxu0 0
      %566 = vmatprep.subr.bf16.mxu0 0
      %567 = vmatpush1.bf16.msra.mxu0 0
      %568 = vmatprep.subr.bf16.mxu0 0
      %569 = vmatpush1.bf16.msra.mxu0 0
      %570 = vmatprep.subr.bf16.mxu0 0
      %571 = vmatpush1.bf16.msra.mxu0 0
      %572 = vmatprep.subr.bf16.mxu0 0
      %573 = vmatpush1.bf16.msra.mxu0 0
      %574 = vmatprep.mubr.bf16.mxu0 0
      %575 = vmatmul.mubr.bf16.gmra.mrb[0].mxu0 %v525
      %v576 = vpop.f32.mrb[0].mxu0
      %v577 = vadd.f32 %v438, %v576
      %v578 = vpop.f32.mrb[0].mxu0
      %v579 = vpop.f32.mrb[0].mxu0
      %v580 = vadd.f32 %v441, %v579
      %v581 = vpop.f32.mrb[0].mxu0
      %582 = vmatprep.mubr.bf16.mxu0 0
      %583 = vmatmul.mubr.bf16.gmra.mrb[0].mxu0 %v528
      %v584 = vpop.f32.mrb[0].mxu0
      %v585 = vadd.f32 %v446, %v584
      %v586 = vpop.f32.mrb[0].mxu0
      %v587 = vpop.f32.mrb[0].mxu0
      %v588 = vadd.f32 %v449, %v587
      %v589 = vpop.f32.mrb[0].mxu0
      %590 = vmatprep.mubr.bf16.mxu0 0
      %591 = vmatmul.mubr.bf16.gmra.mrb[0].mxu0 %v531
      %v592 = vpop.f32.mrb[0].mxu0
      %v593 = vadd.f32 %v454, %v592
      %v594 = vpop.f32.mrb[0].mxu0
      %v595 = vpop.f32.mrb[0].mxu0
      %v596 = vadd.f32 %v457, %v595
      %v597 = vpop.f32.mrb[0].mxu0
      %598 = vmatprep.mubr.bf16.mxu0 0
      %599 = vmatmul.mubr.bf16.gmra.mrb[0].mxu0 %v534
      %v600 = vpop.f32.mrb[0].mxu0
      %v601 = vadd.f32 %v462, %v600
      %v602 = vpop.f32.mrb[0].mxu0
      %v603 = vpop.f32.mrb[0].mxu0
      %v604 = vadd.f32 %v465, %v603
      %v605 = vpop.f32.mrb[0].mxu0
      %606 = vmatprep.mubr.bf16.mxu0 0
      %607 = vmatmul.mubr.bf16.gmra.mrb[0].mxu0 %v537
      %v608 = vpop.f32.mrb[0].mxu0
      %v609 = vadd.f32 %v470, %v608
      %v610 = vpop.f32.mrb[0].mxu0
      %v611 = vpop.f32.mrb[0].mxu0
      %v612 = vadd.f32 %v473, %v611
      %v613 = vpop.f32.mrb[0].mxu0
      %614 = vdwg.mxu0
      %v615 = vld [vmem:[%s294 + $0x2c] sm:$0x3]
      %s616 = scalar_lea.vmem %s298, 8
      %v617 = vld [vmem:[%s616] sm:$0xf]
      %v619 = vunpack.c.l.b16 %v615
      %v620 = vpack.c.b16 %v619, %v619
      %vm621 = vsmask.f32 6400
      %v623 = vshrl.u32 %v365, 16
      %v625 = vrot.slane %v623, 1
      %v626 = vshll.u32 %v365, 16
      %v628 = vrot.slane %v626, 2
      %v629 = vor.u32 %v625, %v628
      %v630 = vrot.slane %v492, 1
      %v631 = vrot.slane %v488, 2
      %v632 = vor.u32 %v630, %v631
      %v633 = vsel %vm621, %v629, %v632
      %v634 = vrot.slane %v500, 1
      %v635 = vrot.slane %v496, 2
      %v636 = vor.u32 %v634, %v635
      %v637 = vsel %vm621, %v632, %v636
      %v638 = vrot.slane %v508, 1
      %v639 = vrot.slane %v504, 2
      %v640 = vor.u32 %v638, %v639
      %v641 = vsel %vm621, %v636, %v640
      %v642 = vrot.slane %v516, 1
      %v643 = vrot.slane %v512, 2
      %v644 = vor.u32 %v642, %v643
      %v645 = vsel %vm621, %v640, %v644
      %v647 = vshrl.u32 %v620, 16
      %v649 = vrot.slane %v647, 1
      %v650 = vshll.u32 %v620, 16
      %v652 = vrot.slane %v650, 2
      %v653 = vor.u32 %v649, %v652
      %v654 = vsel %vm621, %v644, %v653
      %v656 = vsel %vm383, %v633, 0
      %v659 = vsel %vm383, %v637, 0
      %v662 = vsel %vm383, %v641, 0
      %v665 = vsel %vm383, %v645, 0
      %v668 = vsel %vm383, %v654, 0
      %v671 = vsel %vm399, %v617, 0
      %673 = vmatprep.subr.bf16.mxu0 0
      %674 = vmatpush1.bf16.msra.mxu0 %v671
      %675 = vmatprep.subr.bf16.mxu0 0
      %676 = vmatpush1.bf16.msra.mxu0 0
      %677 = vmatprep.subr.bf16.mxu0 0
      %678 = vmatpush1.bf16.msra.mxu0 0
      %679 = vmatprep.subr.bf16.mxu0 0
      %680 = vmatpush1.bf16.msra.mxu0 0
      %681 = vmatprep.subr.bf16.mxu0 0
      %682 = vmatpush1.bf16.msra.mxu0 0
      %683 = vmatprep.subr.bf16.mxu0 0
      %684 = vmatpush1.bf16.msra.mxu0 0
      %685 = vmatprep.subr.bf16.mxu0 0
      %686 = vmatpush1.bf16.msra.mxu0 0
      %687 = vmatprep.subr.bf16.mxu0 0
      %688 = vmatpush1.bf16.msra.mxu0 0
      %689 = vmatprep.subr.bf16.mxu0 0
      %690 = vmatpush1.bf16.msra.mxu0 0
      %691 = vmatprep.subr.bf16.mxu0 0
      %692 = vmatpush1.bf16.msra.mxu0 0
      %693 = vmatprep.subr.bf16.mxu0 0
      %694 = vmatpush1.bf16.msra.mxu0 0
      %695 = vmatprep.subr.bf16.mxu0 0
      %696 = vmatpush1.bf16.msra.mxu0 0
      %697 = vmatprep.subr.bf16.mxu0 0
      %698 = vmatpush1.bf16.msra.mxu0 0
      %699 = vmatprep.subr.bf16.mxu0 0
      %700 = vmatpush1.bf16.msra.mxu0 0
      %701 = vmatprep.subr.bf16.mxu0 0
      %702 = vmatpush1.bf16.msra.mxu0 0
      %703 = vmatprep.subr.bf16.mxu0 0
      %704 = vmatpush1.bf16.msra.mxu0 0
      %705 = vmatprep.mubr.bf16.mxu0 0
      %706 = vmatmul.mubr.bf16.gmra.mrb[0].mxu0 %v656
      %v707 = vpop.f32.mrb[0].mxu0
      %v708 = vadd.f32 0.0, %v707
      %v709 = vpop.f32.mrb[0].mxu0
      %v710 = vpop.f32.mrb[0].mxu0
      %v711 = vadd.f32 0.0, %v710
      %v712 = vpop.f32.mrb[0].mxu0
      %713 = vmatprep.mubr.bf16.mxu0 0
      %714 = vmatmul.mubr.bf16.gmra.mrb[0].mxu0 %v659
      %v715 = vpop.f32.mrb[0].mxu0
      %v716 = vadd.f32 0.0, %v715
      %v717 = vpop.f32.mrb[0].mxu0
      %v718 = vpop.f32.mrb[0].mxu0
      %v719 = vadd.f32 0.0, %v718
      %v720 = vpop.f32.mrb[0].mxu0
      %721 = vmatprep.mubr.bf16.mxu0 0
      %722 = vmatmul.mubr.bf16.gmra.mrb[0].mxu0 %v662
      %v723 = vpop.f32.mrb[0].mxu0
      %v724 = vadd.f32 0.0, %v723
      %v725 = vpop.f32.mrb[0].mxu0
      %v726 = vpop.f32.mrb[0].mxu0
      %v727 = vadd.f32 0.0, %v726
      %v728 = vpop.f32.mrb[0].mxu0
      %729 = vmatprep.mubr.bf16.mxu0 0
      %730 = vmatmul.mubr.bf16.gmra.mrb[0].mxu0 %v665
      %v731 = vpop.f32.mrb[0].mxu0
      %v732 = vadd.f32 0.0, %v731
      %v733 = vpop.f32.mrb[0].mxu0
      %v734 = vpop.f32.mrb[0].mxu0
      %v735 = vadd.f32 0.0, %v734
      %v736 = vpop.f32.mrb[0].mxu0
      %737 = vmatprep.mubr.bf16.mxu0 0
      %738 = vmatmul.mubr.bf16.gmra.mrb[0].mxu0 %v668
      %v739 = vpop.f32.mrb[0].mxu0
      %v740 = vadd.f32 0.0, %v739
      %v741 = vpop.f32.mrb[0].mxu0
      %v742 = vpop.f32.mrb[0].mxu0
      %v743 = vadd.f32 0.0, %v742
      %v744 = vpop.f32.mrb[0].mxu0
      %745 = vdwg.mxu0
      %v746 = vadd.f32 %v577, %v708
      %v747 = vadd.f32 %v580, %v711
      %v748 = vadd.f32 %v585, %v716
      %v749 = vadd.f32 %v588, %v719
      %v750 = vadd.f32 %v593, %v724
      %v751 = vadd.f32 %v596, %v727
      %v752 = vadd.f32 %v601, %v732
      %v753 = vadd.f32 %v604, %v735
      %v754 = vadd.f32 %v609, %v740
      %v755 = vadd.f32 %v612, %v743
      %v756 = vld [vmem:[%s294 + $0x8] sm:$0xe]
      %v757 = vld [vmem:[%s294 + $0xc] sm:$0xf]
      %v758 = vld [vmem:[%s294 + $0x10] sm:$0xf]
      %v759 = vld [vmem:[%s294 + $0x14] sm:$0xf]
      %v760 = vld [vmem:[%s294 + $0x18] sm:$0xf]
      %v761 = vld [vmem:[%s294 + $0x1c] sm:$0xf]
      %v762 = vld [vmem:[%s294 + $0x20] sm:$0xf]
      %v763 = vld [vmem:[%s294 + $0x24] sm:$0xf]
      %v764 = vld [vmem:[%s294 + $0x28] sm:$0xf]
      %v765 = vld [vmem:[%s294 + $0x2c] sm:$0xf]
      %v766 = vld [vmem:[%s294 + $0x30] sm:$0x3]
      %s767 = scalar_lea.vmem %s298, 12
      %v768 = vld [vmem:[%s767] sm:$0xf]
      %v780 = vunpack.c.l.b16 %v756
      %v781 = vunpack.c.l.b16 %v757
      %v782 = vunpack.c.l.b16 %v758
      %v783 = vunpack.c.l.b16 %v759
      %v784 = vunpack.c.l.b16 %v760
      %v785 = vunpack.c.l.b16 %v761
      %v786 = vunpack.c.l.b16 %v762
      %v787 = vunpack.c.l.b16 %v763
      %v788 = vunpack.c.l.b16 %v764
      %v789 = vunpack.c.l.b16 %v765
      %v790 = vunpack.c.l.b16 %v766
      %v791 = vpack.c.b16 %v781, %v780
      %v792 = vpack.c.b16 %v783, %v782
      %v793 = vpack.c.b16 %v785, %v784
      %v794 = vpack.c.b16 %v787, %v786
      %v795 = vpack.c.b16 %v789, %v788
      %v796 = vpack.c.b16 %v790, %v790
      %v798 = vshrl.u32 %v791, 16
      %v800 = vrot.slane %v798, 1
      %v801 = vshll.u32 %v791, 16
      %v803 = vrot.slane %v801, 2
      %v804 = vor.u32 %v800, %v803
      %v806 = vshrl.u32 %v792, 16
      %v808 = vrot.slane %v806, 1
      %v809 = vshll.u32 %v792, 16
      %v811 = vrot.slane %v809, 2
      %v812 = vor.u32 %v808, %v811
      %v813 = vsel %vm621, %v804, %v812
      %v815 = vshrl.u32 %v793, 16
      %v817 = vrot.slane %v815, 1
      %v818 = vshll.u32 %v793, 16
      %v820 = vrot.slane %v818, 2
      %v821 = vor.u32 %v817, %v820
      %v822 = vsel %vm621, %v812, %v821
      %v824 = vshrl.u32 %v794, 16
      %v826 = vrot.slane %v824, 1
      %v827 = vshll.u32 %v794, 16
      %v829 = vrot.slane %v827, 2
      %v830 = vor.u32 %v826, %v829
      %v831 = vsel %vm621, %v821, %v830
      %v833 = vshrl.u32 %v795, 16
      %v835 = vrot.slane %v833, 1
      %v836 = vshll.u32 %v795, 16
      %v838 = vrot.slane %v836, 2
      %v839 = vor.u32 %v835, %v838
      %v840 = vsel %vm621, %v830, %v839
      %v842 = vshrl.u32 %v796, 16
      %v844 = vrot.slane %v842, 1
      %v845 = vshll.u32 %v796, 16
      %v847 = vrot.slane %v845, 2
      %v848 = vor.u32 %v844, %v847
      %v849 = vsel %vm621, %v839, %v848
      %v851 = vsel %vm383, %v813, 0
      %v854 = vsel %vm383, %v822, 0
      %v857 = vsel %vm383, %v831, 0
      %v860 = vsel %vm383, %v840, 0
      %v863 = vsel %vm383, %v849, 0
      %v866 = vsel %vm399, %v768, 0
      %868 = vmatprep.subr.bf16.mxu0 0
      %869 = vmatpush1.bf16.msra.mxu0 %v866
      %870 = vmatprep.subr.bf16.mxu0 0
      %871 = vmatpush1.bf16.msra.mxu0 0
      %872 = vmatprep.subr.bf16.mxu0 0
      %873 = vmatpush1.bf16.msra.mxu0 0
      %874 = vmatprep.subr.bf16.mxu0 0
      %875 = vmatpush1.bf16.msra.mxu0 0
      %876 = vmatprep.subr.bf16.mxu0 0
      %877 = vmatpush1.bf16.msra.mxu0 0
      %878 = vmatprep.subr.bf16.mxu0 0
      %879 = vmatpush1.bf16.msra.mxu0 0
      %880 = vmatprep.subr.bf16.mxu0 0
      %881 = vmatpush1.bf16.msra.mxu0 0
      %882 = vmatprep.subr.bf16.mxu0 0
      %883 = vmatpush1.bf16.msra.mxu0 0
      %884 = vmatprep.subr.bf16.mxu0 0
      %885 = vmatpush1.bf16.msra.mxu0 0
      %886 = vmatprep.subr.bf16.mxu0 0
      %887 = vmatpush1.bf16.msra.mxu0 0
      %888 = vmatprep.subr.bf16.mxu0 0
      %889 = vmatpush1.bf16.msra.mxu0 0
      %890 = vmatprep.subr.bf16.mxu0 0
      %891 = vmatpush1.bf16.msra.mxu0 0
      %892 = vmatprep.subr.bf16.mxu0 0
      %893 = vmatpush1.bf16.msra.mxu0 0
      %894 = vmatprep.subr.bf16.mxu0 0
      %895 = vmatpush1.bf16.msra.mxu0 0
      %896 = vmatprep.subr.bf16.mxu0 0
      %897 = vmatpush1.bf16.msra.mxu0 0
      %898 = vmatprep.subr.bf16.mxu0 0
      %899 = vmatpush1.bf16.msra.mxu0 0
      %900 = vmatprep.mubr.bf16.mxu0 0
      %901 = vmatmul.mubr.bf16.gmra.mrb[0].mxu0 %v851
      %v902 = vpop.f32.mrb[0].mxu0
      %v903 = vadd.f32 0.0, %v902
      %v904 = vpop.f32.mrb[0].mxu0
      %v905 = vpop.f32.mrb[0].mxu0
      %v906 = vadd.f32 0.0, %v905
      %v907 = vpop.f32.mrb[0].mxu0
      %908 = vmatprep.mubr.bf16.mxu0 0
      %909 = vmatmul.mubr.bf16.gmra.mrb[0].mxu0 %v854
      %v910 = vpop.f32.mrb[0].mxu0
      %v911 = vadd.f32 0.0, %v910
      %v912 = vpop.f32.mrb[0].mxu0
      %v913 = vpop.f32.mrb[0].mxu0
      %v914 = vadd.f32 0.0, %v913
      %v915 = vpop.f32.mrb[0].mxu0
      %916 = vmatprep.mubr.bf16.mxu0 0
      %917 = vmatmul.mubr.bf16.gmra.mrb[0].mxu0 %v857
      %v918 = vpop.f32.mrb[0].mxu0
      %v919 = vadd.f32 0.0, %v918
      %v920 = vpop.f32.mrb[0].mxu0
      %v921 = vpop.f32.mrb[0].mxu0
      %v922 = vadd.f32 0.0, %v921
      %v923 = vpop.f32.mrb[0].mxu0
      %924 = vmatprep.mubr.bf16.mxu0 0
      %925 = vmatmul.mubr.bf16.gmra.mrb[0].mxu0 %v860
      %v926 = vpop.f32.mrb[0].mxu0
      %v927 = vadd.f32 0.0, %v926
      %v928 = vpop.f32.mrb[0].mxu0
      %v929 = vpop.f32.mrb[0].mxu0
      %v930 = vadd.f32 0.0, %v929
      %v931 = vpop.f32.mrb[0].mxu0
      %932 = vmatprep.mubr.bf16.mxu0 0
      %933 = vmatmul.mubr.bf16.gmra.mrb[0].mxu0 %v863
      %v934 = vpop.f32.mrb[0].mxu0
      %v935 = vadd.f32 0.0, %v934
      %v936 = vpop.f32.mrb[0].mxu0
      %v937 = vpop.f32.mrb[0].mxu0
      %v938 = vadd.f32 0.0, %v937
      %v939 = vpop.f32.mrb[0].mxu0
      %940 = vdwg.mxu0
      %v941 = vadd.f32 %v746, %v903
      %v942 = vadd.f32 %v747, %v906
      %v943 = vadd.f32 %v748, %v911
      %v944 = vadd.f32 %v749, %v914
      %v945 = vadd.f32 %v750, %v919
      %v946 = vadd.f32 %v751, %v922
      %v947 = vadd.f32 %v752, %v927
      %v948 = vadd.f32 %v753, %v930
      %v949 = vadd.f32 %v754, %v935
      %v950 = vadd.f32 %v755, %v938
      %v951 = vld [vmem:[%s294 + $0x8] sm:$0xc]
      %s952 = scalar_lea.vmem %s298, 16
      %v953 = vld [vmem:[%s952] sm:$0xf]
      %v955 = vunpack.c.l.b16 %v951
      %v956 = vpack.c.b16 %v781, %v955
      %vm957 = vcmask 1045504
      %v958 = vrot.slane %v956, 2
      %v959 = vrot.slane %v792, 2
      %v960 = vsel %vm957, %v958, %v959
      %v961 = vrot.slane %v793, 2
      %v962 = vsel %vm957, %v959, %v961
      %v963 = vrot.slane %v794, 2
      %v964 = vsel %vm957, %v961, %v963
      %v965 = vrot.slane %v795, 2
      %v966 = vsel %vm957, %v963, %v965
      %v967 = vrot.slane %v796, 2
      %v968 = vsel %vm957, %v965, %v967
      %v970 = vsel %vm383, %v960, 0
      %v973 = vsel %vm383, %v962, 0
      %v976 = vsel %vm383, %v964, 0
      %v979 = vsel %vm383, %v966, 0
      %v982 = vsel %vm383, %v968, 0
      %v985 = vsel %vm399, %v953, 0
      %987 = vmatprep.subr.bf16.mxu0 0
      %988 = vmatpush1.bf16.msra.mxu0 %v985
      %989 = vmatprep.subr.bf16.mxu0 0
      %990 = vmatpush1.bf16.msra.mxu0 0
      %991 = vmatprep.subr.bf16.mxu0 0
      %992 = vmatpush1.bf16.msra.mxu0 0
      %993 = vmatprep.subr.bf16.mxu0 0
      %994 = vmatpush1.bf16.msra.mxu0 0
      %995 = vmatprep.subr.bf16.mxu0 0
      %996 = vmatpush1.bf16.msra.mxu0 0
      %997 = vmatprep.subr.bf16.mxu0 0
      %998 = vmatpush1.bf16.msra.mxu0 0
      %999 = vmatprep.subr.bf16.mxu0 0
      %1000 = vmatpush1.bf16.msra.mxu0 0
      %1001 = vmatprep.subr.bf16.mxu0 0
      %1002 = vmatpush1.bf16.msra.mxu0 0
      %1003 = vmatprep.subr.bf16.mxu0 0
      %1004 = vmatpush1.bf16.msra.mxu0 0
      %1005 = vmatprep.subr.bf16.mxu0 0
      %1006 = vmatpush1.bf16.msra.mxu0 0
      %1007 = vmatprep.subr.bf16.mxu0 0
      %1008 = vmatpush1.bf16.msra.mxu0 0
      %1009 = vmatprep.subr.bf16.mxu0 0
      %1010 = vmatpush1.bf16.msra.mxu0 0
      %1011 = vmatprep.subr.bf16.mxu0 0
      %1012 = vmatpush1.bf16.msra.mxu0 0
      %1013 = vmatprep.subr.bf16.mxu0 0
      %1014 = vmatpush1.bf16.msra.mxu0 0
      %1015 = vmatprep.subr.bf16.mxu0 0
      %1016 = vmatpush1.bf16.msra.mxu0 0
      %1017 = vmatprep.subr.bf16.mxu0 0
      %1018 = vmatpush1.bf16.msra.mxu0 0
      %1019 = vmatprep.mubr.bf16.mxu0 0
      %1020 = vmatmul.mubr.bf16.gmra.mrb[0].mxu0 %v970
      %v1021 = vpop.f32.mrb[0].mxu0
      %v1022 = vadd.f32 0.0, %v1021
      %v1023 = vpop.f32.mrb[0].mxu0
      %v1024 = vpop.f32.mrb[0].mxu0
      %v1025 = vadd.f32 0.0, %v1024
      %v1026 = vpop.f32.mrb[0].mxu0
      %1027 = vmatprep.mubr.bf16.mxu0 0
      %1028 = vmatmul.mubr.bf16.gmra.mrb[0].mxu0 %v973
      %v1029 = vpop.f32.mrb[0].mxu0
      %v1030 = vadd.f32 0.0, %v1029
      %v1031 = vpop.f32.mrb[0].mxu0
      %v1032 = vpop.f32.mrb[0].mxu0
      %v1033 = vadd.f32 0.0, %v1032
      %v1034 = vpop.f32.mrb[0].mxu0
      %1035 = vmatprep.mubr.bf16.mxu0 0
      %1036 = vmatmul.mubr.bf16.gmra.mrb[0].mxu0 %v976
      %v1037 = vpop.f32.mrb[0].mxu0
      %v1038 = vadd.f32 0.0, %v1037
      %v1039 = vpop.f32.mrb[0].mxu0
      %v1040 = vpop.f32.mrb[0].mxu0
      %v1041 = vadd.f32 0.0, %v1040
      %v1042 = vpop.f32.mrb[0].mxu0
      %1043 = vmatprep.mubr.bf16.mxu0 0
      %1044 = vmatmul.mubr.bf16.gmra.mrb[0].mxu0 %v979
      %v1045 = vpop.f32.mrb[0].mxu0
      %v1046 = vadd.f32 0.0, %v1045
      %v1047 = vpop.f32.mrb[0].mxu0
      %v1048 = vpop.f32.mrb[0].mxu0
      %v1049 = vadd.f32 0.0, %v1048
      %v1050 = vpop.f32.mrb[0].mxu0
      %1051 = vmatprep.mubr.bf16.mxu0 0
      %1052 = vmatmul.mubr.bf16.gmra.mrb[0].mxu0 %v982
      %v1053 = vpop.f32.mrb[0].mxu0
      %v1054 = vadd.f32 0.0, %v1053
      %v1055 = vpop.f32.mrb[0].mxu0
      %v1056 = vpop.f32.mrb[0].mxu0
      %v1057 = vadd.f32 0.0, %v1056
      %v1058 = vpop.f32.mrb[0].mxu0
      %1059 = vdwg.mxu0
      %v1060 = vadd.f32 %v941, %v1022
      %v1061 = vadd.f32 %v942, %v1025
      %v1062 = vadd.f32 %v943, %v1030
      %v1063 = vadd.f32 %v944, %v1033
      %v1064 = vadd.f32 %v945, %v1038
      %v1065 = vadd.f32 %v946, %v1041
      %v1066 = vadd.f32 %v947, %v1046
      %v1067 = vadd.f32 %v948, %v1049
      %v1068 = vadd.f32 %v949, %v1054
      %v1069 = vadd.f32 %v950, %v1057
      %v1070 = vld [vmem:[%s294 + $0x30] sm:$0x7]
      %s1071 = scalar_lea.vmem %s298, 20
      %v1072 = vld [vmem:[%s1071] sm:$0xf]
      %v1074 = vunpack.c.l.b16 %v1070
      %v1075 = vpack.c.b16 %v1074, %v1074
      %vm1076 = vsmask.f32 5376
      %v1078 = vshrl.u32 %v956, 16
      %v1080 = vrot.slane %v1078, 2
      %v1081 = vshll.u32 %v956, 16
      %v1083 = vrot.slane %v1081, 3
      %v1084 = vor.u32 %v1080, %v1083
      %v1085 = vrot.slane %v806, 2
      %v1086 = vrot.slane %v809, 3
      %v1087 = vor.u32 %v1085, %v1086
      %v1088 = vsel %vm1076, %v1084, %v1087
      %v1089 = vrot.slane %v815, 2
      %v1090 = vrot.slane %v818, 3
      %v1091 = vor.u32 %v1089, %v1090
      %v1092 = vsel %vm1076, %v1087, %v1091
      %v1093 = vrot.slane %v824, 2
      %v1094 = vrot.slane %v827, 3
      %v1095 = vor.u32 %v1093, %v1094
      %v1096 = vsel %vm1076, %v1091, %v1095
      %v1097 = vrot.slane %v833, 2
      %v1098 = vrot.slane %v836, 3
      %v1099 = vor.u32 %v1097, %v1098
      %v1100 = vsel %vm1076, %v1095, %v1099
      %v1102 = vshrl.u32 %v1075, 16
      %v1104 = vrot.slane %v1102, 2
      %v1105 = vshll.u32 %v1075, 16
      %v1107 = vrot.slane %v1105, 3
      %v1108 = vor.u32 %v1104, %v1107
      %v1109 = vsel %vm1076, %v1099, %v1108
      %v1111 = vsel %vm383, %v1088, 0
      %v1114 = vsel %vm383, %v1092, 0
      %v1117 = vsel %vm383, %v1096, 0
      %v1120 = vsel %vm383, %v1100, 0
      %v1123 = vsel %vm383, %v1109, 0
      %v1126 = vsel %vm399, %v1072, 0
      %1128 = vmatprep.subr.bf16.mxu0 0
      %1129 = vmatpush1.bf16.msra.mxu0 %v1126
      %1130 = vmatprep.subr.bf16.mxu0 0
      %1131 = vmatpush1.bf16.msra.mxu0 0
      %1132 = vmatprep.subr.bf16.mxu0 0
      %1133 = vmatpush1.bf16.msra.mxu0 0
      %1134 = vmatprep.subr.bf16.mxu0 0
      %1135 = vmatpush1.bf16.msra.mxu0 0
      %1136 = vmatprep.subr.bf16.mxu0 0
      %1137 = vmatpush1.bf16.msra.mxu0 0
      %1138 = vmatprep.subr.bf16.mxu0 0
      %1139 = vmatpush1.bf16.msra.mxu0 0
      %1140 = vmatprep.subr.bf16.mxu0 0
      %1141 = vmatpush1.bf16.msra.mxu0 0
      %1142 = vmatprep.subr.bf16.mxu0 0
      %1143 = vmatpush1.bf16.msra.mxu0 0
      %1144 = vmatprep.subr.bf16.mxu0 0
      %1145 = vmatpush1.bf16.msra.mxu0 0
      %1146 = vmatprep.subr.bf16.mxu0 0
      %1147 = vmatpush1.bf16.msra.mxu0 0
      %1148 = vmatprep.subr.bf16.mxu0 0
      %1149 = vmatpush1.bf16.msra.mxu0 0
      %1150 = vmatprep.subr.bf16.mxu0 0
      %1151 = vmatpush1.bf16.msra.mxu0 0
      %1152 = vmatprep.subr.bf16.mxu0 0
      %1153 = vmatpush1.bf16.msra.mxu0 0
      %1154 = vmatprep.subr.bf16.mxu0 0
      %1155 = vmatpush1.bf16.msra.mxu0 0
      %1156 = vmatprep.subr.bf16.mxu0 0
      %1157 = vmatpush1.bf16.msra.mxu0 0
      %1158 = vmatprep.subr.bf16.mxu0 0
      %1159 = vmatpush1.bf16.msra.mxu0 0
      %1160 = vmatprep.mubr.bf16.mxu0 0
      %1161 = vmatmul.mubr.bf16.gmra.mrb[0].mxu0 %v1111
      %v1162 = vpop.f32.mrb[0].mxu0
      %v1163 = vadd.f32 0.0, %v1162
      %v1164 = vpop.f32.mrb[0].mxu0
      %v1165 = vpop.f32.mrb[0].mxu0
      %v1166 = vadd.f32 0.0, %v1165
      %v1167 = vpop.f32.mrb[0].mxu0
      %1168 = vmatprep.mubr.bf16.mxu0 0
      %1169 = vmatmul.mubr.bf16.gmra.mrb[0].mxu0 %v1114
      %v1170 = vpop.f32.mrb[0].mxu0
      %v1171 = vadd.f32 0.0, %v1170
      %v1172 = vpop.f32.mrb[0].mxu0
      %v1173 = vpop.f32.mrb[0].mxu0
      %v1174 = vadd.f32 0.0, %v1173
      %v1175 = vpop.f32.mrb[0].mxu0
      %1176 = vmatprep.mubr.bf16.mxu0 0
      %1177 = vmatmul.mubr.bf16.gmra.mrb[0].mxu0 %v1117
      %v1178 = vpop.f32.mrb[0].mxu0
      %v1179 = vadd.f32 0.0, %v1178
      %v1180 = vpop.f32.mrb[0].mxu0
      %v1181 = vpop.f32.mrb[0].mxu0
      %v1182 = vadd.f32 0.0, %v1181
      %v1183 = vpop.f32.mrb[0].mxu0
      %1184 = vmatprep.mubr.bf16.mxu0 0
      %1185 = vmatmul.mubr.bf16.gmra.mrb[0].mxu0 %v1120
      %v1186 = vpop.f32.mrb[0].mxu0
      %v1187 = vadd.f32 0.0, %v1186
      %v1188 = vpop.f32.mrb[0].mxu0
      %v1189 = vpop.f32.mrb[0].mxu0
      %v1190 = vadd.f32 0.0, %v1189
      %v1191 = vpop.f32.mrb[0].mxu0
      %1192 = vmatprep.mubr.bf16.mxu0 0
      %1193 = vmatmul.mubr.bf16.gmra.mrb[0].mxu0 %v1123
      %v1194 = vpop.f32.mrb[0].mxu0
      %v1195 = vadd.f32 0.0, %v1194
      %v1196 = vpop.f32.mrb[0].mxu0
      %v1197 = vpop.f32.mrb[0].mxu0
      %v1198 = vadd.f32 0.0, %v1197
      %v1199 = vpop.f32.mrb[0].mxu0
      %1200 = vdwg.mxu0
      %v1201 = vadd.f32 %v1060, %v1163
      %v1202 = vadd.f32 %v1061, %v1166
      %v1203 = vadd.f32 %v1062, %v1171
      %v1204 = vadd.f32 %v1063, %v1174
      %v1205 = vadd.f32 %v1064, %v1179
      %v1206 = vadd.f32 %v1065, %v1182
      %v1207 = vadd.f32 %v1066, %v1187
      %v1208 = vadd.f32 %v1067, %v1190
      %v1209 = vadd.f32 %v1068, %v1195
      %v1210 = vadd.f32 %v1069, %v1198
      %v1211 = vld [vmem:[%s294 + $0xc] sm:$0xc]
      %v1212 = vld [vmem:[%s294 + $0x10] sm:$0xf]
      %v1213 = vld [vmem:[%s294 + $0x14] sm:$0xf]
      %v1214 = vld [vmem:[%s294 + $0x18] sm:$0xf]
      %v1215 = vld [vmem:[%s294 + $0x1c] sm:$0xf]
      %v1216 = vld [vmem:[%s294 + $0x20] sm:$0xf]
      %v1217 = vld [vmem:[%s294 + $0x24] sm:$0xf]
      %v1218 = vld [vmem:[%s294 + $0x28] sm:$0xf]
      %v1219 = vld [vmem:[%s294 + $0x2c] sm:$0xf]
      %v1220 = vld [vmem:[%s294 + $0x30] sm:$0xf]
      %v1221 = vld [vmem:[%s294 + $0x34] sm:$0x7]
      %s1222 = scalar_lea.vmem %s298, 24
      %v1223 = vld [vmem:[%s1222] sm:$0xf]
      %v1235 = vunpack.c.l.b16 %v1211
      %v1236 = vunpack.c.l.b16 %v1212
      %v1237 = vunpack.c.l.b16 %v1213
      %v1238 = vunpack.c.l.b16 %v1214
      %v1239 = vunpack.c.l.b16 %v1215
      %v1240 = vunpack.c.l.b16 %v1216
      %v1241 = vunpack.c.l.b16 %v1217
      %v1242 = vunpack.c.l.b16 %v1218
      %v1243 = vunpack.c.l.b16 %v1219
      %v1244 = vunpack.c.l.b16 %v1220
      %v1245 = vunpack.c.l.b16 %v1221
      %v1246 = vpack.c.b16 %v1236, %v1235
      %v1247 = vpack.c.b16 %v1238, %v1237
      %v1248 = vpack.c.b16 %v1240, %v1239
      %v1249 = vpack.c.b16 %v1242, %v1241
      %v1250 = vpack.c.b16 %v1244, %v1243
      %v1251 = vpack.c.b16 %v1245, %v1245
      %v1253 = vshrl.u32 %v1246, 16
      %v1255 = vrot.slane %v1253, 2
      %v1256 = vshll.u32 %v1246, 16
      %v1258 = vrot.slane %v1256, 3
      %v1259 = vor.u32 %v1255, %v1258
      %v1261 = vshrl.u32 %v1247, 16
      %v1263 = vrot.slane %v1261, 2
      %v1264 = vshll.u32 %v1247, 16
      %v1266 = vrot.slane %v1264, 3
      %v1267 = vor.u32 %v1263, %v1266
      %v1268 = vsel %vm1076, %v1259, %v1267
      %v1270 = vshrl.u32 %v1248, 16
      %v1272 = vrot.slane %v1270, 2
      %v1273 = vshll.u32 %v1248, 16
      %v1275 = vrot.slane %v1273, 3
      %v1276 = vor.u32 %v1272, %v1275
      %v1277 = vsel %vm1076, %v1267, %v1276
      %v1279 = vshrl.u32 %v1249, 16
      %v1281 = vrot.slane %v1279, 2
      %v1282 = vshll.u32 %v1249, 16
      %v1284 = vrot.slane %v1282, 3
      %v1285 = vor.u32 %v1281, %v1284
      %v1286 = vsel %vm1076, %v1276, %v1285
      %v1288 = vshrl.u32 %v1250, 16
      %v1290 = vrot.slane %v1288, 2
      %v1291 = vshll.u32 %v1250, 16
      %v1293 = vrot.slane %v1291, 3
      %v1294 = vor.u32 %v1290, %v1293
      %v1295 = vsel %vm1076, %v1285, %v1294
      %v1297 = vshrl.u32 %v1251, 16
      %v1299 = vrot.slane %v1297, 2
      %v1300 = vshll.u32 %v1251, 16
      %v1302 = vrot.slane %v1300, 3
      %v1303 = vor.u32 %v1299, %v1302
      %v1304 = vsel %vm1076, %v1294, %v1303
      %v1306 = vsel %vm383, %v1268, 0
      %v1309 = vsel %vm383, %v1277, 0
      %v1312 = vsel %vm383, %v1286, 0
      %v1315 = vsel %vm383, %v1295, 0
      %v1318 = vsel %vm383, %v1304, 0
      %v1321 = vsel %vm399, %v1223, 0
      %1323 = vmatprep.subr.bf16.mxu0 0
      %1324 = vmatpush1.bf16.msra.mxu0 %v1321
      %1325 = vmatprep.subr.bf16.mxu0 0
      %1326 = vmatpush1.bf16.msra.mxu0 0
      %1327 = vmatprep.subr.bf16.mxu0 0
      %1328 = vmatpush1.bf16.msra.mxu0 0
      %1329 = vmatprep.subr.bf16.mxu0 0
      %1330 = vmatpush1.bf16.msra.mxu0 0
      %1331 = vmatprep.subr.bf16.mxu0 0
      %1332 = vmatpush1.bf16.msra.mxu0 0
      %1333 = vmatprep.subr.bf16.mxu0 0
      %1334 = vmatpush1.bf16.msra.mxu0 0
      %1335 = vmatprep.subr.bf16.mxu0 0
      %1336 = vmatpush1.bf16.msra.mxu0 0
      %1337 = vmatprep.subr.bf16.mxu0 0
      %1338 = vmatpush1.bf16.msra.mxu0 0
      %1339 = vmatprep.subr.bf16.mxu0 0
      %1340 = vmatpush1.bf16.msra.mxu0 0
      %1341 = vmatprep.subr.bf16.mxu0 0
      %1342 = vmatpush1.bf16.msra.mxu0 0
      %1343 = vmatprep.subr.bf16.mxu0 0
      %1344 = vmatpush1.bf16.msra.mxu0 0
      %1345 = vmatprep.subr.bf16.mxu0 0
      %1346 = vmatpush1.bf16.msra.mxu0 0
      %1347 = vmatprep.subr.bf16.mxu0 0
      %1348 = vmatpush1.bf16.msra.mxu0 0
      %1349 = vmatprep.subr.bf16.mxu0 0
      %1350 = vmatpush1.bf16.msra.mxu0 0
      %1351 = vmatprep.subr.bf16.mxu0 0
      %1352 = vmatpush1.bf16.msra.mxu0 0
      %1353 = vmatprep.subr.bf16.mxu0 0
      %1354 = vmatpush1.bf16.msra.mxu0 0
      %1355 = vmatprep.mubr.bf16.mxu0 0
      %1356 = vmatmul.mubr.bf16.gmra.mrb[0].mxu0 %v1306
      %v1357 = vpop.f32.mrb[0].mxu0
      %v1358 = vadd.f32 0.0, %v1357
      %v1359 = vpop.f32.mrb[0].mxu0
      %v1360 = vpop.f32.mrb[0].mxu0
      %v1361 = vadd.f32 0.0, %v1360
      %v1362 = vpop.f32.mrb[0].mxu0
      %1363 = vmatprep.mubr.bf16.mxu0 0
      %1364 = vmatmul.mubr.bf16.gmra.mrb[0].mxu0 %v1309
      %v1365 = vpop.f32.mrb[0].mxu0
      %v1366 = vadd.f32 0.0, %v1365
      %v1367 = vpop.f32.mrb[0].mxu0
      %v1368 = vpop.f32.mrb[0].mxu0
      %v1369 = vadd.f32 0.0, %v1368
      %v1370 = vpop.f32.mrb[0].mxu0
      %1371 = vmatprep.mubr.bf16.mxu0 0
      %1372 = vmatmul.mubr.bf16.gmra.mrb[0].mxu0 %v1312
      %v1373 = vpop.f32.mrb[0].mxu0
      %v1374 = vadd.f32 0.0, %v1373
      %v1375 = vpop.f32.mrb[0].mxu0
      %v1376 = vpop.f32.mrb[0].mxu0
      %v1377 = vadd.f32 0.0, %v1376
      %v1378 = vpop.f32.mrb[0].mxu0
      %1379 = vmatprep.mubr.bf16.mxu0 0
      %1380 = vmatmul.mubr.bf16.gmra.mrb[0].mxu0 %v1315
      %v1381 = vpop.f32.mrb[0].mxu0
      %v1382 = vadd.f32 0.0, %v1381
      %v1383 = vpop.f32.mrb[0].mxu0
      %v1384 = vpop.f32.mrb[0].mxu0
      %v1385 = vadd.f32 0.0, %v1384
      %v1386 = vpop.f32.mrb[0].mxu0
      %1387 = vmatprep.mubr.bf16.mxu0 0
      %1388 = vmatmul.mubr.bf16.gmra.mrb[0].mxu0 %v1318
      %v1389 = vpop.f32.mrb[0].mxu0
      %v1390 = vadd.f32 0.0, %v1389
      %v1391 = vpop.f32.mrb[0].mxu0
      %v1392 = vpop.f32.mrb[0].mxu0
      %v1393 = vadd.f32 0.0, %v1392
      %v1394 = vpop.f32.mrb[0].mxu0
      %1395 = vdwg.mxu0
      %v1396 = vadd.f32 %v1201, %v1358
      %v1397 = vadd.f32 %v1202, %v1361
      %v1398 = vadd.f32 %v1203, %v1366
      %v1399 = vadd.f32 %v1204, %v1369
      %v1400 = vadd.f32 %v1205, %v1374
      %v1401 = vadd.f32 %v1206, %v1377
      %v1402 = vadd.f32 %v1207, %v1382
      %v1403 = vadd.f32 %v1208, %v1385
      %v1404 = vadd.f32 %v1209, %v1390
      %v1405 = vadd.f32 %v1210, %v1393
      %v1406 = vld [vmem:[%s294 + $0xc] sm:$0x8]
      %s1407 = scalar_lea.vmem %s298, 28
      %v1408 = vld [vmem:[%s1407] sm:$0xf]
      %v1410 = vunpack.c.l.b16 %v1406
      %v1411 = vpack.c.b16 %v1236, %v1410
      %vm1412 = vcmask 1044480
      %v1413 = vrot.slane %v1411, 3
      %v1414 = vrot.slane %v1247, 3
      %v1415 = vsel %vm1412, %v1413, %v1414
      %v1416 = vrot.slane %v1248, 3
      %v1417 = vsel %vm1412, %v1414, %v1416
      %v1418 = vrot.slane %v1249, 3
      %v1419 = vsel %vm1412, %v1416, %v1418
      %v1420 = vrot.slane %v1250, 3
      %v1421 = vsel %vm1412, %v1418, %v1420
      %v1422 = vrot.slane %v1251, 3
      %v1423 = vsel %vm1412, %v1420, %v1422
      %v1425 = vsel %vm383, %v1415, 0
      %v1428 = vsel %vm383, %v1417, 0
      %v1431 = vsel %vm383, %v1419, 0
      %v1434 = vsel %vm383, %v1421, 0
      %v1437 = vsel %vm383, %v1423, 0
      %v1440 = vsel %vm399, %v1408, 0
      %1442 = vmatprep.subr.bf16.mxu0 0
      %1443 = vmatpush1.bf16.msra.mxu0 %v1440
      %1444 = vmatprep.subr.bf16.mxu0 0
      %1445 = vmatpush1.bf16.msra.mxu0 0
      %1446 = vmatprep.subr.bf16.mxu0 0
      %1447 = vmatpush1.bf16.msra.mxu0 0
      %1448 = vmatprep.subr.bf16.mxu0 0
      %1449 = vmatpush1.bf16.msra.mxu0 0
      %1450 = vmatprep.subr.bf16.mxu0 0
      %1451 = vmatpush1.bf16.msra.mxu0 0
      %1452 = vmatprep.subr.bf16.mxu0 0
      %1453 = vmatpush1.bf16.msra.mxu0 0
      %1454 = vmatprep.subr.bf16.mxu0 0
      %1455 = vmatpush1.bf16.msra.mxu0 0
      %1456 = vmatprep.subr.bf16.mxu0 0
      %1457 = vmatpush1.bf16.msra.mxu0 0
      %1458 = vmatprep.subr.bf16.mxu0 0
      %1459 = vmatpush1.bf16.msra.mxu0 0
      %1460 = vmatprep.subr.bf16.mxu0 0
      %1461 = vmatpush1.bf16.msra.mxu0 0
      %1462 = vmatprep.subr.bf16.mxu0 0
      %1463 = vmatpush1.bf16.msra.mxu0 0
      %1464 = vmatprep.subr.bf16.mxu0 0
      %1465 = vmatpush1.bf16.msra.mxu0 0
      %1466 = vmatprep.subr.bf16.mxu0 0
      %1467 = vmatpush1.bf16.msra.mxu0 0
      %1468 = vmatprep.subr.bf16.mxu0 0
      %1469 = vmatpush1.bf16.msra.mxu0 0
      %1470 = vmatprep.subr.bf16.mxu0 0
      %1471 = vmatpush1.bf16.msra.mxu0 0
      %1472 = vmatprep.subr.bf16.mxu0 0
      %1473 = vmatpush1.bf16.msra.mxu0 0
      %1474 = vmatprep.mubr.bf16.mxu0 0
      %1475 = vmatmul.mubr.bf16.gmra.mrb[0].mxu0 %v1425
      %v1476 = vpop.f32.mrb[0].mxu0
      %v1477 = vadd.f32 0.0, %v1476
      %v1478 = vpop.f32.mrb[0].mxu0
      %v1479 = vpop.f32.mrb[0].mxu0
      %v1480 = vadd.f32 0.0, %v1479
      %v1481 = vpop.f32.mrb[0].mxu0
      %1482 = vmatprep.mubr.bf16.mxu0 0
      %1483 = vmatmul.mubr.bf16.gmra.mrb[0].mxu0 %v1428
      %v1484 = vpop.f32.mrb[0].mxu0
      %v1485 = vadd.f32 0.0, %v1484
      %v1486 = vpop.f32.mrb[0].mxu0
      %v1487 = vpop.f32.mrb[0].mxu0
      %v1488 = vadd.f32 0.0, %v1487
      %v1489 = vpop.f32.mrb[0].mxu0
      %1490 = vmatprep.mubr.bf16.mxu0 0
      %1491 = vmatmul.mubr.bf16.gmra.mrb[0].mxu0 %v1431
      %v1492 = vpop.f32.mrb[0].mxu0
      %v1493 = vadd.f32 0.0, %v1492
      %v1494 = vpop.f32.mrb[0].mxu0
      %v1495 = vpop.f32.mrb[0].mxu0
      %v1496 = vadd.f32 0.0, %v1495
      %v1497 = vpop.f32.mrb[0].mxu0
      %1498 = vmatprep.mubr.bf16.mxu0 0
      %1499 = vmatmul.mubr.bf16.gmra.mrb[0].mxu0 %v1434
      %v1500 = vpop.f32.mrb[0].mxu0
      %v1501 = vadd.f32 0.0, %v1500
      %v1502 = vpop.f32.mrb[0].mxu0
      %v1503 = vpop.f32.mrb[0].mxu0
      %v1504 = vadd.f32 0.0, %v1503
      %v1505 = vpop.f32.mrb[0].mxu0
      %1506 = vmatprep.mubr.bf16.mxu0 0
      %1507 = vmatmul.mubr.bf16.gmra.mrb[0].mxu0 %v1437
      %v1508 = vpop.f32.mrb[0].mxu0
      %v1509 = vadd.f32 0.0, %v1508
      %v1510 = vpop.f32.mrb[0].mxu0
      %v1511 = vpop.f32.mrb[0].mxu0
      %v1512 = vadd.f32 0.0, %v1511
      %v1513 = vpop.f32.mrb[0].mxu0
      %1514 = vdwg.mxu0
      %v1515 = vadd.f32 %v1396, %v1477
      %v1516 = vadd.f32 %v1397, %v1480
      %v1517 = vadd.f32 %v1398, %v1485
      %v1518 = vadd.f32 %v1399, %v1488
      %v1519 = vadd.f32 %v1400, %v1493
      %v1520 = vadd.f32 %v1401, %v1496
      %v1521 = vadd.f32 %v1402, %v1501
      %v1522 = vadd.f32 %v1403, %v1504
      %v1523 = vadd.f32 %v1404, %v1509
      %v1524 = vadd.f32 %v1405, %v1512
      %v1525 = vld [vmem:[%s294 + $0x34] sm:$0xf]
      %s1526 = scalar_lea.vmem %s298, 32
      %v1527 = vld [vmem:[%s1526] sm:$0xf]
      %v1529 = vunpack.c.l.b16 %v1525
      %v1530 = vpack.c.b16 %v1529, %v1529
      %vm1531 = vsmask.f32 4352
      %v1533 = vshrl.u32 %v1411, 16
      %v1535 = vrot.slane %v1533, 3
      %v1536 = vshll.u32 %v1411, 16
      %v1538 = vrot.slane %v1536, 4
      %v1539 = vor.u32 %v1535, %v1538
      %v1540 = vrot.slane %v1261, 3
      %v1541 = vrot.slane %v1264, 4
      %v1542 = vor.u32 %v1540, %v1541
      %v1543 = vsel %vm1531, %v1539, %v1542
      %v1544 = vrot.slane %v1270, 3
      %v1545 = vrot.slane %v1273, 4
      %v1546 = vor.u32 %v1544, %v1545
      %v1547 = vsel %vm1531, %v1542, %v1546
      %v1548 = vrot.slane %v1279, 3
      %v1549 = vrot.slane %v1282, 4
      %v1550 = vor.u32 %v1548, %v1549
      %v1551 = vsel %vm1531, %v1546, %v1550
      %v1552 = vrot.slane %v1288, 3
      %v1553 = vrot.slane %v1291, 4
      %v1554 = vor.u32 %v1552, %v1553
      %v1555 = vsel %vm1531, %v1550, %v1554
      %v1557 = vshrl.u32 %v1530, 16
      %v1559 = vrot.slane %v1557, 3
      %v1560 = vshll.u32 %v1530, 16
      %v1562 = vrot.slane %v1560, 4
      %v1563 = vor.u32 %v1559, %v1562
      %v1564 = vsel %vm1531, %v1554, %v1563
      %v1566 = vsel %vm383, %v1543, 0
      %v1569 = vsel %vm383, %v1547, 0
      %v1572 = vsel %vm383, %v1551, 0
      %v1575 = vsel %vm383, %v1555, 0
      %v1578 = vsel %vm383, %v1564, 0
      %v1581 = vsel %vm399, %v1527, 0
      %1583 = vmatprep.subr.bf16.mxu0 0
      %1584 = vmatpush1.bf16.msra.mxu0 %v1581
      %1585 = vmatprep.subr.bf16.mxu0 0
      %1586 = vmatpush1.bf16.msra.mxu0 0
      %1587 = vmatprep.subr.bf16.mxu0 0
      %1588 = vmatpush1.bf16.msra.mxu0 0
      %1589 = vmatprep.subr.bf16.mxu0 0
      %1590 = vmatpush1.bf16.msra.mxu0 0
      %1591 = vmatprep.subr.bf16.mxu0 0
      %1592 = vmatpush1.bf16.msra.mxu0 0
      %1593 = vmatprep.subr.bf16.mxu0 0
      %1594 = vmatpush1.bf16.msra.mxu0 0
      %1595 = vmatprep.subr.bf16.mxu0 0
      %1596 = vmatpush1.bf16.msra.mxu0 0
      %1597 = vmatprep.subr.bf16.mxu0 0
      %1598 = vmatpush1.bf16.msra.mxu0 0
      %1599 = vmatprep.subr.bf16.mxu0 0
      %1600 = vmatpush1.bf16.msra.mxu0 0
      %1601 = vmatprep.subr.bf16.mxu0 0
      %1602 = vmatpush1.bf16.msra.mxu0 0
      %1603 = vmatprep.subr.bf16.mxu0 0
      %1604 = vmatpush1.bf16.msra.mxu0 0
      %1605 = vmatprep.subr.bf16.mxu0 0
      %1606 = vmatpush1.bf16.msra.mxu0 0
      %1607 = vmatprep.subr.bf16.mxu0 0
      %1608 = vmatpush1.bf16.msra.mxu0 0
      %1609 = vmatprep.subr.bf16.mxu0 0
      %1610 = vmatpush1.bf16.msra.mxu0 0
      %1611 = vmatprep.subr.bf16.mxu0 0
      %1612 = vmatpush1.bf16.msra.mxu0 0
      %1613 = vmatprep.subr.bf16.mxu0 0
      %1614 = vmatpush1.bf16.msra.mxu0 0
      %1615 = vmatprep.mubr.bf16.mxu0 0
      %1616 = vmatmul.mubr.bf16.gmra.mrb[0].mxu0 %v1566
      %v1617 = vpop.f32.mrb[0].mxu0
      %v1618 = vadd.f32 0.0, %v1617
      %v1619 = vpop.f32.mrb[0].mxu0
      %v1620 = vpop.f32.mrb[0].mxu0
      %v1621 = vadd.f32 0.0, %v1620
      %v1622 = vpop.f32.mrb[0].mxu0
      %1623 = vmatprep.mubr.bf16.mxu0 0
      %1624 = vmatmul.mubr.bf16.gmra.mrb[0].mxu0 %v1569
      %v1625 = vpop.f32.mrb[0].mxu0
      %v1626 = vadd.f32 0.0, %v1625
      %v1627 = vpop.f32.mrb[0].mxu0
      %v1628 = vpop.f32.mrb[0].mxu0
      %v1629 = vadd.f32 0.0, %v1628
      %v1630 = vpop.f32.mrb[0].mxu0
      %1631 = vmatprep.mubr.bf16.mxu0 0
      %1632 = vmatmul.mubr.bf16.gmra.mrb[0].mxu0 %v1572
      %v1633 = vpop.f32.mrb[0].mxu0
      %v1634 = vadd.f32 0.0, %v1633
      %v1635 = vpop.f32.mrb[0].mxu0
      %v1636 = vpop.f32.mrb[0].mxu0
      %v1637 = vadd.f32 0.0, %v1636
      %v1638 = vpop.f32.mrb[0].mxu0
      %1639 = vmatprep.mubr.bf16.mxu0 0
      %1640 = vmatmul.mubr.bf16.gmra.mrb[0].mxu0 %v1575
      %v1641 = vpop.f32.mrb[0].mxu0
      %v1642 = vadd.f32 0.0, %v1641
      %v1643 = vpop.f32.mrb[0].mxu0
      %v1644 = vpop.f32.mrb[0].mxu0
      %v1645 = vadd.f32 0.0, %v1644
      %v1646 = vpop.f32.mrb[0].mxu0
      %1647 = vmatprep.mubr.bf16.mxu0 0
      %1648 = vmatmul.mubr.bf16.gmra.mrb[0].mxu0 %v1578
      %v1649 = vpop.f32.mrb[0].mxu0
      %v1650 = vadd.f32 0.0, %v1649
      %v1651 = vpop.f32.mrb[0].mxu0
      %v1652 = vpop.f32.mrb[0].mxu0
      %v1653 = vadd.f32 0.0, %v1652
      %v1654 = vpop.f32.mrb[0].mxu0
      %1655 = vdwg.mxu0
      %v1656 = vadd.f32 %v1515, %v1618
      %v1657 = vadd.f32 %v1516, %v1621
      %v1658 = vadd.f32 %v1517, %v1626
      %v1659 = vadd.f32 %v1518, %v1629
      %v1660 = vadd.f32 %v1519, %v1634
      %v1661 = vadd.f32 %v1520, %v1637
      %v1662 = vadd.f32 %v1521, %v1642
      %v1663 = vadd.f32 %v1522, %v1645
      %v1664 = vadd.f32 %v1523, %v1650
      %v1665 = vadd.f32 %v1524, %v1653
      %v1666 = vld [vmem:[%s301] sm:$0x1]
      %v1668 = vlaneseq
      %v1669 = vshrl.u32 %v1668, 7
      %v1670 = vsub.s32 0, %v1669
      %v1671 = vrot.slane %v1666, %v1670
      %v1673 = vadd.f32 %v1656, %v1671
      %v1674 = vadd.f32 %v1657, %v1671
      %v1675 = vadd.f32 %v1658, %v1671
      %v1676 = vadd.f32 %v1659, %v1671
      %v1677 = vadd.f32 %v1660, %v1671
      %v1678 = vadd.f32 %v1661, %v1671
      %v1679 = vadd.f32 %v1662, %v1671
      %v1680 = vadd.f32 %v1663, %v1671
      %v1681 = vadd.f32 %v1664, %v1671
      %v1682 = vadd.f32 %v1665, %v1671
      %v1683 = vlaneseq
      %v1684 = vshrl.u32 %v1683, 7
      %v1685 = vadd.s32 %v1684, 8
      %v1686 = vadd.s32 %v1684, 16
      %v1687 = vadd.s32 %v1684, 24
      %v1688 = vadd.s32 %v1684, 32
      %v1689 = vadd.s32 %v1684, 40
      %v1690 = vadd.s32 %v1684, 48
      %v1691 = vadd.s32 %v1684, 56
      %v1692 = vadd.s32 %v1684, 64
      %v1693 = vadd.s32 %v1684, 72
      %vm1694 = vcmp.lt.s32.totalorder %v1684, 0
      %v1695 = vsub.s32 0, %v1684
      %v1696 = vsel %vm1694, %v1695, %v1684
      %v1697 = vmul.u32.u64.compose %v1696, 3435973837
      %v1698 = vextract.low.u32 %v1697
      %v1699 = vextract.high.u32 %v1697
      %v1700 = vshrl.u32 %v1699, 3
      %v1701 = vmul.u32 %v1700, 10
      %v1702 = vsub.s32 %v1696, %v1701
      %v1703 = vsub.s32 0, %v1702
      %v1704 = vsel %vm1694, %v1703, %v1702
      %vm1705 = vcmp.lt.s32.totalorder %v1685, 0
      %v1706 = vsub.s32 0, %v1685
      %v1707 = vsel %vm1705, %v1706, %v1685
      %v1708 = vmul.u32.u64.compose %v1707, 3435973837
      %v1709 = vextract.low.u32 %v1708
      %v1710 = vextract.high.u32 %v1708
      %v1711 = vshrl.u32 %v1710, 3
      %v1712 = vmul.u32 %v1711, 10
      %v1713 = vsub.s32 %v1707, %v1712
      %v1714 = vsub.s32 0, %v1713
      %v1715 = vsel %vm1705, %v1714, %v1713
      %vm1716 = vcmp.lt.s32.totalorder %v1686, 0
      %v1717 = vsub.s32 0, %v1686
      %v1718 = vsel %vm1716, %v1717, %v1686
      %v1719 = vmul.u32.u64.compose %v1718, 3435973837
      %v1720 = vextract.low.u32 %v1719
      %v1721 = vextract.high.u32 %v1719
      %v1722 = vshrl.u32 %v1721, 3
      %v1723 = vmul.u32 %v1722, 10
      %v1724 = vsub.s32 %v1718, %v1723
      %v1725 = vsub.s32 0, %v1724
      %v1726 = vsel %vm1716, %v1725, %v1724
      %vm1727 = vcmp.lt.s32.totalorder %v1687, 0
      %v1728 = vsub.s32 0, %v1687
      %v1729 = vsel %vm1727, %v1728, %v1687
      %v1730 = vmul.u32.u64.compose %v1729, 3435973837
      %v1731 = vextract.low.u32 %v1730
      %v1732 = vextract.high.u32 %v1730
      %v1733 = vshrl.u32 %v1732, 3
      %v1734 = vmul.u32 %v1733, 10
      %v1735 = vsub.s32 %v1729, %v1734
      %v1736 = vsub.s32 0, %v1735
      %v1737 = vsel %vm1727, %v1736, %v1735
      %vm1738 = vcmp.lt.s32.totalorder %v1688, 0
      %v1739 = vsub.s32 0, %v1688
      %v1740 = vsel %vm1738, %v1739, %v1688
      %v1741 = vmul.u32.u64.compose %v1740, 3435973837
      %v1742 = vextract.low.u32 %v1741
      %v1743 = vextract.high.u32 %v1741
      %v1744 = vshrl.u32 %v1743, 3
      %v1745 = vmul.u32 %v1744, 10
      %v1746 = vsub.s32 %v1740, %v1745
      %v1747 = vsub.s32 0, %v1746
      %v1748 = vsel %vm1738, %v1747, %v1746
      %vm1749 = vcmp.lt.s32.totalorder %v1689, 0
      %v1750 = vsub.s32 0, %v1689
      %v1751 = vsel %vm1749, %v1750, %v1689
      %v1752 = vmul.u32.u64.compose %v1751, 3435973837
      %v1753 = vextract.low.u32 %v1752
      %v1754 = vextract.high.u32 %v1752
      %v1755 = vshrl.u32 %v1754, 3
      %v1756 = vmul.u32 %v1755, 10
      %v1757 = vsub.s32 %v1751, %v1756
      %v1758 = vsub.s32 0, %v1757
      %v1759 = vsel %vm1749, %v1758, %v1757
      %vm1760 = vcmp.lt.s32.totalorder %v1690, 0
      %v1761 = vsub.s32 0, %v1690
      %v1762 = vsel %vm1760, %v1761, %v1690
      %v1763 = vmul.u32.u64.compose %v1762, 3435973837
      %v1764 = vextract.low.u32 %v1763
      %v1765 = vextract.high.u32 %v1763
      %v1766 = vshrl.u32 %v1765, 3
      %v1767 = vmul.u32 %v1766, 10
      %v1768 = vsub.s32 %v1762, %v1767
      %v1769 = vsub.s32 0, %v1768
      %v1770 = vsel %vm1760, %v1769, %v1768
      %vm1771 = vcmp.lt.s32.totalorder %v1691, 0
      %v1772 = vsub.s32 0, %v1691
      %v1773 = vsel %vm1771, %v1772, %v1691
      %v1774 = vmul.u32.u64.compose %v1773, 3435973837
      %v1775 = vextract.low.u32 %v1774
      %v1776 = vextract.high.u32 %v1774
      %v1777 = vshrl.u32 %v1776, 3
      %v1778 = vmul.u32 %v1777, 10
      %v1779 = vsub.s32 %v1773, %v1778
      %v1780 = vsub.s32 0, %v1779
      %v1781 = vsel %vm1771, %v1780, %v1779
      %vm1782 = vcmp.lt.s32.totalorder %v1692, 0
      %v1783 = vsub.s32 0, %v1692
      %v1784 = vsel %vm1782, %v1783, %v1692
      %v1785 = vmul.u32.u64.compose %v1784, 3435973837
      %v1786 = vextract.low.u32 %v1785
      %v1787 = vextract.high.u32 %v1785
      %v1788 = vshrl.u32 %v1787, 3
      %v1789 = vmul.u32 %v1788, 10
      %v1790 = vsub.s32 %v1784, %v1789
      %v1791 = vsub.s32 0, %v1790
      %v1792 = vsel %vm1782, %v1791, %v1790
      %vm1793 = vcmp.lt.s32.totalorder %v1693, 0
      %v1794 = vsub.s32 0, %v1693
      %v1795 = vsel %vm1793, %v1794, %v1693
      %v1796 = vmul.u32.u64.compose %v1795, 3435973837
      %v1797 = vextract.low.u32 %v1796
      %v1798 = vextract.high.u32 %v1796
      %v1799 = vshrl.u32 %v1798, 3
      %v1800 = vmul.u32 %v1799, 10
      %v1801 = vsub.s32 %v1795, %v1800
      %v1802 = vsub.s32 0, %v1801
      %v1803 = vsel %vm1793, %v1802, %v1801
      %vm1804 = vcmp.ne.s32.totalorder %v1704, 0
      %vm1805 = vcmp.ne.s32.totalorder %v1715, 0
      %vm1806 = vcmp.ne.s32.totalorder %v1726, 0
      %vm1807 = vcmp.ne.s32.totalorder %v1737, 0
      %vm1808 = vcmp.ne.s32.totalorder %v1748, 0
      %vm1809 = vcmp.ne.s32.totalorder %v1759, 0
      %vm1810 = vcmp.ne.s32.totalorder %v1770, 0
      %vm1811 = vcmp.ne.s32.totalorder %v1781, 0
      %vm1812 = vcmp.ne.s32.totalorder %v1792, 0
      %vm1813 = vcmp.ne.s32.totalorder %v1803, 0
      %vm1814 = vcmp.lt.s32.totalorder %v1704, 0
      %vm1815 = vcmp.lt.s32.totalorder %v1715, 0
      %vm1816 = vcmp.lt.s32.totalorder %v1726, 0
      %vm1817 = vcmp.lt.s32.totalorder %v1737, 0
      %vm1818 = vcmp.lt.s32.totalorder %v1748, 0
      %vm1819 = vcmp.lt.s32.totalorder %v1759, 0
      %vm1820 = vcmp.lt.s32.totalorder %v1770, 0
      %vm1821 = vcmp.lt.s32.totalorder %v1781, 0
      %vm1822 = vcmp.lt.s32.totalorder %v1792, 0
      %vm1823 = vcmp.lt.s32.totalorder %v1803, 0
      %vm1824 = vmand %vm1814, %vm1804
      %vm1825 = vmand %vm1815, %vm1805
      %vm1826 = vmand %vm1816, %vm1806
      %vm1827 = vmand %vm1817, %vm1807
      %vm1828 = vmand %vm1818, %vm1808
      %vm1829 = vmand %vm1819, %vm1809
      %vm1830 = vmand %vm1820, %vm1810
      %vm1831 = vmand %vm1821, %vm1811
      %vm1832 = vmand %vm1822, %vm1812
      %vm1833 = vmand %vm1823, %vm1813
      %v1834 = vadd.s32 %v1704, 10
      %v1835 = vadd.s32 %v1715, 10
      %v1836 = vadd.s32 %v1726, 10
      %v1837 = vadd.s32 %v1737, 10
      %v1838 = vadd.s32 %v1748, 10
      %v1839 = vadd.s32 %v1759, 10
      %v1840 = vadd.s32 %v1770, 10
      %v1841 = vadd.s32 %v1781, 10
      %v1842 = vadd.s32 %v1792, 10
      %v1843 = vadd.s32 %v1803, 10
      %v1844 = vsel %vm1824, %v1834, %v1704
      %v1845 = vsel %vm1825, %v1835, %v1715
      %v1846 = vsel %vm1826, %v1836, %v1726
      %v1847 = vsel %vm1827, %v1837, %v1737
      %v1848 = vsel %vm1828, %v1838, %v1748
      %v1849 = vsel %vm1829, %v1839, %v1759
      %v1850 = vsel %vm1830, %v1840, %v1770
      %v1851 = vsel %vm1831, %v1841, %v1781
      %v1852 = vsel %vm1832, %v1842, %v1792
      %v1853 = vsel %vm1833, %v1843, %v1803
      %vm1854 = vcmp.ge.s32.totalorder %v1844, 1
      %vm1855 = vcmp.ge.s32.totalorder %v1845, 1
      %vm1856 = vcmp.ge.s32.totalorder %v1846, 1
      %vm1857 = vcmp.ge.s32.totalorder %v1847, 1
      %vm1858 = vcmp.ge.s32.totalorder %v1848, 1
      %vm1859 = vcmp.ge.s32.totalorder %v1849, 1
      %vm1860 = vcmp.ge.s32.totalorder %v1850, 1
      %vm1861 = vcmp.ge.s32.totalorder %v1851, 1
      %vm1862 = vcmp.ge.s32.totalorder %v1852, 1
      %vm1863 = vcmp.ge.s32.totalorder %v1853, 1
      %vm1864 = vcmp.le.s32.totalorder %v1844, 8
      %vm1865 = vcmp.le.s32.totalorder %v1845, 8
      %vm1866 = vcmp.le.s32.totalorder %v1846, 8
      %vm1867 = vcmp.le.s32.totalorder %v1847, 8
      %vm1868 = vcmp.le.s32.totalorder %v1848, 8
      %vm1869 = vcmp.le.s32.totalorder %v1849, 8
      %vm1870 = vcmp.le.s32.totalorder %v1850, 8
      %vm1871 = vcmp.le.s32.totalorder %v1851, 8
      %vm1872 = vcmp.le.s32.totalorder %v1852, 8
      %vm1873 = vcmp.le.s32.totalorder %v1853, 8
      %vm1874 = vmand %vm1854, %vm1864
      %vm1875 = vmand %vm1855, %vm1865
      %vm1876 = vmand %vm1856, %vm1866
      %vm1877 = vmand %vm1857, %vm1867
      %vm1878 = vmand %vm1858, %vm1868
      %vm1879 = vmand %vm1859, %vm1869
      %vm1880 = vmand %vm1860, %vm1870
      %vm1881 = vmand %vm1861, %vm1871
      %vm1882 = vmand %vm1862, %vm1872
      %vm1883 = vmand %vm1863, %vm1873
      %v1884 = vsel %vm1874, 1, 0
      %v1885 = vsel %vm1875, 1, 0
      %v1886 = vsel %vm1876, 1, 0
      %v1887 = vsel %vm1877, 1, 0
      %v1888 = vsel %vm1878, 1, 0
      %v1889 = vsel %vm1879, 1, 0
      %v1890 = vsel %vm1880, 1, 0
      %v1891 = vsel %vm1881, 1, 0
      %v1892 = vsel %vm1882, 1, 0
      %v1893 = vsel %vm1883, 1, 0
      %vm1894 = vcmp.eq.s32.totalorder %v1884, 1
      %vm1895 = vcmp.eq.s32.totalorder %v1885, 1
      %vm1896 = vcmp.eq.s32.totalorder %v1886, 1
      %vm1897 = vcmp.eq.s32.totalorder %v1887, 1
      %vm1898 = vcmp.eq.s32.totalorder %v1888, 1
      %vm1899 = vcmp.eq.s32.totalorder %v1889, 1
      %vm1900 = vcmp.eq.s32.totalorder %v1890, 1
      %vm1901 = vcmp.eq.s32.totalorder %v1891, 1
      %vm1902 = vcmp.eq.s32.totalorder %v1892, 1
      %vm1903 = vcmp.eq.s32.totalorder %v1893, 1
      %v1904 = vsel %vm1894, %v1673, 0.0
      %v1905 = vsel %vm1895, %v1674, 0.0
      %v1906 = vsel %vm1896, %v1675, 0.0
      %v1907 = vsel %vm1897, %v1676, 0.0
      %v1908 = vsel %vm1898, %v1677, 0.0
      %v1909 = vsel %vm1899, %v1678, 0.0
      %v1910 = vsel %vm1900, %v1679, 0.0
      %v1911 = vsel %vm1901, %v1680, 0.0
      %v1912 = vsel %vm1902, %v1681, 0.0
      %v1913 = vsel %vm1903, %v1682, 0.0
      %v1914 = vpack.c.bf16 %v1905, %v1904
      %v1915 = vpack.c.bf16 %v1907, %v1906
      %v1916 = vpack.c.bf16 %v1909, %v1908
      %v1917 = vpack.c.bf16 %v1911, %v1910
      %v1918 = vpack.c.bf16 %v1913, %v1912
      %v1924 = vunpack.c.l.b16 %v1914
      %v1925 = vunpack.c.h.b16 %v1914
      %v1926 = vunpack.c.l.b16 %v1915
      %v1927 = vunpack.c.h.b16 %v1915
      %v1928 = vunpack.c.l.b16 %v1916
      %v1929 = vunpack.c.h.b16 %v1916
      %v1930 = vunpack.c.l.b16 %v1917
      %v1931 = vunpack.c.h.b16 %v1917
      %v1932 = vunpack.c.l.b16 %v1918
      %v1933 = vunpack.c.h.b16 %v1918
      %v1934 = vpack.c.b16 %v1924, %v1924
      %v1935 = vpack.c.b16 %v1925, %v1925
      %v1936 = vpack.c.b16 %v1926, %v1926
      %v1937 = vpack.c.b16 %v1927, %v1927
      %v1938 = vpack.c.b16 %v1928, %v1928
      %v1939 = vpack.c.b16 %v1929, %v1929
      %v1940 = vpack.c.b16 %v1930, %v1930
      %v1941 = vpack.c.b16 %v1931, %v1931
      %v1942 = vpack.c.b16 %v1932, %v1932
      %v1943 = vpack.c.b16 %v1933, %v1933
      %vm1954 = vcmask 125952
      %1955 = vst.msk [vmem:[%s313] sm:$0xf] %vm1954, %v1934
      %1956 = vst.msk [vmem:[%s313 + $0x4] sm:$0xf] %vm1954, %v1935
      %1957 = vst.msk [vmem:[%s313 + $0x8] sm:$0xf] %vm1954, %v1936
      %1958 = vst.msk [vmem:[%s313 + $0xc] sm:$0xf] %vm1954, %v1937
      %1959 = vst.msk [vmem:[%s313 + $0x10] sm:$0xf] %vm1954, %v1938
      %1960 = vst.msk [vmem:[%s313 + $0x14] sm:$0xf] %vm1954, %v1939
      %1961 = vst.msk [vmem:[%s313 + $0x18] sm:$0xf] %vm1954, %v1940
      %1962 = vst.msk [vmem:[%s313 + $0x1c] sm:$0xf] %vm1954, %v1941
      %1963 = vst.msk [vmem:[%s313 + $0x20] sm:$0xf] %vm1954, %v1942
      %1964 = vst.msk [vmem:[%s313 + $0x24] sm:$0xf] %vm1954, %v1943
      %p1965 = scmp.eq.s32.totalorder %s24, 0
      // Predicated region
      $region33: #{_lambda_.7} parent=31 // pred_check
        %p1966 = pneg %p1965
      $region34: #{_lambda_.7} parent=31 // pred_check_branch
        %1968 = sbr.rel (%p1966) target = $region36
      $region35: #{_lambda_.7} parent=31 // pred_region
        %vm1969 = vcmask 122880
        %1970 = vst.msk [vmem:[%s320] sm:$0x1] %vm1969, 0.0
        %1971 = vst.msk [vmem:[%s326] sm:$0x1] %vm1969, 0.0
      $region36: #{_lambda_.7} parent=31 // pred_fallthru
        _
      %v1972 = vld [vmem:[%s320] sm:$0x1]
      %vm1973 = vcmask 130048
      %v1974 = vsel %vm1973, %v1904, 0.0
      %v1975 = vsel %vm1973, %v1905, 0.0
      %v1976 = vadd.f32 %v1974, %v1975
      %v1977 = vsel %vm1973, %v1906, 0.0
      %v1978 = vadd.f32 %v1976, %v1977
      %v1979 = vsel %vm1973, %v1907, 0.0
      %v1980 = vadd.f32 %v1978, %v1979
      %v1981 = vsel %vm1973, %v1908, 0.0
      %v1982 = vadd.f32 %v1980, %v1981
      %v1983 = vsel %vm1973, %v1909, 0.0
      %v1984 = vadd.f32 %v1982, %v1983
      %v1985 = vsel %vm1973, %v1910, 0.0
      %v1986 = vadd.f32 %v1984, %v1985
      %v1987 = vsel %vm1973, %v1911, 0.0
      %v1988 = vadd.f32 %v1986, %v1987
      %v1989 = vsel %vm1973, %v1912, 0.0
      %v1990 = vadd.f32 %v1988, %v1989
      %v1991 = vsel %vm1973, %v1913, 0.0
      %v1992 = vadd.f32 %v1990, %v1991
      %v1993 = vrot.slane %v1992, 4
      %v1994 = vadd.f32 %v1992, %v1993
      %v1995 = vrot.slane %v1994, 2
      %v1996 = vadd.f32 %v1994, %v1995
      %v1997 = vrot.slane %v1996, 1
      %v1998 = vadd.f32 %v1996, %v1997
      %v1999 = vadd.f32 %v1972, %v1998
      %vm2000 = vcmask 122880
      %2001 = vst.msk [vmem:[%s320] sm:$0x1] %vm2000, %v1999
      %v2002 = vld [vmem:[%s326] sm:$0x1]
      %v2003 = vmul.f32 %v1904, %v1904
      %v2004 = vmul.f32 %v1905, %v1905
      %v2005 = vmul.f32 %v1906, %v1906
      %v2006 = vmul.f32 %v1907, %v1907
      %v2007 = vmul.f32 %v1908, %v1908
      %v2008 = vmul.f32 %v1909, %v1909
      %v2009 = vmul.f32 %v1910, %v1910
      %v2010 = vmul.f32 %v1911, %v1911
      %v2011 = vmul.f32 %v1912, %v1912
      %v2012 = vmul.f32 %v1913, %v1913
      %v2013 = vsel %vm1973, %v2003, 0.0
      %v2014 = vsel %vm1973, %v2004, 0.0
      %v2015 = vadd.f32 %v2013, %v2014
      %v2016 = vsel %vm1973, %v2005, 0.0
      %v2017 = vadd.f32 %v2015, %v2016
      %v2018 = vsel %vm1973, %v2006, 0.0
      %v2019 = vadd.f32 %v2017, %v2018
      %v2020 = vsel %vm1973, %v2007, 0.0
      %v2021 = vadd.f32 %v2019, %v2020
      %v2022 = vsel %vm1973, %v2008, 0.0
      %v2023 = vadd.f32 %v2021, %v2022
      %v2024 = vsel %vm1973, %v2009, 0.0
      %v2025 = vadd.f32 %v2023, %v2024
      %v2026 = vsel %vm1973, %v2010, 0.0
      %v2027 = vadd.f32 %v2025, %v2026
      %v2028 = vsel %vm1973, %v2011, 0.0
      %v2029 = vadd.f32 %v2027, %v2028
      %v2030 = vsel %vm1973, %v2012, 0.0
      %v2031 = vadd.f32 %v2029, %v2030
      %v2032 = vrot.slane %v2031, 4
      %v2033 = vadd.f32 %v2031, %v2032
      %v2034 = vrot.slane %v2033, 2
      %v2035 = vadd.f32 %v2033, %v2034
      %v2036 = vrot.slane %v2035, 1
      %v2037 = vadd.f32 %v2035, %v2036
      %v2038 = vadd.f32 %v2002, %v2037
      %2039 = vst.msk [vmem:[%s326] sm:$0x1] %vm2000, %v2038
      %s2040 = smul.u32 10, %s24
      %p2041 = scmp.lt.s32.totalorder %s23, 1
      %s2042 = scalar_select %p2041, %s23, 1
      %p2043 = scmp.lt.s32.totalorder %s2040, 9
      %s2044 = scalar_select %p2043, %s2040, 9
      %p2045 = scmp.lt.s32.totalorder %s22, 0
      %s2046 = scalar_select %p2045, %s22, 0
      %s2047 = sadd.s32 %s2046, %s2044
      %s2048 = smul.addr %s2042, 10
      %s2049 = sadd.s32 %s2047, %s2048
      %s2050 = smul.addr %s2049, 4
      %s2051 = scalar_lea.vmem %s3, %s2050
      %p2052 = scmp.lt.s32.totalorder %s23, 1
      %s2053 = scalar_select %p2052, %s23, 1
      %p2054 = scmp.lt.s32.totalorder %s22, 0
      %s2055 = scalar_select %p2054, %s22, 0
      %s2056 = sadd.s32 %s2055, %s2053
      %s2057 = scalar_lea.vmem %s4, %s2056
      %p2058 = scmp.lt.s32.totalorder %s23, 1
      %s2059 = scalar_select %p2058, %s23, 1
      %p2060 = scmp.lt.s32.totalorder %s22, 0
      %s2061 = scalar_select %p2060, %s22, 0
      %s2062 = sadd.s32 %s2061, %s2059
      %s2063 = scalar_lea.vmem %s5, %s2062
      // Predicated region
      $region37: #{_lambda_.7} parent=31 // pred_check
        %p2064 = pneg %p136
      $region38: #{_lambda_.7} parent=31 // pred_check_branch
        %2066 = sbr.rel (%p2064) target = $region40
      $region39: #{_lambda_.7} parent=31 // pred_region
        %s2067 = smul.u32 10, %s24
      $region40: #{_lambda_.7} parent=31 // pred_fallthru
        _
      // Predicated region
      $region41: #{_lambda_.7} parent=31 // pred_check
        %p2068 = pneg %p164
      $region42: #{_lambda_.7} parent=31 // pred_check_branch
        %2070 = sbr.rel (%p2068) target = $region44
      $region43: #{_lambda_.7} parent=31 // pred_region
        _
      $region44: #{_lambda_.7} parent=31 // pred_fallthru
        _
      // Predicated region
      $region45: #{_lambda_.7} parent=31 // pred_check
        %p2071 = pneg %p192
      $region46: #{_lambda_.7} parent=31 // pred_check_branch
        %2073 = sbr.rel (%p2071) target = $region48
      $region47: #{_lambda_.7} parent=31 // pred_region
        _
      $region48: #{_lambda_.7} parent=31 // pred_fallthru
        _
    $region32: #{_lambda_.7} parent=5 // pred_fallthru
      _
    %p2074 = scmp.le.s32.totalorder 2, %s12
    // Predicated region
    $region49: #{_lambda_.7} parent=5 // pred_check
      %p2075 = pneg %p2074
    $region50: #{_lambda_.7} parent=5 // pred_check_branch
      %2077 = sbr.rel (%p2075) target = $region52
    $region51: #{_lambda_.7} parent=5 // pred_region
      %s2078 = ssub.s32 %s12, 2
      // Predicated region
      $region53: #{_lambda_.7} parent=51 // pred_check
        %p2079 = pneg %p142
      $region54: #{_lambda_.7} parent=51 // pred_check_branch
        %2081 = sbr.rel (%p2079) target = $region56
      $region55: #{_lambda_.7} parent=51 // pred_region
        %s2082 = smul.u32 10, %s27
        %p2083 = scmp.lt.s32.totalorder %s26, 1
        %s2084 = scalar_select %p2083, %s26, 1
        %p2085 = scmp.lt.s32.totalorder %s2082, 9
        %s2086 = scalar_select %p2085, %s2082, 9
        %p2087 = scmp.lt.s32.totalorder %s25, 0
        %s2088 = scalar_select %p2087, %s25, 0
        %s2089 = sadd.s32 %s2088, %s2086
        %s2090 = smul.addr %s2084, 10
        %s2091 = sadd.s32 %s2089, %s2090
        %s2092 = smul.addr %s2091, 4
        %s2093 = scalar_lea.vmem %s3, %s2092
      $region56: #{_lambda_.7} parent=51 // pred_fallthru
        _
      // Predicated region
      $region57: #{_lambda_.7} parent=51 // pred_check
        %p2094 = pneg %p170
      $region58: #{_lambda_.7} parent=51 // pred_check_branch
        %2096 = sbr.rel (%p2094) target = $region60
      $region59: #{_lambda_.7} parent=51 // pred_region
        %p2097 = scmp.lt.s32.totalorder %s26, 1
        %s2098 = scalar_select %p2097, %s26, 1
        %p2099 = scmp.lt.s32.totalorder %s25, 0
        %s2100 = scalar_select %p2099, %s25, 0
        %s2101 = sadd.s32 %s2100, %s2098
        %s2102 = scalar_lea.vmem %s4, %s2101
      $region60: #{_lambda_.7} parent=51 // pred_fallthru
        _
      // Predicated region
      $region61: #{_lambda_.7} parent=51 // pred_check
        %p2103 = pneg %p198
      $region62: #{_lambda_.7} parent=51 // pred_check_branch
        %2105 = sbr.rel (%p2103) target = $region64
      $region63: #{_lambda_.7} parent=51 // pred_region
        %p2106 = scmp.lt.s32.totalorder %s26, 1
        %s2107 = scalar_select %p2106, %s26, 1
        %p2108 = scmp.lt.s32.totalorder %s25, 0
        %s2109 = scalar_select %p2108, %s25, 0
        %s2110 = sadd.s32 %s2109, %s2107
        %s2111 = scalar_lea.vmem %s5, %s2110
      $region64: #{_lambda_.7} parent=51 // pred_fallthru
        _
    $region52: #{_lambda_.7} parent=5 // pred_fallthru
      _
  $region6: #{_lambda_.7} parent=0 // loop_footer
    %s16 = sadd.s32 1, %s12
  $region7: #{_lambda_.7} parent=0 // loop_footer_branch
    %11 = sbr.rel target = $region3
  $region8: #{_lambda_.7} parent=0 // loop_exit
    _

// kernel: _lambda_.5
$region0: #{_lambda_.5}
  #allocation0 [shape = 'u32[]', space=smem, size = 0x4, offset = 0x4, fixed_abs, tag = 'smem constant byte address 0x4 - core index']
  #allocation1 [shape = 'u32[144,128]{1,0:T(1,128)}', space=vmem, size = 0x12000, scoped, tag = 'internal scratch']
  %s0 = inlined_call_operand.vmem [shape: bf16[2,360,3], index: 0, kind: input, shape index: {}]
  %s1 = inlined_call_operand.vmem [shape: bf16[9,3,8], index: 1, kind: input, shape index: {}]
  %s2 = inlined_call_operand.vmem [shape: f32[1,8], index: 2, kind: input, shape index: {}]
  %s3 = inlined_call_operand.vmem [shape: bf16[2,288,8], index: 3, kind: output, shape index: {0}]
  %s4 = inlined_call_operand.vmem [shape: f32[2,1,8], index: 4, kind: output, shape index: {1}]
  %s5 = inlined_call_operand.vmem [shape: f32[2,1,8], index: 5, kind: output, shape index: {2}]
  %6 = xla_tuple %s3, %s4, %s5
  %s7 = sld [smem:[#allocation0]]
  $region65: #{_lambda_.5} parent=0
    _
  %s9 = ssub.s32 1, %s7
  %s10 = scalar_select 0, %s9, %s7
  loop: start=0, step=1, limit=4
  $region2: #{_lambda_.5} parent=0 // loop_pre_header
    _
  $region3: #{_lambda_.5} parent=0 // loop_header
    %s12 = sphi 0, %s16
    %p13 = scmp.ge.s32.totalorder %s12, 4
    %s19 = sphi 0, %s38
    %s20 = sphi 0, %s34
    %s21 = sphi 0, %s30
    %s22 = sphi 0, %s19
    %s23 = sphi 0, %s20
    %s24 = sphi 0, %s21
    %s25 = sphi 0, %s22
    %s26 = sphi 0, %s23
    %s27 = sphi 0, %s24
    %s41 = sphi 0, %s43
    %s44 = sphi 0, %s41
    %s45 = sphi 0, %s44
    %s61 = sphi 0, %s45
    %s67 = sphi 0, %s69
    %s70 = sphi 0, %s67
    %s71 = sphi 0, %s70
    %s87 = sphi 0, %s71
    %s93 = sphi 0, %s95
    %s96 = sphi 0, %s93
    %s97 = sphi 0, %s96
    %s113 = sphi 0, %s97
    %s123 = sphi 0, %s125
    %s126 = sphi 0, %s123
    %s127 = sphi 0, %s126
    %s143 = sphi 0, %s127
    %s151 = sphi 0, %s153
    %s154 = sphi 0, %s151
    %s155 = sphi 0, %s154
    %s171 = sphi 0, %s155
    %s179 = sphi 0, %s181
    %s182 = sphi 0, %s179
    %s183 = sphi 0, %s182
    %s199 = sphi 0, %s183
  $region4: #{_lambda_.5} parent=0 // loop_header_branch
    %15 = sbr.rel (%p13) target = $region8
  $region5: #{_lambda_.5} parent=0 // loop_body
    %s17 = ssub.s32 %s12, 1
    %s18 = ssub.s32 %s12, 2
    %s28 = sadd.s32 1, %s21
    %p29 = scmp.ge.s32.totalorder %s28, 1
    %s30 = scalar_select %p29, 0, %s28
    %s31 = sadd.s32 1, %s20
    %s32 = scalar_select %p29, %s31, %s20
    %p33 = scmp.ge.s32.totalorder %s32, 2
    %s34 = scalar_select %p33, 0, %s32
    %s35 = sadd.s32 1, %s19
    %s36 = scalar_select %p33, %s35, %s19
    %p37 = scmp.ge.s32.totalorder %s36, 1
    %s38 = scalar_select %p37, 0, %s36
    %s39 = ssub.s32 %s20, %s34
    %p40 = scmp.eq.s32.totalorder %s39, 0
    %s42 = sadd.s32 %s41, 1
    %s43 = scalar_select %p40, %s41, %s42
    %p46 = pneg %p40
    %p47 = scmp.eq.s32.totalorder %s12, 1
    %p48 = por %p46, %p47
    %p49 = scmp.ne.s32.totalorder %s41, %s44
    %p50 = scmp.eq.s32.totalorder %s12, 0
    %p51 = por %p49, %p50
    %p52 = scmp.ne.s32.totalorder %s41, %s44
    %p53 = scmp.eq.s32.totalorder %s17, 1
    %p54 = por %p52, %p53
    %p55 = scmp.ne.s32.totalorder %s44, %s45
    %p56 = scmp.eq.s32.totalorder %s17, 0
    %p57 = por %p55, %p56
    %p58 = scmp.ne.s32.totalorder %s44, %s45
    %p59 = scmp.eq.s32.totalorder %s18, 1
    %p60 = por %p58, %p59
    %p62 = scmp.ne.s32.totalorder %s45, %s61
    %p63 = scmp.eq.s32.totalorder %s18, 0
    %p64 = por %p62, %p63
    %s65 = ssub.s32 %s19, %s38
    %p66 = scmp.eq.s32.totalorder %s65, 0
    %s68 = sadd.s32 %s67, 1
    %s69 = scalar_select %p66, %s67, %s68
    %p72 = pneg %p66
    %p73 = scmp.eq.s32.totalorder %s12, 1
    %p74 = por %p72, %p73
    %p75 = scmp.ne.s32.totalorder %s67, %s70
    %p76 = scmp.eq.s32.totalorder %s12, 0
    %p77 = por %p75, %p76
    %p78 = scmp.ne.s32.totalorder %s67, %s70
    %p79 = scmp.eq.s32.totalorder %s17, 1
    %p80 = por %p78, %p79
    %p81 = scmp.ne.s32.totalorder %s70, %s71
    %p82 = scmp.eq.s32.totalorder %s17, 0
    %p83 = por %p81, %p82
    %p84 = scmp.ne.s32.totalorder %s70, %s71
    %p85 = scmp.eq.s32.totalorder %s18, 1
    %p86 = por %p84, %p85
    %p88 = scmp.ne.s32.totalorder %s71, %s87
    %p89 = scmp.eq.s32.totalorder %s18, 0
    %p90 = por %p88, %p89
    %s91 = ssub.s32 %s19, %s38
    %p92 = scmp.eq.s32.totalorder %s91, 0
    %s94 = sadd.s32 %s93, 1
    %s95 = scalar_select %p92, %s93, %s94
    %p98 = pneg %p92
    %p99 = scmp.eq.s32.totalorder %s12, 1
    %p100 = por %p98, %p99
    %p101 = scmp.ne.s32.totalorder %s93, %s96
    %p102 = scmp.eq.s32.totalorder %s12, 0
    %p103 = por %p101, %p102
    %p104 = scmp.ne.s32.totalorder %s93, %s96
    %p105 = scmp.eq.s32.totalorder %s17, 1
    %p106 = por %p104, %p105
    %p107 = scmp.ne.s32.totalorder %s96, %s97
    %p108 = scmp.eq.s32.totalorder %s17, 0
    %p109 = por %p107, %p108
    %p110 = scmp.ne.s32.totalorder %s96, %s97
    %p111 = scmp.eq.s32.totalorder %s18, 1
    %p112 = por %p110, %p111
    %p114 = scmp.ne.s32.totalorder %s97, %s113
    %p115 = scmp.eq.s32.totalorder %s18, 0
    %p116 = por %p114, %p115
    %s117 = ssub.s32 %s20, %s34
    %s118 = ssub.s32 %s21, %s30
    %s119 = sor.u32 %s117, %s118
    %s120 = ssub.s32 %s19, %s38
    %s121 = sor.u32 %s119, %s120
    %p122 = scmp.eq.s32.totalorder %s121, 0
    %s124 = sadd.s32 %s123, 1
    %s125 = scalar_select %p122, %s123, %s124
    %p128 = pneg %p122
    %p129 = scmp.eq.s32.totalorder %s12, 1
    %p130 = por %p128, %p129
    %p131 = scmp.ne.s32.totalorder %s123, %s126
    %p132 = scmp.eq.s32.totalorder %s12, 0
    %p133 = por %p131, %p132
    %p134 = scmp.ne.s32.totalorder %s123, %s126
    %p135 = scmp.eq.s32.totalorder %s17, 1
    %p136 = por %p134, %p135
    %p137 = scmp.ne.s32.totalorder %s126, %s127
    %p138 = scmp.eq.s32.totalorder %s17, 0
    %p139 = por %p137, %p138
    %p140 = scmp.ne.s32.totalorder %s126, %s127
    %p141 = scmp.eq.s32.totalorder %s18, 1
    %p142 = por %p140, %p141
    %p144 = scmp.ne.s32.totalorder %s127, %s143
    %p145 = scmp.eq.s32.totalorder %s18, 0
    %p146 = por %p144, %p145
    %s147 = ssub.s32 %s20, %s34
    %s148 = ssub.s32 %s19, %s38
    %s149 = sor.u32 %s147, %s148
    %p150 = scmp.eq.s32.totalorder %s149, 0
    %s152 = sadd.s32 %s151, 1
    %s153 = scalar_select %p150, %s151, %s152
    %p156 = pneg %p150
    %p157 = scmp.eq.s32.totalorder %s12, 1
    %p158 = por %p156, %p157
    %p159 = scmp.ne.s32.totalorder %s151, %s154
    %p160 = scmp.eq.s32.totalorder %s12, 0
    %p161 = por %p159, %p160
    %p162 = scmp.ne.s32.totalorder %s151, %s154
    %p163 = scmp.eq.s32.totalorder %s17, 1
    %p164 = por %p162, %p163
    %p165 = scmp.ne.s32.totalorder %s154, %s155
    %p166 = scmp.eq.s32.totalorder %s17, 0
    %p167 = por %p165, %p166
    %p168 = scmp.ne.s32.totalorder %s154, %s155
    %p169 = scmp.eq.s32.totalorder %s18, 1
    %p170 = por %p168, %p169
    %p172 = scmp.ne.s32.totalorder %s155, %s171
    %p173 = scmp.eq.s32.totalorder %s18, 0
    %p174 = por %p172, %p173
    %s175 = ssub.s32 %s20, %s34
    %s176 = ssub.s32 %s19, %s38
    %s177 = sor.u32 %s175, %s176
    %p178 = scmp.eq.s32.totalorder %s177, 0
    %s180 = sadd.s32 %s179, 1
    %s181 = scalar_select %p178, %s179, %s180
    %p184 = pneg %p178
    %p185 = scmp.eq.s32.totalorder %s12, 1
    %p186 = por %p184, %p185
    %p187 = scmp.ne.s32.totalorder %s179, %s182
    %p188 = scmp.eq.s32.totalorder %s12, 0
    %p189 = por %p187, %p188
    %p190 = scmp.ne.s32.totalorder %s179, %s182
    %p191 = scmp.eq.s32.totalorder %s17, 1
    %p192 = por %p190, %p191
    %p193 = scmp.ne.s32.totalorder %s182, %s183
    %p194 = scmp.eq.s32.totalorder %s17, 0
    %p195 = por %p193, %p194
    %p196 = scmp.ne.s32.totalorder %s182, %s183
    %p197 = scmp.eq.s32.totalorder %s18, 1
    %p198 = por %p196, %p197
    %p200 = scmp.ne.s32.totalorder %s183, %s199
    %p201 = scmp.eq.s32.totalorder %s18, 0
    %p202 = por %p200, %p201
    %p203 = scmp.le.s32.totalorder 1, %s12
    %p204 = scmp.lt.s32.totalorder %s12, 3
    %p205 = pnand %p203, %p204
    %p206 = pneg %p205
    // Predicated region
    $region9: #{_lambda_.5} parent=5 // pred_check
      _
    $region10: #{_lambda_.5} parent=5 // pred_check_branch
      %208 = sbr.rel (%p205) target = $region12
    $region11: #{_lambda_.5} parent=5 // pred_region
      %s209 = ssub.s32 %s12, 1
      // Predicated region
      $region13: #{_lambda_.5} parent=11 // pred_check
        %p210 = pneg %p83
      $region14: #{_lambda_.5} parent=11 // pred_check_branch
        %212 = sbr.rel (%p210) target = $region16
      $region15: #{_lambda_.5} parent=11 // pred_region
        %p213 = scmp.lt.s32.totalorder %s22, 0
        %s214 = scalar_select %p213, %s22, 0
        %s215 = smul.addr %s214, 2
        %s216 = scalar_lea.vmem %s1, %s215
      $region16: #{_lambda_.5} parent=11 // pred_fallthru
        _
      // Predicated region
      $region17: #{_lambda_.5} parent=11 // pred_check
        %p217 = pneg %p109
      $region18: #{_lambda_.5} parent=11 // pred_check_branch
        %219 = sbr.rel (%p217) target = $region20
      $region19: #{_lambda_.5} parent=11 // pred_region
        %p220 = scmp.lt.s32.totalorder %s22, 0
        %s221 = scalar_select %p220, %s22, 0
        %s222 = scalar_lea.vmem %s2, %s221
      $region20: #{_lambda_.5} parent=11 // pred_fallthru
        _
    $region12: #{_lambda_.5} parent=5 // pred_fallthru
      _
    %p223 = scmp.lt.s32.totalorder %s12, 2
    // Predicated region
    $region21: #{_lambda_.5} parent=5 // pred_check
      %p224 = pneg %p223
    $region22: #{_lambda_.5} parent=5 // pred_check_branch
      %226 = sbr.rel (%p224) target = $region24
    $region23: #{_lambda_.5} parent=5 // pred_region
      // Predicated region
      $region25: #{_lambda_.5} parent=23 // pred_check
        %p227 = pneg %p51
      $region26: #{_lambda_.5} parent=23 // pred_check_branch
        %229 = sbr.rel (%p227) target = $region28
      $region27: #{_lambda_.5} parent=23 // pred_region
        %p230 = scmp.lt.s32.totalorder %s20, 1
        %s231 = scalar_select %p230, %s20, 1
        %s232 = smul.addr %s231, 45
        %s233 = smul.addr %s232, 4
        %s234 = scalar_lea.vmem %s0, %s233
      $region28: #{_lambda_.5} parent=23 // pred_fallthru
        _
    $region24: #{_lambda_.5} parent=5 // pred_fallthru
      _
    %p235 = scmp.le.s32.totalorder 1, %s12
    %p236 = scmp.lt.s32.totalorder %s12, 3
    %p237 = pnand %p235, %p236
    %p238 = pneg %p237
    // Predicated region
    $region29: #{_lambda_.5} parent=5 // pred_check
      _
    $region30: #{_lambda_.5} parent=5 // pred_check_branch
      %240 = sbr.rel (%p237) target = $region32
    $region31: #{_lambda_.5} parent=5 // pred_region
      %s241 = ssub.s32 %s12, 1
      %p242 = scmp.lt.s32.totalorder %s23, 1
      %s243 = scalar_select %p242, %s23, 1
      %s244 = smul.addr %s243, 45
      %s245 = smul.addr %s244, 4
      %s246 = scalar_lea.vmem %s0, %s245
      %p247 = pneg %p57
      %p248 = pneg %p54
      %p249 = scmp.lt.s32.totalorder %s22, 0
      %s250 = scalar_select %p249, %s22, 0
      %s251 = smul.addr %s250, 2
      %s252 = scalar_lea.vmem %s1, %s251
      %p253 = pneg %p83
      %p254 = pneg %p80
      %p255 = scmp.lt.s32.totalorder %s22, 0
      %s256 = scalar_select %p255, %s22, 0
      %s257 = scalar_lea.vmem %s2, %s256
      %p258 = pneg %p109
      %p259 = pneg %p106
      %p260 = pneg %p139
      %p261 = pneg %p136
      %s262 = smul.u32 36, %s24
      %p263 = scmp.lt.s32.totalorder %s23, 1
      %s264 = scalar_select %p263, %s23, 1
      %p265 = scmp.lt.s32.totalorder %s262, 35
      %s266 = scalar_select %p265, %s262, 35
      %p267 = scmp.lt.s32.totalorder %s22, 0
      %s268 = scalar_select %p267, %s22, 0
      %s269 = sadd.s32 %s268, %s266
      %s270 = smul.addr %s264, 36
      %s271 = sadd.s32 %s269, %s270
      %s272 = smul.addr %s271, 4
      %s273 = scalar_lea.vmem %s3, %s272
      %p274 = pneg %p167
      %p275 = pneg %p164
      %p276 = scmp.lt.s32.totalorder %s23, 1
      %s277 = scalar_select %p276, %s23, 1
      %p278 = scmp.lt.s32.totalorder %s22, 0
      %s279 = scalar_select %p278, %s22, 0
      %s280 = sadd.s32 %s279, %s277
      %s281 = scalar_lea.vmem %s4, %s280
      %p282 = pneg %p195
      %p283 = pneg %p192
      %p284 = scmp.lt.s32.totalorder %s23, 1
      %s285 = scalar_select %p284, %s23, 1
      %p286 = scmp.lt.s32.totalorder %s22, 0
      %s287 = scalar_select %p286, %s22, 0
      %s288 = sadd.s32 %s287, %s285
      %s289 = scalar_lea.vmem %s5, %s288
      %p290 = scmp.lt.s32.totalorder %s23, 1
      %s291 = scalar_select %p290, %s23, 1
      %s292 = smul.addr %s291, 45
      %s293 = smul.addr %s292, 4
      %s294 = scalar_lea.vmem %s0, %s293
      %p295 = scmp.lt.s32.totalorder %s22, 0
      %s296 = scalar_select %p295, %s22, 0
      %s297 = smul.addr %s296, 2
      %s298 = scalar_lea.vmem %s1, %s297
      %p299 = scmp.lt.s32.totalorder %s22, 0
      %s300 = scalar_select %p299, %s22, 0
      %s301 = scalar_lea.vmem %s2, %s300
      %s302 = smul.u32 36, %s24
      %p303 = scmp.lt.s32.totalorder %s23, 1
      %s304 = scalar_select %p303, %s23, 1
      %p305 = scmp.lt.s32.totalorder %s302, 35
      %s306 = scalar_select %p305, %s302, 35
      %p307 = scmp.lt.s32.totalorder %s22, 0
      %s308 = scalar_select %p307, %s22, 0
      %s309 = sadd.s32 %s308, %s306
      %s310 = smul.addr %s304, 36
      %s311 = sadd.s32 %s309, %s310
      %s312 = smul.addr %s311, 4
      %s313 = scalar_lea.vmem %s3, %s312
      %s314 = smul.u32 36, %s24
      %p315 = scmp.lt.s32.totalorder %s23, 1
      %s316 = scalar_select %p315, %s23, 1
      %p317 = scmp.lt.s32.totalorder %s22, 0
      %s318 = scalar_select %p317, %s22, 0
      %s319 = sadd.s32 %s318, %s316
      %s320 = scalar_lea.vmem %s4, %s319
      %p321 = scmp.lt.s32.totalorder %s23, 1
      %s322 = scalar_select %p321, %s23, 1
      %p323 = scmp.lt.s32.totalorder %s22, 0
      %s324 = scalar_select %p323, %s22, 0
      %s325 = sadd.s32 %s324, %s322
      %s326 = scalar_lea.vmem %s5, %s325
      %v328 = vld [vmem:[%s294 + $0x8] sm:$0xf]
      %v329 = vld [vmem:[%s294 + $0xc] sm:$0xf]
      %v330 = vld [vmem:[%s294 + $0x10] sm:$0xf]
      %v331 = vld [vmem:[%s294 + $0x14] sm:$0xf]
      %v332 = vld [vmem:[%s294 + $0x18] sm:$0xf]
      %v333 = vld [vmem:[%s294 + $0x1c] sm:$0xf]
      %v334 = vld [vmem:[%s294 + $0x20] sm:$0xf]
      %v335 = vld [vmem:[%s294 + $0x24] sm:$0xf]
      %v336 = vld [vmem:[%s294 + $0x28] sm:$0xf]
      %v337 = vld [vmem:[%s294 + $0x2c] sm:$0xf]
      %v338 = vld [vmem:[%s294 + $0x30] sm:$0xf]
      %v339 = vld [vmem:[%s294 + $0x34] sm:$0xf]
      %v340 = vld [vmem:[%s294 + $0x38] sm:$0xf]
      %v341 = vld [vmem:[%s294 + $0x3c] sm:$0xf]
      %v342 = vld [vmem:[%s294 + $0x40] sm:$0xf]
      %v343 = vld [vmem:[%s294 + $0x44] sm:$0xf]
      %v344 = vld [vmem:[%s294 + $0x48] sm:$0xf]
      %v345 = vld [vmem:[%s294 + $0x4c] sm:$0xf]
      %v346 = vld [vmem:[%s294 + $0x50] sm:$0xf]
      %v347 = vld [vmem:[%s294 + $0x54] sm:$0xf]
      %v348 = vld [vmem:[%s294 + $0x58] sm:$0xf]
      %v349 = vld [vmem:[%s294 + $0x5c] sm:$0xf]
      %v350 = vld [vmem:[%s294 + $0x60] sm:$0xf]
      %v351 = vld [vmem:[%s294 + $0x64] sm:$0xf]
      %v352 = vld [vmem:[%s294 + $0x68] sm:$0xf]
      %v353 = vld [vmem:[%s294 + $0x6c] sm:$0xf]
      %v354 = vld [vmem:[%s294 + $0x70] sm:$0xf]
      %v355 = vld [vmem:[%s294 + $0x74] sm:$0xf]
      %v356 = vld [vmem:[%s294 + $0x78] sm:$0xf]
      %v357 = vld [vmem:[%s294 + $0x7c] sm:$0xf]
      %v358 = vld [vmem:[%s294 + $0x80] sm:$0xf]
      %v359 = vld [vmem:[%s294 + $0x84] sm:$0xf]
      %v360 = vld [vmem:[%s294 + $0x88] sm:$0xf]
      %v361 = vld [vmem:[%s294 + $0x8c] sm:$0xf]
      %v362 = vld [vmem:[%s294 + $0x90] sm:$0xf]
      %v363 = vld [vmem:[%s294 + $0x94] sm:$0xf]
      %v364 = vld [vmem:[%s294 + $0x98] sm:$0x1]
      %v365 = vld [vmem:[%s298] sm:$0x3]
      %v366 = vld [vmem:[%s294 + $0x8] sm:$0xe]
      %s367 = scalar_lea.vmem %s298, 2
      %v368 = vld [vmem:[%s367] sm:$0x3]
      %v406 = vunpack.c.l.b16 %v366
      %v407 = vunpack.c.l.b16 %v329
      %v408 = vunpack.c.l.b16 %v330
      %v409 = vunpack.c.l.b16 %v331
      %v410 = vunpack.c.l.b16 %v332
      %v411 = vunpack.c.l.b16 %v333
      %v412 = vunpack.c.l.b16 %v334
      %v413 = vunpack.c.l.b16 %v335
      %v414 = vunpack.c.l.b16 %v336
      %v415 = vunpack.c.l.b16 %v337
      %v416 = vunpack.c.l.b16 %v338
      %v417 = vunpack.c.l.b16 %v339
      %v418 = vunpack.c.l.b16 %v340
      %v419 = vunpack.c.l.b16 %v341
      %v420 = vunpack.c.l.b16 %v342
      %v421 = vunpack.c.l.b16 %v343
      %v422 = vunpack.c.l.b16 %v344
      %v423 = vunpack.c.l.b16 %v345
      %v424 = vunpack.c.l.b16 %v346
      %v425 = vunpack.c.l.b16 %v347
      %v426 = vunpack.c.l.b16 %v348
      %v427 = vunpack.c.l.b16 %v349
      %v428 = vunpack.c.l.b16 %v350
      %v429 = vunpack.c.l.b16 %v351
      %v430 = vunpack.c.l.b16 %v352
      %v431 = vunpack.c.l.b16 %v353
      %v432 = vunpack.c.l.b16 %v354
      %v433 = vunpack.c.l.b16 %v355
      %v434 = vunpack.c.l.b16 %v356
      %v435 = vunpack.c.l.b16 %v357
      %v436 = vunpack.c.l.b16 %v358
      %v437 = vunpack.c.l.b16 %v359
      %v438 = vunpack.c.l.b16 %v360
      %v439 = vunpack.c.l.b16 %v361
      %v440 = vunpack.c.l.b16 %v362
      %v441 = vunpack.c.l.b16 %v363
      %v442 = vunpack.c.l.b16 %v364
      %v443 = vpack.c.b16 %v407, %v406
      %v444 = vpack.c.b16 %v409, %v408
      %v445 = vpack.c.b16 %v411, %v410
      %v446 = vpack.c.b16 %v413, %v412
      %v447 = vpack.c.b16 %v415, %v414
      %v448 = vpack.c.b16 %v417, %v416
      %v449 = vpack.c.b16 %v419, %v418
      %v450 = vpack.c.b16 %v421, %v420
      %v451 = vpack.c.b16 %v423, %v422
      %v452 = vpack.c.b16 %v425, %v424
      %v453 = vpack.c.b16 %v427, %v426
      %v454 = vpack.c.b16 %v429, %v428
      %v455 = vpack.c.b16 %v431, %v430
      %v456 = vpack.c.b16 %v433, %v432
      %v457 = vpack.c.b16 %v435, %v434
      %v458 = vpack.c.b16 %v437, %v436
      %v459 = vpack.c.b16 %v439, %v438
      %v460 = vpack.c.b16 %v441, %v440
      %v461 = vpack.c.b16 %v442, %v442
      %vm462 = vcmask 1046528
      %v463 = vrot.slane %v443, 1
      %v464 = vrot.slane %v444, 1
      %v465 = vsel %vm462, %v463, %v464
      %v466 = vrot.slane %v445, 1
      %v467 = vsel %vm462, %v464, %v466
      %v468 = vrot.slane %v446, 1
      %v469 = vsel %vm462, %v466, %v468
      %v470 = vrot.slane %v447, 1
      %v471 = vsel %vm462, %v468, %v470
      %v472 = vrot.slane %v448, 1
      %v473 = vsel %vm462, %v470, %v472
      %v474 = vrot.slane %v449, 1
      %v475 = vsel %vm462, %v472, %v474
      %v476 = vrot.slane %v450, 1
      %v477 = vsel %vm462, %v474, %v476
      %v478 = vrot.slane %v451, 1
      %v479 = vsel %vm462, %v476, %v478
      %v480 = vrot.slane %v452, 1
      %v481 = vsel %vm462, %v478, %v480
      %v482 = vrot.slane %v453, 1
      %v483 = vsel %vm462, %v480, %v482
      %v484 = vrot.slane %v454, 1
      %v485 = vsel %vm462, %v482, %v484
      %v486 = vrot.slane %v455, 1
      %v487 = vsel %vm462, %v484, %v486
      %v488 = vrot.slane %v456, 1
      %v489 = vsel %vm462, %v486, %v488
      %v490 = vrot.slane %v457, 1
      %v491 = vsel %vm462, %v488, %v490
      %v492 = vrot.slane %v458, 1
      %v493 = vsel %vm462, %v490, %v492
      %v494 = vrot.slane %v459, 1
      %v495 = vsel %vm462, %v492, %v494
      %v496 = vrot.slane %v460, 1
      %v497 = vsel %vm462, %v494, %v496
      %v498 = vrot.slane %v461, 1
      %v499 = vsel %vm462, %v496, %v498
      %vm500 = vcmask 23552
      %v502 = vsel %vm500, %v465, 0
      %v505 = vsel %vm500, %v467, 0
      %v508 = vsel %vm500, %v469, 0
      %v511 = vsel %vm500, %v471, 0
      %v514 = vsel %vm500, %v473, 0
      %v517 = vsel %vm500, %v475, 0
      %v520 = vsel %vm500, %v477, 0
      %v523 = vsel %vm500, %v479, 0
      %v526 = vsel %vm500, %v481, 0
      %v529 = vsel %vm500, %v483, 0
      %v532 = vsel %vm500, %v485, 0
      %v535 = vsel %vm500, %v487, 0
      %v538 = vsel %vm500, %v489, 0
      %v541 = vsel %vm500, %v491, 0
      %v544 = vsel %vm500, %v493, 0
      %v547 = vsel %vm500, %v495, 0
      %v550 = vsel %vm500, %v497, 0
      %v553 = vsel %vm500, %v499, 0
      %vm555 = vcmask 1040384
      %vm556 = vcmask 1041408
      %v557 = vsel %vm555, 4294967295, 65535
      %v558 = vsel %vm556, %v557, 0
      %v560 = vand.u32 %v368, %v558
      %562 = vmatprep.subr.bf16.mxu0 0
      %563 = vmatpush1.bf16.msra.mxu0 %v560
      %564 = vmatprep.subr.bf16.mxu0 0
      %565 = vmatpush1.bf16.msra.mxu0 0
      %566 = vmatprep.subr.bf16.mxu0 0
      %567 = vmatpush1.bf16.msra.mxu0 0
      %568 = vmatprep.subr.bf16.mxu0 0
      %569 = vmatpush1.bf16.msra.mxu0 0
      %570 = vmatprep.subr.bf16.mxu0 0
      %571 = vmatpush1.bf16.msra.mxu0 0
      %572 = vmatprep.subr.bf16.mxu0 0
      %573 = vmatpush1.bf16.msra.mxu0 0
      %574 = vmatprep.subr.bf16.mxu0 0
      %575 = vmatpush1.bf16.msra.mxu0 0
      %576 = vmatprep.subr.bf16.mxu0 0
      %577 = vmatpush1.bf16.msra.mxu0 0
      %578 = vmatprep.subr.bf16.mxu0 0
      %579 = vmatpush1.bf16.msra.mxu0 0
      %580 = vmatprep.subr.bf16.mxu0 0
      %581 = vmatpush1.bf16.msra.mxu0 0
      %582 = vmatprep.subr.bf16.mxu0 0
      %583 = vmatpush1.bf16.msra.mxu0 0
      %584 = vmatprep.subr.bf16.mxu0 0
      %585 = vmatpush1.bf16.msra.mxu0 0
      %586 = vmatprep.subr.bf16.mxu0 0
      %587 = vmatpush1.bf16.msra.mxu0 0
      %588 = vmatprep.subr.bf16.mxu0 0
      %589 = vmatpush1.bf16.msra.mxu0 0
      %590 = vmatprep.subr.bf16.mxu0 0
      %591 = vmatpush1.bf16.msra.mxu0 0
      %592 = vmatprep.subr.bf16.mxu0 0
      %593 = vmatpush1.bf16.msra.mxu0 0
      %594 = vmatprep.mubr.bf16.mxu0 0
      %595 = vmatmul.mubr.bf16.gmra.mrb[0].mxu0 %v502
      %v596 = vpop.f32.mrb[0].mxu0
      %v597 = vadd.f32 0.0, %v596
      %v598 = vpop.f32.mrb[0].mxu0
      %v599 = vpop.f32.mrb[0].mxu0
      %v600 = vadd.f32 0.0, %v599
      %v601 = vpop.f32.mrb[0].mxu0
      %602 = vmatprep.mubr.bf16.mxu0 0
      %603 = vmatmul.mubr.bf16.gmra.mrb[0].mxu0 %v505
      %v604 = vpop.f32.mrb[0].mxu0
      %v605 = vadd.f32 0.0, %v604
      %v606 = vpop.f32.mrb[0].mxu0
      %v607 = vpop.f32.mrb[0].mxu0
      %v608 = vadd.f32 0.0, %v607
      %v609 = vpop.f32.mrb[0].mxu0
      %610 = vmatprep.mubr.bf16.mxu0 0
      %611 = vmatmul.mubr.bf16.gmra.mrb[0].mxu0 %v508
      %v612 = vpop.f32.mrb[0].mxu0
      %v613 = vadd.f32 0.0, %v612
      %v614 = vpop.f32.mrb[0].mxu0
      %v615 = vpop.f32.mrb[0].mxu0
      %v616 = vadd.f32 0.0, %v615
      %v617 = vpop.f32.mrb[0].mxu0
      %618 = vmatprep.mubr.bf16.mxu0 0
      %619 = vmatmul.mubr.bf16.gmra.mrb[0].mxu0 %v511
      %v620 = vpop.f32.mrb[0].mxu0
      %v621 = vadd.f32 0.0, %v620
      %v622 = vpop.f32.mrb[0].mxu0
      %v623 = vpop.f32.mrb[0].mxu0
      %v624 = vadd.f32 0.0, %v623
      %v625 = vpop.f32.mrb[0].mxu0
      %626 = vmatprep.mubr.bf16.mxu0 0
      %627 = vmatmul.mubr.bf16.gmra.mrb[0].mxu0 %v514
      %v628 = vpop.f32.mrb[0].mxu0
      %v629 = vadd.f32 0.0, %v628
      %v630 = vpop.f32.mrb[0].mxu0
      %v631 = vpop.f32.mrb[0].mxu0
      %v632 = vadd.f32 0.0, %v631
      %v633 = vpop.f32.mrb[0].mxu0
      %634 = vmatprep.mubr.bf16.mxu0 0
      %635 = vmatmul.mubr.bf16.gmra.mrb[0].mxu0 %v517
      %v636 = vpop.f32.mrb[0].mxu0
      %v637 = vadd.f32 0.0, %v636
      %v638 = vpop.f32.mrb[0].mxu0
      %v639 = vpop.f32.mrb[0].mxu0
      %v640 = vadd.f32 0.0, %v639
      %v641 = vpop.f32.mrb[0].mxu0
      %642 = vmatprep.mubr.bf16.mxu0 0
      %643 = vmatmul.mubr.bf16.gmra.mrb[0].mxu0 %v520
      %v644 = vpop.f32.mrb[0].mxu0
      %v645 = vadd.f32 0.0, %v644
      %v646 = vpop.f32.mrb[0].mxu0
      %v647 = vpop.f32.mrb[0].mxu0
      %v648 = vadd.f32 0.0, %v647
      %v649 = vpop.f32.mrb[0].mxu0
      %650 = vmatprep.mubr.bf16.mxu0 0
      %651 = vmatmul.mubr.bf16.gmra.mrb[0].mxu0 %v523
      %v652 = vpop.f32.mrb[0].mxu0
      %v653 = vadd.f32 0.0, %v652
      %v654 = vpop.f32.mrb[0].mxu0
      %v655 = vpop.f32.mrb[0].mxu0
      %v656 = vadd.f32 0.0, %v655
      %v657 = vpop.f32.mrb[0].mxu0
      %658 = vmatprep.mubr.bf16.mxu0 0
      %659 = vmatmul.mubr.bf16.gmra.mrb[0].mxu0 %v526
      %v660 = vpop.f32.mrb[0].mxu0
      %v661 = vadd.f32 0.0, %v660
      %v662 = vpop.f32.mrb[0].mxu0
      %v663 = vpop.f32.mrb[0].mxu0
      %v664 = vadd.f32 0.0, %v663
      %v665 = vpop.f32.mrb[0].mxu0
      %666 = vmatprep.mubr.bf16.mxu0 0
      %667 = vmatmul.mubr.bf16.gmra.mrb[0].mxu0 %v529
      %v668 = vpop.f32.mrb[0].mxu0
      %v669 = vadd.f32 0.0, %v668
      %v670 = vpop.f32.mrb[0].mxu0
      %v671 = vpop.f32.mrb[0].mxu0
      %v672 = vadd.f32 0.0, %v671
      %v673 = vpop.f32.mrb[0].mxu0
      %674 = vmatprep.mubr.bf16.mxu0 0
      %675 = vmatmul.mubr.bf16.gmra.mrb[0].mxu0 %v532
      %v676 = vpop.f32.mrb[0].mxu0
      %v677 = vadd.f32 0.0, %v676
      %v678 = vpop.f32.mrb[0].mxu0
      %v679 = vpop.f32.mrb[0].mxu0
      %v680 = vadd.f32 0.0, %v679
      %v681 = vpop.f32.mrb[0].mxu0
      %682 = vmatprep.mubr.bf16.mxu0 0
      %683 = vmatmul.mubr.bf16.gmra.mrb[0].mxu0 %v535
      %v684 = vpop.f32.mrb[0].mxu0
      %v685 = vadd.f32 0.0, %v684
      %v686 = vpop.f32.mrb[0].mxu0
      %v687 = vpop.f32.mrb[0].mxu0
      %v688 = vadd.f32 0.0, %v687
      %v689 = vpop.f32.mrb[0].mxu0
      %690 = vmatprep.mubr.bf16.mxu0 0
      %691 = vmatmul.mubr.bf16.gmra.mrb[0].mxu0 %v538
      %v692 = vpop.f32.mrb[0].mxu0
      %v693 = vadd.f32 0.0, %v692
      %v694 = vpop.f32.mrb[0].mxu0
      %v695 = vpop.f32.mrb[0].mxu0
      %v696 = vadd.f32 0.0, %v695
      %v697 = vpop.f32.mrb[0].mxu0
      %698 = vmatprep.mubr.bf16.mxu0 0
      %699 = vmatmul.mubr.bf16.gmra.mrb[0].mxu0 %v541
      %v700 = vpop.f32.mrb[0].mxu0
      %v701 = vadd.f32 0.0, %v700
      %v702 = vpop.f32.mrb[0].mxu0
      %v703 = vpop.f32.mrb[0].mxu0
      %v704 = vadd.f32 0.0, %v703
      %v705 = vpop.f32.mrb[0].mxu0
      %706 = vmatprep.mubr.bf16.mxu0 0
      %707 = vmatmul.mubr.bf16.gmra.mrb[0].mxu0 %v544
      %v708 = vpop.f32.mrb[0].mxu0
      %v709 = vadd.f32 0.0, %v708
      %v710 = vpop.f32.mrb[0].mxu0
      %v711 = vpop.f32.mrb[0].mxu0
      %v712 = vadd.f32 0.0, %v711
      %v713 = vpop.f32.mrb[0].mxu0
      %714 = vmatprep.mubr.bf16.mxu0 0
      %715 = vmatmul.mubr.bf16.gmra.mrb[0].mxu0 %v547
      %v716 = vpop.f32.mrb[0].mxu0
      %v717 = vadd.f32 0.0, %v716
      %v718 = vpop.f32.mrb[0].mxu0
      %v719 = vpop.f32.mrb[0].mxu0
      %v720 = vadd.f32 0.0, %v719
      %v721 = vpop.f32.mrb[0].mxu0
      %722 = vmatprep.mubr.bf16.mxu0 0
      %723 = vmatmul.mubr.bf16.gmra.mrb[0].mxu0 %v550
      %v724 = vpop.f32.mrb[0].mxu0
      %v725 = vadd.f32 0.0, %v724
      %v726 = vpop.f32.mrb[0].mxu0
      %v727 = vpop.f32.mrb[0].mxu0
      %v728 = vadd.f32 0.0, %v727
      %v729 = vpop.f32.mrb[0].mxu0
      %730 = vmatprep.mubr.bf16.mxu0 0
      %731 = vmatmul.mubr.bf16.gmra.mrb[0].mxu0 %v553
      %v732 = vpop.f32.mrb[0].mxu0
      %v733 = vadd.f32 0.0, %v732
      %v734 = vpop.f32.mrb[0].mxu0
      %v735 = vpop.f32.mrb[0].mxu0
      %v736 = vadd.f32 0.0, %v735
      %v737 = vpop.f32.mrb[0].mxu0
      %738 = vdwg.mxu0
      %v740 = vunpack.c.l.b16 %v328
      %v741 = vpack.c.b16 %v407, %v740
      %vm742 = vsmask.f32 7424
      %v744 = vshrl.u32 %v741, 16
      %v746 = vshll.u32 %v741, 16
      %v748 = vrot.slane %v746, 1
      %v749 = vor.u32 %v744, %v748
      %v751 = vshll.u32 %v444, 16
      %v753 = vrot.slane %v751, 1
      %v754 = vsel %vm742, %v749, %v753
      %v755 = vshrl.u32 %v444, 16
      %v757 = vor.u32 %v755, %v753
      %v759 = vshll.u32 %v445, 16
      %v761 = vrot.slane %v759, 1
      %v762 = vsel %vm742, %v757, %v761
      %v763 = vshrl.u32 %v445, 16
      %v765 = vor.u32 %v763, %v761
      %v767 = vshll.u32 %v446, 16
      %v769 = vrot.slane %v767, 1
      %v770 = vsel %vm742, %v765, %v769
      %v771 = vshrl.u32 %v446, 16
      %v773 = vor.u32 %v771, %v769
      %v775 = vshll.u32 %v447, 16
      %v777 = vrot.slane %v775, 1
      %v778 = vsel %vm742, %v773, %v777
      %v779 = vshrl.u32 %v447, 16
      %v781 = vor.u32 %v779, %v777
      %v783 = vshll.u32 %v448, 16
      %v785 = vrot.slane %v783, 1
      %v786 = vsel %vm742, %v781, %v785
      %v787 = vshrl.u32 %v448, 16
      %v789 = vor.u32 %v787, %v785
      %v791 = vshll.u32 %v449, 16
      %v793 = vrot.slane %v791, 1
      %v794 = vsel %vm742, %v789, %v793
      %v795 = vshrl.u32 %v449, 16
      %v797 = vor.u32 %v795, %v793
      %v799 = vshll.u32 %v450, 16
      %v801 = vrot.slane %v799, 1
      %v802 = vsel %vm742, %v797, %v801
      %v803 = vshrl.u32 %v450, 16
      %v805 = vor.u32 %v803, %v801
      %v807 = vshll.u32 %v451, 16
      %v809 = vrot.slane %v807, 1
      %v810 = vsel %vm742, %v805, %v809
      %v811 = vshrl.u32 %v451, 16
      %v813 = vor.u32 %v811, %v809
      %v815 = vshll.u32 %v452, 16
      %v817 = vrot.slane %v815, 1
      %v818 = vsel %vm742, %v813, %v817
      %v819 = vshrl.u32 %v452, 16
      %v821 = vor.u32 %v819, %v817
      %v823 = vshll.u32 %v453, 16
      %v825 = vrot.slane %v823, 1
      %v826 = vsel %vm742, %v821, %v825
      %v827 = vshrl.u32 %v453, 16
      %v829 = vor.u32 %v827, %v825
      %v831 = vshll.u32 %v454, 16
      %v833 = vrot.slane %v831, 1
      %v834 = vsel %vm742, %v829, %v833
      %v835 = vshrl.u32 %v454, 16
      %v837 = vor.u32 %v835, %v833
      %v839 = vshll.u32 %v455, 16
      %v841 = vrot.slane %v839, 1
      %v842 = vsel %vm742, %v837, %v841
      %v843 = vshrl.u32 %v455, 16
      %v845 = vor.u32 %v843, %v841
      %v847 = vshll.u32 %v456, 16
      %v849 = vrot.slane %v847, 1
      %v850 = vsel %vm742, %v845, %v849
      %v851 = vshrl.u32 %v456, 16
      %v853 = vor.u32 %v851, %v849
      %v855 = vshll.u32 %v457, 16
      %v857 = vrot.slane %v855, 1
      %v858 = vsel %vm742, %v853, %v857
      %v859 = vshrl.u32 %v457, 16
      %v861 = vor.u32 %v859, %v857
      %v863 = vshll.u32 %v458, 16
      %v865 = vrot.slane %v863, 1
      %v866 = vsel %vm742, %v861, %v865
      %v867 = vshrl.u32 %v458, 16
      %v869 = vor.u32 %v867, %v865
      %v871 = vshll.u32 %v459, 16
      %v873 = vrot.slane %v871, 1
      %v874 = vsel %vm742, %v869, %v873
      %v875 = vshrl.u32 %v459, 16
      %v877 = vor.u32 %v875, %v873
      %v879 = vshll.u32 %v460, 16
      %v881 = vrot.slane %v879, 1
      %v882 = vsel %vm742, %v877, %v881
      %v883 = vshrl.u32 %v460, 16
      %v885 = vor.u32 %v883, %v881
      %v887 = vshll.u32 %v461, 16
      %v889 = vrot.slane %v887, 1
      %v890 = vsel %vm742, %v885, %v889
      %v892 = vsel %vm500, %v754, 0
      %v895 = vsel %vm500, %v762, 0
      %v898 = vsel %vm500, %v770, 0
      %v901 = vsel %vm500, %v778, 0
      %v904 = vsel %vm500, %v786, 0
      %v907 = vsel %vm500, %v794, 0
      %v910 = vsel %vm500, %v802, 0
      %v913 = vsel %vm500, %v810, 0
      %v916 = vsel %vm500, %v818, 0
      %v919 = vsel %vm500, %v826, 0
      %v922 = vsel %vm500, %v834, 0
      %v925 = vsel %vm500, %v842, 0
      %v928 = vsel %vm500, %v850, 0
      %v931 = vsel %vm500, %v858, 0
      %v934 = vsel %vm500, %v866, 0
      %v937 = vsel %vm500, %v874, 0
      %v940 = vsel %vm500, %v882, 0
      %v943 = vsel %vm500, %v890, 0
      %v946 = vand.u32 %v365, %v558
      %948 = vmatprep.subr.bf16.mxu0 0
      %949 = vmatpush1.bf16.msra.mxu0 %v946
      %950 = vmatprep.subr.bf16.mxu0 0
      %951 = vmatpush1.bf16.msra.mxu0 0
      %952 = vmatprep.subr.bf16.mxu0 0
      %953 = vmatpush1.bf16.msra.mxu0 0
      %954 = vmatprep.subr.bf16.mxu0 0
      %955 = vmatpush1.bf16.msra.mxu0 0
      %956 = vmatprep.subr.bf16.mxu0 0
      %957 = vmatpush1.bf16.msra.mxu0 0
      %958 = vmatprep.subr.bf16.mxu0 0
      %959 = vmatpush1.bf16.msra.mxu0 0
      %960 = vmatprep.subr.bf16.mxu0 0
      %961 = vmatpush1.bf16.msra.mxu0 0
      %962 = vmatprep.subr.bf16.mxu0 0
      %963 = vmatpush1.bf16.msra.mxu0 0
      %964 = vmatprep.subr.bf16.mxu0 0
      %965 = vmatpush1.bf16.msra.mxu0 0
      %966 = vmatprep.subr.bf16.mxu0 0
      %967 = vmatpush1.bf16.msra.mxu0 0
      %968 = vmatprep.subr.bf16.mxu0 0
      %969 = vmatpush1.bf16.msra.mxu0 0
      %970 = vmatprep.subr.bf16.mxu0 0
      %971 = vmatpush1.bf16.msra.mxu0 0
      %972 = vmatprep.subr.bf16.mxu0 0
      %973 = vmatpush1.bf16.msra.mxu0 0
      %974 = vmatprep.subr.bf16.mxu0 0
      %975 = vmatpush1.bf16.msra.mxu0 0
      %976 = vmatprep.subr.bf16.mxu0 0
      %977 = vmatpush1.bf16.msra.mxu0 0
      %978 = vmatprep.subr.bf16.mxu0 0
      %979 = vmatpush1.bf16.msra.mxu0 0
      %980 = vmatprep.mubr.bf16.mxu0 0
      %981 = vmatmul.mubr.bf16.gmra.mrb[0].mxu0 %v892
      %v982 = vpop.f32.mrb[0].mxu0
      %v983 = vadd.f32 %v597, %v982
      %v984 = vpop.f32.mrb[0].mxu0
      %v985 = vpop.f32.mrb[0].mxu0
      %v986 = vadd.f32 %v600, %v985
      %v987 = vpop.f32.mrb[0].mxu0
      %988 = vmatprep.mubr.bf16.mxu0 0
      %989 = vmatmul.mubr.bf16.gmra.mrb[0].mxu0 %v895
      %v990 = vpop.f32.mrb[0].mxu0
      %v991 = vadd.f32 %v605, %v990
      %v992 = vpop.f32.mrb[0].mxu0
      %v993 = vpop.f32.mrb[0].mxu0
      %v994 = vadd.f32 %v608, %v993
      %v995 = vpop.f32.mrb[0].mxu0
      %996 = vmatprep.mubr.bf16.mxu0 0
      %997 = vmatmul.mubr.bf16.gmra.mrb[0].mxu0 %v898
      %v998 = vpop.f32.mrb[0].mxu0
      %v999 = vadd.f32 %v613, %v998
      %v1000 = vpop.f32.mrb[0].mxu0
      %v1001 = vpop.f32.mrb[0].mxu0
      %v1002 = vadd.f32 %v616, %v1001
      %v1003 = vpop.f32.mrb[0].mxu0
      %1004 = vmatprep.mubr.bf16.mxu0 0
      %1005 = vmatmul.mubr.bf16.gmra.mrb[0].mxu0 %v901
      %v1006 = vpop.f32.mrb[0].mxu0
      %v1007 = vadd.f32 %v621, %v1006
      %v1008 = vpop.f32.mrb[0].mxu0
      %v1009 = vpop.f32.mrb[0].mxu0
      %v1010 = vadd.f32 %v624, %v1009
      %v1011 = vpop.f32.mrb[0].mxu0
      %1012 = vmatprep.mubr.bf16.mxu0 0
      %1013 = vmatmul.mubr.bf16.gmra.mrb[0].mxu0 %v904
      %v1014 = vpop.f32.mrb[0].mxu0
      %v1015 = vadd.f32 %v629, %v1014
      %v1016 = vpop.f32.mrb[0].mxu0
      %v1017 = vpop.f32.mrb[0].mxu0
      %v1018 = vadd.f32 %v632, %v1017
      %v1019 = vpop.f32.mrb[0].mxu0
      %1020 = vmatprep.mubr.bf16.mxu0 0
      %1021 = vmatmul.mubr.bf16.gmra.mrb[0].mxu0 %v907
      %v1022 = vpop.f32.mrb[0].mxu0
      %v1023 = vadd.f32 %v637, %v1022
      %v1024 = vpop.f32.mrb[0].mxu0
      %v1025 = vpop.f32.mrb[0].mxu0
      %v1026 = vadd.f32 %v640, %v1025
      %v1027 = vpop.f32.mrb[0].mxu0
      %1028 = vmatprep.mubr.bf16.mxu0 0
      %1029 = vmatmul.mubr.bf16.gmra.mrb[0].mxu0 %v910
      %v1030 = vpop.f32.mrb[0].mxu0
      %v1031 = vadd.f32 %v645, %v1030
      %v1032 = vpop.f32.mrb[0].mxu0
      %v1033 = vpop.f32.mrb[0].mxu0
      %v1034 = vadd.f32 %v648, %v1033
      %v1035 = vpop.f32.mrb[0].mxu0
      %1036 = vmatprep.mubr.bf16.mxu0 0
      %1037 = vmatmul.mubr.bf16.gmra.mrb[0].mxu0 %v913
      %v1038 = vpop.f32.mrb[0].mxu0
      %v1039 = vadd.f32 %v653, %v1038
      %v1040 = vpop.f32.mrb[0].mxu0
      %v1041 = vpop.f32.mrb[0].mxu0
      %v1042 = vadd.f32 %v656, %v1041
      %v1043 = vpop.f32.mrb[0].mxu0
      %1044 = vmatprep.mubr.bf16.mxu0 0
      %1045 = vmatmul.mubr.bf16.gmra.mrb[0].mxu0 %v916
      %v1046 = vpop.f32.mrb[0].mxu0
      %v1047 = vadd.f32 %v661, %v1046
      %v1048 = vpop.f32.mrb[0].mxu0
      %v1049 = vpop.f32.mrb[0].mxu0
      %v1050 = vadd.f32 %v664, %v1049
      %v1051 = vpop.f32.mrb[0].mxu0
      %1052 = vmatprep.mubr.bf16.mxu0 0
      %1053 = vmatmul.mubr.bf16.gmra.mrb[0].mxu0 %v919
      %v1054 = vpop.f32.mrb[0].mxu0
      %v1055 = vadd.f32 %v669, %v1054
      %v1056 = vpop.f32.mrb[0].mxu0
      %v1057 = vpop.f32.mrb[0].mxu0
      %v1058 = vadd.f32 %v672, %v1057
      %v1059 = vpop.f32.mrb[0].mxu0
      %1060 = vmatprep.mubr.bf16.mxu0 0
      %1061 = vmatmul.mubr.bf16.gmra.mrb[0].mxu0 %v922
      %v1062 = vpop.f32.mrb[0].mxu0
      %v1063 = vadd.f32 %v677, %v1062
      %v1064 = vpop.f32.mrb[0].mxu0
      %v1065 = vpop.f32.mrb[0].mxu0
      %v1066 = vadd.f32 %v680, %v1065
      %v1067 = vpop.f32.mrb[0].mxu0
      %1068 = vmatprep.mubr.bf16.mxu0 0
      %1069 = vmatmul.mubr.bf16.gmra.mrb[0].mxu0 %v925
      %v1070 = vpop.f32.mrb[0].mxu0
      %v1071 = vadd.f32 %v685, %v1070
      %v1072 = vpop.f32.mrb[0].mxu0
      %v1073 = vpop.f32.mrb[0].mxu0
      %v1074 = vadd.f32 %v688, %v1073
      %v1075 = vpop.f32.mrb[0].mxu0
      %1076 = vmatprep.mubr.bf16.mxu0 0
      %1077 = vmatmul.mubr.bf16.gmra.mrb[0].mxu0 %v928
      %v1078 = vpop.f32.mrb[0].mxu0
      %v1079 = vadd.f32 %v693, %v1078
      %v1080 = vpop.f32.mrb[0].mxu0
      %v1081 = vpop.f32.mrb[0].mxu0
      %v1082 = vadd.f32 %v696, %v1081
      %v1083 = vpop.f32.mrb[0].mxu0
      %1084 = vmatprep.mubr.bf16.mxu0 0
      %1085 = vmatmul.mubr.bf16.gmra.mrb[0].mxu0 %v931
      %v1086 = vpop.f32.mrb[0].mxu0
      %v1087 = vadd.f32 %v701, %v1086
      %v1088 = vpop.f32.mrb[0].mxu0
      %v1089 = vpop.f32.mrb[0].mxu0
      %v1090 = vadd.f32 %v704, %v1089
      %v1091 = vpop.f32.mrb[0].mxu0
      %1092 = vmatprep.mubr.bf16.mxu0 0
      %1093 = vmatmul.mubr.bf16.gmra.mrb[0].mxu0 %v934
      %v1094 = vpop.f32.mrb[0].mxu0
      %v1095 = vadd.f32 %v709, %v1094
      %v1096 = vpop.f32.mrb[0].mxu0
      %v1097 = vpop.f32.mrb[0].mxu0
      %v1098 = vadd.f32 %v712, %v1097
      %v1099 = vpop.f32.mrb[0].mxu0
      %1100 = vmatprep.mubr.bf16.mxu0 0
      %1101 = vmatmul.mubr.bf16.gmra.mrb[0].mxu0 %v937
      %v1102 = vpop.f32.mrb[0].mxu0
      %v1103 = vadd.f32 %v717, %v1102
      %v1104 = vpop.f32.mrb[0].mxu0
      %v1105 = vpop.f32.mrb[0].mxu0
      %v1106 = vadd.f32 %v720, %v1105
      %v1107 = vpop.f32.mrb[0].mxu0
      %1108 = vmatprep.mubr.bf16.mxu0 0
      %1109 = vmatmul.mubr.bf16.gmra.mrb[0].mxu0 %v940
      %v1110 = vpop.f32.mrb[0].mxu0
      %v1111 = vadd.f32 %v725, %v1110
      %v1112 = vpop.f32.mrb[0].mxu0
      %v1113 = vpop.f32.mrb[0].mxu0
      %v1114 = vadd.f32 %v728, %v1113
      %v1115 = vpop.f32.mrb[0].mxu0
      %1116 = vmatprep.mubr.bf16.mxu0 0
      %1117 = vmatmul.mubr.bf16.gmra.mrb[0].mxu0 %v943
      %v1118 = vpop.f32.mrb[0].mxu0
      %v1119 = vadd.f32 %v733, %v1118
      %v1120 = vpop.f32.mrb[0].mxu0
      %v1121 = vpop.f32.mrb[0].mxu0
      %v1122 = vadd.f32 %v736, %v1121
      %v1123 = vpop.f32.mrb[0].mxu0
      %1124 = vdwg.mxu0
      %v1125 = vld [vmem:[%s294 + $0x98] sm:$0x3]
      %s1126 = scalar_lea.vmem %s298, 4
      %v1127 = vld [vmem:[%s1126] sm:$0x3]
      %v1129 = vunpack.c.l.b16 %v1125
      %v1130 = vpack.c.b16 %v1129, %v1129
      %vm1131 = vsmask.f32 6400
      %v1133 = vshrl.u32 %v443, 16
      %v1135 = vrot.slane %v1133, 1
      %v1136 = vshll.u32 %v443, 16
      %v1138 = vrot.slane %v1136, 2
      %v1139 = vor.u32 %v1135, %v1138
      %v1140 = vrot.slane %v755, 1
      %v1141 = vrot.slane %v751, 2
      %v1142 = vor.u32 %v1140, %v1141
      %v1143 = vsel %vm1131, %v1139, %v1142
      %v1144 = vrot.slane %v763, 1
      %v1145 = vrot.slane %v759, 2
      %v1146 = vor.u32 %v1144, %v1145
      %v1147 = vsel %vm1131, %v1142, %v1146
      %v1148 = vrot.slane %v771, 1
      %v1149 = vrot.slane %v767, 2
      %v1150 = vor.u32 %v1148, %v1149
      %v1151 = vsel %vm1131, %v1146, %v1150
      %v1152 = vrot.slane %v779, 1
      %v1153 = vrot.slane %v775, 2
      %v1154 = vor.u32 %v1152, %v1153
      %v1155 = vsel %vm1131, %v1150, %v1154
      %v1156 = vrot.slane %v787, 1
      %v1157 = vrot.slane %v783, 2
      %v1158 = vor.u32 %v1156, %v1157
      %v1159 = vsel %vm1131, %v1154, %v1158
      %v1160 = vrot.slane %v795, 1
      %v1161 = vrot.slane %v791, 2
      %v1162 = vor.u32 %v1160, %v1161
      %v1163 = vsel %vm1131, %v1158, %v1162
      %v1164 = vrot.slane %v803, 1
      %v1165 = vrot.slane %v799, 2
      %v1166 = vor.u32 %v1164, %v1165
      %v1167 = vsel %vm1131, %v1162, %v1166
      %v1168 = vrot.slane %v811, 1
      %v1169 = vrot.slane %v807, 2
      %v1170 = vor.u32 %v1168, %v1169
      %v1171 = vsel %vm1131, %v1166, %v1170
      %v1172 = vrot.slane %v819, 1
      %v1173 = vrot.slane %v815, 2
      %v1174 = vor.u32 %v1172, %v1173
      %v1175 = vsel %vm1131, %v1170, %v1174
      %v1176 = vrot.slane %v827, 1
      %v1177 = vrot.slane %v823, 2
      %v1178 = vor.u32 %v1176, %v1177
      %v1179 = vsel %vm1131, %v1174, %v1178
      %v1180 = vrot.slane %v835, 1
      %v1181 = vrot.slane %v831, 2
      %v1182 = vor.u32 %v1180, %v1181
      %v1183 = vsel %vm1131, %v1178, %v1182
      %v1184 = vrot.slane %v843, 1
      %v1185 = vrot.slane %v839, 2
      %v1186 = vor.u32 %v1184, %v1185
      %v1187 = vsel %vm1131, %v1182, %v1186
      %v1188 = vrot.slane %v851, 1
      %v1189 = vrot.slane %v847, 2
      %v1190 = vor.u32 %v1188, %v1189
      %v1191 = vsel %vm1131, %v1186, %v1190
      %v1192 = vrot.slane %v859, 1
      %v1193 = vrot.slane %v855, 2
      %v1194 = vor.u32 %v1192, %v1193
      %v1195 = vsel %vm1131, %v1190, %v1194
      %v1196 = vrot.slane %v867, 1
      %v1197 = vrot.slane %v863, 2
      %v1198 = vor.u32 %v1196, %v1197
      %v1199 = vsel %vm1131, %v1194, %v1198
      %v1200 = vrot.slane %v875, 1
      %v1201 = vrot.slane %v871, 2
      %v1202 = vor.u32 %v1200, %v1201
      %v1203 = vsel %vm1131, %v1198, %v1202
      %v1204 = vrot.slane %v883, 1
      %v1205 = vrot.slane %v879, 2
      %v1206 = vor.u32 %v1204, %v1205
      %v1207 = vsel %vm1131, %v1202, %v1206
      %v1209 = vshrl.u32 %v1130, 16
      %v1211 = vrot.slane %v1209, 1
      %v1212 = vshll.u32 %v1130, 16
      %v1214 = vrot.slane %v1212, 2
      %v1215 = vor.u32 %v1211, %v1214
      %v1216 = vsel %vm1131, %v1206, %v1215
      %v1218 = vsel %vm500, %v1143, 0
      %v1221 = vsel %vm500, %v1147, 0
      %v1224 = vsel %vm500, %v1151, 0
      %v1227 = vsel %vm500, %v1155, 0
      %v1230 = vsel %vm500, %v1159, 0
      %v1233 = vsel %vm500, %v1163, 0
      %v1236 = vsel %vm500, %v1167, 0
      %v1239 = vsel %vm500, %v1171, 0
      %v1242 = vsel %vm500, %v1175, 0
      %v1245 = vsel %vm500, %v1179, 0
      %v1248 = vsel %vm500, %v1183, 0
      %v1251 = vsel %vm500, %v1187, 0
      %v1254 = vsel %vm500, %v1191, 0
      %v1257 = vsel %vm500, %v1195, 0
      %v1260 = vsel %vm500, %v1199, 0
      %v1263 = vsel %vm500, %v1203, 0
      %v1266 = vsel %vm500, %v1207, 0
      %v1269 = vsel %vm500, %v1216, 0
      %v1272 = vand.u32 %v1127, %v558
      %1274 = vmatprep.subr.bf16.mxu0 0
      %1275 = vmatpush1.bf16.msra.mxu0 %v1272
      %1276 = vmatprep.subr.bf16.mxu0 0
      %1277 = vmatpush1.bf16.msra.mxu0 0
      %1278 = vmatprep.subr.bf16.mxu0 0
      %1279 = vmatpush1.bf16.msra.mxu0 0
      %1280 = vmatprep.subr.bf16.mxu0 0
      %1281 = vmatpush1.bf16.msra.mxu0 0
      %1282 = vmatprep.subr.bf16.mxu0 0
      %1283 = vmatpush1.bf16.msra.mxu0 0
      %1284 = vmatprep.subr.bf16.mxu0 0
      %1285 = vmatpush1.bf16.msra.mxu0 0
      %1286 = vmatprep.subr.bf16.mxu0 0
      %1287 = vmatpush1.bf16.msra.mxu0 0
      %1288 = vmatprep.subr.bf16.mxu0 0
      %1289 = vmatpush1.bf16.msra.mxu0 0
      %1290 = vmatprep.subr.bf16.mxu0 0
      %1291 = vmatpush1.bf16.msra.mxu0 0
      %1292 = vmatprep.subr.bf16.mxu0 0
      %1293 = vmatpush1.bf16.msra.mxu0 0
      %1294 = vmatprep.subr.bf16.mxu0 0
      %1295 = vmatpush1.bf16.msra.mxu0 0
      %1296 = vmatprep.subr.bf16.mxu0 0
      %1297 = vmatpush1.bf16.msra.mxu0 0
      %1298 = vmatprep.subr.bf16.mxu0 0
      %1299 = vmatpush1.bf16.msra.mxu0 0
      %1300 = vmatprep.subr.bf16.mxu0 0
      %1301 = vmatpush1.bf16.msra.mxu0 0
      %1302 = vmatprep.subr.bf16.mxu0 0
      %1303 = vmatpush1.bf16.msra.mxu0 0
      %1304 = vmatprep.subr.bf16.mxu0 0
      %1305 = vmatpush1.bf16.msra.mxu0 0
      %1306 = vmatprep.mubr.bf16.mxu0 0
      %1307 = vmatmul.mubr.bf16.gmra.mrb[0].mxu0 %v1218
      %v1308 = vpop.f32.mrb[0].mxu0
      %v1309 = vadd.f32 0.0, %v1308
      %v1310 = vpop.f32.mrb[0].mxu0
      %v1311 = vpop.f32.mrb[0].mxu0
      %v1312 = vadd.f32 0.0, %v1311
      %v1313 = vpop.f32.mrb[0].mxu0
      %1314 = vmatprep.mubr.bf16.mxu0 0
      %1315 = vmatmul.mubr.bf16.gmra.mrb[0].mxu0 %v1221
      %v1316 = vpop.f32.mrb[0].mxu0
      %v1317 = vadd.f32 0.0, %v1316
      %v1318 = vpop.f32.mrb[0].mxu0
      %v1319 = vpop.f32.mrb[0].mxu0
      %v1320 = vadd.f32 0.0, %v1319
      %v1321 = vpop.f32.mrb[0].mxu0
      %1322 = vmatprep.mubr.bf16.mxu0 0
      %1323 = vmatmul.mubr.bf16.gmra.mrb[0].mxu0 %v1224
      %v1324 = vpop.f32.mrb[0].mxu0
      %v1325 = vadd.f32 0.0, %v1324
      %v1326 = vpop.f32.mrb[0].mxu0
      %v1327 = vpop.f32.mrb[0].mxu0
      %v1328 = vadd.f32 0.0, %v1327
      %v1329 = vpop.f32.mrb[0].mxu0
      %1330 = vmatprep.mubr.bf16.mxu0 0
      %1331 = vmatmul.mubr.bf16.gmra.mrb[0].mxu0 %v1227
      %v1332 = vpop.f32.mrb[0].mxu0
      %v1333 = vadd.f32 0.0, %v1332
      %v1334 = vpop.f32.mrb[0].mxu0
      %v1335 = vpop.f32.mrb[0].mxu0
      %v1336 = vadd.f32 0.0, %v1335
      %v1337 = vpop.f32.mrb[0].mxu0
      %1338 = vmatprep.mubr.bf16.mxu0 0
      %1339 = vmatmul.mubr.bf16.gmra.mrb[0].mxu0 %v1230
      %v1340 = vpop.f32.mrb[0].mxu0
      %v1341 = vadd.f32 0.0, %v1340
      %v1342 = vpop.f32.mrb[0].mxu0
      %v1343 = vpop.f32.mrb[0].mxu0
      %v1344 = vadd.f32 0.0, %v1343
      %v1345 = vpop.f32.mrb[0].mxu0
      %1346 = vmatprep.mubr.bf16.mxu0 0
      %1347 = vmatmul.mubr.bf16.gmra.mrb[0].mxu0 %v1233
      %v1348 = vpop.f32.mrb[0].mxu0
      %v1349 = vadd.f32 0.0, %v1348
      %v1350 = vpop.f32.mrb[0].mxu0
      %v1351 = vpop.f32.mrb[0].mxu0
      %v1352 = vadd.f32 0.0, %v1351
      %v1353 = vpop.f32.mrb[0].mxu0
      %1354 = vmatprep.mubr.bf16.mxu0 0
      %1355 = vmatmul.mubr.bf16.gmra.mrb[0].mxu0 %v1236
      %v1356 = vpop.f32.mrb[0].mxu0
      %v1357 = vadd.f32 0.0, %v1356
      %v1358 = vpop.f32.mrb[0].mxu0
      %v1359 = vpop.f32.mrb[0].mxu0
      %v1360 = vadd.f32 0.0, %v1359
      %v1361 = vpop.f32.mrb[0].mxu0
      %1362 = vmatprep.mubr.bf16.mxu0 0
      %1363 = vmatmul.mubr.bf16.gmra.mrb[0].mxu0 %v1239
      %v1364 = vpop.f32.mrb[0].mxu0
      %v1365 = vadd.f32 0.0, %v1364
      %v1366 = vpop.f32.mrb[0].mxu0
      %v1367 = vpop.f32.mrb[0].mxu0
      %v1368 = vadd.f32 0.0, %v1367
      %v1369 = vpop.f32.mrb[0].mxu0
      %1370 = vmatprep.mubr.bf16.mxu0 0
      %1371 = vmatmul.mubr.bf16.gmra.mrb[0].mxu0 %v1242
      %v1372 = vpop.f32.mrb[0].mxu0
      %v1373 = vadd.f32 0.0, %v1372
      %v1374 = vpop.f32.mrb[0].mxu0
      %v1375 = vpop.f32.mrb[0].mxu0
      %v1376 = vadd.f32 0.0, %v1375
      %v1377 = vpop.f32.mrb[0].mxu0
      %1378 = vmatprep.mubr.bf16.mxu0 0
      %1379 = vmatmul.mubr.bf16.gmra.mrb[0].mxu0 %v1245
      %v1380 = vpop.f32.mrb[0].mxu0
      %v1381 = vadd.f32 0.0, %v1380
      %v1382 = vpop.f32.mrb[0].mxu0
      %v1383 = vpop.f32.mrb[0].mxu0
      %v1384 = vadd.f32 0.0, %v1383
      %v1385 = vpop.f32.mrb[0].mxu0
      %1386 = vmatprep.mubr.bf16.mxu0 0
      %1387 = vmatmul.mubr.bf16.gmra.mrb[0].mxu0 %v1248
      %v1388 = vpop.f32.mrb[0].mxu0
      %v1389 = vadd.f32 0.0, %v1388
      %v1390 = vpop.f32.mrb[0].mxu0
      %v1391 = vpop.f32.mrb[0].mxu0
      %v1392 = vadd.f32 0.0, %v1391
      %v1393 = vpop.f32.mrb[0].mxu0
      %1394 = vmatprep.mubr.bf16.mxu0 0
      %1395 = vmatmul.mubr.bf16.gmra.mrb[0].mxu0 %v1251
      %v1396 = vpop.f32.mrb[0].mxu0
      %v1397 = vadd.f32 0.0, %v1396
      %v1398 = vpop.f32.mrb[0].mxu0
      %v1399 = vpop.f32.mrb[0].mxu0
      %v1400 = vadd.f32 0.0, %v1399
      %v1401 = vpop.f32.mrb[0].mxu0
      %1402 = vmatprep.mubr.bf16.mxu0 0
      %1403 = vmatmul.mubr.bf16.gmra.mrb[0].mxu0 %v1254
      %v1404 = vpop.f32.mrb[0].mxu0
      %v1405 = vadd.f32 0.0, %v1404
      %v1406 = vpop.f32.mrb[0].mxu0
      %v1407 = vpop.f32.mrb[0].mxu0
      %v1408 = vadd.f32 0.0, %v1407
      %v1409 = vpop.f32.mrb[0].mxu0
      %1410 = vmatprep.mubr.bf16.mxu0 0
      %1411 = vmatmul.mubr.bf16.gmra.mrb[0].mxu0 %v1257
      %v1412 = vpop.f32.mrb[0].mxu0
      %v1413 = vadd.f32 0.0, %v1412
      %v1414 = vpop.f32.mrb[0].mxu0
      %v1415 = vpop.f32.mrb[0].mxu0
      %v1416 = vadd.f32 0.0, %v1415
      %v1417 = vpop.f32.mrb[0].mxu0
      %1418 = vmatprep.mubr.bf16.mxu0 0
      %1419 = vmatmul.mubr.bf16.gmra.mrb[0].mxu0 %v1260
      %v1420 = vpop.f32.mrb[0].mxu0
      %v1421 = vadd.f32 0.0, %v1420
      %v1422 = vpop.f32.mrb[0].mxu0
      %v1423 = vpop.f32.mrb[0].mxu0
      %v1424 = vadd.f32 0.0, %v1423
      %v1425 = vpop.f32.mrb[0].mxu0
      %1426 = vmatprep.mubr.bf16.mxu0 0
      %1427 = vmatmul.mubr.bf16.gmra.mrb[0].mxu0 %v1263
      %v1428 = vpop.f32.mrb[0].mxu0
      %v1429 = vadd.f32 0.0, %v1428
      %v1430 = vpop.f32.mrb[0].mxu0
      %v1431 = vpop.f32.mrb[0].mxu0
      %v1432 = vadd.f32 0.0, %v1431
      %v1433 = vpop.f32.mrb[0].mxu0
      %1434 = vmatprep.mubr.bf16.mxu0 0
      %1435 = vmatmul.mubr.bf16.gmra.mrb[0].mxu0 %v1266
      %v1436 = vpop.f32.mrb[0].mxu0
      %v1437 = vadd.f32 0.0, %v1436
      %v1438 = vpop.f32.mrb[0].mxu0
      %v1439 = vpop.f32.mrb[0].mxu0
      %v1440 = vadd.f32 0.0, %v1439
      %v1441 = vpop.f32.mrb[0].mxu0
      %1442 = vmatprep.mubr.bf16.mxu0 0
      %1443 = vmatmul.mubr.bf16.gmra.mrb[0].mxu0 %v1269
      %v1444 = vpop.f32.mrb[0].mxu0
      %v1445 = vadd.f32 0.0, %v1444
      %v1446 = vpop.f32.mrb[0].mxu0
      %v1447 = vpop.f32.mrb[0].mxu0
      %v1448 = vadd.f32 0.0, %v1447
      %v1449 = vpop.f32.mrb[0].mxu0
      %1450 = vdwg.mxu0
      %v1451 = vadd.f32 %v983, %v1309
      %v1452 = vadd.f32 %v986, %v1312
      %v1453 = vadd.f32 %v991, %v1317
      %v1454 = vadd.f32 %v994, %v1320
      %v1455 = vadd.f32 %v999, %v1325
      %v1456 = vadd.f32 %v1002, %v1328
      %v1457 = vadd.f32 %v1007, %v1333
      %v1458 = vadd.f32 %v1010, %v1336
      %v1459 = vadd.f32 %v1015, %v1341
      %v1460 = vadd.f32 %v1018, %v1344
      %v1461 = vadd.f32 %v1023, %v1349
      %v1462 = vadd.f32 %v1026, %v1352
      %v1463 = vadd.f32 %v1031, %v1357
      %v1464 = vadd.f32 %v1034, %v1360
      %v1465 = vadd.f32 %v1039, %v1365
      %v1466 = vadd.f32 %v1042, %v1368
      %v1467 = vadd.f32 %v1047, %v1373
      %v1468 = vadd.f32 %v1050, %v1376
      %v1469 = vadd.f32 %v1055, %v1381
      %v1470 = vadd.f32 %v1058, %v1384
      %v1471 = vadd.f32 %v1063, %v1389
      %v1472 = vadd.f32 %v1066, %v1392
      %v1473 = vadd.f32 %v1071, %v1397
      %v1474 = vadd.f32 %v1074, %v1400
      %v1475 = vadd.f32 %v1079, %v1405
      %v1476 = vadd.f32 %v1082, %v1408
      %v1477 = vadd.f32 %v1087, %v1413
      %v1478 = vadd.f32 %v1090, %v1416
      %v1479 = vadd.f32 %v1095, %v1421
      %v1480 = vadd.f32 %v1098, %v1424
      %v1481 = vadd.f32 %v1103, %v1429
      %v1482 = vadd.f32 %v1106, %v1432
      %v1483 = vadd.f32 %v1111, %v1437
      %v1484 = vadd.f32 %v1114, %v1440
      %v1485 = vadd.f32 %v1119, %v1445
      %v1486 = vadd.f32 %v1122, %v1448
      %v1487 = vld [vmem:[%s294 + $0x10] sm:$0xe]
      %v1488 = vld [vmem:[%s294 + $0x14] sm:$0xf]
      %v1489 = vld [vmem:[%s294 + $0x18] sm:$0xf]
      %v1490 = vld [vmem:[%s294 + $0x1c] sm:$0xf]
      %v1491 = vld [vmem:[%s294 + $0x20] sm:$0xf]
      %v1492 = vld [vmem:[%s294 + $0x24] sm:$0xf]
      %v1493 = vld [vmem:[%s294 + $0x28] sm:$0xf]
      %v1494 = vld [vmem:[%s294 + $0x2c] sm:$0xf]
      %v1495 = vld [vmem:[%s294 + $0x30] sm:$0xf]
      %v1496 = vld [vmem:[%s294 + $0x34] sm:$0xf]
      %v1497 = vld [vmem:[%s294 + $0x38] sm:$0xf]
      %v1498 = vld [vmem:[%s294 + $0x3c] sm:$0xf]
      %v1499 = vld [vmem:[%s294 + $0x40] sm:$0xf]
      %v1500 = vld [vmem:[%s294 + $0x44] sm:$0xf]
      %v1501 = vld [vmem:[%s294 + $0x48] sm:$0xf]
      %v1502 = vld [vmem:[%s294 + $0x4c] sm:$0xf]
      %v1503 = vld [vmem:[%s294 + $0x50] sm:$0xf]
      %v1504 = vld [vmem:[%s294 + $0x54] sm:$0xf]
      %v1505 = vld [vmem:[%s294 + $0x58] sm:$0xf]
      %v1506 = vld [vmem:[%s294 + $0x5c] sm:$0xf]
      %v1507 = vld [vmem:[%s294 + $0x60] sm:$0xf]
      %v1508 = vld [vmem:[%s294 + $0x64] sm:$0xf]
      %v1509 = vld [vmem:[%s294 + $0x68] sm:$0xf]
      %v1510 = vld [vmem:[%s294 + $0x6c] sm:$0xf]
      %v1511 = vld [vmem:[%s294 + $0x70] sm:$0xf]
      %v1512 = vld [vmem:[%s294 + $0x74] sm:$0xf]
      %v1513 = vld [vmem:[%s294 + $0x78] sm:$0xf]
      %v1514 = vld [vmem:[%s294 + $0x7c] sm:$0xf]
      %v1515 = vld [vmem:[%s294 + $0x80] sm:$0xf]
      %v1516 = vld [vmem:[%s294 + $0x84] sm:$0xf]
      %v1517 = vld [vmem:[%s294 + $0x88] sm:$0xf]
      %v1518 = vld [vmem:[%s294 + $0x8c] sm:$0xf]
      %v1519 = vld [vmem:[%s294 + $0x90] sm:$0xf]
      %v1520 = vld [vmem:[%s294 + $0x94] sm:$0xf]
      %v1521 = vld [vmem:[%s294 + $0x98] sm:$0xf]
      %v1522 = vld [vmem:[%s294 + $0x9c] sm:$0xf]
      %v1523 = vld [vmem:[%s294 + $0xa0] sm:$0x3]
      %s1524 = scalar_lea.vmem %s298, 6
      %v1525 = vld [vmem:[%s1524] sm:$0x3]
      %v1563 = vunpack.c.l.b16 %v1487
      %v1564 = vunpack.c.l.b16 %v1488
      %v1565 = vunpack.c.l.b16 %v1489
      %v1566 = vunpack.c.l.b16 %v1490
      %v1567 = vunpack.c.l.b16 %v1491
      %v1568 = vunpack.c.l.b16 %v1492
      %v1569 = vunpack.c.l.b16 %v1493
      %v1570 = vunpack.c.l.b16 %v1494
      %v1571 = vunpack.c.l.b16 %v1495
      %v1572 = vunpack.c.l.b16 %v1496
      %v1573 = vunpack.c.l.b16 %v1497
      %v1574 = vunpack.c.l.b16 %v1498
      %v1575 = vunpack.c.l.b16 %v1499
      %v1576 = vunpack.c.l.b16 %v1500
      %v1577 = vunpack.c.l.b16 %v1501
      %v1578 = vunpack.c.l.b16 %v1502
      %v1579 = vunpack.c.l.b16 %v1503
      %v1580 = vunpack.c.l.b16 %v1504
      %v1581 = vunpack.c.l.b16 %v1505
      %v1582 = vunpack.c.l.b16 %v1506
      %v1583 = vunpack.c.l.b16 %v1507
      %v1584 = vunpack.c.l.b16 %v1508
      %v1585 = vunpack.c.l.b16 %v1509
      %v1586 = vunpack.c.l.b16 %v1510
      %v1587 = vunpack.c.l.b16 %v1511
      %v1588 = vunpack.c.l.b16 %v1512
      %v1589 = vunpack.c.l.b16 %v1513
      %v1590 = vunpack.c.l.b16 %v1514
      %v1591 = vunpack.c.l.b16 %v1515
      %v1592 = vunpack.c.l.b16 %v1516
      %v1593 = vunpack.c.l.b16 %v1517
      %v1594 = vunpack.c.l.b16 %v1518
      %v1595 = vunpack.c.l.b16 %v1519
      %v1596 = vunpack.c.l.b16 %v1520
      %v1597 = vunpack.c.l.b16 %v1521
      %v1598 = vunpack.c.l.b16 %v1522
      %v1599 = vunpack.c.l.b16 %v1523
      %v1600 = vpack.c.b16 %v1564, %v1563
      %v1601 = vpack.c.b16 %v1566, %v1565
      %v1602 = vpack.c.b16 %v1568, %v1567
      %v1603 = vpack.c.b16 %v1570, %v1569
      %v1604 = vpack.c.b16 %v1572, %v1571
      %v1605 = vpack.c.b16 %v1574, %v1573
      %v1606 = vpack.c.b16 %v1576, %v1575
      %v1607 = vpack.c.b16 %v1578, %v1577
      %v1608 = vpack.c.b16 %v1580, %v1579
      %v1609 = vpack.c.b16 %v1582, %v1581
      %v1610 = vpack.c.b16 %v1584, %v1583
      %v1611 = vpack.c.b16 %v1586, %v1585
      %v1612 = vpack.c.b16 %v1588, %v1587
      %v1613 = vpack.c.b16 %v1590, %v1589
      %v1614 = vpack.c.b16 %v1592, %v1591
      %v1615 = vpack.c.b16 %v1594, %v1593
      %v1616 = vpack.c.b16 %v1596, %v1595
      %v1617 = vpack.c.b16 %v1598, %v1597
      %v1618 = vpack.c.b16 %v1599, %v1599
      %v1620 = vshrl.u32 %v1600, 16
      %v1622 = vrot.slane %v1620, 1
      %v1623 = vshll.u32 %v1600, 16
      %v1625 = vrot.slane %v1623, 2
      %v1626 = vor.u32 %v1622, %v1625
      %v1628 = vshrl.u32 %v1601, 16
      %v1630 = vrot.slane %v1628, 1
      %v1631 = vshll.u32 %v1601, 16
      %v1633 = vrot.slane %v1631, 2
      %v1634 = vor.u32 %v1630, %v1633
      %v1635 = vsel %vm1131, %v1626, %v1634
      %v1637 = vshrl.u32 %v1602, 16
      %v1639 = vrot.slane %v1637, 1
      %v1640 = vshll.u32 %v1602, 16
      %v1642 = vrot.slane %v1640, 2
      %v1643 = vor.u32 %v1639, %v1642
      %v1644 = vsel %vm1131, %v1634, %v1643
      %v1646 = vshrl.u32 %v1603, 16
      %v1648 = vrot.slane %v1646, 1
      %v1649 = vshll.u32 %v1603, 16
      %v1651 = vrot.slane %v1649, 2
      %v1652 = vor.u32 %v1648, %v1651
      %v1653 = vsel %vm1131, %v1643, %v1652
      %v1655 = vshrl.u32 %v1604, 16
      %v1657 = vrot.slane %v1655, 1
      %v1658 = vshll.u32 %v1604, 16
      %v1660 = vrot.slane %v1658, 2
      %v1661 = vor.u32 %v1657, %v1660
      %v1662 = vsel %vm1131, %v1652, %v1661
      %v1664 = vshrl.u32 %v1605, 16
      %v1666 = vrot.slane %v1664, 1
      %v1667 = vshll.u32 %v1605, 16
      %v1669 = vrot.slane %v1667, 2
      %v1670 = vor.u32 %v1666, %v1669
      %v1671 = vsel %vm1131, %v1661, %v1670
      %v1673 = vshrl.u32 %v1606, 16
      %v1675 = vrot.slane %v1673, 1
      %v1676 = vshll.u32 %v1606, 16
      %v1678 = vrot.slane %v1676, 2
      %v1679 = vor.u32 %v1675, %v1678
      %v1680 = vsel %vm1131, %v1670, %v1679
      %v1682 = vshrl.u32 %v1607, 16
      %v1684 = vrot.slane %v1682, 1
      %v1685 = vshll.u32 %v1607, 16
      %v1687 = vrot.slane %v1685, 2
      %v1688 = vor.u32 %v1684, %v1687
      %v1689 = vsel %vm1131, %v1679, %v1688
      %v1691 = vshrl.u32 %v1608, 16
      %v1693 = vrot.slane %v1691, 1
      %v1694 = vshll.u32 %v1608, 16
      %v1696 = vrot.slane %v1694, 2
      %v1697 = vor.u32 %v1693, %v1696
      %v1698 = vsel %vm1131, %v1688, %v1697
      %v1700 = vshrl.u32 %v1609, 16
      %v1702 = vrot.slane %v1700, 1
      %v1703 = vshll.u32 %v1609, 16
      %v1705 = vrot.slane %v1703, 2
      %v1706 = vor.u32 %v1702, %v1705
      %v1707 = vsel %vm1131, %v1697, %v1706
      %v1709 = vshrl.u32 %v1610, 16
      %v1711 = vrot.slane %v1709, 1
      %v1712 = vshll.u32 %v1610, 16
      %v1714 = vrot.slane %v1712, 2
      %v1715 = vor.u32 %v1711, %v1714
      %v1716 = vsel %vm1131, %v1706, %v1715
      %v1718 = vshrl.u32 %v1611, 16
      %v1720 = vrot.slane %v1718, 1
      %v1721 = vshll.u32 %v1611, 16
      %v1723 = vrot.slane %v1721, 2
      %v1724 = vor.u32 %v1720, %v1723
      %v1725 = vsel %vm1131, %v1715, %v1724
      %v1727 = vshrl.u32 %v1612, 16
      %v1729 = vrot.slane %v1727, 1
      %v1730 = vshll.u32 %v1612, 16
      %v1732 = vrot.slane %v1730, 2
      %v1733 = vor.u32 %v1729, %v1732
      %v1734 = vsel %vm1131, %v1724, %v1733
      %v1736 = vshrl.u32 %v1613, 16
      %v1738 = vrot.slane %v1736, 1
      %v1739 = vshll.u32 %v1613, 16
      %v1741 = vrot.slane %v1739, 2
      %v1742 = vor.u32 %v1738, %v1741
      %v1743 = vsel %vm1131, %v1733, %v1742
      %v1745 = vshrl.u32 %v1614, 16
      %v1747 = vrot.slane %v1745, 1
      %v1748 = vshll.u32 %v1614, 16
      %v1750 = vrot.slane %v1748, 2
      %v1751 = vor.u32 %v1747, %v1750
      %v1752 = vsel %vm1131, %v1742, %v1751
      %v1754 = vshrl.u32 %v1615, 16
      %v1756 = vrot.slane %v1754, 1
      %v1757 = vshll.u32 %v1615, 16
      %v1759 = vrot.slane %v1757, 2
      %v1760 = vor.u32 %v1756, %v1759
      %v1761 = vsel %vm1131, %v1751, %v1760
      %v1763 = vshrl.u32 %v1616, 16
      %v1765 = vrot.slane %v1763, 1
      %v1766 = vshll.u32 %v1616, 16
      %v1768 = vrot.slane %v1766, 2
      %v1769 = vor.u32 %v1765, %v1768
      %v1770 = vsel %vm1131, %v1760, %v1769
      %v1772 = vshrl.u32 %v1617, 16
      %v1774 = vrot.slane %v1772, 1
      %v1775 = vshll.u32 %v1617, 16
      %v1777 = vrot.slane %v1775, 2
      %v1778 = vor.u32 %v1774, %v1777
      %v1779 = vsel %vm1131, %v1769, %v1778
      %v1781 = vshrl.u32 %v1618, 16
      %v1783 = vrot.slane %v1781, 1
      %v1784 = vshll.u32 %v1618, 16
      %v1786 = vrot.slane %v1784, 2
      %v1787 = vor.u32 %v1783, %v1786
      %v1788 = vsel %vm1131, %v1778, %v1787
      %v1790 = vsel %vm500, %v1635, 0
      %v1793 = vsel %vm500, %v1644, 0
      %v1796 = vsel %vm500, %v1653, 0
      %v1799 = vsel %vm500, %v1662, 0
      %v1802 = vsel %vm500, %v1671, 0
      %v1805 = vsel %vm500, %v1680, 0
      %v1808 = vsel %vm500, %v1689, 0
      %v1811 = vsel %vm500, %v1698, 0
      %v1814 = vsel %vm500, %v1707, 0
      %v1817 = vsel %vm500, %v1716, 0
      %v1820 = vsel %vm500, %v1725, 0
      %v1823 = vsel %vm500, %v1734, 0
      %v1826 = vsel %vm500, %v1743, 0
      %v1829 = vsel %vm500, %v1752, 0
      %v1832 = vsel %vm500, %v1761, 0
      %v1835 = vsel %vm500, %v1770, 0
      %v1838 = vsel %vm500, %v1779, 0
      %v1841 = vsel %vm500, %v1788, 0
      %v1844 = vand.u32 %v1525, %v558
      %1846 = vmatprep.subr.bf16.mxu0 0
      %1847 = vmatpush1.bf16.msra.mxu0 %v1844
      %1848 = vmatprep.subr.bf16.mxu0 0
      %1849 = vmatpush1.bf16.msra.mxu0 0
      %1850 = vmatprep.subr.bf16.mxu0 0
      %1851 = vmatpush1.bf16.msra.mxu0 0
      %1852 = vmatprep.subr.bf16.mxu0 0
      %1853 = vmatpush1.bf16.msra.mxu0 0
      %1854 = vmatprep.subr.bf16.mxu0 0
      %1855 = vmatpush1.bf16.msra.mxu0 0
      %1856 = vmatprep.subr.bf16.mxu0 0
      %1857 = vmatpush1.bf16.msra.mxu0 0
      %1858 = vmatprep.subr.bf16.mxu0 0
      %1859 = vmatpush1.bf16.msra.mxu0 0
      %1860 = vmatprep.subr.bf16.mxu0 0
      %1861 = vmatpush1.bf16.msra.mxu0 0
      %1862 = vmatprep.subr.bf16.mxu0 0
      %1863 = vmatpush1.bf16.msra.mxu0 0
      %1864 = vmatprep.subr.bf16.mxu0 0
      %1865 = vmatpush1.bf16.msra.mxu0 0
      %1866 = vmatprep.subr.bf16.mxu0 0
      %1867 = vmatpush1.bf16.msra.mxu0 0
      %1868 = vmatprep.subr.bf16.mxu0 0
      %1869 = vmatpush1.bf16.msra.mxu0 0
      %1870 = vmatprep.subr.bf16.mxu0 0
      %1871 = vmatpush1.bf16.msra.mxu0 0
      %1872 = vmatprep.subr.bf16.mxu0 0
      %1873 = vmatpush1.bf16.msra.mxu0 0
      %1874 = vmatprep.subr.bf16.mxu0 0
      %1875 = vmatpush1.bf16.msra.mxu0 0
      %1876 = vmatprep.subr.bf16.mxu0 0
      %1877 = vmatpush1.bf16.msra.mxu0 0
      %1878 = vmatprep.mubr.bf16.mxu0 0
      %1879 = vmatmul.mubr.bf16.gmra.mrb[0].mxu0 %v1790
      %v1880 = vpop.f32.mrb[0].mxu0
      %v1881 = vadd.f32 0.0, %v1880
      %v1882 = vpop.f32.mrb[0].mxu0
      %v1883 = vpop.f32.mrb[0].mxu0
      %v1884 = vadd.f32 0.0, %v1883
      %v1885 = vpop.f32.mrb[0].mxu0
      %1886 = vmatprep.mubr.bf16.mxu0 0
      %1887 = vmatmul.mubr.bf16.gmra.mrb[0].mxu0 %v1793
      %v1888 = vpop.f32.mrb[0].mxu0
      %v1889 = vadd.f32 0.0, %v1888
      %v1890 = vpop.f32.mrb[0].mxu0
      %v1891 = vpop.f32.mrb[0].mxu0
      %v1892 = vadd.f32 0.0, %v1891
      %v1893 = vpop.f32.mrb[0].mxu0
      %1894 = vmatprep.mubr.bf16.mxu0 0
      %1895 = vmatmul.mubr.bf16.gmra.mrb[0].mxu0 %v1796
      %v1896 = vpop.f32.mrb[0].mxu0
      %v1897 = vadd.f32 0.0, %v1896
      %v1898 = vpop.f32.mrb[0].mxu0
      %v1899 = vpop.f32.mrb[0].mxu0
      %v1900 = vadd.f32 0.0, %v1899
      %v1901 = vpop.f32.mrb[0].mxu0
      %1902 = vmatprep.mubr.bf16.mxu0 0
      %1903 = vmatmul.mubr.bf16.gmra.mrb[0].mxu0 %v1799
      %v1904 = vpop.f32.mrb[0].mxu0
      %v1905 = vadd.f32 0.0, %v1904
      %v1906 = vpop.f32.mrb[0].mxu0
      %v1907 = vpop.f32.mrb[0].mxu0
      %v1908 = vadd.f32 0.0, %v1907
      %v1909 = vpop.f32.mrb[0].mxu0
      %1910 = vmatprep.mubr.bf16.mxu0 0
      %1911 = vmatmul.mubr.bf16.gmra.mrb[0].mxu0 %v1802
      %v1912 = vpop.f32.mrb[0].mxu0
      %v1913 = vadd.f32 0.0, %v1912
      %v1914 = vpop.f32.mrb[0].mxu0
      %v1915 = vpop.f32.mrb[0].mxu0
      %v1916 = vadd.f32 0.0, %v1915
      %v1917 = vpop.f32.mrb[0].mxu0
      %1918 = vmatprep.mubr.bf16.mxu0 0
      %1919 = vmatmul.mubr.bf16.gmra.mrb[0].mxu0 %v1805
      %v1920 = vpop.f32.mrb[0].mxu0
      %v1921 = vadd.f32 0.0, %v1920
      %v1922 = vpop.f32.mrb[0].mxu0
      %v1923 = vpop.f32.mrb[0].mxu0
      %v1924 = vadd.f32 0.0, %v1923
      %v1925 = vpop.f32.mrb[0].mxu0
      %1926 = vmatprep.mubr.bf16.mxu0 0
      %1927 = vmatmul.mubr.bf16.gmra.mrb[0].mxu0 %v1808
      %v1928 = vpop.f32.mrb[0].mxu0
      %v1929 = vadd.f32 0.0, %v1928
      %v1930 = vpop.f32.mrb[0].mxu0
      %v1931 = vpop.f32.mrb[0].mxu0
      %v1932 = vadd.f32 0.0, %v1931
      %v1933 = vpop.f32.mrb[0].mxu0
      %1934 = vmatprep.mubr.bf16.mxu0 0
      %1935 = vmatmul.mubr.bf16.gmra.mrb[0].mxu0 %v1811
      %v1936 = vpop.f32.mrb[0].mxu0
      %v1937 = vadd.f32 0.0, %v1936
      %v1938 = vpop.f32.mrb[0].mxu0
      %v1939 = vpop.f32.mrb[0].mxu0
      %v1940 = vadd.f32 0.0, %v1939
      %v1941 = vpop.f32.mrb[0].mxu0
      %1942 = vmatprep.mubr.bf16.mxu0 0
      %1943 = vmatmul.mubr.bf16.gmra.mrb[0].mxu0 %v1814
      %v1944 = vpop.f32.mrb[0].mxu0
      %v1945 = vadd.f32 0.0, %v1944
      %v1946 = vpop.f32.mrb[0].mxu0
      %v1947 = vpop.f32.mrb[0].mxu0
      %v1948 = vadd.f32 0.0, %v1947
      %v1949 = vpop.f32.mrb[0].mxu0
      %1950 = vmatprep.mubr.bf16.mxu0 0
      %1951 = vmatmul.mubr.bf16.gmra.mrb[0].mxu0 %v1817
      %v1952 = vpop.f32.mrb[0].mxu0
      %v1953 = vadd.f32 0.0, %v1952
      %v1954 = vpop.f32.mrb[0].mxu0
      %v1955 = vpop.f32.mrb[0].mxu0
      %v1956 = vadd.f32 0.0, %v1955
      %v1957 = vpop.f32.mrb[0].mxu0
      %1958 = vmatprep.mubr.bf16.mxu0 0
      %1959 = vmatmul.mubr.bf16.gmra.mrb[0].mxu0 %v1820
      %v1960 = vpop.f32.mrb[0].mxu0
      %v1961 = vadd.f32 0.0, %v1960
      %v1962 = vpop.f32.mrb[0].mxu0
      %v1963 = vpop.f32.mrb[0].mxu0
      %v1964 = vadd.f32 0.0, %v1963
      %v1965 = vpop.f32.mrb[0].mxu0
      %1966 = vmatprep.mubr.bf16.mxu0 0
      %1967 = vmatmul.mubr.bf16.gmra.mrb[0].mxu0 %v1823
      %v1968 = vpop.f32.mrb[0].mxu0
      %v1969 = vadd.f32 0.0, %v1968
      %v1970 = vpop.f32.mrb[0].mxu0
      %v1971 = vpop.f32.mrb[0].mxu0
      %v1972 = vadd.f32 0.0, %v1971
      %v1973 = vpop.f32.mrb[0].mxu0
      %1974 = vmatprep.mubr.bf16.mxu0 0
      %1975 = vmatmul.mubr.bf16.gmra.mrb[0].mxu0 %v1826
      %v1976 = vpop.f32.mrb[0].mxu0
      %v1977 = vadd.f32 0.0, %v1976
      %v1978 = vpop.f32.mrb[0].mxu0
      %v1979 = vpop.f32.mrb[0].mxu0
      %v1980 = vadd.f32 0.0, %v1979
      %v1981 = vpop.f32.mrb[0].mxu0
      %1982 = vmatprep.mubr.bf16.mxu0 0
      %1983 = vmatmul.mubr.bf16.gmra.mrb[0].mxu0 %v1829
      %v1984 = vpop.f32.mrb[0].mxu0
      %v1985 = vadd.f32 0.0, %v1984
      %v1986 = vpop.f32.mrb[0].mxu0
      %v1987 = vpop.f32.mrb[0].mxu0
      %v1988 = vadd.f32 0.0, %v1987
      %v1989 = vpop.f32.mrb[0].mxu0
      %1990 = vmatprep.mubr.bf16.mxu0 0
      %1991 = vmatmul.mubr.bf16.gmra.mrb[0].mxu0 %v1832
      %v1992 = vpop.f32.mrb[0].mxu0
      %v1993 = vadd.f32 0.0, %v1992
      %v1994 = vpop.f32.mrb[0].mxu0
      %v1995 = vpop.f32.mrb[0].mxu0
      %v1996 = vadd.f32 0.0, %v1995
      %v1997 = vpop.f32.mrb[0].mxu0
      %1998 = vmatprep.mubr.bf16.mxu0 0
      %1999 = vmatmul.mubr.bf16.gmra.mrb[0].mxu0 %v1835
      %v2000 = vpop.f32.mrb[0].mxu0
      %v2001 = vadd.f32 0.0, %v2000
      %v2002 = vpop.f32.mrb[0].mxu0
      %v2003 = vpop.f32.mrb[0].mxu0
      %v2004 = vadd.f32 0.0, %v2003
      %v2005 = vpop.f32.mrb[0].mxu0
      %2006 = vmatprep.mubr.bf16.mxu0 0
      %2007 = vmatmul.mubr.bf16.gmra.mrb[0].mxu0 %v1838
      %v2008 = vpop.f32.mrb[0].mxu0
      %v2009 = vadd.f32 0.0, %v2008
      %v2010 = vpop.f32.mrb[0].mxu0
      %v2011 = vpop.f32.mrb[0].mxu0
      %v2012 = vadd.f32 0.0, %v2011
      %v2013 = vpop.f32.mrb[0].mxu0
      %2014 = vmatprep.mubr.bf16.mxu0 0
      %2015 = vmatmul.mubr.bf16.gmra.mrb[0].mxu0 %v1841
      %v2016 = vpop.f32.mrb[0].mxu0
      %v2017 = vadd.f32 0.0, %v2016
      %v2018 = vpop.f32.mrb[0].mxu0
      %v2019 = vpop.f32.mrb[0].mxu0
      %v2020 = vadd.f32 0.0, %v2019
      %v2021 = vpop.f32.mrb[0].mxu0
      %2022 = vdwg.mxu0
      %v2023 = vadd.f32 %v1451, %v1881
      %v2024 = vadd.f32 %v1452, %v1884
      %v2025 = vadd.f32 %v1453, %v1889
      %v2026 = vadd.f32 %v1454, %v1892
      %v2027 = vadd.f32 %v1455, %v1897
      %v2028 = vadd.f32 %v1456, %v1900
      %v2029 = vadd.f32 %v1457, %v1905
      %v2030 = vadd.f32 %v1458, %v1908
      %v2031 = vadd.f32 %v1459, %v1913
      %v2032 = vadd.f32 %v1460, %v1916
      %v2033 = vadd.f32 %v1461, %v1921
      %v2034 = vadd.f32 %v1462, %v1924
      %v2035 = vadd.f32 %v1463, %v1929
      %v2036 = vadd.f32 %v1464, %v1932
      %v2037 = vadd.f32 %v1465, %v1937
      %v2038 = vadd.f32 %v1466, %v1940
      %v2039 = vadd.f32 %v1467, %v1945
      %v2040 = vadd.f32 %v1468, %v1948
      %v2041 = vadd.f32 %v1469, %v1953
      %v2042 = vadd.f32 %v1470, %v1956
      %v2043 = vadd.f32 %v1471, %v1961
      %v2044 = vadd.f32 %v1472, %v1964
      %v2045 = vadd.f32 %v1473, %v1969
      %v2046 = vadd.f32 %v1474, %v1972
      %v2047 = vadd.f32 %v1475, %v1977
      %v2048 = vadd.f32 %v1476, %v1980
      %v2049 = vadd.f32 %v1477, %v1985
      %v2050 = vadd.f32 %v1478, %v1988
      %v2051 = vadd.f32 %v1479, %v1993
      %v2052 = vadd.f32 %v1480, %v1996
      %v2053 = vadd.f32 %v1481, %v2001
      %v2054 = vadd.f32 %v1482, %v2004
      %v2055 = vadd.f32 %v1483, %v2009
      %v2056 = vadd.f32 %v1484, %v2012
      %v2057 = vadd.f32 %v1485, %v2017
      %v2058 = vadd.f32 %v1486, %v2020
      %v2059 = vld [vmem:[%s294 + $0x10] sm:$0xc]
      %s2060 = scalar_lea.vmem %s298, 8
      %v2061 = vld [vmem:[%s2060] sm:$0x3]
      %v2063 = vunpack.c.l.b16 %v2059
      %v2064 = vpack.c.b16 %v1564, %v2063
      %vm2065 = vcmask 1045504
      %v2066 = vrot.slane %v2064, 2
      %v2067 = vrot.slane %v1601, 2
      %v2068 = vsel %vm2065, %v2066, %v2067
      %v2069 = vrot.slane %v1602, 2
      %v2070 = vsel %vm2065, %v2067, %v2069
      %v2071 = vrot.slane %v1603, 2
      %v2072 = vsel %vm2065, %v2069, %v2071
      %v2073 = vrot.slane %v1604, 2
      %v2074 = vsel %vm2065, %v2071, %v2073
      %v2075 = vrot.slane %v1605, 2
      %v2076 = vsel %vm2065, %v2073, %v2075
      %v2077 = vrot.slane %v1606, 2
      %v2078 = vsel %vm2065, %v2075, %v2077
      %v2079 = vrot.slane %v1607, 2
      %v2080 = vsel %vm2065, %v2077, %v2079
      %v2081 = vrot.slane %v1608, 2
      %v2082 = vsel %vm2065, %v2079, %v2081
      %v2083 = vrot.slane %v1609, 2
      %v2084 = vsel %vm2065, %v2081, %v2083
      %v2085 = vrot.slane %v1610, 2
      %v2086 = vsel %vm2065, %v2083, %v2085
      %v2087 = vrot.slane %v1611, 2
      %v2088 = vsel %vm2065, %v2085, %v2087
      %v2089 = vrot.slane %v1612, 2
      %v2090 = vsel %vm2065, %v2087, %v2089
      %v2091 = vrot.slane %v1613, 2
      %v2092 = vsel %vm2065, %v2089, %v2091
      %v2093 = vrot.slane %v1614, 2
      %v2094 = vsel %vm2065, %v2091, %v2093
      %v2095 = vrot.slane %v1615, 2
      %v2096 = vsel %vm2065, %v2093, %v2095
      %v2097 = vrot.slane %v1616, 2
      %v2098 = vsel %vm2065, %v2095, %v2097
      %v2099 = vrot.slane %v1617, 2
      %v2100 = vsel %vm2065, %v2097, %v2099
      %v2101 = vrot.slane %v1618, 2
      %v2102 = vsel %vm2065, %v2099, %v2101
      %v2104 = vsel %vm500, %v2068, 0
      %v2107 = vsel %vm500, %v2070, 0
      %v2110 = vsel %vm500, %v2072, 0
      %v2113 = vsel %vm500, %v2074, 0
      %v2116 = vsel %vm500, %v2076, 0
      %v2119 = vsel %vm500, %v2078, 0
      %v2122 = vsel %vm500, %v2080, 0
      %v2125 = vsel %vm500, %v2082, 0
      %v2128 = vsel %vm500, %v2084, 0
      %v2131 = vsel %vm500, %v2086, 0
      %v2134 = vsel %vm500, %v2088, 0
      %v2137 = vsel %vm500, %v2090, 0
      %v2140 = vsel %vm500, %v2092, 0
      %v2143 = vsel %vm500, %v2094, 0
      %v2146 = vsel %vm500, %v2096, 0
      %v2149 = vsel %vm500, %v2098, 0
      %v2152 = vsel %vm500, %v2100, 0
      %v2155 = vsel %vm500, %v2102, 0
      %v2158 = vand.u32 %v2061, %v558
      %2160 = vmatprep.subr.bf16.mxu0 0
      %2161 = vmatpush1.bf16.msra.mxu0 %v2158
      %2162 = vmatprep.subr.bf16.mxu0 0
      %2163 = vmatpush1.bf16.msra.mxu0 0
      %2164 = vmatprep.subr.bf16.mxu0 0
      %2165 = vmatpush1.bf16.msra.mxu0 0
      %2166 = vmatprep.subr.bf16.mxu0 0
      %2167 = vmatpush1.bf16.msra.mxu0 0
      %2168 = vmatprep.subr.bf16.mxu0 0
      %2169 = vmatpush1.bf16.msra.mxu0 0
      %2170 = vmatprep.subr.bf16.mxu0 0
      %2171 = vmatpush1.bf16.msra.mxu0 0
      %2172 = vmatprep.subr.bf16.mxu0 0
      %2173 = vmatpush1.bf16.msra.mxu0 0
      %2174 = vmatprep.subr.bf16.mxu0 0
      %2175 = vmatpush1.bf16.msra.mxu0 0
      %2176 = vmatprep.subr.bf16.mxu0 0
      %2177 = vmatpush1.bf16.msra.mxu0 0
      %2178 = vmatprep.subr.bf16.mxu0 0
      %2179 = vmatpush1.bf16.msra.mxu0 0
      %2180 = vmatprep.subr.bf16.mxu0 0
      %2181 = vmatpush1.bf16.msra.mxu0 0
      %2182 = vmatprep.subr.bf16.mxu0 0
      %2183 = vmatpush1.bf16.msra.mxu0 0
      %2184 = vmatprep.subr.bf16.mxu0 0
      %2185 = vmatpush1.bf16.msra.mxu0 0
      %2186 = vmatprep.subr.bf16.mxu0 0
      %2187 = vmatpush1.bf16.msra.mxu0 0
      %2188 = vmatprep.subr.bf16.mxu0 0
      %2189 = vmatpush1.bf16.msra.mxu0 0
      %2190 = vmatprep.subr.bf16.mxu0 0
      %2191 = vmatpush1.bf16.msra.mxu0 0
      %2192 = vmatprep.mubr.bf16.mxu0 0
      %2193 = vmatmul.mubr.bf16.gmra.mrb[0].mxu0 %v2104
      %v2194 = vpop.f32.mrb[0].mxu0
      %v2195 = vadd.f32 0.0, %v2194
      %v2196 = vpop.f32.mrb[0].mxu0
      %v2197 = vpop.f32.mrb[0].mxu0
      %v2198 = vadd.f32 0.0, %v2197
      %v2199 = vpop.f32.mrb[0].mxu0
      %2200 = vmatprep.mubr.bf16.mxu0 0
      %2201 = vmatmul.mubr.bf16.gmra.mrb[0].mxu0 %v2107
      %v2202 = vpop.f32.mrb[0].mxu0
      %v2203 = vadd.f32 0.0, %v2202
      %v2204 = vpop.f32.mrb[0].mxu0
      %v2205 = vpop.f32.mrb[0].mxu0
      %v2206 = vadd.f32 0.0, %v2205
      %v2207 = vpop.f32.mrb[0].mxu0
      %2208 = vmatprep.mubr.bf16.mxu0 0
      %2209 = vmatmul.mubr.bf16.gmra.mrb[0].mxu0 %v2110
      %v2210 = vpop.f32.mrb[0].mxu0
      %v2211 = vadd.f32 0.0, %v2210
      %v2212 = vpop.f32.mrb[0].mxu0
      %v2213 = vpop.f32.mrb[0].mxu0
      %v2214 = vadd.f32 0.0, %v2213
      %v2215 = vpop.f32.mrb[0].mxu0
      %2216 = vmatprep.mubr.bf16.mxu0 0
      %2217 = vmatmul.mubr.bf16.gmra.mrb[0].mxu0 %v2113
      %v2218 = vpop.f32.mrb[0].mxu0
      %v2219 = vadd.f32 0.0, %v2218
      %v2220 = vpop.f32.mrb[0].mxu0
      %v2221 = vpop.f32.mrb[0].mxu0
      %v2222 = vadd.f32 0.0, %v2221
      %v2223 = vpop.f32.mrb[0].mxu0
      %2224 = vmatprep.mubr.bf16.mxu0 0
      %2225 = vmatmul.mubr.bf16.gmra.mrb[0].mxu0 %v2116
      %v2226 = vpop.f32.mrb[0].mxu0
      %v2227 = vadd.f32 0.0, %v2226
      %v2228 = vpop.f32.mrb[0].mxu0
      %v2229 = vpop.f32.mrb[0].mxu0
      %v2230 = vadd.f32 0.0, %v2229
      %v2231 = vpop.f32.mrb[0].mxu0
      %2232 = vmatprep.mubr.bf16.mxu0 0
      %2233 = vmatmul.mubr.bf16.gmra.mrb[0].mxu0 %v2119
      %v2234 = vpop.f32.mrb[0].mxu0
      %v2235 = vadd.f32 0.0, %v2234
      %v2236 = vpop.f32.mrb[0].mxu0
      %v2237 = vpop.f32.mrb[0].mxu0
      %v2238 = vadd.f32 0.0, %v2237
      %v2239 = vpop.f32.mrb[0].mxu0
      %2240 = vmatprep.mubr.bf16.mxu0 0
      %2241 = vmatmul.mubr.bf16.gmra.mrb[0].mxu0 %v2122
      %v2242 = vpop.f32.mrb[0].mxu0
      %v2243 = vadd.f32 0.0, %v2242
      %v2244 = vpop.f32.mrb[0].mxu0
      %v2245 = vpop.f32.mrb[0].mxu0
      %v2246 = vadd.f32 0.0, %v2245
      %v2247 = vpop.f32.mrb[0].mxu0
      %2248 = vmatprep.mubr.bf16.mxu0 0
      %2249 = vmatmul.mubr.bf16.gmra.mrb[0].mxu0 %v2125
      %v2250 = vpop.f32.mrb[0].mxu0
      %v2251 = vadd.f32 0.0, %v2250
      %v2252 = vpop.f32.mrb[0].mxu0
      %v2253 = vpop.f32.mrb[0].mxu0
      %v2254 = vadd.f32 0.0, %v2253
      %v2255 = vpop.f32.mrb[0].mxu0
      %2256 = vmatprep.mubr.bf16.mxu0 0
      %2257 = vmatmul.mubr.bf16.gmra.mrb[0].mxu0 %v2128
      %v2258 = vpop.f32.mrb[0].mxu0
      %v2259 = vadd.f32 0.0, %v2258
      %v2260 = vpop.f32.mrb[0].mxu0
      %v2261 = vpop.f32.mrb[0].mxu0
      %v2262 = vadd.f32 0.0, %v2261
      %v2263 = vpop.f32.mrb[0].mxu0
      %2264 = vmatprep.mubr.bf16.mxu0 0
      %2265 = vmatmul.mubr.bf16.gmra.mrb[0].mxu0 %v2131
      %v2266 = vpop.f32.mrb[0].mxu0
      %v2267 = vadd.f32 0.0, %v2266
      %v2268 = vpop.f32.mrb[0].mxu0
      %v2269 = vpop.f32.mrb[0].mxu0
      %v2270 = vadd.f32 0.0, %v2269
      %v2271 = vpop.f32.mrb[0].mxu0
      %2272 = vmatprep.mubr.bf16.mxu0 0
      %2273 = vmatmul.mubr.bf16.gmra.mrb[0].mxu0 %v2134
      %v2274 = vpop.f32.mrb[0].mxu0
      %v2275 = vadd.f32 0.0, %v2274
      %v2276 = vpop.f32.mrb[0].mxu0
      %v2277 = vpop.f32.mrb[0].mxu0
      %v2278 = vadd.f32 0.0, %v2277
      %v2279 = vpop.f32.mrb[0].mxu0
      %2280 = vmatprep.mubr.bf16.mxu0 0
      %2281 = vmatmul.mubr.bf16.gmra.mrb[0].mxu0 %v2137
      %v2282 = vpop.f32.mrb[0].mxu0
      %v2283 = vadd.f32 0.0, %v2282
      %v2284 = vpop.f32.mrb[0].mxu0
      %v2285 = vpop.f32.mrb[0].mxu0
      %v2286 = vadd.f32 0.0, %v2285
      %v2287 = vpop.f32.mrb[0].mxu0
      %2288 = vmatprep.mubr.bf16.mxu0 0
      %2289 = vmatmul.mubr.bf16.gmra.mrb[0].mxu0 %v2140
      %v2290 = vpop.f32.mrb[0].mxu0
      %v2291 = vadd.f32 0.0, %v2290
      %v2292 = vpop.f32.mrb[0].mxu0
      %v2293 = vpop.f32.mrb[0].mxu0
      %v2294 = vadd.f32 0.0, %v2293
      %v2295 = vpop.f32.mrb[0].mxu0
      %2296 = vmatprep.mubr.bf16.mxu0 0
      %2297 = vmatmul.mubr.bf16.gmra.mrb[0].mxu0 %v2143
      %v2298 = vpop.f32.mrb[0].mxu0
      %v2299 = vadd.f32 0.0, %v2298
      %v2300 = vpop.f32.mrb[0].mxu0
      %v2301 = vpop.f32.mrb[0].mxu0
      %v2302 = vadd.f32 0.0, %v2301
      %v2303 = vpop.f32.mrb[0].mxu0
      %2304 = vmatprep.mubr.bf16.mxu0 0
      %2305 = vmatmul.mubr.bf16.gmra.mrb[0].mxu0 %v2146
      %v2306 = vpop.f32.mrb[0].mxu0
      %v2307 = vadd.f32 0.0, %v2306
      %v2308 = vpop.f32.mrb[0].mxu0
      %v2309 = vpop.f32.mrb[0].mxu0
      %v2310 = vadd.f32 0.0, %v2309
      %v2311 = vpop.f32.mrb[0].mxu0
      %2312 = vmatprep.mubr.bf16.mxu0 0
      %2313 = vmatmul.mubr.bf16.gmra.mrb[0].mxu0 %v2149
      %v2314 = vpop.f32.mrb[0].mxu0
      %v2315 = vadd.f32 0.0, %v2314
      %v2316 = vpop.f32.mrb[0].mxu0
      %v2317 = vpop.f32.mrb[0].mxu0
      %v2318 = vadd.f32 0.0, %v2317
      %v2319 = vpop.f32.mrb[0].mxu0
      %2320 = vmatprep.mubr.bf16.mxu0 0
      %2321 = vmatmul.mubr.bf16.gmra.mrb[0].mxu0 %v2152
      %v2322 = vpop.f32.mrb[0].mxu0
      %v2323 = vadd.f32 0.0, %v2322
      %v2324 = vpop.f32.mrb[0].mxu0
      %v2325 = vpop.f32.mrb[0].mxu0
      %v2326 = vadd.f32 0.0, %v2325
      %v2327 = vpop.f32.mrb[0].mxu0
      %2328 = vmatprep.mubr.bf16.mxu0 0
      %2329 = vmatmul.mubr.bf16.gmra.mrb[0].mxu0 %v2155
      %v2330 = vpop.f32.mrb[0].mxu0
      %v2331 = vadd.f32 0.0, %v2330
      %v2332 = vpop.f32.mrb[0].mxu0
      %v2333 = vpop.f32.mrb[0].mxu0
      %v2334 = vadd.f32 0.0, %v2333
      %v2335 = vpop.f32.mrb[0].mxu0
      %2336 = vdwg.mxu0
      %v2337 = vadd.f32 %v2023, %v2195
      %v2338 = vadd.f32 %v2024, %v2198
      %v2339 = vadd.f32 %v2025, %v2203
      %v2340 = vadd.f32 %v2026, %v2206
      %v2341 = vadd.f32 %v2027, %v2211
      %v2342 = vadd.f32 %v2028, %v2214
      %v2343 = vadd.f32 %v2029, %v2219
      %v2344 = vadd.f32 %v2030, %v2222
      %v2345 = vadd.f32 %v2031, %v2227
      %v2346 = vadd.f32 %v2032, %v2230
      %v2347 = vadd.f32 %v2033, %v2235
      %v2348 = vadd.f32 %v2034, %v2238
      %v2349 = vadd.f32 %v2035, %v2243
      %v2350 = vadd.f32 %v2036, %v2246
      %v2351 = vadd.f32 %v2037, %v2251
      %v2352 = vadd.f32 %v2038, %v2254
      %v2353 = vadd.f32 %v2039, %v2259
      %v2354 = vadd.f32 %v2040, %v2262
      %v2355 = vadd.f32 %v2041, %v2267
      %v2356 = vadd.f32 %v2042, %v2270
      %v2357 = vadd.f32 %v2043, %v2275
      %v2358 = vadd.f32 %v2044, %v2278
      %v2359 = vadd.f32 %v2045, %v2283
      %v2360 = vadd.f32 %v2046, %v2286
      %v2361 = vadd.f32 %v2047, %v2291
      %v2362 = vadd.f32 %v2048, %v2294
      %v2363 = vadd.f32 %v2049, %v2299
      %v2364 = vadd.f32 %v2050, %v2302
      %v2365 = vadd.f32 %v2051, %v2307
      %v2366 = vadd.f32 %v2052, %v2310
      %v2367 = vadd.f32 %v2053, %v2315
      %v2368 = vadd.f32 %v2054, %v2318
      %v2369 = vadd.f32 %v2055, %v2323
      %v2370 = vadd.f32 %v2056, %v2326
      %v2371 = vadd.f32 %v2057, %v2331
      %v2372 = vadd.f32 %v2058, %v2334
      %v2373 = vld [vmem:[%s294 + $0xa0] sm:$0x7]
      %s2374 = scalar_lea.vmem %s298, 10
      %v2375 = vld [vmem:[%s2374] sm:$0x3]
      %v2377 = vunpack.c.l.b16 %v2373
      %v2378 = vpack.c.b16 %v2377, %v2377
      %vm2379 = vsmask.f32 5376
      %v2381 = vshrl.u32 %v2064, 16
      %v2383 = vrot.slane %v2381, 2
      %v2384 = vshll.u32 %v2064, 16
      %v2386 = vrot.slane %v2384, 3
      %v2387 = vor.u32 %v2383, %v2386
      %v2388 = vrot.slane %v1628, 2
      %v2389 = vrot.slane %v1631, 3
      %v2390 = vor.u32 %v2388, %v2389
      %v2391 = vsel %vm2379, %v2387, %v2390
      %v2392 = vrot.slane %v1637, 2
      %v2393 = vrot.slane %v1640, 3
      %v2394 = vor.u32 %v2392, %v2393
      %v2395 = vsel %vm2379, %v2390, %v2394
      %v2396 = vrot.slane %v1646, 2
      %v2397 = vrot.slane %v1649, 3
      %v2398 = vor.u32 %v2396, %v2397
      %v2399 = vsel %vm2379, %v2394, %v2398
      %v2400 = vrot.slane %v1655, 2
      %v2401 = vrot.slane %v1658, 3
      %v2402 = vor.u32 %v2400, %v2401
      %v2403 = vsel %vm2379, %v2398, %v2402
      %v2404 = vrot.slane %v1664, 2
      %v2405 = vrot.slane %v1667, 3
      %v2406 = vor.u32 %v2404, %v2405
      %v2407 = vsel %vm2379, %v2402, %v2406
      %v2408 = vrot.slane %v1673, 2
      %v2409 = vrot.slane %v1676, 3
      %v2410 = vor.u32 %v2408, %v2409
      %v2411 = vsel %vm2379, %v2406, %v2410
      %v2412 = vrot.slane %v1682, 2
      %v2413 = vrot.slane %v1685, 3
      %v2414 = vor.u32 %v2412, %v2413
      %v2415 = vsel %vm2379, %v2410, %v2414
      %v2416 = vrot.slane %v1691, 2
      %v2417 = vrot.slane %v1694, 3
      %v2418 = vor.u32 %v2416, %v2417
      %v2419 = vsel %vm2379, %v2414, %v2418
      %v2420 = vrot.slane %v1700, 2
      %v2421 = vrot.slane %v1703, 3
      %v2422 = vor.u32 %v2420, %v2421
      %v2423 = vsel %vm2379, %v2418, %v2422
      %v2424 = vrot.slane %v1709, 2
      %v2425 = vrot.slane %v1712, 3
      %v2426 = vor.u32 %v2424, %v2425
      %v2427 = vsel %vm2379, %v2422, %v2426
      %v2428 = vrot.slane %v1718, 2
      %v2429 = vrot.slane %v1721, 3
      %v2430 = vor.u32 %v2428, %v2429
      %v2431 = vsel %vm2379, %v2426, %v2430
      %v2432 = vrot.slane %v1727, 2
      %v2433 = vrot.slane %v1730, 3
      %v2434 = vor.u32 %v2432, %v2433
      %v2435 = vsel %vm2379, %v2430, %v2434
      %v2436 = vrot.slane %v1736, 2
      %v2437 = vrot.slane %v1739, 3
      %v2438 = vor.u32 %v2436, %v2437
      %v2439 = vsel %vm2379, %v2434, %v2438
      %v2440 = vrot.slane %v1745, 2
      %v2441 = vrot.slane %v1748, 3
      %v2442 = vor.u32 %v2440, %v2441
      %v2443 = vsel %vm2379, %v2438, %v2442
      %v2444 = vrot.slane %v1754, 2
      %v2445 = vrot.slane %v1757, 3
      %v2446 = vor.u32 %v2444, %v2445
      %v2447 = vsel %vm2379, %v2442, %v2446
      %v2448 = vrot.slane %v1763, 2
      %v2449 = vrot.slane %v1766, 3
      %v2450 = vor.u32 %v2448, %v2449
      %v2451 = vsel %vm2379, %v2446, %v2450
      %v2452 = vrot.slane %v1772, 2
      %v2453 = vrot.slane %v1775, 3
      %v2454 = vor.u32 %v2452, %v2453
      %v2455 = vsel %vm2379, %v2450, %v2454
      %v2457 = vshrl.u32 %v2378, 16
      %v2459 = vrot.slane %v2457, 2
      %v2460 = vshll.u32 %v2378, 16
      %v2462 = vrot.slane %v2460, 3
      %v2463 = vor.u32 %v2459, %v2462
      %v2464 = vsel %vm2379, %v2454, %v2463
      %v2466 = vsel %vm500, %v2391, 0
      %v2469 = vsel %vm500, %v2395, 0
      %v2472 = vsel %vm500, %v2399, 0
      %v2475 = vsel %vm500, %v2403, 0
      %v2478 = vsel %vm500, %v2407, 0
      %v2481 = vsel %vm500, %v2411, 0
      %v2484 = vsel %vm500, %v2415, 0
      %v2487 = vsel %vm500, %v2419, 0
      %v2490 = vsel %vm500, %v2423, 0
      %v2493 = vsel %vm500, %v2427, 0
      %v2496 = vsel %vm500, %v2431, 0
      %v2499 = vsel %vm500, %v2435, 0
      %v2502 = vsel %vm500, %v2439, 0
      %v2505 = vsel %vm500, %v2443, 0
      %v2508 = vsel %vm500, %v2447, 0
      %v2511 = vsel %vm500, %v2451, 0
      %v2514 = vsel %vm500, %v2455, 0
      %v2517 = vsel %vm500, %v2464, 0
      %v2520 = vand.u32 %v2375, %v558
      %2522 = vmatprep.subr.bf16.mxu0 0
      %2523 = vmatpush1.bf16.msra.mxu0 %v2520
      %2524 = vmatprep.subr.bf16.mxu0 0
      %2525 = vmatpush1.bf16.msra.mxu0 0
      %2526 = vmatprep.subr.bf16.mxu0 0
      %2527 = vmatpush1.bf16.msra.mxu0 0
      %2528 = vmatprep.subr.bf16.mxu0 0
      %2529 = vmatpush1.bf16.msra.mxu0 0
      %2530 = vmatprep.subr.bf16.mxu0 0
      %2531 = vmatpush1.bf16.msra.mxu0 0
      %2532 = vmatprep.subr.bf16.mxu0 0
      %2533 = vmatpush1.bf16.msra.mxu0 0
      %2534 = vmatprep.subr.bf16.mxu0 0
      %2535 = vmatpush1.bf16.msra.mxu0 0
      %2536 = vmatprep.subr.bf16.mxu0 0
      %2537 = vmatpush1.bf16.msra.mxu0 0
      %2538 = vmatprep.subr.bf16.mxu0 0
      %2539 = vmatpush1.bf16.msra.mxu0 0
      %2540 = vmatprep.subr.bf16.mxu0 0
      %2541 = vmatpush1.bf16.msra.mxu0 0
      %2542 = vmatprep.subr.bf16.mxu0 0
      %2543 = vmatpush1.bf16.msra.mxu0 0
      %2544 = vmatprep.subr.bf16.mxu0 0
      %2545 = vmatpush1.bf16.msra.mxu0 0
      %2546 = vmatprep.subr.bf16.mxu0 0
      %2547 = vmatpush1.bf16.msra.mxu0 0
      %2548 = vmatprep.subr.bf16.mxu0 0
      %2549 = vmatpush1.bf16.msra.mxu0 0
      %2550 = vmatprep.subr.bf16.mxu0 0
      %2551 = vmatpush1.bf16.msra.mxu0 0
      %2552 = vmatprep.subr.bf16.mxu0 0
      %2553 = vmatpush1.bf16.msra.mxu0 0
      %2554 = vmatprep.mubr.bf16.mxu0 0
      %2555 = vmatmul.mubr.bf16.gmra.mrb[0].mxu0 %v2466
      %v2556 = vpop.f32.mrb[0].mxu0
      %v2557 = vadd.f32 0.0, %v2556
      %v2558 = vpop.f32.mrb[0].mxu0
      %v2559 = vpop.f32.mrb[0].mxu0
      %v2560 = vadd.f32 0.0, %v2559
      %v2561 = vpop.f32.mrb[0].mxu0
      %2562 = vmatprep.mubr.bf16.mxu0 0
      %2563 = vmatmul.mubr.bf16.gmra.mrb[0].mxu0 %v2469
      %v2564 = vpop.f32.mrb[0].mxu0
      %v2565 = vadd.f32 0.0, %v2564
      %v2566 = vpop.f32.mrb[0].mxu0
      %v2567 = vpop.f32.mrb[0].mxu0
      %v2568 = vadd.f32 0.0, %v2567
      %v2569 = vpop.f32.mrb[0].mxu0
      %2570 = vmatprep.mubr.bf16.mxu0 0
      %2571 = vmatmul.mubr.bf16.gmra.mrb[0].mxu0 %v2472
      %v2572 = vpop.f32.mrb[0].mxu0
      %v2573 = vadd.f32 0.0, %v2572
      %v2574 = vpop.f32.mrb[0].mxu0
      %v2575 = vpop.f32.mrb[0].mxu0
      %v2576 = vadd.f32 0.0, %v2575
      %v2577 = vpop.f32.mrb[0].mxu0
      %2578 = vmatprep.mubr.bf16.mxu0 0
      %2579 = vmatmul.mubr.bf16.gmra.mrb[0].mxu0 %v2475
      %v2580 = vpop.f32.mrb[0].mxu0
      %v2581 = vadd.f32 0.0, %v2580
      %v2582 = vpop.f32.mrb[0].mxu0
      %v2583 = vpop.f32.mrb[0].mxu0
      %v2584 = vadd.f32 0.0, %v2583
      %v2585 = vpop.f32.mrb[0].mxu0
      %2586 = vmatprep.mubr.bf16.mxu0 0
      %2587 = vmatmul.mubr.bf16.gmra.mrb[0].mxu0 %v2478
      %v2588 = vpop.f32.mrb[0].mxu0
      %v2589 = vadd.f32 0.0, %v2588
      %v2590 = vpop.f32.mrb[0].mxu0
      %v2591 = vpop.f32.mrb[0].mxu0
      %v2592 = vadd.f32 0.0, %v2591
      %v2593 = vpop.f32.mrb[0].mxu0
      %2594 = vmatprep.mubr.bf16.mxu0 0
      %2595 = vmatmul.mubr.bf16.gmra.mrb[0].mxu0 %v2481
      %v2596 = vpop.f32.mrb[0].mxu0
      %v2597 = vadd.f32 0.0, %v2596
      %v2598 = vpop.f32.mrb[0].mxu0
      %v2599 = vpop.f32.mrb[0].mxu0
      %v2600 = vadd.f32 0.0, %v2599
      %v2601 = vpop.f32.mrb[0].mxu0
      %2602 = vmatprep.mubr.bf16.mxu0 0
      %2603 = vmatmul.mubr.bf16.gmra.mrb[0].mxu0 %v2484
      %v2604 = vpop.f32.mrb[0].mxu0
      %v2605 = vadd.f32 0.0, %v2604
      %v2606 = vpop.f32.mrb[0].mxu0
      %v2607 = vpop.f32.mrb[0].mxu0
      %v2608 = vadd.f32 0.0, %v2607
      %v2609 = vpop.f32.mrb[0].mxu0
      %2610 = vmatprep.mubr.bf16.mxu0 0
      %2611 = vmatmul.mubr.bf16.gmra.mrb[0].mxu0 %v2487
      %v2612 = vpop.f32.mrb[0].mxu0
      %v2613 = vadd.f32 0.0, %v2612
      %v2614 = vpop.f32.mrb[0].mxu0
      %v2615 = vpop.f32.mrb[0].mxu0
      %v2616 = vadd.f32 0.0, %v2615
      %v2617 = vpop.f32.mrb[0].mxu0
      %2618 = vmatprep.mubr.bf16.mxu0 0
      %2619 = vmatmul.mubr.bf16.gmra.mrb[0].mxu0 %v2490
      %v2620 = vpop.f32.mrb[0].mxu0
      %v2621 = vadd.f32 0.0, %v2620
      %v2622 = vpop.f32.mrb[0].mxu0
      %v2623 = vpop.f32.mrb[0].mxu0
      %v2624 = vadd.f32 0.0, %v2623
      %v2625 = vpop.f32.mrb[0].mxu0
      %2626 = vmatprep.mubr.bf16.mxu0 0
      %2627 = vmatmul.mubr.bf16.gmra.mrb[0].mxu0 %v2493
      %v2628 = vpop.f32.mrb[0].mxu0
      %v2629 = vadd.f32 0.0, %v2628
      %v2630 = vpop.f32.mrb[0].mxu0
      %v2631 = vpop.f32.mrb[0].mxu0
      %v2632 = vadd.f32 0.0, %v2631
      %v2633 = vpop.f32.mrb[0].mxu0
      %2634 = vmatprep.mubr.bf16.mxu0 0
      %2635 = vmatmul.mubr.bf16.gmra.mrb[0].mxu0 %v2496
      %v2636 = vpop.f32.mrb[0].mxu0
      %v2637 = vadd.f32 0.0, %v2636
      %v2638 = vpop.f32.mrb[0].mxu0
      %v2639 = vpop.f32.mrb[0].mxu0
      %v2640 = vadd.f32 0.0, %v2639
      %v2641 = vpop.f32.mrb[0].mxu0
      %2642 = vmatprep.mubr.bf16.mxu0 0
      %2643 = vmatmul.mubr.bf16.gmra.mrb[0].mxu0 %v2499
      %v2644 = vpop.f32.mrb[0].mxu0
      %v2645 = vadd.f32 0.0, %v2644
      %v2646 = vpop.f32.mrb[0].mxu0
      %v2647 = vpop.f32.mrb[0].mxu0
      %v2648 = vadd.f32 0.0, %v2647
      %v2649 = vpop.f32.mrb[0].mxu0
      %2650 = vmatprep.mubr.bf16.mxu0 0
      %2651 = vmatmul.mubr.bf16.gmra.mrb[0].mxu0 %v2502
      %v2652 = vpop.f32.mrb[0].mxu0
      %v2653 = vadd.f32 0.0, %v2652
      %v2654 = vpop.f32.mrb[0].mxu0
      %v2655 = vpop.f32.mrb[0].mxu0
      %v2656 = vadd.f32 0.0, %v2655
      %v2657 = vpop.f32.mrb[0].mxu0
      %2658 = vmatprep.mubr.bf16.mxu0 0
      %2659 = vmatmul.mubr.bf16.gmra.mrb[0].mxu0 %v2505
      %v2660 = vpop.f32.mrb[0].mxu0
      %v2661 = vadd.f32 0.0, %v2660
      %v2662 = vpop.f32.mrb[0].mxu0
      %v2663 = vpop.f32.mrb[0].mxu0
      %v2664 = vadd.f32 0.0, %v2663
      %v2665 = vpop.f32.mrb[0].mxu0
      %2666 = vmatprep.mubr.bf16.mxu0 0
      %2667 = vmatmul.mubr.bf16.gmra.mrb[0].mxu0 %v2508
      %v2668 = vpop.f32.mrb[0].mxu0
      %v2669 = vadd.f32 0.0, %v2668
      %v2670 = vpop.f32.mrb[0].mxu0
      %v2671 = vpop.f32.mrb[0].mxu0
      %v2672 = vadd.f32 0.0, %v2671
      %v2673 = vpop.f32.mrb[0].mxu0
      %2674 = vmatprep.mubr.bf16.mxu0 0
      %2675 = vmatmul.mubr.bf16.gmra.mrb[0].mxu0 %v2511
      %v2676 = vpop.f32.mrb[0].mxu0
      %v2677 = vadd.f32 0.0, %v2676
      %v2678 = vpop.f32.mrb[0].mxu0
      %v2679 = vpop.f32.mrb[0].mxu0
      %v2680 = vadd.f32 0.0, %v2679
      %v2681 = vpop.f32.mrb[0].mxu0
      %2682 = vmatprep.mubr.bf16.mxu0 0
      %2683 = vmatmul.mubr.bf16.gmra.mrb[0].mxu0 %v2514
      %v2684 = vpop.f32.mrb[0].mxu0
      %v2685 = vadd.f32 0.0, %v2684
      %v2686 = vpop.f32.mrb[0].mxu0
      %v2687 = vpop.f32.mrb[0].mxu0
      %v2688 = vadd.f32 0.0, %v2687
      %v2689 = vpop.f32.mrb[0].mxu0
      %2690 = vmatprep.mubr.bf16.mxu0 0
      %2691 = vmatmul.mubr.bf16.gmra.mrb[0].mxu0 %v2517
      %v2692 = vpop.f32.mrb[0].mxu0
      %v2693 = vadd.f32 0.0, %v2692
      %v2694 = vpop.f32.mrb[0].mxu0
      %v2695 = vpop.f32.mrb[0].mxu0
      %v2696 = vadd.f32 0.0, %v2695
      %v2697 = vpop.f32.mrb[0].mxu0
      %2698 = vdwg.mxu0
      %v2699 = vadd.f32 %v2337, %v2557
      %v2700 = vadd.f32 %v2338, %v2560
      %v2701 = vadd.f32 %v2339, %v2565
      %v2702 = vadd.f32 %v2340, %v2568
      %v2703 = vadd.f32 %v2341, %v2573
      %v2704 = vadd.f32 %v2342, %v2576
      %v2705 = vadd.f32 %v2343, %v2581
      %v2706 = vadd.f32 %v2344, %v2584
      %v2707 = vadd.f32 %v2345, %v2589
      %v2708 = vadd.f32 %v2346, %v2592
      %v2709 = vadd.f32 %v2347, %v2597
      %v2710 = vadd.f32 %v2348, %v2600
      %v2711 = vadd.f32 %v2349, %v2605
      %v2712 = vadd.f32 %v2350, %v2608
      %v2713 = vadd.f32 %v2351, %v2613
      %v2714 = vadd.f32 %v2352, %v2616
      %v2715 = vadd.f32 %v2353, %v2621
      %v2716 = vadd.f32 %v2354, %v2624
      %v2717 = vadd.f32 %v2355, %v2629
      %v2718 = vadd.f32 %v2356, %v2632
      %v2719 = vadd.f32 %v2357, %v2637
      %v2720 = vadd.f32 %v2358, %v2640
      %v2721 = vadd.f32 %v2359, %v2645
      %v2722 = vadd.f32 %v2360, %v2648
      %v2723 = vadd.f32 %v2361, %v2653
      %v2724 = vadd.f32 %v2362, %v2656
      %v2725 = vadd.f32 %v2363, %v2661
      %v2726 = vadd.f32 %v2364, %v2664
      %v2727 = vadd.f32 %v2365, %v2669
      %v2728 = vadd.f32 %v2366, %v2672
      %v2729 = vadd.f32 %v2367, %v2677
      %v2730 = vadd.f32 %v2368, %v2680
      %v2731 = vadd.f32 %v2369, %v2685
      %v2732 = vadd.f32 %v2370, %v2688
      %v2733 = vadd.f32 %v2371, %v2693
      %v2734 = vadd.f32 %v2372, %v2696
      %v2735 = vld [vmem:[%s294 + $0x18] sm:$0xc]
      %v2736 = vld [vmem:[%s294 + $0x1c] sm:$0xf]
      %v2737 = vld [vmem:[%s294 + $0x20] sm:$0xf]
      %v2738 = vld [vmem:[%s294 + $0x24] sm:$0xf]
      %v2739 = vld [vmem:[%s294 + $0x28] sm:$0xf]
      %v2740 = vld [vmem:[%s294 + $0x2c] sm:$0xf]
      %v2741 = vld [vmem:[%s294 + $0x30] sm:$0xf]
      %v2742 = vld [vmem:[%s294 + $0x34] sm:$0xf]
      %v2743 = vld [vmem:[%s294 + $0x38] sm:$0xf]
      %v2744 = vld [vmem:[%s294 + $0x3c] sm:$0xf]
      %v2745 = vld [vmem:[%s294 + $0x40] sm:$0xf]
      %v2746 = vld [vmem:[%s294 + $0x44] sm:$0xf]
      %v2747 = vld [vmem:[%s294 + $0x48] sm:$0xf]
      %v2748 = vld [vmem:[%s294 + $0x4c] sm:$0xf]
      %v2749 = vld [vmem:[%s294 + $0x50] sm:$0xf]
      %v2750 = vld [vmem:[%s294 + $0x54] sm:$0xf]
      %v2751 = vld [vmem:[%s294 + $0x58] sm:$0xf]
      %v2752 = vld [vmem:[%s294 + $0x5c] sm:$0xf]
      %v2753 = vld [vmem:[%s294 + $0x60] sm:$0xf]
      %v2754 = vld [vmem:[%s294 + $0x64] sm:$0xf]
      %v2755 = vld [vmem:[%s294 + $0x68] sm:$0xf]
      %v2756 = vld [vmem:[%s294 + $0x6c] sm:$0xf]
      %v2757 = vld [vmem:[%s294 + $0x70] sm:$0xf]
      %v2758 = vld [vmem:[%s294 + $0x74] sm:$0xf]
      %v2759 = vld [vmem:[%s294 + $0x78] sm:$0xf]
      %v2760 = vld [vmem:[%s294 + $0x7c] sm:$0xf]
      %v2761 = vld [vmem:[%s294 + $0x80] sm:$0xf]
      %v2762 = vld [vmem:[%s294 + $0x84] sm:$0xf]
      %v2763 = vld [vmem:[%s294 + $0x88] sm:$0xf]
      %v2764 = vld [vmem:[%s294 + $0x8c] sm:$0xf]
      %v2765 = vld [vmem:[%s294 + $0x90] sm:$0xf]
      %v2766 = vld [vmem:[%s294 + $0x94] sm:$0xf]
      %v2767 = vld [vmem:[%s294 + $0x98] sm:$0xf]
      %v2768 = vld [vmem:[%s294 + $0x9c] sm:$0xf]
      %v2769 = vld [vmem:[%s294 + $0xa0] sm:$0xf]
      %v2770 = vld [vmem:[%s294 + $0xa4] sm:$0xf]
      %v2771 = vld [vmem:[%s294 + $0xa8] sm:$0x7]
      %s2772 = scalar_lea.vmem %s298, 12
      %v2773 = vld [vmem:[%s2772] sm:$0x3]
      %v2811 = vunpack.c.l.b16 %v2735
      %v2812 = vunpack.c.l.b16 %v2736
      %v2813 = vunpack.c.l.b16 %v2737
      %v2814 = vunpack.c.l.b16 %v2738
      %v2815 = vunpack.c.l.b16 %v2739
      %v2816 = vunpack.c.l.b16 %v2740
      %v2817 = vunpack.c.l.b16 %v2741
      %v2818 = vunpack.c.l.b16 %v2742
      %v2819 = vunpack.c.l.b16 %v2743
      %v2820 = vunpack.c.l.b16 %v2744
      %v2821 = vunpack.c.l.b16 %v2745
      %v2822 = vunpack.c.l.b16 %v2746
      %v2823 = vunpack.c.l.b16 %v2747
      %v2824 = vunpack.c.l.b16 %v2748
      %v2825 = vunpack.c.l.b16 %v2749
      %v2826 = vunpack.c.l.b16 %v2750
      %v2827 = vunpack.c.l.b16 %v2751
      %v2828 = vunpack.c.l.b16 %v2752
      %v2829 = vunpack.c.l.b16 %v2753
      %v2830 = vunpack.c.l.b16 %v2754
      %v2831 = vunpack.c.l.b16 %v2755
      %v2832 = vunpack.c.l.b16 %v2756
      %v2833 = vunpack.c.l.b16 %v2757
      %v2834 = vunpack.c.l.b16 %v2758
      %v2835 = vunpack.c.l.b16 %v2759
      %v2836 = vunpack.c.l.b16 %v2760
      %v2837 = vunpack.c.l.b16 %v2761
      %v2838 = vunpack.c.l.b16 %v2762
      %v2839 = vunpack.c.l.b16 %v2763
      %v2840 = vunpack.c.l.b16 %v2764
      %v2841 = vunpack.c.l.b16 %v2765
      %v2842 = vunpack.c.l.b16 %v2766
      %v2843 = vunpack.c.l.b16 %v2767
      %v2844 = vunpack.c.l.b16 %v2768
      %v2845 = vunpack.c.l.b16 %v2769
      %v2846 = vunpack.c.l.b16 %v2770
      %v2847 = vunpack.c.l.b16 %v2771
      %v2848 = vpack.c.b16 %v2812, %v2811
      %v2849 = vpack.c.b16 %v2814, %v2813
      %v2850 = vpack.c.b16 %v2816, %v2815
      %v2851 = vpack.c.b16 %v2818, %v2817
      %v2852 = vpack.c.b16 %v2820, %v2819
      %v2853 = vpack.c.b16 %v2822, %v2821
      %v2854 = vpack.c.b16 %v2824, %v2823
      %v2855 = vpack.c.b16 %v2826, %v2825
      %v2856 = vpack.c.b16 %v2828, %v2827
      %v2857 = vpack.c.b16 %v2830, %v2829
      %v2858 = vpack.c.b16 %v2832, %v2831
      %v2859 = vpack.c.b16 %v2834, %v2833
      %v2860 = vpack.c.b16 %v2836, %v2835
      %v2861 = vpack.c.b16 %v2838, %v2837
      %v2862 = vpack.c.b16 %v2840, %v2839
      %v2863 = vpack.c.b16 %v2842, %v2841
      %v2864 = vpack.c.b16 %v2844, %v2843
      %v2865 = vpack.c.b16 %v2846, %v2845
      %v2866 = vpack.c.b16 %v2847, %v2847
      %v2868 = vshrl.u32 %v2848, 16
      %v2870 = vrot.slane %v2868, 2
      %v2871 = vshll.u32 %v2848, 16
      %v2873 = vrot.slane %v2871, 3
      %v2874 = vor.u32 %v2870, %v2873
      %v2876 = vshrl.u32 %v2849, 16
      %v2878 = vrot.slane %v2876, 2
      %v2879 = vshll.u32 %v2849, 16
      %v2881 = vrot.slane %v2879, 3
      %v2882 = vor.u32 %v2878, %v2881
      %v2883 = vsel %vm2379, %v2874, %v2882
      %v2885 = vshrl.u32 %v2850, 16
      %v2887 = vrot.slane %v2885, 2
      %v2888 = vshll.u32 %v2850, 16
      %v2890 = vrot.slane %v2888, 3
      %v2891 = vor.u32 %v2887, %v2890
      %v2892 = vsel %vm2379, %v2882, %v2891
      %v2894 = vshrl.u32 %v2851, 16
      %v2896 = vrot.slane %v2894, 2
      %v2897 = vshll.u32 %v2851, 16
      %v2899 = vrot.slane %v2897, 3
      %v2900 = vor.u32 %v2896, %v2899
      %v2901 = vsel %vm2379, %v2891, %v2900
      %v2903 = vshrl.u32 %v2852, 16
      %v2905 = vrot.slane %v2903, 2
      %v2906 = vshll.u32 %v2852, 16
      %v2908 = vrot.slane %v2906, 3
      %v2909 = vor.u32 %v2905, %v2908
      %v2910 = vsel %vm2379, %v2900, %v2909
      %v2912 = vshrl.u32 %v2853, 16
      %v2914 = vrot.slane %v2912, 2
      %v2915 = vshll.u32 %v2853, 16
      %v2917 = vrot.slane %v2915, 3
      %v2918 = vor.u32 %v2914, %v2917
      %v2919 = vsel %vm2379, %v2909, %v2918
      %v2921 = vshrl.u32 %v2854, 16
      %v2923 = vrot.slane %v2921, 2
      %v2924 = vshll.u32 %v2854, 16
      %v2926 = vrot.slane %v2924, 3
      %v2927 = vor.u32 %v2923, %v2926
      %v2928 = vsel %vm2379, %v2918, %v2927
      %v2930 = vshrl.u32 %v2855, 16
      %v2932 = vrot.slane %v2930, 2
      %v2933 = vshll.u32 %v2855, 16
      %v2935 = vrot.slane %v2933, 3
      %v2936 = vor.u32 %v2932, %v2935
      %v2937 = vsel %vm2379, %v2927, %v2936
      %v2939 = vshrl.u32 %v2856, 16
      %v2941 = vrot.slane %v2939, 2
      %v2942 = vshll.u32 %v2856, 16
      %v2944 = vrot.slane %v2942, 3
      %v2945 = vor.u32 %v2941, %v2944
      %v2946 = vsel %vm2379, %v2936, %v2945
      %v2948 = vshrl.u32 %v2857, 16
      %v2950 = vrot.slane %v2948, 2
      %v2951 = vshll.u32 %v2857, 16
      %v2953 = vrot.slane %v2951, 3
      %v2954 = vor.u32 %v2950, %v2953
      %v2955 = vsel %vm2379, %v2945, %v2954
      %v2957 = vshrl.u32 %v2858, 16
      %v2959 = vrot.slane %v2957, 2
      %v2960 = vshll.u32 %v2858, 16
      %v2962 = vrot.slane %v2960, 3
      %v2963 = vor.u32 %v2959, %v2962
      %v2964 = vsel %vm2379, %v2954, %v2963
      %v2966 = vshrl.u32 %v2859, 16
      %v2968 = vrot.slane %v2966, 2
      %v2969 = vshll.u32 %v2859, 16
      %v2971 = vrot.slane %v2969, 3
      %v2972 = vor.u32 %v2968, %v2971
      %v2973 = vsel %vm2379, %v2963, %v2972
      %v2975 = vshrl.u32 %v2860, 16
      %v2977 = vrot.slane %v2975, 2
      %v2978 = vshll.u32 %v2860, 16
      %v2980 = vrot.slane %v2978, 3
      %v2981 = vor.u32 %v2977, %v2980
      %v2982 = vsel %vm2379, %v2972, %v2981
      %v2984 = vshrl.u32 %v2861, 16
      %v2986 = vrot.slane %v2984, 2
      %v2987 = vshll.u32 %v2861, 16
      %v2989 = vrot.slane %v2987, 3
      %v2990 = vor.u32 %v2986, %v2989
      %v2991 = vsel %vm2379, %v2981, %v2990
      %v2993 = vshrl.u32 %v2862, 16
      %v2995 = vrot.slane %v2993, 2
      %v2996 = vshll.u32 %v2862, 16
      %v2998 = vrot.slane %v2996, 3
      %v2999 = vor.u32 %v2995, %v2998
      %v3000 = vsel %vm2379, %v2990, %v2999
      %v3002 = vshrl.u32 %v2863, 16
      %v3004 = vrot.slane %v3002, 2
      %v3005 = vshll.u32 %v2863, 16
      %v3007 = vrot.slane %v3005, 3
      %v3008 = vor.u32 %v3004, %v3007
      %v3009 = vsel %vm2379, %v2999, %v3008
      %v3011 = vshrl.u32 %v2864, 16
      %v3013 = vrot.slane %v3011, 2
      %v3014 = vshll.u32 %v2864, 16
      %v3016 = vrot.slane %v3014, 3
      %v3017 = vor.u32 %v3013, %v3016
      %v3018 = vsel %vm2379, %v3008, %v3017
      %v3020 = vshrl.u32 %v2865, 16
      %v3022 = vrot.slane %v3020, 2
      %v3023 = vshll.u32 %v2865, 16
      %v3025 = vrot.slane %v3023, 3
      %v3026 = vor.u32 %v3022, %v3025
      %v3027 = vsel %vm2379, %v3017, %v3026
      %v3029 = vshrl.u32 %v2866, 16
      %v3031 = vrot.slane %v3029, 2
      %v3032 = vshll.u32 %v2866, 16
      %v3034 = vrot.slane %v3032, 3
      %v3035 = vor.u32 %v3031, %v3034
      %v3036 = vsel %vm2379, %v3026, %v3035
      %v3038 = vsel %vm500, %v2883, 0
      %v3041 = vsel %vm500, %v2892, 0
      %v3044 = vsel %vm500, %v2901, 0
      %v3047 = vsel %vm500, %v2910, 0
      %v3050 = vsel %vm500, %v2919, 0
      %v3053 = vsel %vm500, %v2928, 0
      %v3056 = vsel %vm500, %v2937, 0
      %v3059 = vsel %vm500, %v2946, 0
      %v3062 = vsel %vm500, %v2955, 0
      %v3065 = vsel %vm500, %v2964, 0
      %v3068 = vsel %vm500, %v2973, 0
      %v3071 = vsel %vm500, %v2982, 0
      %v3074 = vsel %vm500, %v2991, 0
      %v3077 = vsel %vm500, %v3000, 0
      %v3080 = vsel %vm500, %v3009, 0
      %v3083 = vsel %vm500, %v3018, 0
      %v3086 = vsel %vm500, %v3027, 0
      %v3089 = vsel %vm500, %v3036, 0
      %v3092 = vand.u32 %v2773, %v558
      %3094 = vmatprep.subr.bf16.mxu0 0
      %3095 = vmatpush1.bf16.msra.mxu0 %v3092
      %3096 = vmatprep.subr.bf16.mxu0 0
      %3097 = vmatpush1.bf16.msra.mxu0 0
      %3098 = vmatprep.subr.bf16.mxu0 0
      %3099 = vmatpush1.bf16.msra.mxu0 0
      %3100 = vmatprep.subr.bf16.mxu0 0
      %3101 = vmatpush1.bf16.msra.mxu0 0
      %3102 = vmatprep.subr.bf16.mxu0 0
      %3103 = vmatpush1.bf16.msra.mxu0 0
      %3104 = vmatprep.subr.bf16.mxu0 0
      %3105 = vmatpush1.bf16.msra.mxu0 0
      %3106 = vmatprep.subr.bf16.mxu0 0
      %3107 = vmatpush1.bf16.msra.mxu0 0
      %3108 = vmatprep.subr.bf16.mxu0 0
      %3109 = vmatpush1.bf16.msra.mxu0 0
      %3110 = vmatprep.subr.bf16.mxu0 0
      %3111 = vmatpush1.bf16.msra.mxu0 0
      %3112 = vmatprep.subr.bf16.mxu0 0
      %3113 = vmatpush1.bf16.msra.mxu0 0
      %3114 = vmatprep.subr.bf16.mxu0 0
      %3115 = vmatpush1.bf16.msra.mxu0 0
      %3116 = vmatprep.subr.bf16.mxu0 0
      %3117 = vmatpush1.bf16.msra.mxu0 0
      %3118 = vmatprep.subr.bf16.mxu0 0
      %3119 = vmatpush1.bf16.msra.mxu0 0
      %3120 = vmatprep.subr.bf16.mxu0 0
      %3121 = vmatpush1.bf16.msra.mxu0 0
      %3122 = vmatprep.subr.bf16.mxu0 0
      %3123 = vmatpush1.bf16.msra.mxu0 0
      %3124 = vmatprep.subr.bf16.mxu0 0
      %3125 = vmatpush1.bf16.msra.mxu0 0
      %3126 = vmatprep.mubr.bf16.mxu0 0
      %3127 = vmatmul.mubr.bf16.gmra.mrb[0].mxu0 %v3038
      %v3128 = vpop.f32.mrb[0].mxu0
      %v3129 = vadd.f32 0.0, %v3128
      %v3130 = vpop.f32.mrb[0].mxu0
      %v3131 = vpop.f32.mrb[0].mxu0
      %v3132 = vadd.f32 0.0, %v3131
      %v3133 = vpop.f32.mrb[0].mxu0
      %3134 = vmatprep.mubr.bf16.mxu0 0
      %3135 = vmatmul.mubr.bf16.gmra.mrb[0].mxu0 %v3041
      %v3136 = vpop.f32.mrb[0].mxu0
      %v3137 = vadd.f32 0.0, %v3136
      %v3138 = vpop.f32.mrb[0].mxu0
      %v3139 = vpop.f32.mrb[0].mxu0
      %v3140 = vadd.f32 0.0, %v3139
      %v3141 = vpop.f32.mrb[0].mxu0
      %3142 = vmatprep.mubr.bf16.mxu0 0
      %3143 = vmatmul.mubr.bf16.gmra.mrb[0].mxu0 %v3044
      %v3144 = vpop.f32.mrb[0].mxu0
      %v3145 = vadd.f32 0.0, %v3144
      %v3146 = vpop.f32.mrb[0].mxu0
      %v3147 = vpop.f32.mrb[0].mxu0
      %v3148 = vadd.f32 0.0, %v3147
      %v3149 = vpop.f32.mrb[0].mxu0
      %3150 = vmatprep.mubr.bf16.mxu0 0
      %3151 = vmatmul.mubr.bf16.gmra.mrb[0].mxu0 %v3047
      %v3152 = vpop.f32.mrb[0].mxu0
      %v3153 = vadd.f32 0.0, %v3152
      %v3154 = vpop.f32.mrb[0].mxu0
      %v3155 = vpop.f32.mrb[0].mxu0
      %v3156 = vadd.f32 0.0, %v3155
      %v3157 = vpop.f32.mrb[0].mxu0
      %3158 = vmatprep.mubr.bf16.mxu0 0
      %3159 = vmatmul.mubr.bf16.gmra.mrb[0].mxu0 %v3050
      %v3160 = vpop.f32.mrb[0].mxu0
      %v3161 = vadd.f32 0.0, %v3160
      %v3162 = vpop.f32.mrb[0].mxu0
      %v3163 = vpop.f32.mrb[0].mxu0
      %v3164 = vadd.f32 0.0, %v3163
      %v3165 = vpop.f32.mrb[0].mxu0
      %3166 = vmatprep.mubr.bf16.mxu0 0
      %3167 = vmatmul.mubr.bf16.gmra.mrb[0].mxu0 %v3053
      %v3168 = vpop.f32.mrb[0].mxu0
      %v3169 = vadd.f32 0.0, %v3168
      %v3170 = vpop.f32.mrb[0].mxu0
      %v3171 = vpop.f32.mrb[0].mxu0
      %v3172 = vadd.f32 0.0, %v3171
      %v3173 = vpop.f32.mrb[0].mxu0
      %3174 = vmatprep.mubr.bf16.mxu0 0
      %3175 = vmatmul.mubr.bf16.gmra.mrb[0].mxu0 %v3056
      %v3176 = vpop.f32.mrb[0].mxu0
      %v3177 = vadd.f32 0.0, %v3176
      %v3178 = vpop.f32.mrb[0].mxu0
      %v3179 = vpop.f32.mrb[0].mxu0
      %v3180 = vadd.f32 0.0, %v3179
      %v3181 = vpop.f32.mrb[0].mxu0
      %3182 = vmatprep.mubr.bf16.mxu0 0
      %3183 = vmatmul.mubr.bf16.gmra.mrb[0].mxu0 %v3059
      %v3184 = vpop.f32.mrb[0].mxu0
      %v3185 = vadd.f32 0.0, %v3184
      %v3186 = vpop.f32.mrb[0].mxu0
      %v3187 = vpop.f32.mrb[0].mxu0
      %v3188 = vadd.f32 0.0, %v3187
      %v3189 = vpop.f32.mrb[0].mxu0
      %3190 = vmatprep.mubr.bf16.mxu0 0
      %3191 = vmatmul.mubr.bf16.gmra.mrb[0].mxu0 %v3062
      %v3192 = vpop.f32.mrb[0].mxu0
      %v3193 = vadd.f32 0.0, %v3192
      %v3194 = vpop.f32.mrb[0].mxu0
      %v3195 = vpop.f32.mrb[0].mxu0
      %v3196 = vadd.f32 0.0, %v3195
      %v3197 = vpop.f32.mrb[0].mxu0
      %3198 = vmatprep.mubr.bf16.mxu0 0
      %3199 = vmatmul.mubr.bf16.gmra.mrb[0].mxu0 %v3065
      %v3200 = vpop.f32.mrb[0].mxu0
      %v3201 = vadd.f32 0.0, %v3200
      %v3202 = vpop.f32.mrb[0].mxu0
      %v3203 = vpop.f32.mrb[0].mxu0
      %v3204 = vadd.f32 0.0, %v3203
      %v3205 = vpop.f32.mrb[0].mxu0
      %3206 = vmatprep.mubr.bf16.mxu0 0
      %3207 = vmatmul.mubr.bf16.gmra.mrb[0].mxu0 %v3068
      %v3208 = vpop.f32.mrb[0].mxu0
      %v3209 = vadd.f32 0.0, %v3208
      %v3210 = vpop.f32.mrb[0].mxu0
      %v3211 = vpop.f32.mrb[0].mxu0
      %v3212 = vadd.f32 0.0, %v3211
      %v3213 = vpop.f32.mrb[0].mxu0
      %3214 = vmatprep.mubr.bf16.mxu0 0
      %3215 = vmatmul.mubr.bf16.gmra.mrb[0].mxu0 %v3071
      %v3216 = vpop.f32.mrb[0].mxu0
      %v3217 = vadd.f32 0.0, %v3216
      %v3218 = vpop.f32.mrb[0].mxu0
      %v3219 = vpop.f32.mrb[0].mxu0
      %v3220 = vadd.f32 0.0, %v3219
      %v3221 = vpop.f32.mrb[0].mxu0
      %3222 = vmatprep.mubr.bf16.mxu0 0
      %3223 = vmatmul.mubr.bf16.gmra.mrb[0].mxu0 %v3074
      %v3224 = vpop.f32.mrb[0].mxu0
      %v3225 = vadd.f32 0.0, %v3224
      %v3226 = vpop.f32.mrb[0].mxu0
      %v3227 = vpop.f32.mrb[0].mxu0
      %v3228 = vadd.f32 0.0, %v3227
      %v3229 = vpop.f32.mrb[0].mxu0
      %3230 = vmatprep.mubr.bf16.mxu0 0
      %3231 = vmatmul.mubr.bf16.gmra.mrb[0].mxu0 %v3077
      %v3232 = vpop.f32.mrb[0].mxu0
      %v3233 = vadd.f32 0.0, %v3232
      %v3234 = vpop.f32.mrb[0].mxu0
      %v3235 = vpop.f32.mrb[0].mxu0
      %v3236 = vadd.f32 0.0, %v3235
      %v3237 = vpop.f32.mrb[0].mxu0
      %3238 = vmatprep.mubr.bf16.mxu0 0
      %3239 = vmatmul.mubr.bf16.gmra.mrb[0].mxu0 %v3080
      %v3240 = vpop.f32.mrb[0].mxu0
      %v3241 = vadd.f32 0.0, %v3240
      %v3242 = vpop.f32.mrb[0].mxu0
      %v3243 = vpop.f32.mrb[0].mxu0
      %v3244 = vadd.f32 0.0, %v3243
      %v3245 = vpop.f32.mrb[0].mxu0
      %3246 = vmatprep.mubr.bf16.mxu0 0
      %3247 = vmatmul.mubr.bf16.gmra.mrb[0].mxu0 %v3083
      %v3248 = vpop.f32.mrb[0].mxu0
      %v3249 = vadd.f32 0.0, %v3248
      %v3250 = vpop.f32.mrb[0].mxu0
      %v3251 = vpop.f32.mrb[0].mxu0
      %v3252 = vadd.f32 0.0, %v3251
      %v3253 = vpop.f32.mrb[0].mxu0
      %3254 = vmatprep.mubr.bf16.mxu0 0
      %3255 = vmatmul.mubr.bf16.gmra.mrb[0].mxu0 %v3086
      %v3256 = vpop.f32.mrb[0].mxu0
      %v3257 = vadd.f32 0.0, %v3256
      %v3258 = vpop.f32.mrb[0].mxu0
      %v3259 = vpop.f32.mrb[0].mxu0
      %v3260 = vadd.f32 0.0, %v3259
      %v3261 = vpop.f32.mrb[0].mxu0
      %3262 = vmatprep.mubr.bf16.mxu0 0
      %3263 = vmatmul.mubr.bf16.gmra.mrb[0].mxu0 %v3089
      %v3264 = vpop.f32.mrb[0].mxu0
      %v3265 = vadd.f32 0.0, %v3264
      %v3266 = vpop.f32.mrb[0].mxu0
      %v3267 = vpop.f32.mrb[0].mxu0
      %v3268 = vadd.f32 0.0, %v3267
      %v3269 = vpop.f32.mrb[0].mxu0
      %3270 = vdwg.mxu0
      %v3271 = vadd.f32 %v2699, %v3129
      %v3272 = vadd.f32 %v2700, %v3132
      %v3273 = vadd.f32 %v2701, %v3137
      %v3274 = vadd.f32 %v2702, %v3140
      %v3275 = vadd.f32 %v2703, %v3145
      %v3276 = vadd.f32 %v2704, %v3148
      %v3277 = vadd.f32 %v2705, %v3153
      %v3278 = vadd.f32 %v2706, %v3156
      %v3279 = vadd.f32 %v2707, %v3161
      %v3280 = vadd.f32 %v2708, %v3164
      %v3281 = vadd.f32 %v2709, %v3169
      %v3282 = vadd.f32 %v2710, %v3172
      %v3283 = vadd.f32 %v2711, %v3177
      %v3284 = vadd.f32 %v2712, %v3180
      %v3285 = vadd.f32 %v2713, %v3185
      %v3286 = vadd.f32 %v2714, %v3188
      %v3287 = vadd.f32 %v2715, %v3193
      %v3288 = vadd.f32 %v2716, %v3196
      %v3289 = vadd.f32 %v2717, %v3201
      %v3290 = vadd.f32 %v2718, %v3204
      %v3291 = vadd.f32 %v2719, %v3209
      %v3292 = vadd.f32 %v2720, %v3212
      %v3293 = vadd.f32 %v2721, %v3217
      %v3294 = vadd.f32 %v2722, %v3220
      %v3295 = vadd.f32 %v2723, %v3225
      %v3296 = vadd.f32 %v2724, %v3228
      %v3297 = vadd.f32 %v2725, %v3233
      %v3298 = vadd.f32 %v2726, %v3236
      %v3299 = vadd.f32 %v2727, %v3241
      %v3300 = vadd.f32 %v2728, %v3244
      %v3301 = vadd.f32 %v2729, %v3249
      %v3302 = vadd.f32 %v2730, %v3252
      %v3303 = vadd.f32 %v2731, %v3257
      %v3304 = vadd.f32 %v2732, %v3260
      %v3305 = vadd.f32 %v2733, %v3265
      %v3306 = vadd.f32 %v2734, %v3268
      %v3307 = vld [vmem:[%s294 + $0x18] sm:$0x8]
      %s3308 = scalar_lea.vmem %s298, 14
      %v3309 = vld [vmem:[%s3308] sm:$0x3]
      %v3311 = vunpack.c.l.b16 %v3307
      %v3312 = vpack.c.b16 %v2812, %v3311
      %vm3313 = vcmask 1044480
      %v3314 = vrot.slane %v3312, 3
      %v3315 = vrot.slane %v2849, 3
      %v3316 = vsel %vm3313, %v3314, %v3315
      %v3317 = vrot.slane %v2850, 3
      %v3318 = vsel %vm3313, %v3315, %v3317
      %v3319 = vrot.slane %v2851, 3
      %v3320 = vsel %vm3313, %v3317, %v3319
      %v3321 = vrot.slane %v2852, 3
      %v3322 = vsel %vm3313, %v3319, %v3321
      %v3323 = vrot.slane %v2853, 3
      %v3324 = vsel %vm3313, %v3321, %v3323
      %v3325 = vrot.slane %v2854, 3
      %v3326 = vsel %vm3313, %v3323, %v3325
      %v3327 = vrot.slane %v2855, 3
      %v3328 = vsel %vm3313, %v3325, %v3327
      %v3329 = vrot.slane %v2856, 3
      %v3330 = vsel %vm3313, %v3327, %v3329
      %v3331 = vrot.slane %v2857, 3
      %v3332 = vsel %vm3313, %v3329, %v3331
      %v3333 = vrot.slane %v2858, 3
      %v3334 = vsel %vm3313, %v3331, %v3333
      %v3335 = vrot.slane %v2859, 3
      %v3336 = vsel %vm3313, %v3333, %v3335
      %v3337 = vrot.slane %v2860, 3
      %v3338 = vsel %vm3313, %v3335, %v3337
      %v3339 = vrot.slane %v2861, 3
      %v3340 = vsel %vm3313, %v3337, %v3339
      %v3341 = vrot.slane %v2862, 3
      %v3342 = vsel %vm3313, %v3339, %v3341
      %v3343 = vrot.slane %v2863, 3
      %v3344 = vsel %vm3313, %v3341, %v3343
      %v3345 = vrot.slane %v2864, 3
      %v3346 = vsel %vm3313, %v3343, %v3345
      %v3347 = vrot.slane %v2865, 3
      %v3348 = vsel %vm3313, %v3345, %v3347
      %v3349 = vrot.slane %v2866, 3
      %v3350 = vsel %vm3313, %v3347, %v3349
      %v3352 = vsel %vm500, %v3316, 0
      %v3355 = vsel %vm500, %v3318, 0
      %v3358 = vsel %vm500, %v3320, 0
      %v3361 = vsel %vm500, %v3322, 0
      %v3364 = vsel %vm500, %v3324, 0
      %v3367 = vsel %vm500, %v3326, 0
      %v3370 = vsel %vm500, %v3328, 0
      %v3373 = vsel %vm500, %v3330, 0
      %v3376 = vsel %vm500, %v3332, 0
      %v3379 = vsel %vm500, %v3334, 0
      %v3382 = vsel %vm500, %v3336, 0
      %v3385 = vsel %vm500, %v3338, 0
      %v3388 = vsel %vm500, %v3340, 0
      %v3391 = vsel %vm500, %v3342, 0
      %v3394 = vsel %vm500, %v3344, 0
      %v3397 = vsel %vm500, %v3346, 0
      %v3400 = vsel %vm500, %v3348, 0
      %v3403 = vsel %vm500, %v3350, 0
      %v3406 = vand.u32 %v3309, %v558
      %3408 = vmatprep.subr.bf16.mxu0 0
      %3409 = vmatpush1.bf16.msra.mxu0 %v3406
      %3410 = vmatprep.subr.bf16.mxu0 0
      %3411 = vmatpush1.bf16.msra.mxu0 0
      %3412 = vmatprep.subr.bf16.mxu0 0
      %3413 = vmatpush1.bf16.msra.mxu0 0
      %3414 = vmatprep.subr.bf16.mxu0 0
      %3415 = vmatpush1.bf16.msra.mxu0 0
      %3416 = vmatprep.subr.bf16.mxu0 0
      %3417 = vmatpush1.bf16.msra.mxu0 0
      %3418 = vmatprep.subr.bf16.mxu0 0
      %3419 = vmatpush1.bf16.msra.mxu0 0
      %3420 = vmatprep.subr.bf16.mxu0 0
      %3421 = vmatpush1.bf16.msra.mxu0 0
      %3422 = vmatprep.subr.bf16.mxu0 0
      %3423 = vmatpush1.bf16.msra.mxu0 0
      %3424 = vmatprep.subr.bf16.mxu0 0
      %3425 = vmatpush1.bf16.msra.mxu0 0
      %3426 = vmatprep.subr.bf16.mxu0 0
      %3427 = vmatpush1.bf16.msra.mxu0 0
      %3428 = vmatprep.subr.bf16.mxu0 0
      %3429 = vmatpush1.bf16.msra.mxu0 0
      %3430 = vmatprep.subr.bf16.mxu0 0
      %3431 = vmatpush1.bf16.msra.mxu0 0
      %3432 = vmatprep.subr.bf16.mxu0 0
      %3433 = vmatpush1.bf16.msra.mxu0 0
      %3434 = vmatprep.subr.bf16.mxu0 0
      %3435 = vmatpush1.bf16.msra.mxu0 0
      %3436 = vmatprep.subr.bf16.mxu0 0
      %3437 = vmatpush1.bf16.msra.mxu0 0
      %3438 = vmatprep.subr.bf16.mxu0 0
      %3439 = vmatpush1.bf16.msra.mxu0 0
      %3440 = vmatprep.mubr.bf16.mxu0 0
      %3441 = vmatmul.mubr.bf16.gmra.mrb[0].mxu0 %v3352
      %v3442 = vpop.f32.mrb[0].mxu0
      %v3443 = vadd.f32 0.0, %v3442
      %v3444 = vpop.f32.mrb[0].mxu0
      %v3445 = vpop.f32.mrb[0].mxu0
      %v3446 = vadd.f32 0.0, %v3445
      %v3447 = vpop.f32.mrb[0].mxu0
      %3448 = vmatprep.mubr.bf16.mxu0 0
      %3449 = vmatmul.mubr.bf16.gmra.mrb[0].mxu0 %v3355
      %v3450 = vpop.f32.mrb[0].mxu0
      %v3451 = vadd.f32 0.0, %v3450
      %v3452 = vpop.f32.mrb[0].mxu0
      %v3453 = vpop.f32.mrb[0].mxu0
      %v3454 = vadd.f32 0.0, %v3453
      %v3455 = vpop.f32.mrb[0].mxu0
      %3456 = vmatprep.mubr.bf16.mxu0 0
      %3457 = vmatmul.mubr.bf16.gmra.mrb[0].mxu0 %v3358
      %v3458 = vpop.f32.mrb[0].mxu0
      %v3459 = vadd.f32 0.0, %v3458
      %v3460 = vpop.f32.mrb[0].mxu0
      %v3461 = vpop.f32.mrb[0].mxu0
      %v3462 = vadd.f32 0.0, %v3461
      %v3463 = vpop.f32.mrb[0].mxu0
      %3464 = vmatprep.mubr.bf16.mxu0 0
      %3465 = vmatmul.mubr.bf16.gmra.mrb[0].mxu0 %v3361
      %v3466 = vpop.f32.mrb[0].mxu0
      %v3467 = vadd.f32 0.0, %v3466
      %v3468 = vpop.f32.mrb[0].mxu0
      %v3469 = vpop.f32.mrb[0].mxu0
      %v3470 = vadd.f32 0.0, %v3469
      %v3471 = vpop.f32.mrb[0].mxu0
      %3472 = vmatprep.mubr.bf16.mxu0 0
      %3473 = vmatmul.mubr.bf16.gmra.mrb[0].mxu0 %v3364
      %v3474 = vpop.f32.mrb[0].mxu0
      %v3475 = vadd.f32 0.0, %v3474
      %v3476 = vpop.f32.mrb[0].mxu0
      %v3477 = vpop.f32.mrb[0].mxu0
      %v3478 = vadd.f32 0.0, %v3477
      %v3479 = vpop.f32.mrb[0].mxu0
      %3480 = vmatprep.mubr.bf16.mxu0 0
      %3481 = vmatmul.mubr.bf16.gmra.mrb[0].mxu0 %v3367
      %v3482 = vpop.f32.mrb[0].mxu0
      %v3483 = vadd.f32 0.0, %v3482
      %v3484 = vpop.f32.mrb[0].mxu0
      %v3485 = vpop.f32.mrb[0].mxu0
      %v3486 = vadd.f32 0.0, %v3485
      %v3487 = vpop.f32.mrb[0].mxu0
      %3488 = vmatprep.mubr.bf16.mxu0 0
      %3489 = vmatmul.mubr.bf16.gmra.mrb[0].mxu0 %v3370
      %v3490 = vpop.f32.mrb[0].mxu0
      %v3491 = vadd.f32 0.0, %v3490
      %v3492 = vpop.f32.mrb[0].mxu0
      %v3493 = vpop.f32.mrb[0].mxu0
      %v3494 = vadd.f32 0.0, %v3493
      %v3495 = vpop.f32.mrb[0].mxu0
      %3496 = vmatprep.mubr.bf16.mxu0 0
      %3497 = vmatmul.mubr.bf16.gmra.mrb[0].mxu0 %v3373
      %v3498 = vpop.f32.mrb[0].mxu0
      %v3499 = vadd.f32 0.0, %v3498
      %v3500 = vpop.f32.mrb[0].mxu0
      %v3501 = vpop.f32.mrb[0].mxu0
      %v3502 = vadd.f32 0.0, %v3501
      %v3503 = vpop.f32.mrb[0].mxu0
      %3504 = vmatprep.mubr.bf16.mxu0 0
      %3505 = vmatmul.mubr.bf16.gmra.mrb[0].mxu0 %v3376
      %v3506 = vpop.f32.mrb[0].mxu0
      %v3507 = vadd.f32 0.0, %v3506
      %v3508 = vpop.f32.mrb[0].mxu0
      %v3509 = vpop.f32.mrb[0].mxu0
      %v3510 = vadd.f32 0.0, %v3509
      %v3511 = vpop.f32.mrb[0].mxu0
      %3512 = vmatprep.mubr.bf16.mxu0 0
      %3513 = vmatmul.mubr.bf16.gmra.mrb[0].mxu0 %v3379
      %v3514 = vpop.f32.mrb[0].mxu0
      %v3515 = vadd.f32 0.0, %v3514
      %v3516 = vpop.f32.mrb[0].mxu0
      %v3517 = vpop.f32.mrb[0].mxu0
      %v3518 = vadd.f32 0.0, %v3517
      %v3519 = vpop.f32.mrb[0].mxu0
      %3520 = vmatprep.mubr.bf16.mxu0 0
      %3521 = vmatmul.mubr.bf16.gmra.mrb[0].mxu0 %v3382
      %v3522 = vpop.f32.mrb[0].mxu0
      %v3523 = vadd.f32 0.0, %v3522
      %v3524 = vpop.f32.mrb[0].mxu0
      %v3525 = vpop.f32.mrb[0].mxu0
      %v3526 = vadd.f32 0.0, %v3525
      %v3527 = vpop.f32.mrb[0].mxu0
      %3528 = vmatprep.mubr.bf16.mxu0 0
      %3529 = vmatmul.mubr.bf16.gmra.mrb[0].mxu0 %v3385
      %v3530 = vpop.f32.mrb[0].mxu0
      %v3531 = vadd.f32 0.0, %v3530
      %v3532 = vpop.f32.mrb[0].mxu0
      %v3533 = vpop.f32.mrb[0].mxu0
      %v3534 = vadd.f32 0.0, %v3533
      %v3535 = vpop.f32.mrb[0].mxu0
      %3536 = vmatprep.mubr.bf16.mxu0 0
      %3537 = vmatmul.mubr.bf16.gmra.mrb[0].mxu0 %v3388
      %v3538 = vpop.f32.mrb[0].mxu0
      %v3539 = vadd.f32 0.0, %v3538
      %v3540 = vpop.f32.mrb[0].mxu0
      %v3541 = vpop.f32.mrb[0].mxu0
      %v3542 = vadd.f32 0.0, %v3541
      %v3543 = vpop.f32.mrb[0].mxu0
      %3544 = vmatprep.mubr.bf16.mxu0 0
      %3545 = vmatmul.mubr.bf16.gmra.mrb[0].mxu0 %v3391
      %v3546 = vpop.f32.mrb[0].mxu0
      %v3547 = vadd.f32 0.0, %v3546
      %v3548 = vpop.f32.mrb[0].mxu0
      %v3549 = vpop.f32.mrb[0].mxu0
      %v3550 = vadd.f32 0.0, %v3549
      %v3551 = vpop.f32.mrb[0].mxu0
      %3552 = vmatprep.mubr.bf16.mxu0 0
      %3553 = vmatmul.mubr.bf16.gmra.mrb[0].mxu0 %v3394
      %v3554 = vpop.f32.mrb[0].mxu0
      %v3555 = vadd.f32 0.0, %v3554
      %v3556 = vpop.f32.mrb[0].mxu0
      %v3557 = vpop.f32.mrb[0].mxu0
      %v3558 = vadd.f32 0.0, %v3557
      %v3559 = vpop.f32.mrb[0].mxu0
      %3560 = vmatprep.mubr.bf16.mxu0 0
      %3561 = vmatmul.mubr.bf16.gmra.mrb[0].mxu0 %v3397
      %v3562 = vpop.f32.mrb[0].mxu0
      %v3563 = vadd.f32 0.0, %v3562
      %v3564 = vpop.f32.mrb[0].mxu0
      %v3565 = vpop.f32.mrb[0].mxu0
      %v3566 = vadd.f32 0.0, %v3565
      %v3567 = vpop.f32.mrb[0].mxu0
      %3568 = vmatprep.mubr.bf16.mxu0 0
      %3569 = vmatmul.mubr.bf16.gmra.mrb[0].mxu0 %v3400
      %v3570 = vpop.f32.mrb[0].mxu0
      %v3571 = vadd.f32 0.0, %v3570
      %v3572 = vpop.f32.mrb[0].mxu0
      %v3573 = vpop.f32.mrb[0].mxu0
      %v3574 = vadd.f32 0.0, %v3573
      %v3575 = vpop.f32.mrb[0].mxu0
      %3576 = vmatprep.mubr.bf16.mxu0 0
      %3577 = vmatmul.mubr.bf16.gmra.mrb[0].mxu0 %v3403
      %v3578 = vpop.f32.mrb[0].mxu0
      %v3579 = vadd.f32 0.0, %v3578
      %v3580 = vpop.f32.mrb[0].mxu0
      %v3581 = vpop.f32.mrb[0].mxu0
      %v3582 = vadd.f32 0.0, %v3581
      %v3583 = vpop.f32.mrb[0].mxu0
      %3584 = vdwg.mxu0
      %v3585 = vadd.f32 %v3271, %v3443
      %v3586 = vadd.f32 %v3272, %v3446
      %v3587 = vadd.f32 %v3273, %v3451
      %v3588 = vadd.f32 %v3274, %v3454
      %v3589 = vadd.f32 %v3275, %v3459
      %v3590 = vadd.f32 %v3276, %v3462
      %v3591 = vadd.f32 %v3277, %v3467
      %v3592 = vadd.f32 %v3278, %v3470
      %v3593 = vadd.f32 %v3279, %v3475
      %v3594 = vadd.f32 %v3280, %v3478
      %v3595 = vadd.f32 %v3281, %v3483
      %v3596 = vadd.f32 %v3282, %v3486
      %v3597 = vadd.f32 %v3283, %v3491
      %v3598 = vadd.f32 %v3284, %v3494
      %v3599 = vadd.f32 %v3285, %v3499
      %v3600 = vadd.f32 %v3286, %v3502
      %v3601 = vadd.f32 %v3287, %v3507
      %v3602 = vadd.f32 %v3288, %v3510
      %v3603 = vadd.f32 %v3289, %v3515
      %v3604 = vadd.f32 %v3290, %v3518
      %v3605 = vadd.f32 %v3291, %v3523
      %v3606 = vadd.f32 %v3292, %v3526
      %v3607 = vadd.f32 %v3293, %v3531
      %v3608 = vadd.f32 %v3294, %v3534
      %v3609 = vadd.f32 %v3295, %v3539
      %v3610 = vadd.f32 %v3296, %v3542
      %v3611 = vadd.f32 %v3297, %v3547
      %v3612 = vadd.f32 %v3298, %v3550
      %v3613 = vadd.f32 %v3299, %v3555
      %v3614 = vadd.f32 %v3300, %v3558
      %v3615 = vadd.f32 %v3301, %v3563
      %v3616 = vadd.f32 %v3302, %v3566
      %v3617 = vadd.f32 %v3303, %v3571
      %v3618 = vadd.f32 %v3304, %v3574
      %v3619 = vadd.f32 %v3305, %v3579
      %v3620 = vadd.f32 %v3306, %v3582
      %v3621 = vld [vmem:[%s294 + $0xa8] sm:$0xf]
      %s3622 = scalar_lea.vmem %s298, 16
      %v3623 = vld [vmem:[%s3622] sm:$0x3]
      %v3625 = vunpack.c.l.b16 %v3621
      %v3626 = vpack.c.b16 %v3625, %v3625
      %vm3627 = vsmask.f32 4352
      %v3629 = vshrl.u32 %v3312, 16
      %v3631 = vrot.slane %v3629, 3
      %v3632 = vshll.u32 %v3312, 16
      %v3634 = vrot.slane %v3632, 4
      %v3635 = vor.u32 %v3631, %v3634
      %v3636 = vrot.slane %v2876, 3
      %v3637 = vrot.slane %v2879, 4
      %v3638 = vor.u32 %v3636, %v3637
      %v3639 = vsel %vm3627, %v3635, %v3638
      %v3640 = vrot.slane %v2885, 3
      %v3641 = vrot.slane %v2888, 4
      %v3642 = vor.u32 %v3640, %v3641
      %v3643 = vsel %vm3627, %v3638, %v3642
      %v3644 = vrot.slane %v2894, 3
      %v3645 = vrot.slane %v2897, 4
      %v3646 = vor.u32 %v3644, %v3645
      %v3647 = vsel %vm3627, %v3642, %v3646
      %v3648 = vrot.slane %v2903, 3
      %v3649 = vrot.slane %v2906, 4
      %v3650 = vor.u32 %v3648, %v3649
      %v3651 = vsel %vm3627, %v3646, %v3650
      %v3652 = vrot.slane %v2912, 3
      %v3653 = vrot.slane %v2915, 4
      %v3654 = vor.u32 %v3652, %v3653
      %v3655 = vsel %vm3627, %v3650, %v3654
      %v3656 = vrot.slane %v2921, 3
      %v3657 = vrot.slane %v2924, 4
      %v3658 = vor.u32 %v3656, %v3657
      %v3659 = vsel %vm3627, %v3654, %v3658
      %v3660 = vrot.slane %v2930, 3
      %v3661 = vrot.slane %v2933, 4
      %v3662 = vor.u32 %v3660, %v3661
      %v3663 = vsel %vm3627, %v3658, %v3662
      %v3664 = vrot.slane %v2939, 3
      %v3665 = vrot.slane %v2942, 4
      %v3666 = vor.u32 %v3664, %v3665
      %v3667 = vsel %vm3627, %v3662, %v3666
      %v3668 = vrot.slane %v2948, 3
      %v3669 = vrot.slane %v2951, 4
      %v3670 = vor.u32 %v3668, %v3669
      %v3671 = vsel %vm3627, %v3666, %v3670
      %v3672 = vrot.slane %v2957, 3
      %v3673 = vrot.slane %v2960, 4
      %v3674 = vor.u32 %v3672, %v3673
      %v3675 = vsel %vm3627, %v3670, %v3674
      %v3676 = vrot.slane %v2966, 3
      %v3677 = vrot.slane %v2969, 4
      %v3678 = vor.u32 %v3676, %v3677
      %v3679 = vsel %vm3627, %v3674, %v3678
      %v3680 = vrot.slane %v2975, 3
      %v3681 = vrot.slane %v2978, 4
      %v3682 = vor.u32 %v3680, %v3681
      %v3683 = vsel %vm3627, %v3678, %v3682
      %v3684 = vrot.slane %v2984, 3
      %v3685 = vrot.slane %v2987, 4
      %v3686 = vor.u32 %v3684, %v3685
      %v3687 = vsel %vm3627, %v3682, %v3686
      %v3688 = vrot.slane %v2993, 3
      %v3689 = vrot.slane %v2996, 4
      %v3690 = vor.u32 %v3688, %v3689
      %v3691 = vsel %vm3627, %v3686, %v3690
      %v3692 = vrot.slane %v3002, 3
      %v3693 = vrot.slane %v3005, 4
      %v3694 = vor.u32 %v3692, %v3693
      %v3695 = vsel %vm3627, %v3690, %v3694
      %v3696 = vrot.slane %v3011, 3
      %v3697 = vrot.slane %v3014, 4
      %v3698 = vor.u32 %v3696, %v3697
      %v3699 = vsel %vm3627, %v3694, %v3698
      %v3700 = vrot.slane %v3020, 3
      %v3701 = vrot.slane %v3023, 4
      %v3702 = vor.u32 %v3700, %v3701
      %v3703 = vsel %vm3627, %v3698, %v3702
      %v3705 = vshrl.u32 %v3626, 16
      %v3707 = vrot.slane %v3705, 3
      %v3708 = vshll.u32 %v3626, 16
      %v3710 = vrot.slane %v3708, 4
      %v3711 = vor.u32 %v3707, %v3710
      %v3712 = vsel %vm3627, %v3702, %v3711
      %v3714 = vsel %vm500, %v3639, 0
      %v3717 = vsel %vm500, %v3643, 0
      %v3720 = vsel %vm500, %v3647, 0
      %v3723 = vsel %vm500, %v3651, 0
      %v3726 = vsel %vm500, %v3655, 0
      %v3729 = vsel %vm500, %v3659, 0
      %v3732 = vsel %vm500, %v3663, 0
      %v3735 = vsel %vm500, %v3667, 0
      %v3738 = vsel %vm500, %v3671, 0
      %v3741 = vsel %vm500, %v3675, 0
      %v3744 = vsel %vm500, %v3679, 0
      %v3747 = vsel %vm500, %v3683, 0
      %v3750 = vsel %vm500, %v3687, 0
      %v3753 = vsel %vm500, %v3691, 0
      %v3756 = vsel %vm500, %v3695, 0
      %v3759 = vsel %vm500, %v3699, 0
      %v3762 = vsel %vm500, %v3703, 0
      %v3765 = vsel %vm500, %v3712, 0
      %v3768 = vand.u32 %v3623, %v558
      %3770 = vmatprep.subr.bf16.mxu0 0
      %3771 = vmatpush1.bf16.msra.mxu0 %v3768
      %3772 = vmatprep.subr.bf16.mxu0 0
      %3773 = vmatpush1.bf16.msra.mxu0 0
      %3774 = vmatprep.subr.bf16.mxu0 0
      %3775 = vmatpush1.bf16.msra.mxu0 0
      %3776 = vmatprep.subr.bf16.mxu0 0
      %3777 = vmatpush1.bf16.msra.mxu0 0
      %3778 = vmatprep.subr.bf16.mxu0 0
      %3779 = vmatpush1.bf16.msra.mxu0 0
      %3780 = vmatprep.subr.bf16.mxu0 0
      %3781 = vmatpush1.bf16.msra.mxu0 0
      %3782 = vmatprep.subr.bf16.mxu0 0
      %3783 = vmatpush1.bf16.msra.mxu0 0
      %3784 = vmatprep.subr.bf16.mxu0 0
      %3785 = vmatpush1.bf16.msra.mxu0 0
      %3786 = vmatprep.subr.bf16.mxu0 0
      %3787 = vmatpush1.bf16.msra.mxu0 0
      %3788 = vmatprep.subr.bf16.mxu0 0
      %3789 = vmatpush1.bf16.msra.mxu0 0
      %3790 = vmatprep.subr.bf16.mxu0 0
      %3791 = vmatpush1.bf16.msra.mxu0 0
      %3792 = vmatprep.subr.bf16.mxu0 0
      %3793 = vmatpush1.bf16.msra.mxu0 0
      %3794 = vmatprep.subr.bf16.mxu0 0
      %3795 = vmatpush1.bf16.msra.mxu0 0
      %3796 = vmatprep.subr.bf16.mxu0 0
      %3797 = vmatpush1.bf16.msra.mxu0 0
      %3798 = vmatprep.subr.bf16.mxu0 0
      %3799 = vmatpush1.bf16.msra.mxu0 0
      %3800 = vmatprep.subr.bf16.mxu0 0
      %3801 = vmatpush1.bf16.msra.mxu0 0
      %3802 = vmatprep.mubr.bf16.mxu0 0
      %3803 = vmatmul.mubr.bf16.gmra.mrb[0].mxu0 %v3714
      %v3804 = vpop.f32.mrb[0].mxu0
      %v3805 = vadd.f32 0.0, %v3804
      %v3806 = vpop.f32.mrb[0].mxu0
      %v3807 = vpop.f32.mrb[0].mxu0
      %v3808 = vadd.f32 0.0, %v3807
      %v3809 = vpop.f32.mrb[0].mxu0
      %3810 = vmatprep.mubr.bf16.mxu0 0
      %3811 = vmatmul.mubr.bf16.gmra.mrb[0].mxu0 %v3717
      %v3812 = vpop.f32.mrb[0].mxu0
      %v3813 = vadd.f32 0.0, %v3812
      %v3814 = vpop.f32.mrb[0].mxu0
      %v3815 = vpop.f32.mrb[0].mxu0
      %v3816 = vadd.f32 0.0, %v3815
      %v3817 = vpop.f32.mrb[0].mxu0
      %3818 = vmatprep.mubr.bf16.mxu0 0
      %3819 = vmatmul.mubr.bf16.gmra.mrb[0].mxu0 %v3720
      %v3820 = vpop.f32.mrb[0].mxu0
      %v3821 = vadd.f32 0.0, %v3820
      %v3822 = vpop.f32.mrb[0].mxu0
      %v3823 = vpop.f32.mrb[0].mxu0
      %v3824 = vadd.f32 0.0, %v3823
      %v3825 = vpop.f32.mrb[0].mxu0
      %3826 = vmatprep.mubr.bf16.mxu0 0
      %3827 = vmatmul.mubr.bf16.gmra.mrb[0].mxu0 %v3723
      %v3828 = vpop.f32.mrb[0].mxu0
      %v3829 = vadd.f32 0.0, %v3828
      %v3830 = vpop.f32.mrb[0].mxu0
      %v3831 = vpop.f32.mrb[0].mxu0
      %v3832 = vadd.f32 0.0, %v3831
      %v3833 = vpop.f32.mrb[0].mxu0
      %3834 = vmatprep.mubr.bf16.mxu0 0
      %3835 = vmatmul.mubr.bf16.gmra.mrb[0].mxu0 %v3726
      %v3836 = vpop.f32.mrb[0].mxu0
      %v3837 = vadd.f32 0.0, %v3836
      %v3838 = vpop.f32.mrb[0].mxu0
      %v3839 = vpop.f32.mrb[0].mxu0
      %v3840 = vadd.f32 0.0, %v3839
      %v3841 = vpop.f32.mrb[0].mxu0
      %3842 = vmatprep.mubr.bf16.mxu0 0
      %3843 = vmatmul.mubr.bf16.gmra.mrb[0].mxu0 %v3729
      %v3844 = vpop.f32.mrb[0].mxu0
      %v3845 = vadd.f32 0.0, %v3844
      %v3846 = vpop.f32.mrb[0].mxu0
      %v3847 = vpop.f32.mrb[0].mxu0
      %v3848 = vadd.f32 0.0, %v3847
      %v3849 = vpop.f32.mrb[0].mxu0
      %3850 = vmatprep.mubr.bf16.mxu0 0
      %3851 = vmatmul.mubr.bf16.gmra.mrb[0].mxu0 %v3732
      %v3852 = vpop.f32.mrb[0].mxu0
      %v3853 = vadd.f32 0.0, %v3852
      %v3854 = vpop.f32.mrb[0].mxu0
      %v3855 = vpop.f32.mrb[0].mxu0
      %v3856 = vadd.f32 0.0, %v3855
      %v3857 = vpop.f32.mrb[0].mxu0
      %3858 = vmatprep.mubr.bf16.mxu0 0
      %3859 = vmatmul.mubr.bf16.gmra.mrb[0].mxu0 %v3735
      %v3860 = vpop.f32.mrb[0].mxu0
      %v3861 = vadd.f32 0.0, %v3860
      %v3862 = vpop.f32.mrb[0].mxu0
      %v3863 = vpop.f32.mrb[0].mxu0
      %v3864 = vadd.f32 0.0, %v3863
      %v3865 = vpop.f32.mrb[0].mxu0
      %3866 = vmatprep.mubr.bf16.mxu0 0
      %3867 = vmatmul.mubr.bf16.gmra.mrb[0].mxu0 %v3738
      %v3868 = vpop.f32.mrb[0].mxu0
      %v3869 = vadd.f32 0.0, %v3868
      %v3870 = vpop.f32.mrb[0].mxu0
      %v3871 = vpop.f32.mrb[0].mxu0
      %v3872 = vadd.f32 0.0, %v3871
      %v3873 = vpop.f32.mrb[0].mxu0
      %3874 = vmatprep.mubr.bf16.mxu0 0
      %3875 = vmatmul.mubr.bf16.gmra.mrb[0].mxu0 %v3741
      %v3876 = vpop.f32.mrb[0].mxu0
      %v3877 = vadd.f32 0.0, %v3876
      %v3878 = vpop.f32.mrb[0].mxu0
      %v3879 = vpop.f32.mrb[0].mxu0
      %v3880 = vadd.f32 0.0, %v3879
      %v3881 = vpop.f32.mrb[0].mxu0
      %3882 = vmatprep.mubr.bf16.mxu0 0
      %3883 = vmatmul.mubr.bf16.gmra.mrb[0].mxu0 %v3744
      %v3884 = vpop.f32.mrb[0].mxu0
      %v3885 = vadd.f32 0.0, %v3884
      %v3886 = vpop.f32.mrb[0].mxu0
      %v3887 = vpop.f32.mrb[0].mxu0
      %v3888 = vadd.f32 0.0, %v3887
      %v3889 = vpop.f32.mrb[0].mxu0
      %3890 = vmatprep.mubr.bf16.mxu0 0
      %3891 = vmatmul.mubr.bf16.gmra.mrb[0].mxu0 %v3747
      %v3892 = vpop.f32.mrb[0].mxu0
      %v3893 = vadd.f32 0.0, %v3892
      %v3894 = vpop.f32.mrb[0].mxu0
      %v3895 = vpop.f32.mrb[0].mxu0
      %v3896 = vadd.f32 0.0, %v3895
      %v3897 = vpop.f32.mrb[0].mxu0
      %3898 = vmatprep.mubr.bf16.mxu0 0
      %3899 = vmatmul.mubr.bf16.gmra.mrb[0].mxu0 %v3750
      %v3900 = vpop.f32.mrb[0].mxu0
      %v3901 = vadd.f32 0.0, %v3900
      %v3902 = vpop.f32.mrb[0].mxu0
      %v3903 = vpop.f32.mrb[0].mxu0
      %v3904 = vadd.f32 0.0, %v3903
      %v3905 = vpop.f32.mrb[0].mxu0
      %3906 = vmatprep.mubr.bf16.mxu0 0
      %3907 = vmatmul.mubr.bf16.gmra.mrb[0].mxu0 %v3753
      %v3908 = vpop.f32.mrb[0].mxu0
      %v3909 = vadd.f32 0.0, %v3908
      %v3910 = vpop.f32.mrb[0].mxu0
      %v3911 = vpop.f32.mrb[0].mxu0
      %v3912 = vadd.f32 0.0, %v3911
      %v3913 = vpop.f32.mrb[0].mxu0
      %3914 = vmatprep.mubr.bf16.mxu0 0
      %3915 = vmatmul.mubr.bf16.gmra.mrb[0].mxu0 %v3756
      %v3916 = vpop.f32.mrb[0].mxu0
      %v3917 = vadd.f32 0.0, %v3916
      %v3918 = vpop.f32.mrb[0].mxu0
      %v3919 = vpop.f32.mrb[0].mxu0
      %v3920 = vadd.f32 0.0, %v3919
      %v3921 = vpop.f32.mrb[0].mxu0
      %3922 = vmatprep.mubr.bf16.mxu0 0
      %3923 = vmatmul.mubr.bf16.gmra.mrb[0].mxu0 %v3759
      %v3924 = vpop.f32.mrb[0].mxu0
      %v3925 = vadd.f32 0.0, %v3924
      %v3926 = vpop.f32.mrb[0].mxu0
      %v3927 = vpop.f32.mrb[0].mxu0
      %v3928 = vadd.f32 0.0, %v3927
      %v3929 = vpop.f32.mrb[0].mxu0
      %3930 = vmatprep.mubr.bf16.mxu0 0
      %3931 = vmatmul.mubr.bf16.gmra.mrb[0].mxu0 %v3762
      %v3932 = vpop.f32.mrb[0].mxu0
      %v3933 = vadd.f32 0.0, %v3932
      %v3934 = vpop.f32.mrb[0].mxu0
      %v3935 = vpop.f32.mrb[0].mxu0
      %v3936 = vadd.f32 0.0, %v3935
      %v3937 = vpop.f32.mrb[0].mxu0
      %3938 = vmatprep.mubr.bf16.mxu0 0
      %3939 = vmatmul.mubr.bf16.gmra.mrb[0].mxu0 %v3765
      %v3940 = vpop.f32.mrb[0].mxu0
      %v3941 = vadd.f32 0.0, %v3940
      %v3942 = vpop.f32.mrb[0].mxu0
      %v3943 = vpop.f32.mrb[0].mxu0
      %v3944 = vadd.f32 0.0, %v3943
      %v3945 = vpop.f32.mrb[0].mxu0
      %3946 = vdwg.mxu0
      %v3947 = vadd.f32 %v3585, %v3805
      %v3948 = vadd.f32 %v3586, %v3808
      %v3949 = vadd.f32 %v3587, %v3813
      %v3950 = vadd.f32 %v3588, %v3816
      %v3951 = vadd.f32 %v3589, %v3821
      %v3952 = vadd.f32 %v3590, %v3824
      %v3953 = vadd.f32 %v3591, %v3829
      %v3954 = vadd.f32 %v3592, %v3832
      %v3955 = vadd.f32 %v3593, %v3837
      %v3956 = vadd.f32 %v3594, %v3840
      %v3957 = vadd.f32 %v3595, %v3845
      %v3958 = vadd.f32 %v3596, %v3848
      %v3959 = vadd.f32 %v3597, %v3853
      %v3960 = vadd.f32 %v3598, %v3856
      %v3961 = vadd.f32 %v3599, %v3861
      %v3962 = vadd.f32 %v3600, %v3864
      %v3963 = vadd.f32 %v3601, %v3869
      %v3964 = vadd.f32 %v3602, %v3872
      %v3965 = vadd.f32 %v3603, %v3877
      %v3966 = vadd.f32 %v3604, %v3880
      %v3967 = vadd.f32 %v3605, %v3885
      %v3968 = vadd.f32 %v3606, %v3888
      %v3969 = vadd.f32 %v3607, %v3893
      %v3970 = vadd.f32 %v3608, %v3896
      %v3971 = vadd.f32 %v3609, %v3901
      %v3972 = vadd.f32 %v3610, %v3904
      %v3973 = vadd.f32 %v3611, %v3909
      %v3974 = vadd.f32 %v3612, %v3912
      %v3975 = vadd.f32 %v3613, %v3917
      %v3976 = vadd.f32 %v3614, %v3920
      %v3977 = vadd.f32 %v3615, %v3925
      %v3978 = vadd.f32 %v3616, %v3928
      %v3979 = vadd.f32 %v3617, %v3933
      %v3980 = vadd.f32 %v3618, %v3936
      %v3981 = vadd.f32 %v3619, %v3941
      %v3982 = vadd.f32 %v3620, %v3944
      %v3983 = vld [vmem:[%s301] sm:$0x1]
      %v3985 = vlaneseq
      %v3986 = vshrl.u32 %v3985, 7
      %v3987 = vsub.s32 0, %v3986
      %v3988 = vrot.slane %v3983, %v3987
      %v3990 = vadd.f32 %v3947, %v3988
      %v3991 = vadd.f32 %v3948, %v3988
      %v3992 = vadd.f32 %v3949, %v3988
      %v3993 = vadd.f32 %v3950, %v3988
      %v3994 = vadd.f32 %v3951, %v3988
      %v3995 = vadd.f32 %v3952, %v3988
      %v3996 = vadd.f32 %v3953, %v3988
      %v3997 = vadd.f32 %v3954, %v3988
      %v3998 = vadd.f32 %v3955, %v3988
      %v3999 = vadd.f32 %v3956, %v3988
      %v4000 = vadd.f32 %v3957, %v3988
      %v4001 = vadd.f32 %v3958, %v3988
      %v4002 = vadd.f32 %v3959, %v3988
      %v4003 = vadd.f32 %v3960, %v3988
      %v4004 = vadd.f32 %v3961, %v3988
      %v4005 = vadd.f32 %v3962, %v3988
      %v4006 = vadd.f32 %v3963, %v3988
      %v4007 = vadd.f32 %v3964, %v3988
      %v4008 = vadd.f32 %v3965, %v3988
      %v4009 = vadd.f32 %v3966, %v3988
      %v4010 = vadd.f32 %v3967, %v3988
      %v4011 = vadd.f32 %v3968, %v3988
      %v4012 = vadd.f32 %v3969, %v3988
      %v4013 = vadd.f32 %v3970, %v3988
      %v4014 = vadd.f32 %v3971, %v3988
      %v4015 = vadd.f32 %v3972, %v3988
      %v4016 = vadd.f32 %v3973, %v3988
      %v4017 = vadd.f32 %v3974, %v3988
      %v4018 = vadd.f32 %v3975, %v3988
      %v4019 = vadd.f32 %v3976, %v3988
      %v4020 = vadd.f32 %v3977, %v3988
      %v4021 = vadd.f32 %v3978, %v3988
      %v4022 = vadd.f32 %v3979, %v3988
      %v4023 = vadd.f32 %v3980, %v3988
      %v4024 = vadd.f32 %v3981, %v3988
      %v4025 = vadd.f32 %v3982, %v3988
      %v4026 = vlaneseq
      %v4027 = vshrl.u32 %v4026, 7
      %v4028 = vadd.s32 %v4027, 8
      %v4029 = vadd.s32 %v4027, 16
      %v4030 = vadd.s32 %v4027, 24
      %v4031 = vadd.s32 %v4027, 32
      %v4032 = vadd.s32 %v4027, 40
      %v4033 = vadd.s32 %v4027, 48
      %v4034 = vadd.s32 %v4027, 56
      %v4035 = vadd.s32 %v4027, 64
      %v4036 = vadd.s32 %v4027, 72
      %v4037 = vadd.s32 %v4027, 80
      %v4038 = vadd.s32 %v4027, 88
      %v4039 = vadd.s32 %v4027, 96
      %v4040 = vadd.s32 %v4027, 104
      %v4041 = vadd.s32 %v4027, 112
      %v4042 = vadd.s32 %v4027, 120
      %v4043 = vadd.s32 %v4027, 128
      %v4044 = vadd.s32 %v4027, 136
      %v4045 = vadd.s32 %v4027, 144
      %v4046 = vadd.s32 %v4027, 152
      %v4047 = vadd.s32 %v4027, 160
      %v4048 = vadd.s32 %v4027, 168
      %v4049 = vadd.s32 %v4027, 176
      %v4050 = vadd.s32 %v4027, 184
      %v4051 = vadd.s32 %v4027, 192
      %v4052 = vadd.s32 %v4027, 200
      %v4053 = vadd.s32 %v4027, 208
      %v4054 = vadd.s32 %v4027, 216
      %v4055 = vadd.s32 %v4027, 224
      %v4056 = vadd.s32 %v4027, 232
      %v4057 = vadd.s32 %v4027, 240
      %v4058 = vadd.s32 %v4027, 248
      %v4059 = vadd.s32 %v4027, 256
      %v4060 = vadd.s32 %v4027, 264
      %v4061 = vadd.s32 %v4027, 272
      %v4062 = vadd.s32 %v4027, 280
      %vm4063 = vcmp.lt.s32.totalorder %v4027, 0
      %v4064 = vsub.s32 0, %v4027
      %v4065 = vsel %vm4063, %v4064, %v4027
      %v4066 = vmul.u32.u64.compose %v4065, 3817748708
      %v4067 = vextract.low.u32 %v4066
      %v4068 = vextract.high.u32 %v4066
      %v4069 = vshrl.u32 %v4068, 4
      %v4070 = vmul.u32 %v4069, 18
      %v4071 = vsub.s32 %v4065, %v4070
      %v4072 = vsub.s32 0, %v4071
      %v4073 = vsel %vm4063, %v4072, %v4071
      %vm4074 = vcmp.lt.s32.totalorder %v4028, 0
      %v4075 = vsub.s32 0, %v4028
      %v4076 = vsel %vm4074, %v4075, %v4028
      %v4077 = vmul.u32.u64.compose %v4076, 3817748708
      %v4078 = vextract.low.u32 %v4077
      %v4079 = vextract.high.u32 %v4077
      %v4080 = vshrl.u32 %v4079, 4
      %v4081 = vmul.u32 %v4080, 18
      %v4082 = vsub.s32 %v4076, %v4081
      %v4083 = vsub.s32 0, %v4082
      %v4084 = vsel %vm4074, %v4083, %v4082
      %vm4085 = vcmp.lt.s32.totalorder %v4029, 0
      %v4086 = vsub.s32 0, %v4029
      %v4087 = vsel %vm4085, %v4086, %v4029
      %v4088 = vmul.u32.u64.compose %v4087, 3817748708
      %v4089 = vextract.low.u32 %v4088
      %v4090 = vextract.high.u32 %v4088
      %v4091 = vshrl.u32 %v4090, 4
      %v4092 = vmul.u32 %v4091, 18
      %v4093 = vsub.s32 %v4087, %v4092
      %v4094 = vsub.s32 0, %v4093
      %v4095 = vsel %vm4085, %v4094, %v4093
      %vm4096 = vcmp.lt.s32.totalorder %v4030, 0
      %v4097 = vsub.s32 0, %v4030
      %v4098 = vsel %vm4096, %v4097, %v4030
      %v4099 = vmul.u32.u64.compose %v4098, 3817748708
      %v4100 = vextract.low.u32 %v4099
      %v4101 = vextract.high.u32 %v4099
      %v4102 = vshrl.u32 %v4101, 4
      %v4103 = vmul.u32 %v4102, 18
      %v4104 = vsub.s32 %v4098, %v4103
      %v4105 = vsub.s32 0, %v4104
      %v4106 = vsel %vm4096, %v4105, %v4104
      %vm4107 = vcmp.lt.s32.totalorder %v4031, 0
      %v4108 = vsub.s32 0, %v4031
      %v4109 = vsel %vm4107, %v4108, %v4031
      %v4110 = vmul.u32.u64.compose %v4109, 3817748708
      %v4111 = vextract.low.u32 %v4110
      %v4112 = vextract.high.u32 %v4110
      %v4113 = vshrl.u32 %v4112, 4
      %v4114 = vmul.u32 %v4113, 18
      %v4115 = vsub.s32 %v4109, %v4114
      %v4116 = vsub.s32 0, %v4115
      %v4117 = vsel %vm4107, %v4116, %v4115
      %vm4118 = vcmp.lt.s32.totalorder %v4032, 0
      %v4119 = vsub.s32 0, %v4032
      %v4120 = vsel %vm4118, %v4119, %v4032
      %v4121 = vmul.u32.u64.compose %v4120, 3817748708
      %v4122 = vextract.low.u32 %v4121
      %v4123 = vextract.high.u32 %v4121
      %v4124 = vshrl.u32 %v4123, 4
      %v4125 = vmul.u32 %v4124, 18
      %v4126 = vsub.s32 %v4120, %v4125
      %v4127 = vsub.s32 0, %v4126
      %v4128 = vsel %vm4118, %v4127, %v4126
      %vm4129 = vcmp.lt.s32.totalorder %v4033, 0
      %v4130 = vsub.s32 0, %v4033
      %v4131 = vsel %vm4129, %v4130, %v4033
      %v4132 = vmul.u32.u64.compose %v4131, 3817748708
      %v4133 = vextract.low.u32 %v4132
      %v4134 = vextract.high.u32 %v4132
      %v4135 = vshrl.u32 %v4134, 4
      %v4136 = vmul.u32 %v4135, 18
      %v4137 = vsub.s32 %v4131, %v4136
      %v4138 = vsub.s32 0, %v4137
      %v4139 = vsel %vm4129, %v4138, %v4137
      %vm4140 = vcmp.lt.s32.totalorder %v4034, 0
      %v4141 = vsub.s32 0, %v4034
      %v4142 = vsel %vm4140, %v4141, %v4034
      %v4143 = vmul.u32.u64.compose %v4142, 3817748708
      %v4144 = vextract.low.u32 %v4143
      %v4145 = vextract.high.u32 %v4143
      %v4146 = vshrl.u32 %v4145, 4
      %v4147 = vmul.u32 %v4146, 18
      %v4148 = vsub.s32 %v4142, %v4147
      %v4149 = vsub.s32 0, %v4148
      %v4150 = vsel %vm4140, %v4149, %v4148
      %vm4151 = vcmp.lt.s32.totalorder %v4035, 0
      %v4152 = vsub.s32 0, %v4035
      %v4153 = vsel %vm4151, %v4152, %v4035
      %v4154 = vmul.u32.u64.compose %v4153, 3817748708
      %v4155 = vextract.low.u32 %v4154
      %v4156 = vextract.high.u32 %v4154
      %v4157 = vshrl.u32 %v4156, 4
      %v4158 = vmul.u32 %v4157, 18
      %v4159 = vsub.s32 %v4153, %v4158
      %v4160 = vsub.s32 0, %v4159
      %v4161 = vsel %vm4151, %v4160, %v4159
      %vm4162 = vcmp.lt.s32.totalorder %v4036, 0
      %v4163 = vsub.s32 0, %v4036
      %v4164 = vsel %vm4162, %v4163, %v4036
      %v4165 = vmul.u32.u64.compose %v4164, 3817748708
      %v4166 = vextract.low.u32 %v4165
      %v4167 = vextract.high.u32 %v4165
      %v4168 = vshrl.u32 %v4167, 4
      %v4169 = vmul.u32 %v4168, 18
      %v4170 = vsub.s32 %v4164, %v4169
      %v4171 = vsub.s32 0, %v4170
      %v4172 = vsel %vm4162, %v4171, %v4170
      %vm4173 = vcmp.lt.s32.totalorder %v4037, 0
      %v4174 = vsub.s32 0, %v4037
      %v4175 = vsel %vm4173, %v4174, %v4037
      %v4176 = vmul.u32.u64.compose %v4175, 3817748708
      %v4177 = vextract.low.u32 %v4176
      %v4178 = vextract.high.u32 %v4176
      %v4179 = vshrl.u32 %v4178, 4
      %v4180 = vmul.u32 %v4179, 18
      %v4181 = vsub.s32 %v4175, %v4180
      %v4182 = vsub.s32 0, %v4181
      %v4183 = vsel %vm4173, %v4182, %v4181
      %vm4184 = vcmp.lt.s32.totalorder %v4038, 0
      %v4185 = vsub.s32 0, %v4038
      %v4186 = vsel %vm4184, %v4185, %v4038
      %v4187 = vmul.u32.u64.compose %v4186, 3817748708
      %v4188 = vextract.low.u32 %v4187
      %v4189 = vextract.high.u32 %v4187
      %v4190 = vshrl.u32 %v4189, 4
      %v4191 = vmul.u32 %v4190, 18
      %v4192 = vsub.s32 %v4186, %v4191
      %v4193 = vsub.s32 0, %v4192
      %v4194 = vsel %vm4184, %v4193, %v4192
      %vm4195 = vcmp.lt.s32.totalorder %v4039, 0
      %v4196 = vsub.s32 0, %v4039
      %v4197 = vsel %vm4195, %v4196, %v4039
      %v4198 = vmul.u32.u64.compose %v4197, 3817748708
      %v4199 = vextract.low.u32 %v4198
      %v4200 = vextract.high.u32 %v4198
      %v4201 = vshrl.u32 %v4200, 4
      %v4202 = vmul.u32 %v4201, 18
      %v4203 = vsub.s32 %v4197, %v4202
      %v4204 = vsub.s32 0, %v4203
      %v4205 = vsel %vm4195, %v4204, %v4203
      %vm4206 = vcmp.lt.s32.totalorder %v4040, 0
      %v4207 = vsub.s32 0, %v4040
      %v4208 = vsel %vm4206, %v4207, %v4040
      %v4209 = vmul.u32.u64.compose %v4208, 3817748708
      %v4210 = vextract.low.u32 %v4209
      %v4211 = vextract.high.u32 %v4209
      %v4212 = vshrl.u32 %v4211, 4
      %v4213 = vmul.u32 %v4212, 18
      %v4214 = vsub.s32 %v4208, %v4213
      %v4215 = vsub.s32 0, %v4214
      %v4216 = vsel %vm4206, %v4215, %v4214
      %vm4217 = vcmp.lt.s32.totalorder %v4041, 0
      %v4218 = vsub.s32 0, %v4041
      %v4219 = vsel %vm4217, %v4218, %v4041
      %v4220 = vmul.u32.u64.compose %v4219, 3817748708
      %v4221 = vextract.low.u32 %v4220
      %v4222 = vextract.high.u32 %v4220
      %v4223 = vshrl.u32 %v4222, 4
      %v4224 = vmul.u32 %v4223, 18
      %v4225 = vsub.s32 %v4219, %v4224
      %v4226 = vsub.s32 0, %v4225
      %v4227 = vsel %vm4217, %v4226, %v4225
      %vm4228 = vcmp.lt.s32.totalorder %v4042, 0
      %v4229 = vsub.s32 0, %v4042
      %v4230 = vsel %vm4228, %v4229, %v4042
      %v4231 = vmul.u32.u64.compose %v4230, 3817748708
      %v4232 = vextract.low.u32 %v4231
      %v4233 = vextract.high.u32 %v4231
      %v4234 = vshrl.u32 %v4233, 4
      %v4235 = vmul.u32 %v4234, 18
      %v4236 = vsub.s32 %v4230, %v4235
      %v4237 = vsub.s32 0, %v4236
      %v4238 = vsel %vm4228, %v4237, %v4236
      %vm4239 = vcmp.lt.s32.totalorder %v4043, 0
      %v4240 = vsub.s32 0, %v4043
      %v4241 = vsel %vm4239, %v4240, %v4043
      %v4242 = vmul.u32.u64.compose %v4241, 3817748708
      %v4243 = vextract.low.u32 %v4242
      %v4244 = vextract.high.u32 %v4242
      %v4245 = vshrl.u32 %v4244, 4
      %v4246 = vmul.u32 %v4245, 18
      %v4247 = vsub.s32 %v4241, %v4246
      %v4248 = vsub.s32 0, %v4247
      %v4249 = vsel %vm4239, %v4248, %v4247
      %vm4250 = vcmp.lt.s32.totalorder %v4044, 0
      %v4251 = vsub.s32 0, %v4044
      %v4252 = vsel %vm4250, %v4251, %v4044
      %v4253 = vmul.u32.u64.compose %v4252, 3817748708
      %v4254 = vextract.low.u32 %v4253
      %v4255 = vextract.high.u32 %v4253
      %v4256 = vshrl.u32 %v4255, 4
      %v4257 = vmul.u32 %v4256, 18
      %v4258 = vsub.s32 %v4252, %v4257
      %v4259 = vsub.s32 0, %v4258
      %v4260 = vsel %vm4250, %v4259, %v4258
      %vm4261 = vcmp.lt.s32.totalorder %v4045, 0
      %v4262 = vsub.s32 0, %v4045
      %v4263 = vsel %vm4261, %v4262, %v4045
      %v4264 = vmul.u32.u64.compose %v4263, 3817748708
      %v4265 = vextract.low.u32 %v4264
      %v4266 = vextract.high.u32 %v4264
      %v4267 = vshrl.u32 %v4266, 4
      %v4268 = vmul.u32 %v4267, 18
      %v4269 = vsub.s32 %v4263, %v4268
      %v4270 = vsub.s32 0, %v4269
      %v4271 = vsel %vm4261, %v4270, %v4269
      %vm4272 = vcmp.lt.s32.totalorder %v4046, 0
      %v4273 = vsub.s32 0, %v4046
      %v4274 = vsel %vm4272, %v4273, %v4046
      %v4275 = vmul.u32.u64.compose %v4274, 3817748708
      %v4276 = vextract.low.u32 %v4275
      %v4277 = vextract.high.u32 %v4275
      %v4278 = vshrl.u32 %v4277, 4
      %v4279 = vmul.u32 %v4278, 18
      %v4280 = vsub.s32 %v4274, %v4279
      %v4281 = vsub.s32 0, %v4280
      %v4282 = vsel %vm4272, %v4281, %v4280
      %vm4283 = vcmp.lt.s32.totalorder %v4047, 0
      %v4284 = vsub.s32 0, %v4047
      %v4285 = vsel %vm4283, %v4284, %v4047
      %v4286 = vmul.u32.u64.compose %v4285, 3817748708
      %v4287 = vextract.low.u32 %v4286
      %v4288 = vextract.high.u32 %v4286
      %v4289 = vshrl.u32 %v4288, 4
      %v4290 = vmul.u32 %v4289, 18
      %v4291 = vsub.s32 %v4285, %v4290
      %v4292 = vsub.s32 0, %v4291
      %v4293 = vsel %vm4283, %v4292, %v4291
      %vm4294 = vcmp.lt.s32.totalorder %v4048, 0
      %v4295 = vsub.s32 0, %v4048
      %v4296 = vsel %vm4294, %v4295, %v4048
      %v4297 = vmul.u32.u64.compose %v4296, 3817748708
      %v4298 = vextract.low.u32 %v4297
      %v4299 = vextract.high.u32 %v4297
      %v4300 = vshrl.u32 %v4299, 4
      %v4301 = vmul.u32 %v4300, 18
      %v4302 = vsub.s32 %v4296, %v4301
      %v4303 = vsub.s32 0, %v4302
      %v4304 = vsel %vm4294, %v4303, %v4302
      %vm4305 = vcmp.lt.s32.totalorder %v4049, 0
      %v4306 = vsub.s32 0, %v4049
      %v4307 = vsel %vm4305, %v4306, %v4049
      %v4308 = vmul.u32.u64.compose %v4307, 3817748708
      %v4309 = vextract.low.u32 %v4308
      %v4310 = vextract.high.u32 %v4308
      %v4311 = vshrl.u32 %v4310, 4
      %v4312 = vmul.u32 %v4311, 18
      %v4313 = vsub.s32 %v4307, %v4312
      %v4314 = vsub.s32 0, %v4313
      %v4315 = vsel %vm4305, %v4314, %v4313
      %vm4316 = vcmp.lt.s32.totalorder %v4050, 0
      %v4317 = vsub.s32 0, %v4050
      %v4318 = vsel %vm4316, %v4317, %v4050
      %v4319 = vmul.u32.u64.compose %v4318, 3817748708
      %v4320 = vextract.low.u32 %v4319
      %v4321 = vextract.high.u32 %v4319
      %v4322 = vshrl.u32 %v4321, 4
      %v4323 = vmul.u32 %v4322, 18
      %v4324 = vsub.s32 %v4318, %v4323
      %v4325 = vsub.s32 0, %v4324
      %v4326 = vsel %vm4316, %v4325, %v4324
      %vm4327 = vcmp.lt.s32.totalorder %v4051, 0
      %v4328 = vsub.s32 0, %v4051
      %v4329 = vsel %vm4327, %v4328, %v4051
      %v4330 = vmul.u32.u64.compose %v4329, 3817748708
      %v4331 = vextract.low.u32 %v4330
      %v4332 = vextract.high.u32 %v4330
      %v4333 = vshrl.u32 %v4332, 4
      %v4334 = vmul.u32 %v4333, 18
      %v4335 = vsub.s32 %v4329, %v4334
      %v4336 = vsub.s32 0, %v4335
      %v4337 = vsel %vm4327, %v4336, %v4335
      %vm4338 = vcmp.lt.s32.totalorder %v4052, 0
      %v4339 = vsub.s32 0, %v4052
      %v4340 = vsel %vm4338, %v4339, %v4052
      %v4341 = vmul.u32.u64.compose %v4340, 3817748708
      %v4342 = vextract.low.u32 %v4341
      %v4343 = vextract.high.u32 %v4341
      %v4344 = vshrl.u32 %v4343, 4
      %v4345 = vmul.u32 %v4344, 18
      %v4346 = vsub.s32 %v4340, %v4345
      %v4347 = vsub.s32 0, %v4346
      %v4348 = vsel %vm4338, %v4347, %v4346
      %vm4349 = vcmp.lt.s32.totalorder %v4053, 0
      %v4350 = vsub.s32 0, %v4053
      %v4351 = vsel %vm4349, %v4350, %v4053
      %v4352 = vmul.u32.u64.compose %v4351, 3817748708
      %v4353 = vextract.low.u32 %v4352
      %v4354 = vextract.high.u32 %v4352
      %v4355 = vshrl.u32 %v4354, 4
      %v4356 = vmul.u32 %v4355, 18
      %v4357 = vsub.s32 %v4351, %v4356
      %v4358 = vsub.s32 0, %v4357
      %v4359 = vsel %vm4349, %v4358, %v4357
      %vm4360 = vcmp.lt.s32.totalorder %v4054, 0
      %v4361 = vsub.s32 0, %v4054
      %v4362 = vsel %vm4360, %v4361, %v4054
      %v4363 = vmul.u32.u64.compose %v4362, 3817748708
      %v4364 = vextract.low.u32 %v4363
      %v4365 = vextract.high.u32 %v4363
      %v4366 = vshrl.u32 %v4365, 4
      %v4367 = vmul.u32 %v4366, 18
      %v4368 = vsub.s32 %v4362, %v4367
      %v4369 = vsub.s32 0, %v4368
      %v4370 = vsel %vm4360, %v4369, %v4368
      %vm4371 = vcmp.lt.s32.totalorder %v4055, 0
      %v4372 = vsub.s32 0, %v4055
      %v4373 = vsel %vm4371, %v4372, %v4055
      %v4374 = vmul.u32.u64.compose %v4373, 3817748708
      %v4375 = vextract.low.u32 %v4374
      %v4376 = vextract.high.u32 %v4374
      %v4377 = vshrl.u32 %v4376, 4
      %v4378 = vmul.u32 %v4377, 18
      %v4379 = vsub.s32 %v4373, %v4378
      %v4380 = vsub.s32 0, %v4379
      %v4381 = vsel %vm4371, %v4380, %v4379
      %vm4382 = vcmp.lt.s32.totalorder %v4056, 0
      %v4383 = vsub.s32 0, %v4056
      %v4384 = vsel %vm4382, %v4383, %v4056
      %v4385 = vmul.u32.u64.compose %v4384, 3817748708
      %v4386 = vextract.low.u32 %v4385
      %v4387 = vextract.high.u32 %v4385
      %v4388 = vshrl.u32 %v4387, 4
      %v4389 = vmul.u32 %v4388, 18
      %v4390 = vsub.s32 %v4384, %v4389
      %v4391 = vsub.s32 0, %v4390
      %v4392 = vsel %vm4382, %v4391, %v4390
      %vm4393 = vcmp.lt.s32.totalorder %v4057, 0
      %v4394 = vsub.s32 0, %v4057
      %v4395 = vsel %vm4393, %v4394, %v4057
      %v4396 = vmul.u32.u64.compose %v4395, 3817748708
      %v4397 = vextract.low.u32 %v4396
      %v4398 = vextract.high.u32 %v4396
      %v4399 = vshrl.u32 %v4398, 4
      %v4400 = vmul.u32 %v4399, 18
      %v4401 = vsub.s32 %v4395, %v4400
      %v4402 = vsub.s32 0, %v4401
      %v4403 = vsel %vm4393, %v4402, %v4401
      %vm4404 = vcmp.lt.s32.totalorder %v4058, 0
      %v4405 = vsub.s32 0, %v4058
      %v4406 = vsel %vm4404, %v4405, %v4058
      %v4407 = vmul.u32.u64.compose %v4406, 3817748708
      %v4408 = vextract.low.u32 %v4407
      %v4409 = vextract.high.u32 %v4407
      %v4410 = vshrl.u32 %v4409, 4
      %v4411 = vmul.u32 %v4410, 18
      %v4412 = vsub.s32 %v4406, %v4411
      %v4413 = vsub.s32 0, %v4412
      %v4414 = vsel %vm4404, %v4413, %v4412
      %vm4415 = vcmp.lt.s32.totalorder %v4059, 0
      %v4416 = vsub.s32 0, %v4059
      %v4417 = vsel %vm4415, %v4416, %v4059
      %v4418 = vmul.u32.u64.compose %v4417, 3817748708
      %v4419 = vextract.low.u32 %v4418
      %v4420 = vextract.high.u32 %v4418
      %v4421 = vshrl.u32 %v4420, 4
      %v4422 = vmul.u32 %v4421, 18
      %v4423 = vsub.s32 %v4417, %v4422
      %v4424 = vsub.s32 0, %v4423
      %v4425 = vsel %vm4415, %v4424, %v4423
      %vm4426 = vcmp.lt.s32.totalorder %v4060, 0
      %v4427 = vsub.s32 0, %v4060
      %v4428 = vsel %vm4426, %v4427, %v4060
      %v4429 = vmul.u32.u64.compose %v4428, 3817748708
      %v4430 = vextract.low.u32 %v4429
      %v4431 = vextract.high.u32 %v4429
      %v4432 = vshrl.u32 %v4431, 4
      %v4433 = vmul.u32 %v4432, 18
      %v4434 = vsub.s32 %v4428, %v4433
      %v4435 = vsub.s32 0, %v4434
      %v4436 = vsel %vm4426, %v4435, %v4434
      %vm4437 = vcmp.lt.s32.totalorder %v4061, 0
      %v4438 = vsub.s32 0, %v4061
      %v4439 = vsel %vm4437, %v4438, %v4061
      %v4440 = vmul.u32.u64.compose %v4439, 3817748708
      %v4441 = vextract.low.u32 %v4440
      %v4442 = vextract.high.u32 %v4440
      %v4443 = vshrl.u32 %v4442, 4
      %v4444 = vmul.u32 %v4443, 18
      %v4445 = vsub.s32 %v4439, %v4444
      %v4446 = vsub.s32 0, %v4445
      %v4447 = vsel %vm4437, %v4446, %v4445
      %vm4448 = vcmp.lt.s32.totalorder %v4062, 0
      %v4449 = vsub.s32 0, %v4062
      %v4450 = vsel %vm4448, %v4449, %v4062
      %v4451 = vmul.u32.u64.compose %v4450, 3817748708
      %v4452 = vextract.low.u32 %v4451
      %v4453 = vextract.high.u32 %v4451
      %v4454 = vshrl.u32 %v4453, 4
      %v4455 = vmul.u32 %v4454, 18
      %v4456 = vsub.s32 %v4450, %v4455
      %v4457 = vsub.s32 0, %v4456
      %v4458 = vsel %vm4448, %v4457, %v4456
      %vm4459 = vcmp.ne.s32.totalorder %v4073, 0
      %vm4460 = vcmp.ne.s32.totalorder %v4084, 0
      %vm4461 = vcmp.ne.s32.totalorder %v4095, 0
      %vm4462 = vcmp.ne.s32.totalorder %v4106, 0
      %vm4463 = vcmp.ne.s32.totalorder %v4117, 0
      %vm4464 = vcmp.ne.s32.totalorder %v4128, 0
      %vm4465 = vcmp.ne.s32.totalorder %v4139, 0
      %vm4466 = vcmp.ne.s32.totalorder %v4150, 0
      %vm4467 = vcmp.ne.s32.totalorder %v4161, 0
      %vm4468 = vcmp.ne.s32.totalorder %v4172, 0
      %vm4469 = vcmp.ne.s32.totalorder %v4183, 0
      %vm4470 = vcmp.ne.s32.totalorder %v4194, 0
      %vm4471 = vcmp.ne.s32.totalorder %v4205, 0
      %vm4472 = vcmp.ne.s32.totalorder %v4216, 0
      %vm4473 = vcmp.ne.s32.totalorder %v4227, 0
      %vm4474 = vcmp.ne.s32.totalorder %v4238, 0
      %vm4475 = vcmp.ne.s32.totalorder %v4249, 0
      %vm4476 = vcmp.ne.s32.totalorder %v4260, 0
      %vm4477 = vcmp.ne.s32.totalorder %v4271, 0
      %vm4478 = vcmp.ne.s32.totalorder %v4282, 0
      %vm4479 = vcmp.ne.s32.totalorder %v4293, 0
      %vm4480 = vcmp.ne.s32.totalorder %v4304, 0
      %vm4481 = vcmp.ne.s32.totalorder %v4315, 0
      %vm4482 = vcmp.ne.s32.totalorder %v4326, 0
      %vm4483 = vcmp.ne.s32.totalorder %v4337, 0
      %vm4484 = vcmp.ne.s32.totalorder %v4348, 0
      %vm4485 = vcmp.ne.s32.totalorder %v4359, 0
      %vm4486 = vcmp.ne.s32.totalorder %v4370, 0
      %vm4487 = vcmp.ne.s32.totalorder %v4381, 0
      %vm4488 = vcmp.ne.s32.totalorder %v4392, 0
      %vm4489 = vcmp.ne.s32.totalorder %v4403, 0
      %vm4490 = vcmp.ne.s32.totalorder %v4414, 0
      %vm4491 = vcmp.ne.s32.totalorder %v4425, 0
      %vm4492 = vcmp.ne.s32.totalorder %v4436, 0
      %vm4493 = vcmp.ne.s32.totalorder %v4447, 0
      %vm4494 = vcmp.ne.s32.totalorder %v4458, 0
      %vm4495 = vcmp.lt.s32.totalorder %v4073, 0
      %vm4496 = vcmp.lt.s32.totalorder %v4084, 0
      %vm4497 = vcmp.lt.s32.totalorder %v4095, 0
      %vm4498 = vcmp.lt.s32.totalorder %v4106, 0
      %vm4499 = vcmp.lt.s32.totalorder %v4117, 0
      %vm4500 = vcmp.lt.s32.totalorder %v4128, 0
      %vm4501 = vcmp.lt.s32.totalorder %v4139, 0
      %vm4502 = vcmp.lt.s32.totalorder %v4150, 0
      %vm4503 = vcmp.lt.s32.totalorder %v4161, 0
      %vm4504 = vcmp.lt.s32.totalorder %v4172, 0
      %vm4505 = vcmp.lt.s32.totalorder %v4183, 0
      %vm4506 = vcmp.lt.s32.totalorder %v4194, 0
      %vm4507 = vcmp.lt.s32.totalorder %v4205, 0
      %vm4508 = vcmp.lt.s32.totalorder %v4216, 0
      %vm4509 = vcmp.lt.s32.totalorder %v4227, 0
      %vm4510 = vcmp.lt.s32.totalorder %v4238, 0
      %vm4511 = vcmp.lt.s32.totalorder %v4249, 0
      %vm4512 = vcmp.lt.s32.totalorder %v4260, 0
      %vm4513 = vcmp.lt.s32.totalorder %v4271, 0
      %vm4514 = vcmp.lt.s32.totalorder %v4282, 0
      %vm4515 = vcmp.lt.s32.totalorder %v4293, 0
      %vm4516 = vcmp.lt.s32.totalorder %v4304, 0
      %vm4517 = vcmp.lt.s32.totalorder %v4315, 0
      %vm4518 = vcmp.lt.s32.totalorder %v4326, 0
      %vm4519 = vcmp.lt.s32.totalorder %v4337, 0
      %vm4520 = vcmp.lt.s32.totalorder %v4348, 0
      %vm4521 = vcmp.lt.s32.totalorder %v4359, 0
      %vm4522 = vcmp.lt.s32.totalorder %v4370, 0
      %vm4523 = vcmp.lt.s32.totalorder %v4381, 0
      %vm4524 = vcmp.lt.s32.totalorder %v4392, 0
      %vm4525 = vcmp.lt.s32.totalorder %v4403, 0
      %vm4526 = vcmp.lt.s32.totalorder %v4414, 0
      %vm4527 = vcmp.lt.s32.totalorder %v4425, 0
      %vm4528 = vcmp.lt.s32.totalorder %v4436, 0
      %vm4529 = vcmp.lt.s32.totalorder %v4447, 0
      %vm4530 = vcmp.lt.s32.totalorder %v4458, 0
      %vm4531 = vmand %vm4495, %vm4459
      %vm4532 = vmand %vm4496, %vm4460
      %vm4533 = vmand %vm4497, %vm4461
      %vm4534 = vmand %vm4498, %vm4462
      %vm4535 = vmand %vm4499, %vm4463
      %vm4536 = vmand %vm4500, %vm4464
      %vm4537 = vmand %vm4501, %vm4465
      %vm4538 = vmand %vm4502, %vm4466
      %vm4539 = vmand %vm4503, %vm4467
      %vm4540 = vmand %vm4504, %vm4468
      %vm4541 = vmand %vm4505, %vm4469
      %vm4542 = vmand %vm4506, %vm4470
      %vm4543 = vmand %vm4507, %vm4471
      %vm4544 = vmand %vm4508, %vm4472
      %vm4545 = vmand %vm4509, %vm4473
      %vm4546 = vmand %vm4510, %vm4474
      %vm4547 = vmand %vm4511, %vm4475
      %vm4548 = vmand %vm4512, %vm4476
      %vm4549 = vmand %vm4513, %vm4477
      %vm4550 = vmand %vm4514, %vm4478
      %vm4551 = vmand %vm4515, %vm4479
      %vm4552 = vmand %vm4516, %vm4480
      %vm4553 = vmand %vm4517, %vm4481
      %vm4554 = vmand %vm4518, %vm4482
      %vm4555 = vmand %vm4519, %vm4483
      %vm4556 = vmand %vm4520, %vm4484
      %vm4557 = vmand %vm4521, %vm4485
      %vm4558 = vmand %vm4522, %vm4486
      %vm4559 = vmand %vm4523, %vm4487
      %vm4560 = vmand %vm4524, %vm4488
      %vm4561 = vmand %vm4525, %vm4489
      %vm4562 = vmand %vm4526, %vm4490
      %vm4563 = vmand %vm4527, %vm4491
      %vm4564 = vmand %vm4528, %vm4492
      %vm4565 = vmand %vm4529, %vm4493
      %vm4566 = vmand %vm4530, %vm4494
      %v4567 = vadd.s32 %v4073, 18
      %v4568 = vadd.s32 %v4084, 18
      %v4569 = vadd.s32 %v4095, 18
      %v4570 = vadd.s32 %v4106, 18
      %v4571 = vadd.s32 %v4117, 18
      %v4572 = vadd.s32 %v4128, 18
      %v4573 = vadd.s32 %v4139, 18
      %v4574 = vadd.s32 %v4150, 18
      %v4575 = vadd.s32 %v4161, 18
      %v4576 = vadd.s32 %v4172, 18
      %v4577 = vadd.s32 %v4183, 18
      %v4578 = vadd.s32 %v4194, 18
      %v4579 = vadd.s32 %v4205, 18
      %v4580 = vadd.s32 %v4216, 18
      %v4581 = vadd.s32 %v4227, 18
      %v4582 = vadd.s32 %v4238, 18
      %v4583 = vadd.s32 %v4249, 18
      %v4584 = vadd.s32 %v4260, 18
      %v4585 = vadd.s32 %v4271, 18
      %v4586 = vadd.s32 %v4282, 18
      %v4587 = vadd.s32 %v4293, 18
      %v4588 = vadd.s32 %v4304, 18
      %v4589 = vadd.s32 %v4315, 18
      %v4590 = vadd.s32 %v4326, 18
      %v4591 = vadd.s32 %v4337, 18
      %v4592 = vadd.s32 %v4348, 18
      %v4593 = vadd.s32 %v4359, 18
      %v4594 = vadd.s32 %v4370, 18
      %v4595 = vadd.s32 %v4381, 18
      %v4596 = vadd.s32 %v4392, 18
      %v4597 = vadd.s32 %v4403, 18
      %v4598 = vadd.s32 %v4414, 18
      %v4599 = vadd.s32 %v4425, 18
      %v4600 = vadd.s32 %v4436, 18
      %v4601 = vadd.s32 %v4447, 18
      %v4602 = vadd.s32 %v4458, 18
      %v4603 = vsel %vm4531, %v4567, %v4073
      %v4604 = vsel %vm4532, %v4568, %v4084
      %v4605 = vsel %vm4533, %v4569, %v4095
      %v4606 = vsel %vm4534, %v4570, %v4106
      %v4607 = vsel %vm4535, %v4571, %v4117
      %v4608 = vsel %vm4536, %v4572, %v4128
      %v4609 = vsel %vm4537, %v4573, %v4139
      %v4610 = vsel %vm4538, %v4574, %v4150
      %v4611 = vsel %vm4539, %v4575, %v4161
      %v4612 = vsel %vm4540, %v4576, %v4172
      %v4613 = vsel %vm4541, %v4577, %v4183
      %v4614 = vsel %vm4542, %v4578, %v4194
      %v4615 = vsel %vm4543, %v4579, %v4205
      %v4616 = vsel %vm4544, %v4580, %v4216
      %v4617 = vsel %vm4545, %v4581, %v4227
      %v4618 = vsel %vm4546, %v4582, %v4238
      %v4619 = vsel %vm4547, %v4583, %v4249
      %v4620 = vsel %vm4548, %v4584, %v4260
      %v4621 = vsel %vm4549, %v4585, %v4271
      %v4622 = vsel %vm4550, %v4586, %v4282
      %v4623 = vsel %vm4551, %v4587, %v4293
      %v4624 = vsel %vm4552, %v4588, %v4304
      %v4625 = vsel %vm4553, %v4589, %v4315
      %v4626 = vsel %vm4554, %v4590, %v4326
      %v4627 = vsel %vm4555, %v4591, %v4337
      %v4628 = vsel %vm4556, %v4592, %v4348
      %v4629 = vsel %vm4557, %v4593, %v4359
      %v4630 = vsel %vm4558, %v4594, %v4370
      %v4631 = vsel %vm4559, %v4595, %v4381
      %v4632 = vsel %vm4560, %v4596, %v4392
      %v4633 = vsel %vm4561, %v4597, %v4403
      %v4634 = vsel %vm4562, %v4598, %v4414
      %v4635 = vsel %vm4563, %v4599, %v4425
      %v4636 = vsel %vm4564, %v4600, %v4436
      %v4637 = vsel %vm4565, %v4601, %v4447
      %v4638 = vsel %vm4566, %v4602, %v4458
      %vm4639 = vcmp.ge.s32.totalorder %v4603, 1
      %vm4640 = vcmp.ge.s32.totalorder %v4604, 1
      %vm4641 = vcmp.ge.s32.totalorder %v4605, 1
      %vm4642 = vcmp.ge.s32.totalorder %v4606, 1
      %vm4643 = vcmp.ge.s32.totalorder %v4607, 1
      %vm4644 = vcmp.ge.s32.totalorder %v4608, 1
      %vm4645 = vcmp.ge.s32.totalorder %v4609, 1
      %vm4646 = vcmp.ge.s32.totalorder %v4610, 1
      %vm4647 = vcmp.ge.s32.totalorder %v4611, 1
      %vm4648 = vcmp.ge.s32.totalorder %v4612, 1
      %vm4649 = vcmp.ge.s32.totalorder %v4613, 1
      %vm4650 = vcmp.ge.s32.totalorder %v4614, 1
      %vm4651 = vcmp.ge.s32.totalorder %v4615, 1
      %vm4652 = vcmp.ge.s32.totalorder %v4616, 1
      %vm4653 = vcmp.ge.s32.totalorder %v4617, 1
      %vm4654 = vcmp.ge.s32.totalorder %v4618, 1
      %vm4655 = vcmp.ge.s32.totalorder %v4619, 1
      %vm4656 = vcmp.ge.s32.totalorder %v4620, 1
      %vm4657 = vcmp.ge.s32.totalorder %v4621, 1
      %vm4658 = vcmp.ge.s32.totalorder %v4622, 1
      %vm4659 = vcmp.ge.s32.totalorder %v4623, 1
      %vm4660 = vcmp.ge.s32.totalorder %v4624, 1
      %vm4661 = vcmp.ge.s32.totalorder %v4625, 1
      %vm4662 = vcmp.ge.s32.totalorder %v4626, 1
      %vm4663 = vcmp.ge.s32.totalorder %v4627, 1
      %vm4664 = vcmp.ge.s32.totalorder %v4628, 1
      %vm4665 = vcmp.ge.s32.totalorder %v4629, 1
      %vm4666 = vcmp.ge.s32.totalorder %v4630, 1
      %vm4667 = vcmp.ge.s32.totalorder %v4631, 1
      %vm4668 = vcmp.ge.s32.totalorder %v4632, 1
      %vm4669 = vcmp.ge.s32.totalorder %v4633, 1
      %vm4670 = vcmp.ge.s32.totalorder %v4634, 1
      %vm4671 = vcmp.ge.s32.totalorder %v4635, 1
      %vm4672 = vcmp.ge.s32.totalorder %v4636, 1
      %vm4673 = vcmp.ge.s32.totalorder %v4637, 1
      %vm4674 = vcmp.ge.s32.totalorder %v4638, 1
      %vm4675 = vcmp.le.s32.totalorder %v4603, 16
      %vm4676 = vcmp.le.s32.totalorder %v4604, 16
      %vm4677 = vcmp.le.s32.totalorder %v4605, 16
      %vm4678 = vcmp.le.s32.totalorder %v4606, 16
      %vm4679 = vcmp.le.s32.totalorder %v4607, 16
      %vm4680 = vcmp.le.s32.totalorder %v4608, 16
      %vm4681 = vcmp.le.s32.totalorder %v4609, 16
      %vm4682 = vcmp.le.s32.totalorder %v4610, 16
      %vm4683 = vcmp.le.s32.totalorder %v4611, 16
      %vm4684 = vcmp.le.s32.totalorder %v4612, 16
      %vm4685 = vcmp.le.s32.totalorder %v4613, 16
      %vm4686 = vcmp.le.s32.totalorder %v4614, 16
      %vm4687 = vcmp.le.s32.totalorder %v4615, 16
      %vm4688 = vcmp.le.s32.totalorder %v4616, 16
      %vm4689 = vcmp.le.s32.totalorder %v4617, 16
      %vm4690 = vcmp.le.s32.totalorder %v4618, 16
      %vm4691 = vcmp.le.s32.totalorder %v4619, 16
      %vm4692 = vcmp.le.s32.totalorder %v4620, 16
      %vm4693 = vcmp.le.s32.totalorder %v4621, 16
      %vm4694 = vcmp.le.s32.totalorder %v4622, 16
      %vm4695 = vcmp.le.s32.totalorder %v4623, 16
      %vm4696 = vcmp.le.s32.totalorder %v4624, 16
      %vm4697 = vcmp.le.s32.totalorder %v4625, 16
      %vm4698 = vcmp.le.s32.totalorder %v4626, 16
      %vm4699 = vcmp.le.s32.totalorder %v4627, 16
      %vm4700 = vcmp.le.s32.totalorder %v4628, 16
      %vm4701 = vcmp.le.s32.totalorder %v4629, 16
      %vm4702 = vcmp.le.s32.totalorder %v4630, 16
      %vm4703 = vcmp.le.s32.totalorder %v4631, 16
      %vm4704 = vcmp.le.s32.totalorder %v4632, 16
      %vm4705 = vcmp.le.s32.totalorder %v4633, 16
      %vm4706 = vcmp.le.s32.totalorder %v4634, 16
      %vm4707 = vcmp.le.s32.totalorder %v4635, 16
      %vm4708 = vcmp.le.s32.totalorder %v4636, 16
      %vm4709 = vcmp.le.s32.totalorder %v4637, 16
      %vm4710 = vcmp.le.s32.totalorder %v4638, 16
      %vm4711 = vmand %vm4639, %vm4675
      %vm4712 = vmand %vm4640, %vm4676
      %vm4713 = vmand %vm4641, %vm4677
      %vm4714 = vmand %vm4642, %vm4678
      %vm4715 = vmand %vm4643, %vm4679
      %vm4716 = vmand %vm4644, %vm4680
      %vm4717 = vmand %vm4645, %vm4681
      %vm4718 = vmand %vm4646, %vm4682
      %vm4719 = vmand %vm4647, %vm4683
      %vm4720 = vmand %vm4648, %vm4684
      %vm4721 = vmand %vm4649, %vm4685
      %vm4722 = vmand %vm4650, %vm4686
      %vm4723 = vmand %vm4651, %vm4687
      %vm4724 = vmand %vm4652, %vm4688
      %vm4725 = vmand %vm4653, %vm4689
      %vm4726 = vmand %vm4654, %vm4690
      %vm4727 = vmand %vm4655, %vm4691
      %vm4728 = vmand %vm4656, %vm4692
      %vm4729 = vmand %vm4657, %vm4693
      %vm4730 = vmand %vm4658, %vm4694
      %vm4731 = vmand %vm4659, %vm4695
      %vm4732 = vmand %vm4660, %vm4696
      %vm4733 = vmand %vm4661, %vm4697
      %vm4734 = vmand %vm4662, %vm4698
      %vm4735 = vmand %vm4663, %vm4699
      %vm4736 = vmand %vm4664, %vm4700
      %vm4737 = vmand %vm4665, %vm4701
      %vm4738 = vmand %vm4666, %vm4702
      %vm4739 = vmand %vm4667, %vm4703
      %vm4740 = vmand %vm4668, %vm4704
      %vm4741 = vmand %vm4669, %vm4705
      %vm4742 = vmand %vm4670, %vm4706
      %vm4743 = vmand %vm4671, %vm4707
      %vm4744 = vmand %vm4672, %vm4708
      %vm4745 = vmand %vm4673, %vm4709
      %vm4746 = vmand %vm4674, %vm4710
      %v4747 = vsel %vm4711, 1, 0
      %v4748 = vsel %vm4712, 1, 0
      %v4749 = vsel %vm4713, 1, 0
      %v4750 = vsel %vm4714, 1, 0
      %v4751 = vsel %vm4715, 1, 0
      %v4752 = vsel %vm4716, 1, 0
      %v4753 = vsel %vm4717, 1, 0
      %v4754 = vsel %vm4718, 1, 0
      %v4755 = vsel %vm4719, 1, 0
      %v4756 = vsel %vm4720, 1, 0
      %v4757 = vsel %vm4721, 1, 0
      %v4758 = vsel %vm4722, 1, 0
      %v4759 = vsel %vm4723, 1, 0
      %v4760 = vsel %vm4724, 1, 0
      %v4761 = vsel %vm4725, 1, 0
      %v4762 = vsel %vm4726, 1, 0
      %v4763 = vsel %vm4727, 1, 0
      %v4764 = vsel %vm4728, 1, 0
      %v4765 = vsel %vm4729, 1, 0
      %v4766 = vsel %vm4730, 1, 0
      %v4767 = vsel %vm4731, 1, 0
      %v4768 = vsel %vm4732, 1, 0
      %v4769 = vsel %vm4733, 1, 0
      %v4770 = vsel %vm4734, 1, 0
      %v4771 = vsel %vm4735, 1, 0
      %v4772 = vsel %vm4736, 1, 0
      %v4773 = vsel %vm4737, 1, 0
      %v4774 = vsel %vm4738, 1, 0
      %v4775 = vsel %vm4739, 1, 0
      %v4776 = vsel %vm4740, 1, 0
      %v4777 = vsel %vm4741, 1, 0
      %v4778 = vsel %vm4742, 1, 0
      %v4779 = vsel %vm4743, 1, 0
      %v4780 = vsel %vm4744, 1, 0
      %v4781 = vsel %vm4745, 1, 0
      %v4782 = vsel %vm4746, 1, 0
      %vm4783 = vcmp.eq.s32.totalorder %v4747, 1
      %vm4784 = vcmp.eq.s32.totalorder %v4748, 1
      %vm4785 = vcmp.eq.s32.totalorder %v4749, 1
      %vm4786 = vcmp.eq.s32.totalorder %v4750, 1
      %vm4787 = vcmp.eq.s32.totalorder %v4751, 1
      %vm4788 = vcmp.eq.s32.totalorder %v4752, 1
      %vm4789 = vcmp.eq.s32.totalorder %v4753, 1
      %vm4790 = vcmp.eq.s32.totalorder %v4754, 1
      %vm4791 = vcmp.eq.s32.totalorder %v4755, 1
      %vm4792 = vcmp.eq.s32.totalorder %v4756, 1
      %vm4793 = vcmp.eq.s32.totalorder %v4757, 1
      %vm4794 = vcmp.eq.s32.totalorder %v4758, 1
      %vm4795 = vcmp.eq.s32.totalorder %v4759, 1
      %vm4796 = vcmp.eq.s32.totalorder %v4760, 1
      %vm4797 = vcmp.eq.s32.totalorder %v4761, 1
      %vm4798 = vcmp.eq.s32.totalorder %v4762, 1
      %vm4799 = vcmp.eq.s32.totalorder %v4763, 1
      %vm4800 = vcmp.eq.s32.totalorder %v4764, 1
      %vm4801 = vcmp.eq.s32.totalorder %v4765, 1
      %vm4802 = vcmp.eq.s32.totalorder %v4766, 1
      %vm4803 = vcmp.eq.s32.totalorder %v4767, 1
      %vm4804 = vcmp.eq.s32.totalorder %v4768, 1
      %vm4805 = vcmp.eq.s32.totalorder %v4769, 1
      %vm4806 = vcmp.eq.s32.totalorder %v4770, 1
      %vm4807 = vcmp.eq.s32.totalorder %v4771, 1
      %vm4808 = vcmp.eq.s32.totalorder %v4772, 1
      %vm4809 = vcmp.eq.s32.totalorder %v4773, 1
      %vm4810 = vcmp.eq.s32.totalorder %v4774, 1
      %vm4811 = vcmp.eq.s32.totalorder %v4775, 1
      %vm4812 = vcmp.eq.s32.totalorder %v4776, 1
      %vm4813 = vcmp.eq.s32.totalorder %v4777, 1
      %vm4814 = vcmp.eq.s32.totalorder %v4778, 1
      %vm4815 = vcmp.eq.s32.totalorder %v4779, 1
      %vm4816 = vcmp.eq.s32.totalorder %v4780, 1
      %vm4817 = vcmp.eq.s32.totalorder %v4781, 1
      %vm4818 = vcmp.eq.s32.totalorder %v4782, 1
      %v4819 = vsel %vm4783, %v3990, 0.0
      %v4820 = vsel %vm4784, %v3991, 0.0
      %v4821 = vsel %vm4785, %v3992, 0.0
      %v4822 = vsel %vm4786, %v3993, 0.0
      %v4823 = vsel %vm4787, %v3994, 0.0
      %v4824 = vsel %vm4788, %v3995, 0.0
      %v4825 = vsel %vm4789, %v3996, 0.0
      %v4826 = vsel %vm4790, %v3997, 0.0
      %v4827 = vsel %vm4791, %v3998, 0.0
      %v4828 = vsel %vm4792, %v3999, 0.0
      %v4829 = vsel %vm4793, %v4000, 0.0
      %v4830 = vsel %vm4794, %v4001, 0.0
      %v4831 = vsel %vm4795, %v4002, 0.0
      %v4832 = vsel %vm4796, %v4003, 0.0
      %v4833 = vsel %vm4797, %v4004, 0.0
      %v4834 = vsel %vm4798, %v4005, 0.0
      %v4835 = vsel %vm4799, %v4006, 0.0
      %v4836 = vsel %vm4800, %v4007, 0.0
      %v4837 = vsel %vm4801, %v4008, 0.0
      %v4838 = vsel %vm4802, %v4009, 0.0
      %v4839 = vsel %vm4803, %v4010, 0.0
      %v4840 = vsel %vm4804, %v4011, 0.0
      %v4841 = vsel %vm4805, %v4012, 0.0
      %v4842 = vsel %vm4806, %v4013, 0.0
      %v4843 = vsel %vm4807, %v4014, 0.0
      %v4844 = vsel %vm4808, %v4015, 0.0
      %v4845 = vsel %vm4809, %v4016, 0.0
      %v4846 = vsel %vm4810, %v4017, 0.0
      %v4847 = vsel %vm4811, %v4018, 0.0
      %v4848 = vsel %vm4812, %v4019, 0.0
      %v4849 = vsel %vm4813, %v4020, 0.0
      %v4850 = vsel %vm4814, %v4021, 0.0
      %v4851 = vsel %vm4815, %v4022, 0.0
      %v4852 = vsel %vm4816, %v4023, 0.0
      %v4853 = vsel %vm4817, %v4024, 0.0
      %v4854 = vsel %vm4818, %v4025, 0.0
      %v4855 = vpack.c.bf16 %v4820, %v4819
      %v4856 = vpack.c.bf16 %v4822, %v4821
      %v4857 = vpack.c.bf16 %v4824, %v4823
      %v4858 = vpack.c.bf16 %v4826, %v4825
      %v4859 = vpack.c.bf16 %v4828, %v4827
      %v4860 = vpack.c.bf16 %v4830, %v4829
      %v4861 = vpack.c.bf16 %v4832, %v4831
      %v4862 = vpack.c.bf16 %v4834, %v4833
      %v4863 = vpack.c.bf16 %v4836, %v4835
      %v4864 = vpack.c.bf16 %v4838, %v4837
      %v4865 = vpack.c.bf16 %v4840, %v4839
      %v4866 = vpack.c.bf16 %v4842, %v4841
      %v4867 = vpack.c.bf16 %v4844, %v4843
      %v4868 = vpack.c.bf16 %v4846, %v4845
      %v4869 = vpack.c.bf16 %v4848, %v4847
      %v4870 = vpack.c.bf16 %v4850, %v4849
      %v4871 = vpack.c.bf16 %v4852, %v4851
      %v4872 = vpack.c.bf16 %v4854, %v4853
      %v4891 = vunpack.c.l.b16 %v4855
      %v4892 = vunpack.c.h.b16 %v4855
      %v4893 = vunpack.c.l.b16 %v4856
      %v4894 = vunpack.c.h.b16 %v4856
      %v4895 = vunpack.c.l.b16 %v4857
      %v4896 = vunpack.c.h.b16 %v4857
      %v4897 = vunpack.c.l.b16 %v4858
      %v4898 = vunpack.c.h.b16 %v4858
      %v4899 = vunpack.c.l.b16 %v4859
      %v4900 = vunpack.c.h.b16 %v4859
      %v4901 = vunpack.c.l.b16 %v4860
      %v4902 = vunpack.c.h.b16 %v4860
      %v4903 = vunpack.c.l.b16 %v4861
      %v4904 = vunpack.c.h.b16 %v4861
      %v4905 = vunpack.c.l.b16 %v4862
      %v4906 = vunpack.c.h.b16 %v4862
      %v4907 = vunpack.c.l.b16 %v4863
      %v4908 = vunpack.c.h.b16 %v4863
      %v4909 = vunpack.c.l.b16 %v4864
      %v4910 = vunpack.c.h.b16 %v4864
      %v4911 = vunpack.c.l.b16 %v4865
      %v4912 = vunpack.c.h.b16 %v4865
      %v4913 = vunpack.c.l.b16 %v4866
      %v4914 = vunpack.c.h.b16 %v4866
      %v4915 = vunpack.c.l.b16 %v4867
      %v4916 = vunpack.c.h.b16 %v4867
      %v4917 = vunpack.c.l.b16 %v4868
      %v4918 = vunpack.c.h.b16 %v4868
      %v4919 = vunpack.c.l.b16 %v4869
      %v4920 = vunpack.c.h.b16 %v4869
      %v4921 = vunpack.c.l.b16 %v4870
      %v4922 = vunpack.c.h.b16 %v4870
      %v4923 = vunpack.c.l.b16 %v4871
      %v4924 = vunpack.c.h.b16 %v4871
      %v4925 = vunpack.c.l.b16 %v4872
      %v4926 = vunpack.c.h.b16 %v4872
      %v4927 = vpack.c.b16 %v4891, %v4891
      %v4928 = vpack.c.b16 %v4892, %v4892
      %v4929 = vpack.c.b16 %v4893, %v4893
      %v4930 = vpack.c.b16 %v4894, %v4894
      %v4931 = vpack.c.b16 %v4895, %v4895
      %v4932 = vpack.c.b16 %v4896, %v4896
      %v4933 = vpack.c.b16 %v4897, %v4897
      %v4934 = vpack.c.b16 %v4898, %v4898
      %v4935 = vpack.c.b16 %v4899, %v4899
      %v4936 = vpack.c.b16 %v4900, %v4900
      %v4937 = vpack.c.b16 %v4901, %v4901
      %v4938 = vpack.c.b16 %v4902, %v4902
      %v4939 = vpack.c.b16 %v4903, %v4903
      %v4940 = vpack.c.b16 %v4904, %v4904
      %v4941 = vpack.c.b16 %v4905, %v4905
      %v4942 = vpack.c.b16 %v4906, %v4906
      %v4943 = vpack.c.b16 %v4907, %v4907
      %v4944 = vpack.c.b16 %v4908, %v4908
      %v4945 = vpack.c.b16 %v4909, %v4909
      %v4946 = vpack.c.b16 %v4910, %v4910
      %v4947 = vpack.c.b16 %v4911, %v4911
      %v4948 = vpack.c.b16 %v4912, %v4912
      %v4949 = vpack.c.b16 %v4913, %v4913
      %v4950 = vpack.c.b16 %v4914, %v4914
      %v4951 = vpack.c.b16 %v4915, %v4915
      %v4952 = vpack.c.b16 %v4916, %v4916
      %v4953 = vpack.c.b16 %v4917, %v4917
      %v4954 = vpack.c.b16 %v4918, %v4918
      %v4955 = vpack.c.b16 %v4919, %v4919
      %v4956 = vpack.c.b16 %v4920, %v4920
      %v4957 = vpack.c.b16 %v4921, %v4921
      %v4958 = vpack.c.b16 %v4922, %v4922
      %v4959 = vpack.c.b16 %v4923, %v4923
      %v4960 = vpack.c.b16 %v4924, %v4924
      %v4961 = vpack.c.b16 %v4925, %v4925
      %v4962 = vpack.c.b16 %v4926, %v4926
      %vm4999 = vcmask 60416
      %5000 = vst.msk [vmem:[%s313] sm:$0xf] %vm4999, %v4927
      %5001 = vst.msk [vmem:[%s313 + $0x4] sm:$0xf] %vm4999, %v4928
      %5002 = vst.msk [vmem:[%s313 + $0x8] sm:$0xf] %vm4999, %v4929
      %5003 = vst.msk [vmem:[%s313 + $0xc] sm:$0xf] %vm4999, %v4930
      %5004 = vst.msk [vmem:[%s313 + $0x10] sm:$0xf] %vm4999, %v4931
      %5005 = vst.msk [vmem:[%s313 + $0x14] sm:$0xf] %vm4999, %v4932
      %5006 = vst.msk [vmem:[%s313 + $0x18] sm:$0xf] %vm4999, %v4933
      %5007 = vst.msk [vmem:[%s313 + $0x1c] sm:$0xf] %vm4999, %v4934
      %5008 = vst.msk [vmem:[%s313 + $0x20] sm:$0xf] %vm4999, %v4935
      %5009 = vst.msk [vmem:[%s313 + $0x24] sm:$0xf] %vm4999, %v4936
      %5010 = vst.msk [vmem:[%s313 + $0x28] sm:$0xf] %vm4999, %v4937
      %5011 = vst.msk [vmem:[%s313 + $0x2c] sm:$0xf] %vm4999, %v4938
      %5012 = vst.msk [vmem:[%s313 + $0x30] sm:$0xf] %vm4999, %v4939
      %5013 = vst.msk [vmem:[%s313 + $0x34] sm:$0xf] %vm4999, %v4940
      %5014 = vst.msk [vmem:[%s313 + $0x38] sm:$0xf] %vm4999, %v4941
      %5015 = vst.msk [vmem:[%s313 + $0x3c] sm:$0xf] %vm4999, %v4942
      %5016 = vst.msk [vmem:[%s313 + $0x40] sm:$0xf] %vm4999, %v4943
      %5017 = vst.msk [vmem:[%s313 + $0x44] sm:$0xf] %vm4999, %v4944
      %5018 = vst.msk [vmem:[%s313 + $0x48] sm:$0xf] %vm4999, %v4945
      %5019 = vst.msk [vmem:[%s313 + $0x4c] sm:$0xf] %vm4999, %v4946
      %5020 = vst.msk [vmem:[%s313 + $0x50] sm:$0xf] %vm4999, %v4947
      %5021 = vst.msk [vmem:[%s313 + $0x54] sm:$0xf] %vm4999, %v4948
      %5022 = vst.msk [vmem:[%s313 + $0x58] sm:$0xf] %vm4999, %v4949
      %5023 = vst.msk [vmem:[%s313 + $0x5c] sm:$0xf] %vm4999, %v4950
      %5024 = vst.msk [vmem:[%s313 + $0x60] sm:$0xf] %vm4999, %v4951
      %5025 = vst.msk [vmem:[%s313 + $0x64] sm:$0xf] %vm4999, %v4952
      %5026 = vst.msk [vmem:[%s313 + $0x68] sm:$0xf] %vm4999, %v4953
      %5027 = vst.msk [vmem:[%s313 + $0x6c] sm:$0xf] %vm4999, %v4954
      %5028 = vst.msk [vmem:[%s313 + $0x70] sm:$0xf] %vm4999, %v4955
      %5029 = vst.msk [vmem:[%s313 + $0x74] sm:$0xf] %vm4999, %v4956
      %5030 = vst.msk [vmem:[%s313 + $0x78] sm:$0xf] %vm4999, %v4957
      %5031 = vst.msk [vmem:[%s313 + $0x7c] sm:$0xf] %vm4999, %v4958
      %5032 = vst.msk [vmem:[%s313 + $0x80] sm:$0xf] %vm4999, %v4959
      %5033 = vst.msk [vmem:[%s313 + $0x84] sm:$0xf] %vm4999, %v4960
      %5034 = vst.msk [vmem:[%s313 + $0x88] sm:$0xf] %vm4999, %v4961
      %5035 = vst.msk [vmem:[%s313 + $0x8c] sm:$0xf] %vm4999, %v4962
      %p5036 = scmp.eq.s32.totalorder %s24, 0
      // Predicated region
      $region33: #{_lambda_.5} parent=31 // pred_check
        %p5037 = pneg %p5036
      $region34: #{_lambda_.5} parent=31 // pred_check_branch
        %5039 = sbr.rel (%p5037) target = $region36
      $region35: #{_lambda_.5} parent=31 // pred_region
        %vm5040 = vcmask 57344
        %5041 = vst.msk [vmem:[%s320] sm:$0x1] %vm5040, 0.0
        %5042 = vst.msk [vmem:[%s326] sm:$0x1] %vm5040, 0.0
      $region36: #{_lambda_.5} parent=31 // pred_fallthru
        _
      %v5043 = vld [vmem:[%s320] sm:$0x1]
      %vm5044 = vcmask 64512
      %v5045 = vsel %vm5044, %v4819, 0.0
      %v5046 = vsel %vm5044, %v4820, 0.0
      %v5047 = vadd.f32 %v5045, %v5046
      %v5048 = vsel %vm5044, %v4821, 0.0
      %v5049 = vadd.f32 %v5047, %v5048
      %v5050 = vsel %vm5044, %v4822, 0.0
      %v5051 = vadd.f32 %v5049, %v5050
      %v5052 = vsel %vm5044, %v4823, 0.0
      %v5053 = vadd.f32 %v5051, %v5052
      %v5054 = vsel %vm5044, %v4824, 0.0
      %v5055 = vadd.f32 %v5053, %v5054
      %v5056 = vsel %vm5044, %v4825, 0.0
      %v5057 = vadd.f32 %v5055, %v5056
      %v5058 = vsel %vm5044, %v4826, 0.0
      %v5059 = vadd.f32 %v5057, %v5058
      %v5060 = vsel %vm5044, %v4827, 0.0
      %v5061 = vadd.f32 %v5059, %v5060
      %v5062 = vsel %vm5044, %v4828, 0.0
      %v5063 = vadd.f32 %v5061, %v5062
      %v5064 = vsel %vm5044, %v4829, 0.0
      %v5065 = vadd.f32 %v5063, %v5064
      %v5066 = vsel %vm5044, %v4830, 0.0
      %v5067 = vadd.f32 %v5065, %v5066
      %v5068 = vsel %vm5044, %v4831, 0.0
      %v5069 = vadd.f32 %v5067, %v5068
      %v5070 = vsel %vm5044, %v4832, 0.0
      %v5071 = vadd.f32 %v5069, %v5070
      %v5072 = vsel %vm5044, %v4833, 0.0
      %v5073 = vadd.f32 %v5071, %v5072
      %v5074 = vsel %vm5044, %v4834, 0.0
      %v5075 = vadd.f32 %v5073, %v5074
      %v5076 = vsel %vm5044, %v4835, 0.0
      %v5077 = vadd.f32 %v5075, %v5076
      %v5078 = vsel %vm5044, %v4836, 0.0
      %v5079 = vadd.f32 %v5077, %v5078
      %v5080 = vsel %vm5044, %v4837, 0.0
      %v5081 = vadd.f32 %v5079, %v5080
      %v5082 = vsel %vm5044, %v4838, 0.0
      %v5083 = vadd.f32 %v5081, %v5082
      %v5084 = vsel %vm5044, %v4839, 0.0
      %v5085 = vadd.f32 %v5083, %v5084
      %v5086 = vsel %vm5044, %v4840, 0.0
      %v5087 = vadd.f32 %v5085, %v5086
      %v5088 = vsel %vm5044, %v4841, 0.0
      %v5089 = vadd.f32 %v5087, %v5088
      %v5090 = vsel %vm5044, %v4842, 0.0
      %v5091 = vadd.f32 %v5089, %v5090
      %v5092 = vsel %vm5044, %v4843, 0.0
      %v5093 = vadd.f32 %v5091, %v5092
      %v5094 = vsel %vm5044, %v4844, 0.0
      %v5095 = vadd.f32 %v5093, %v5094
      %v5096 = vsel %vm5044, %v4845, 0.0
      %v5097 = vadd.f32 %v5095, %v5096
      %v5098 = vsel %vm5044, %v4846, 0.0
      %v5099 = vadd.f32 %v5097, %v5098
      %v5100 = vsel %vm5044, %v4847, 0.0
      %v5101 = vadd.f32 %v5099, %v5100
      %v5102 = vsel %vm5044, %v4848, 0.0
      %v5103 = vadd.f32 %v5101, %v5102
      %v5104 = vsel %vm5044, %v4849, 0.0
      %v5105 = vadd.f32 %v5103, %v5104
      %v5106 = vsel %vm5044, %v4850, 0.0
      %v5107 = vadd.f32 %v5105, %v5106
      %v5108 = vsel %vm5044, %v4851, 0.0
      %v5109 = vadd.f32 %v5107, %v5108
      %v5110 = vsel %vm5044, %v4852, 0.0
      %v5111 = vadd.f32 %v5109, %v5110
      %v5112 = vsel %vm5044, %v4853, 0.0
      %v5113 = vadd.f32 %v5111, %v5112
      %v5114 = vsel %vm5044, %v4854, 0.0
      %v5115 = vadd.f32 %v5113, %v5114
      %v5116 = vrot.slane %v5115, 4
      %v5117 = vadd.f32 %v5115, %v5116
      %v5118 = vrot.slane %v5117, 2
      %v5119 = vadd.f32 %v5117, %v5118
      %v5120 = vrot.slane %v5119, 1
      %v5121 = vadd.f32 %v5119, %v5120
      %v5122 = vadd.f32 %v5043, %v5121
      %vm5123 = vcmask 57344
      %5124 = vst.msk [vmem:[%s320] sm:$0x1] %vm5123, %v5122
      %v5125 = vld [vmem:[%s326] sm:$0x1]
      %v5126 = vmul.f32 %v4819, %v4819
      %v5127 = vmul.f32 %v4820, %v4820
      %v5128 = vmul.f32 %v4821, %v4821
      %v5129 = vmul.f32 %v4822, %v4822
      %v5130 = vmul.f32 %v4823, %v4823
      %v5131 = vmul.f32 %v4824, %v4824
      %v5132 = vmul.f32 %v4825, %v4825
      %v5133 = vmul.f32 %v4826, %v4826
      %v5134 = vmul.f32 %v4827, %v4827
      %v5135 = vmul.f32 %v4828, %v4828
      %v5136 = vmul.f32 %v4829, %v4829
      %v5137 = vmul.f32 %v4830, %v4830
      %v5138 = vmul.f32 %v4831, %v4831
      %v5139 = vmul.f32 %v4832, %v4832
      %v5140 = vmul.f32 %v4833, %v4833
      %v5141 = vmul.f32 %v4834, %v4834
      %v5142 = vmul.f32 %v4835, %v4835
      %v5143 = vmul.f32 %v4836, %v4836
      %v5144 = vmul.f32 %v4837, %v4837
      %v5145 = vmul.f32 %v4838, %v4838
      %v5146 = vmul.f32 %v4839, %v4839
      %v5147 = vmul.f32 %v4840, %v4840
      %v5148 = vmul.f32 %v4841, %v4841
      %v5149 = vmul.f32 %v4842, %v4842
      %v5150 = vmul.f32 %v4843, %v4843
      %v5151 = vmul.f32 %v4844, %v4844
      %v5152 = vmul.f32 %v4845, %v4845
      %v5153 = vmul.f32 %v4846, %v4846
      %v5154 = vmul.f32 %v4847, %v4847
      %v5155 = vmul.f32 %v4848, %v4848
      %v5156 = vmul.f32 %v4849, %v4849
      %v5157 = vmul.f32 %v4850, %v4850
      %v5158 = vmul.f32 %v4851, %v4851
      %v5159 = vmul.f32 %v4852, %v4852
      %v5160 = vmul.f32 %v4853, %v4853
      %v5161 = vmul.f32 %v4854, %v4854
      %v5162 = vsel %vm5044, %v5126, 0.0
      %v5163 = vsel %vm5044, %v5127, 0.0
      %v5164 = vadd.f32 %v5162, %v5163
      %v5165 = vsel %vm5044, %v5128, 0.0
      %v5166 = vadd.f32 %v5164, %v5165
      %v5167 = vsel %vm5044, %v5129, 0.0
      %v5168 = vadd.f32 %v5166, %v5167
      %v5169 = vsel %vm5044, %v5130, 0.0
      %v5170 = vadd.f32 %v5168, %v5169
      %v5171 = vsel %vm5044, %v5131, 0.0
      %v5172 = vadd.f32 %v5170, %v5171
      %v5173 = vsel %vm5044, %v5132, 0.0
      %v5174 = vadd.f32 %v5172, %v5173
      %v5175 = vsel %vm5044, %v5133, 0.0
      %v5176 = vadd.f32 %v5174, %v5175
      %v5177 = vsel %vm5044, %v5134, 0.0
      %v5178 = vadd.f32 %v5176, %v5177
      %v5179 = vsel %vm5044, %v5135, 0.0
      %v5180 = vadd.f32 %v5178, %v5179
      %v5181 = vsel %vm5044, %v5136, 0.0
      %v5182 = vadd.f32 %v5180, %v5181
      %v5183 = vsel %vm5044, %v5137, 0.0
      %v5184 = vadd.f32 %v5182, %v5183
      %v5185 = vsel %vm5044, %v5138, 0.0
      %v5186 = vadd.f32 %v5184, %v5185
      %v5187 = vsel %vm5044, %v5139, 0.0
      %v5188 = vadd.f32 %v5186, %v5187
      %v5189 = vsel %vm5044, %v5140, 0.0
      %v5190 = vadd.f32 %v5188, %v5189
      %v5191 = vsel %vm5044, %v5141, 0.0
      %v5192 = vadd.f32 %v5190, %v5191
      %v5193 = vsel %vm5044, %v5142, 0.0
      %v5194 = vadd.f32 %v5192, %v5193
      %v5195 = vsel %vm5044, %v5143, 0.0
      %v5196 = vadd.f32 %v5194, %v5195
      %v5197 = vsel %vm5044, %v5144, 0.0
      %v5198 = vadd.f32 %v5196, %v5197
      %v5199 = vsel %vm5044, %v5145, 0.0
      %v5200 = vadd.f32 %v5198, %v5199
      %v5201 = vsel %vm5044, %v5146, 0.0
      %v5202 = vadd.f32 %v5200, %v5201
      %v5203 = vsel %vm5044, %v5147, 0.0
      %v5204 = vadd.f32 %v5202, %v5203
      %v5205 = vsel %vm5044, %v5148, 0.0
      %v5206 = vadd.f32 %v5204, %v5205
      %v5207 = vsel %vm5044, %v5149, 0.0
      %v5208 = vadd.f32 %v5206, %v5207
      %v5209 = vsel %vm5044, %v5150, 0.0
      %v5210 = vadd.f32 %v5208, %v5209
      %v5211 = vsel %vm5044, %v5151, 0.0
      %v5212 = vadd.f32 %v5210, %v5211
      %v5213 = vsel %vm5044, %v5152, 0.0
      %v5214 = vadd.f32 %v5212, %v5213
      %v5215 = vsel %vm5044, %v5153, 0.0
      %v5216 = vadd.f32 %v5214, %v5215
      %v5217 = vsel %vm5044, %v5154, 0.0
      %v5218 = vadd.f32 %v5216, %v5217
      %v5219 = vsel %vm5044, %v5155, 0.0
      %v5220 = vadd.f32 %v5218, %v5219
      %v5221 = vsel %vm5044, %v5156, 0.0
      %v5222 = vadd.f32 %v5220, %v5221
      %v5223 = vsel %vm5044, %v5157, 0.0
      %v5224 = vadd.f32 %v5222, %v5223
      %v5225 = vsel %vm5044, %v5158, 0.0
      %v5226 = vadd.f32 %v5224, %v5225
      %v5227 = vsel %vm5044, %v5159, 0.0
      %v5228 = vadd.f32 %v5226, %v5227
      %v5229 = vsel %vm5044, %v5160, 0.0
      %v5230 = vadd.f32 %v5228, %v5229
      %v5231 = vsel %vm5044, %v5161, 0.0
      %v5232 = vadd.f32 %v5230, %v5231
      %v5233 = vrot.slane %v5232, 4
      %v5234 = vadd.f32 %v5232, %v5233
      %v5235 = vrot.slane %v5234, 2
      %v5236 = vadd.f32 %v5234, %v5235
      %v5237 = vrot.slane %v5236, 1
      %v5238 = vadd.f32 %v5236, %v5237
      %v5239 = vadd.f32 %v5125, %v5238
      %5240 = vst.msk [vmem:[%s326] sm:$0x1] %vm5123, %v5239
      %s5241 = smul.u32 36, %s24
      %p5242 = scmp.lt.s32.totalorder %s23, 1
      %s5243 = scalar_select %p5242, %s23, 1
      %p5244 = scmp.lt.s32.totalorder %s5241, 35
      %s5245 = scalar_select %p5244, %s5241, 35
      %p5246 = scmp.lt.s32.totalorder %s22, 0
      %s5247 = scalar_select %p5246, %s22, 0
      %s5248 = sadd.s32 %s5247, %s5245
      %s5249 = smul.addr %s5243, 36
      %s5250 = sadd.s32 %s5248, %s5249
      %s5251 = smul.addr %s5250, 4
      %s5252 = scalar_lea.vmem %s3, %s5251
      %p5253 = scmp.lt.s32.totalorder %s23, 1
      %s5254 = scalar_select %p5253, %s23, 1
      %p5255 = scmp.lt.s32.totalorder %s22, 0
      %s5256 = scalar_select %p5255, %s22, 0
      %s5257 = sadd.s32 %s5256, %s5254
      %s5258 = scalar_lea.vmem %s4, %s5257
      %p5259 = scmp.lt.s32.totalorder %s23, 1
      %s5260 = scalar_select %p5259, %s23, 1
      %p5261 = scmp.lt.s32.totalorder %s22, 0
      %s5262 = scalar_select %p5261, %s22, 0
      %s5263 = sadd.s32 %s5262, %s5260
      %s5264 = scalar_lea.vmem %s5, %s5263
      // Predicated region
      $region37: #{_lambda_.5} parent=31 // pred_check
        %p5265 = pneg %p136
      $region38: #{_lambda_.5} parent=31 // pred_check_branch
        %5267 = sbr.rel (%p5265) target = $region40
      $region39: #{_lambda_.5} parent=31 // pred_region
        %s5268 = smul.u32 36, %s24
      $region40: #{_lambda_.5} parent=31 // pred_fallthru
        _
      // Predicated region
      $region41: #{_lambda_.5} parent=31 // pred_check
        %p5269 = pneg %p164
      $region42: #{_lambda_.5} parent=31 // pred_check_branch
        %5271 = sbr.rel (%p5269) target = $region44
      $region43: #{_lambda_.5} parent=31 // pred_region
        _
      $region44: #{_lambda_.5} parent=31 // pred_fallthru
        _
      // Predicated region
      $region45: #{_lambda_.5} parent=31 // pred_check
        %p5272 = pneg %p192
      $region46: #{_lambda_.5} parent=31 // pred_check_branch
        %5274 = sbr.rel (%p5272) target = $region48
      $region47: #{_lambda_.5} parent=31 // pred_region
        _
      $region48: #{_lambda_.5} parent=31 // pred_fallthru
        _
    $region32: #{_lambda_.5} parent=5 // pred_fallthru
      _
    %p5275 = scmp.le.s32.totalorder 2, %s12
    // Predicated region
    $region49: #{_lambda_.5} parent=5 // pred_check
      %p5276 = pneg %p5275
    $region50: #{_lambda_.5} parent=5 // pred_check_branch
      %5278 = sbr.rel (%p5276) target = $region52
    $region51: #{_lambda_.5} parent=5 // pred_region
      %s5279 = ssub.s32 %s12, 2
      // Predicated region
      $region53: #{_lambda_.5} parent=51 // pred_check
        %p5280 = pneg %p142
      $region54: #{_lambda_.5} parent=51 // pred_check_branch
        %5282 = sbr.rel (%p5280) target = $region56
      $region55: #{_lambda_.5} parent=51 // pred_region
        %s5283 = smul.u32 36, %s27
        %p5284 = scmp.lt.s32.totalorder %s26, 1
        %s5285 = scalar_select %p5284, %s26, 1
        %p5286 = scmp.lt.s32.totalorder %s5283, 35
        %s5287 = scalar_select %p5286, %s5283, 35
        %p5288 = scmp.lt.s32.totalorder %s25, 0
        %s5289 = scalar_select %p5288, %s25, 0
        %s5290 = sadd.s32 %s5289, %s5287
        %s5291 = smul.addr %s5285, 36
        %s5292 = sadd.s32 %s5290, %s5291
        %s5293 = smul.addr %s5292, 4
        %s5294 = scalar_lea.vmem %s3, %s5293
      $region56: #{_lambda_.5} parent=51 // pred_fallthru
        _
      // Predicated region
      $region57: #{_lambda_.5} parent=51 // pred_check
        %p5295 = pneg %p170
      $region58: #{_lambda_.5} parent=51 // pred_check_branch
        %5297 = sbr.rel (%p5295) target = $region60
      $region59: #{_lambda_.5} parent=51 // pred_region
        %p5298 = scmp.lt.s32.totalorder %s26, 1
        %s5299 = scalar_select %p5298, %s26, 1
        %p5300 = scmp.lt.s32.totalorder %s25, 0
        %s5301 = scalar_select %p5300, %s25, 0
        %s5302 = sadd.s32 %s5301, %s5299
        %s5303 = scalar_lea.vmem %s4, %s5302
      $region60: #{_lambda_.5} parent=51 // pred_fallthru
        _
      // Predicated region
      $region61: #{_lambda_.5} parent=51 // pred_check
        %p5304 = pneg %p198
      $region62: #{_lambda_.5} parent=51 // pred_check_branch
        %5306 = sbr.rel (%p5304) target = $region64
      $region63: #{_lambda_.5} parent=51 // pred_region
        %p5307 = scmp.lt.s32.totalorder %s26, 1
        %s5308 = scalar_select %p5307, %s26, 1
        %p5309 = scmp.lt.s32.totalorder %s25, 0
        %s5310 = scalar_select %p5309, %s25, 0
        %s5311 = sadd.s32 %s5310, %s5308
        %s5312 = scalar_lea.vmem %s5, %s5311
      $region64: #{_lambda_.5} parent=51 // pred_fallthru
        _
    $region52: #{_lambda_.5} parent=5 // pred_fallthru
      _
  $region6: #{_lambda_.5} parent=0 // loop_footer
    %s16 = sadd.s32 1, %s12
  $region7: #{_lambda_.5} parent=0 // loop_footer_branch
    %11 = sbr.rel target = $region3
  $region8: #{_lambda_.5} parent=0 // loop_exit
    _

// kernel: _lambda_.9
$region0: #{_lambda_.9}
  #allocation0 [shape = 'u32[]', space=smem, size = 0x4, offset = 0x4, fixed_abs, tag = 'smem constant byte address 0x4 - core index']
  #allocation1 [shape = 'u32[144,128]{1,0:T(1,128)}', space=vmem, size = 0x12000, scoped, tag = 'internal scratch']
  %s0 = inlined_call_operand.vmem [shape: f32[2,256], index: 0, kind: input, shape index: {}]
  %s1 = inlined_call_operand.vmem [shape: f32[256,100], index: 1, kind: input, shape index: {}]
  %s2 = inlined_call_operand.vmem [shape: f32[1,100], index: 2, kind: input, shape index: {}]
  %s3 = inlined_call_operand.vmem [shape: f32[100,10], index: 3, kind: input, shape index: {}]
  %s4 = inlined_call_operand.vmem [shape: f32[1,10], index: 4, kind: input, shape index: {}]
  %s5 = inlined_call_operand.hbm [shape: f32[2,10], index: 5, kind: output, shape index: {}]
  %s6 = sld [smem:[#allocation0]]
  $region30: #{_lambda_.9} parent=0
    _
  %s8 = ssub.s32 1, %s6
  %s9 = scalar_select 0, %s8, %s6
  $region1: #{_lambda_.9} parent=0
    #allocation2 [shape = 'u8[1024]{0}', space=vmem, size = 0x400, scoped, tag = 'output window, operand 0, single buffered']
    #allocation3 [shape = 's32[1]{0}', space=sflag, size = 0x4, scoped, tag = 'scoped memory for _lambda_.9']
    %10 = vsyncpa [#allocation3], 0
    // Predicated region
    $region2: #{_lambda_.9} parent=1 // pred_check
      _
    $region3: #{_lambda_.9} parent=1 // pred_check_branch
      %12 = sbr.rel (0) target = $region5
    $region4: #{_lambda_.9} parent=1 // pred_region
      _
    $region5: #{_lambda_.9} parent=1 // pred_fallthru
      _
    // Predicated region
    $region6: #{_lambda_.9} parent=1 // pred_check
      _
    $region7: #{_lambda_.9} parent=1 // pred_check_branch
      %14 = sbr.rel (0) target = $region9
    $region8: #{_lambda_.9} parent=1 // pred_region
      _
    $region9: #{_lambda_.9} parent=1 // pred_fallthru
      _
    // Predicated region
    $region10: #{_lambda_.9} parent=1 // pred_check
      _
    $region11: #{_lambda_.9} parent=1 // pred_check_branch
      %16 = sbr.rel (0) target = $region13
    $region12: #{_lambda_.9} parent=1 // pred_region
      _
    $region13: #{_lambda_.9} parent=1 // pred_fallthru
      _
    // Predicated region
    $region14: #{_lambda_.9} parent=1 // pred_check
      _
    $region15: #{_lambda_.9} parent=1 // pred_check_branch
      %18 = sbr.rel (0) target = $region17
    $region16: #{_lambda_.9} parent=1 // pred_region
      _
    $region17: #{_lambda_.9} parent=1 // pred_fallthru
      _
    // Predicated region
    $region18: #{_lambda_.9} parent=1 // pred_check
      _
    $region19: #{_lambda_.9} parent=1 // pred_check_branch
      %20 = sbr.rel (0) target = $region21
    $region20: #{_lambda_.9} parent=1 // pred_region
      _
    $region21: #{_lambda_.9} parent=1 // pred_fallthru
      _
    %v21 = vld [vmem:[%s0] sm:$0xf]
    %v22 = vld [vmem:[%s1] sm:$0xff]
    %v23 = vld [vmem:[%s1 + $0x8] sm:$0xff]
    %v24 = vld [vmem:[%s1 + $0x10] sm:$0xff]
    %v25 = vld [vmem:[%s1 + $0x18] sm:$0xff]
    %v26 = vld [vmem:[%s1 + $0x20] sm:$0xff]
    %v27 = vld [vmem:[%s1 + $0x28] sm:$0xff]
    %v28 = vld [vmem:[%s1 + $0x30] sm:$0xff]
    %v29 = vld [vmem:[%s1 + $0x38] sm:$0xff]
    %v30 = vld [vmem:[%s1 + $0x40] sm:$0xff]
    %v31 = vld [vmem:[%s1 + $0x48] sm:$0xff]
    %v32 = vld [vmem:[%s1 + $0x50] sm:$0xff]
    %v33 = vld [vmem:[%s1 + $0x58] sm:$0xff]
    %v34 = vld [vmem:[%s1 + $0x60] sm:$0xff]
    %v35 = vld [vmem:[%s1 + $0x68] sm:$0xff]
    %v36 = vld [vmem:[%s1 + $0x70] sm:$0xff]
    %v37 = vld [vmem:[%s1 + $0x78] sm:$0xff]
    %v38 = vld [vmem:[%s1 + $0x80] sm:$0xff]
    %v39 = vld [vmem:[%s1 + $0x88] sm:$0xff]
    %v40 = vld [vmem:[%s1 + $0x90] sm:$0xff]
    %v41 = vld [vmem:[%s1 + $0x98] sm:$0xff]
    %v42 = vld [vmem:[%s1 + $0xa0] sm:$0xff]
    %v43 = vld [vmem:[%s1 + $0xa8] sm:$0xff]
    %v44 = vld [vmem:[%s1 + $0xb0] sm:$0xff]
    %v45 = vld [vmem:[%s1 + $0xb8] sm:$0xff]
    %v46 = vld [vmem:[%s1 + $0xc0] sm:$0xff]
    %v47 = vld [vmem:[%s1 + $0xc8] sm:$0xff]
    %v48 = vld [vmem:[%s1 + $0xd0] sm:$0xff]
    %v49 = vld [vmem:[%s1 + $0xd8] sm:$0xff]
    %v50 = vld [vmem:[%s1 + $0xe0] sm:$0xff]
    %v51 = vld [vmem:[%s1 + $0xe8] sm:$0xff]
    %v52 = vld [vmem:[%s1 + $0xf0] sm:$0xff]
    %v53 = vld [vmem:[%s1 + $0xf8] sm:$0xff]
    %v54 = vld [vmem:[%s2] sm:$0x1]
    %v56 = vlaneseq
    %v57 = vshrl.u32 %v56, 7
    %v58 = vsub.s32 0, %v57
    %v59 = vrot.slane %v54, %v58
    %v63 = vunpack.c.l.s4 1983009808
    %v64 = vunpack.c.0.s8 %v63
    %v65 = vlaneseq
    %v66 = vshrl.u32 %v65, 7
    %v67 = vsub.s32 %v64, %v66
    %v68 = vrot.slane %v21, %v67
    %v69 = vcombine.high %v68, %v68
    %72 = vmatprep.subr.mxu0 0.0
    %73 = vmatpush1.msra.mxu0 %v22
    %74 = vmatprep.subr.mxu0 0.0
    %75 = vmatpush1.msra.mxu0 %v23
    %76 = vmatprep.subr.mxu0 0.0
    %77 = vmatpush1.msra.mxu0 %v24
    %78 = vmatprep.subr.mxu0 0.0
    %79 = vmatpush1.msra.mxu0 %v25
    %80 = vmatprep.subr.mxu0 0.0
    %81 = vmatpush1.msra.mxu0 %v26
    %82 = vmatprep.subr.mxu0 0.0
    %83 = vmatpush1.msra.mxu0 %v27
    %84 = vmatprep.subr.mxu0 0.0
    %85 = vmatpush1.msra.mxu0 %v28
    %86 = vmatprep.subr.mxu0 0.0
    %87 = vmatpush1.msra.mxu0 %v29
    %88 = vmatprep.subr.mxu0 0.0
    %89 = vmatpush1.msra.mxu0 %v30
    %90 = vmatprep.subr.mxu0 0.0
    %91 = vmatpush1.msra.mxu0 %v31
    %92 = vmatprep.subr.mxu0 0.0
    %93 = vmatpush1.msra.mxu0 %v32
    %94 = vmatprep.subr.mxu0 0.0
    %95 = vmatpush1.msra.mxu0 %v33
    %96 = vmatprep.subr.mxu0 0.0
    %97 = vmatpush1.msra.mxu0 %v34
    %98 = vmatprep.subr.mxu0 0.0
    %99 = vmatpush1.msra.mxu0 %v35
    %100 = vmatprep.subr.mxu0 0.0
    %101 = vmatpush1.msra.mxu0 %v36
    %102 = vmatprep.subr.mxu0 0.0
    %103 = vmatpush1.msra.mxu0 %v37
    %104 = vmatprep.subr.mxu0 0.0
    %105 = vmatpush1.msra.mxu0 %v38
    %106 = vmatprep.subr.mxu0 0.0
    %107 = vmatpush1.msra.mxu0 %v39
    %108 = vmatprep.subr.mxu0 0.0
    %109 = vmatpush1.msra.mxu0 %v40
    %110 = vmatprep.subr.mxu0 0.0
    %111 = vmatpush1.msra.mxu0 %v41
    %112 = vmatprep.subr.mxu0 0.0
    %113 = vmatpush1.msra.mxu0 %v42
    %114 = vmatprep.subr.mxu0 0.0
    %115 = vmatpush1.msra.mxu0 %v43
    %116 = vmatprep.subr.mxu0 0.0
    %117 = vmatpush1.msra.mxu0 %v44
    %118 = vmatprep.subr.mxu0 0.0
    %119 = vmatpush1.msra.mxu0 %v45
    %120 = vmatprep.subr.mxu0 0.0
    %121 = vmatpush1.msra.mxu0 %v46
    %122 = vmatprep.subr.mxu0 0.0
    %123 = vmatpush1.msra.mxu0 %v47
    %124 = vmatprep.subr.mxu0 0.0
    %125 = vmatpush1.msra.mxu0 %v48
    %126 = vmatprep.subr.mxu0 0.0
    %127 = vmatpush1.msra.mxu0 %v49
    %128 = vmatprep.subr.mxu0 0.0
    %129 = vmatpush1.msra.mxu0 %v50
    %130 = vmatprep.subr.mxu0 0.0
    %131 = vmatpush1.msra.mxu0 %v51
    %132 = vmatprep.subr.mxu0 0.0
    %133 = vmatpush1.msra.mxu0 %v52
    %134 = vmatprep.subr.mxu0 0.0
    %135 = vmatpush1.msra.mxu0 %v53
    %136 = vmatprep.mubr.f32.mxu0 %v69
    %137 = vmatmul.mubr.f32.gmra.mrb[0].mxu0 %v68
    %v138 = vpop.f32.mrb[0].mxu0
    %v139 = vadd.f32 %v59, %v138
    %v140 = vpop.f32.mrb[0].mxu0
    %141 = vdwg.mxu0
    %v142 = vld [vmem:[%s3] sm:$0xff]
    %v143 = vld [vmem:[%s3 + $0x8] sm:$0xff]
    %v144 = vld [vmem:[%s3 + $0x10] sm:$0xff]
    %v145 = vld [vmem:[%s3 + $0x18] sm:$0xff]
    %v146 = vld [vmem:[%s3 + $0x20] sm:$0xff]
    %v147 = vld [vmem:[%s3 + $0x28] sm:$0xff]
    %v148 = vld [vmem:[%s3 + $0x30] sm:$0xff]
    %v149 = vld [vmem:[%s3 + $0x38] sm:$0xff]
    %v150 = vld [vmem:[%s3 + $0x40] sm:$0xff]
    %v151 = vld [vmem:[%s3 + $0x48] sm:$0xff]
    %v152 = vld [vmem:[%s3 + $0x50] sm:$0xff]
    %v153 = vld [vmem:[%s3 + $0x58] sm:$0xff]
    %v154 = vld [vmem:[%s3 + $0x60] sm:$0xf]
    %v155 = vld [vmem:[%s4] sm:$0x1]
    %v157 = vlaneseq
    %v158 = vshrl.u32 %v157, 7
    %v159 = vsub.s32 0, %v158
    %v160 = vrot.slane %v155, %v159
    %vm162 = vcmask 818176
    %v164 = vsel %vm162, %v139, 0
    %vm166 = vcmask 1043456
    %v168 = vsel %vm166, %v154, 0
    %170 = vmatprep.subr.mxu0 0.0
    %171 = vmatpush1.msra.mxu0 %v142
    %172 = vmatprep.subr.mxu0 0.0
    %173 = vmatpush1.msra.mxu0 %v143
    %174 = vmatprep.subr.mxu0 0.0
    %175 = vmatpush1.msra.mxu0 %v144
    %176 = vmatprep.subr.mxu0 0.0
    %177 = vmatpush1.msra.mxu0 %v145
    %178 = vmatprep.subr.mxu0 0.0
    %179 = vmatpush1.msra.mxu0 %v146
    %180 = vmatprep.subr.mxu0 0.0
    %181 = vmatpush1.msra.mxu0 %v147
    %182 = vmatprep.subr.mxu0 0.0
    %183 = vmatpush1.msra.mxu0 %v148
    %184 = vmatprep.subr.mxu0 0.0
    %185 = vmatpush1.msra.mxu0 %v149
    %186 = vmatprep.subr.mxu0 0.0
    %187 = vmatpush1.msra.mxu0 %v150
    %188 = vmatprep.subr.mxu0 0.0
    %189 = vmatpush1.msra.mxu0 %v151
    %190 = vmatprep.subr.mxu0 0.0
    %191 = vmatpush1.msra.mxu0 %v152
    %192 = vmatprep.subr.mxu0 0.0
    %193 = vmatpush1.msra.mxu0 %v153
    %194 = vmatprep.subr.mxu0 0.0
    %195 = vmatpush1.msra.mxu0 %v168
    %196 = vmatprep.subr.mxu0 0.0
    %197 = vmatpush1.msra.mxu0 0.0
    %198 = vmatprep.subr.mxu0 0.0
    %199 = vmatpush1.msra.mxu0 0.0
    %200 = vmatprep.subr.mxu0 0.0
    %201 = vmatpush1.msra.mxu0 0.0
    %202 = vmatprep.subr.mxu0 0.0
    %203 = vmatpush1.msra.mxu0 0.0
    %204 = vmatprep.subr.mxu0 0.0
    %205 = vmatpush1.msra.mxu0 0.0
    %206 = vmatprep.subr.mxu0 0.0
    %207 = vmatpush1.msra.mxu0 0.0
    %208 = vmatprep.subr.mxu0 0.0
    %209 = vmatpush1.msra.mxu0 0.0
    %210 = vmatprep.subr.mxu0 0.0
    %211 = vmatpush1.msra.mxu0 0.0
    %212 = vmatprep.subr.mxu0 0.0
    %213 = vmatpush1.msra.mxu0 0.0
    %214 = vmatprep.subr.mxu0 0.0
    %215 = vmatpush1.msra.mxu0 0.0
    %216 = vmatprep.subr.mxu0 0.0
    %217 = vmatpush1.msra.mxu0 0.0
    %218 = vmatprep.subr.mxu0 0.0
    %219 = vmatpush1.msra.mxu0 0.0
    %220 = vmatprep.subr.mxu0 0.0
    %221 = vmatpush1.msra.mxu0 0.0
    %222 = vmatprep.subr.mxu0 0.0
    %223 = vmatpush1.msra.mxu0 0.0
    %224 = vmatprep.subr.mxu0 0.0
    %225 = vmatpush1.msra.mxu0 0.0
    %226 = vmatprep.subr.mxu0 0.0
    %227 = vmatpush1.msra.mxu0 0.0
    %228 = vmatprep.subr.mxu0 0.0
    %229 = vmatpush1.msra.mxu0 0.0
    %230 = vmatprep.subr.mxu0 0.0
    %231 = vmatpush1.msra.mxu0 0.0
    %232 = vmatprep.subr.mxu0 0.0
    %233 = vmatpush1.msra.mxu0 0.0
    %234 = vmatprep.mubr.f32.mxu0 0.0
    %235 = vmatmul.mubr.f32.gmra.mrb[0].mxu0 %v164
    %v236 = vpop.f32.mrb[0].mxu0
    %v237 = vadd.f32 %v160, %v236
    %v238 = vpop.f32.mrb[0].mxu0
    %239 = vdwg.mxu0
    %vm240 = vcmask 74752
    %241 = vst.msk [vmem:[#allocation2] sm:$0x3] %vm240, %v237
    // Predicated region
    $region22: #{_lambda_.9} parent=1 // pred_check
      _
    $region23: #{_lambda_.9} parent=1 // pred_check_branch
      %243 = sbr.rel (0) target = $region25
    $region24: #{_lambda_.9} parent=1 // pred_region
      %s245 = ssub.s32 32, 32
      %246 = vsyncadd [#allocation3], %s245
      %s248 = sshll.u32 [#allocation2], 4
      %s249 = int_to_ptr.vmem [resolvable:$true] %s248
      %251 = dma.vmem_to_hbm [thread:$0]  %s249, 32, %s5, [#allocation3]
    $region25: #{_lambda_.9} parent=1 // pred_fallthru
      _
    // Predicated region
    $region26: #{_lambda_.9} parent=1 // pred_check
      _
    $region27: #{_lambda_.9} parent=1 // pred_check_branch
      %253 = sbr.rel (0) target = $region29
    $region28: #{_lambda_.9} parent=1 // pred_region
      %254 = dma.done [#allocation3], 32
    $region29: #{_lambda_.9} parent=1 // pred_fallthru
      _
    %255 = vsyncpa [#allocation3], 1

</llo_original>
